<compile_context>
chip_gen: v7x
topology: tpu7x:2x2x1
jax: 0.10.0
libtpu: 0.0.40
codegen_flags: <defaults>
</compile_context>

<pallas_src>
import functools

import jax
import jax.numpy as jnp
import numpy as np
from jax.experimental import pallas as pl
from jax.experimental.pallas import tpu as pltpu

K = 5      # conv kernel size
PAD = 2    # "same" padding for k=5, stride=1
LANE = 128


def _round8(n):
    return ((n + 7) // 8) * 8


# -----------------------------------------------------------------------------
# Fused Pallas kernel: the entire 4-block residual ConvNet forward.
# -----------------------------------------------------------------------------
def _convnet_kernel(x_ref, mask_ref, wa_ref, ba_ref, wb_ref, bb_ref,
                    out_ref, pat_ref, *, W, dim):
    """Activations live as (C_pad, Npad): flattened zero-padded image
    (Hp*Wp rounded up to a multiple of 128) on the lane axis, channels padded
    to a multiple of 8 on the sublane axis.  Each 5x5 conv is ONE MXU matmul
    (Cout_pad, 25*Cin_pad) @ (25*Cin_pad, Npad); the im2col slab is built from
    25 static pltpu.roll's of the activation (no staging buffer, no unaligned
    loads, all stores 8-sublane / 128-lane aligned)."""
    Wp = W + 2 * PAD
    Npad = out_ref.shape[1]
    rdim = _round8(dim)
    rhalf = _round8(dim // 2)
    mask = mask_ref[...]             # (1, Npad): 1.0 on real pixels, else 0.0

    def conv5x5(act, wmat, bias, cin_pad):
        # act:  (cin_pad, Npad), zero on halo / lane-pad / pad-channel slots.
        # wmat: (cout_pad, K*K*cin_pad), packed as [co, (i*K+j)*cin_pad + ci].
        # bias: (cout_pad, 1), zero on pad rows.
        # Build the im2col slab: each tap is one XLU roll + one aligned store.
        # Roll wrap-around only ever hits halo / lane-pad output positions,
        # which the mask below zeroes, so it cannot pollute real pixels.
        for i in range(K):
            for j in range(K):
                t = i * K + j
                delta = (i - PAD) * Wp + (j - PAD)
                win = act if delta == 0 else pltpu.roll(
                    act, shift=(-delta) % Npad, axis=1)
                pat_ref[t * cin_pad:(t + 1) * cin_pad, :] = win
        patches = pat_ref[:K * K * cin_pad, :]             # (K*K*cin_pad, Npad)
        y = jnp.dot(wmat, patches, preferred_element_type=jnp.float32)
        # bias + ReLU, then zero halo / lane-pad / wrapped columns so the next
        # layer (and the residual stream) keeps a clean zero padding.
        return jnp.maximum(y + bias, 0.0) * mask

    act = x_ref[...]                                        # (rdim, Npad)
    # TODO(synk): at real channel counts move this to lax.fori_loop with
    # dynamic wa_ref[blk]/wb_ref[blk] indexing to bound vreg live ranges.
    for blk in range(4):
        mid = conv5x5(act, wa_ref[blk], ba_ref[blk], rdim)      # (rhalf, Npad)
        act = conv5x5(mid, wb_ref[blk], bb_ref[blk], rhalf) + act   # residual
    out_ref[...] = act


# -----------------------------------------------------------------------------
# Host-side wrappers
# -----------------------------------------------------------------------------
def pack_params(params, dim):
    """torch-layout params -> stacked, channel-padded kernel-layout weights
    (done ONCE).  Column layout matches the slab: col = (i*K + j)*cin_pad + ci,
    padded channels are zero so the MXU result is unchanged."""
    half = dim // 2
    rdim, rhalf = _round8(dim), _round8(half)

    def pack_w(w, cout_pad, cin_pad):
        cout, cin = w.shape[0], w.shape[1]
        # (Cout, Cin, kh, kw) -> (Cout, kh, kw, Cin) -> (Cout, kh*kw, Cin)
        wt = jnp.transpose(w, (0, 2, 3, 1)).reshape(cout, K * K, cin)
        wt = jnp.pad(wt, ((0, cout_pad - cout), (0, 0), (0, cin_pad - cin)))
        return wt.reshape(cout_pad, K * K * cin_pad)

    def pack_b(b, cout_pad):
        return jnp.pad(b, (0, cout_pad - b.shape[0])).reshape(cout_pad, 1)

    wa, ba, wb, bb = [], [], [], []
    for blk in range(4):
        (w1, b1), (w2, b2) = params[2 * blk], params[2 * blk + 1]
        wa.append(pack_w(w1, rhalf, rdim))
        ba.append(pack_b(b1, rhalf))
        wb.append(pack_w(w2, rdim, rhalf))
        bb.append(pack_b(b2, rdim))
    return jnp.stack(wa), jnp.stack(ba), jnp.stack(wb), jnp.stack(bb)


def convnet_forward(x, packed):
    """Pallas forward.  x: (H, W, dim) f32 -> (H, W, dim) f32."""
    H, W, dim = x.shape
    half = dim // 2
    rdim, rhalf = _round8(dim), _round8(half)
    Hp, Wp = H + 2 * PAD, W + 2 * PAD
    Np = Hp * Wp
    Npad = ((Np + LANE - 1) // LANE) * LANE       # lane-dense spatial axis
    wa, ba, wb, bb = packed

    # One-time layout change: HWC -> CHW, pad channels to 8 sublanes, pad the
    # image once, flatten, pad lanes to a multiple of 128.
    x_chw = jnp.transpose(x, (2, 0, 1))
    x_pad = jnp.pad(x_chw, ((0, rdim - dim), (PAD, PAD), (PAD, PAD)))
    x_flat = jnp.pad(x_pad.reshape(rdim, Np), ((0, 0), (0, Npad - Np)))

    # Static interior mask (1.0 on real pixels), built at trace time in numpy.
    hh, ww = np.meshgrid(np.arange(Hp), np.arange(Wp), indexing="ij")
    interior = ((hh >= PAD) & (hh < PAD + H) & (ww >= PAD) & (ww < PAD + W))
    mask_np = np.zeros((1, Npad), np.float32)
    mask_np[0, :Np] = interior.reshape(-1).astype(np.float32)
    mask = jnp.asarray(mask_np)

    # 8 convs, 1 matmul each (padded shapes).
    flops = int(4 * 2 * Npad * (rhalf * K * K * rdim + rdim * K * K * rhalf))
    bytes_accessed = 4 * int(x_flat.size + mask.size + wa.size + ba.size +
                             wb.size + bb.size + rdim * Npad)

    kernel = functools.partial(_convnet_kernel, W=W, dim=dim)
    out_flat = pl.pallas_call(
        kernel,
        out_shape=jax.ShapeDtypeStruct((rdim, Npad), jnp.float32),
        in_specs=[pl.BlockSpec(memory_space=pltpu.MemorySpace.VMEM)] * 6,
        out_specs=pl.BlockSpec(memory_space=pltpu.MemorySpace.VMEM),
        scratch_shapes=[
            pltpu.VMEM((K * K * rdim, Npad), jnp.float32),   # im2col slab
        ],
        compiler_params=pltpu.CompilerParams(
            vmem_limit_bytes=32 * 1024 * 1024),
        cost_estimate=pl.CostEstimate(flops=flops, transcendentals=0,
                                      bytes_accessed=bytes_accessed),
    )(x_flat, mask, wa, ba, wb, bb)

    # Back to (H, W, dim): drop channel/lane padding, unflatten, crop halo.
    out = out_flat[:dim, :Np].reshape(dim, Hp, Wp)[:, PAD:PAD + H, PAD:PAD + W]
    return jnp.transpose(out, (1, 2, 0))


# -----------------------------------------------------------------------------
# Parameters (deterministic, PyTorch Conv2d shapes: (Cout, Cin, 5, 5))
# -----------------------------------------------------------------------------
def init_params(key, dim):
    params = []
    for _ in range(4):                                   # 4 residual blocks
        for (cin, cout) in ((dim, dim // 2), (dim // 2, dim)):
            key, kw, kb = jax.random.split(key, 3)
            fan_in = cin * K * K
            bound = 1.0 / np.sqrt(fan_in)
            w = jax.random.uniform(kw, (cout, cin, K, K), jnp.float32,
                                   -bound, bound)
            b = jax.random.uniform(kb, (cout,), jnp.float32, -bound, bound)
            params.append((w, b))
    return params


# -----------------------------------------------------------------------------
# Pure-JAX reference mirroring the PyTorch forward exactly (NCHW).
# -----------------------------------------------------------------------------
def convnet_reference(x, params):
    h = jnp.transpose(x, (2, 0, 1))[None]                 # (1, dim, H, W)
    dn = ('NCHW', 'OIHW', 'NCHW')
    for blk in range(4):
        (w1, b1), (w2, b2) = params[2 * blk], params[2 * blk + 1]
        y = jax.lax.conv_general_dilated(h, w1, (1, 1), 'SAME',
                                         dimension_numbers=dn)
        y = jnp.maximum(y + b1[None, :, None, None], 0.0)
        y = jax.lax.conv_general_dilated(y, w2, (1, 1), 'SAME',
                                         dimension_numbers=dn)
        y = jnp.maximum(y + b2[None, :, None, None], 0.0)
        h = y + h
    return jnp.transpose(h[0], (1, 2, 0))                 # (H, W, dim)


# -----------------------------------------------------------------------------
if __name__ == "__main__":
    dim, H, W = 4, 16, 16
    key = jax.random.PRNGKey(0)
    key, kx = jax.random.split(key)
    x = jax.random.normal(kx, (H, W, dim), jnp.float32)   # module input (H, W, dim)
    params = init_params(key, dim)
    packed = pack_params(params, dim)                     # pre-packed once

    fwd = jax.jit(convnet_forward)
    out = jax.block_until_ready(fwd(x, packed))

    ref = convnet_reference(x, params)
    np.testing.assert_allclose(np.asarray(out), np.asarray(ref),
                               rtol=2e-4, atol=2e-4)
    print("KERNEL_OK")
</pallas_src>

<mosaic_0001>
module attributes {stable_mosaic.version = 11 : i64} {
  func.func @_convnet_kernel(%arg0: memref<8x512xf32, #tpu.memory_space<vmem>>, %arg1: memref<1x512xf32, #tpu.memory_space<vmem>>, %arg2: memref<4x8x200xf32, #tpu.memory_space<vmem>>, %arg3: memref<4x8x1xf32, #tpu.memory_space<vmem>>, %arg4: memref<4x8x200xf32, #tpu.memory_space<vmem>>, %arg5: memref<4x8x1xf32, #tpu.memory_space<vmem>>, %arg6: memref<8x512xf32, #tpu.memory_space<vmem>>, %arg7: memref<200x512xf32, #tpu.memory_space<vmem>>) attributes {dimension_semantics = [], scalar_prefetch = 0 : i64, scratch_operands = 1 : i64, tpu.core_type = #tpu.core_type<tc>} {
    %c0 = arith.constant 0 : index
    %c0_0 = arith.constant 0 : index
    %0 = vector.load %arg1[%c0, %c0_0] : memref<1x512xf32, #tpu.memory_space<vmem>>, vector<1x512xf32>
    %c0_1 = arith.constant 0 : index
    %c0_2 = arith.constant 0 : index
    %1 = vector.load %arg0[%c0_1, %c0_2] : memref<8x512xf32, #tpu.memory_space<vmem>>, vector<8x512xf32>
    %c0_3 = arith.constant 0 : index
    %c0_4 = arith.constant 0 : index
    %c0_5 = arith.constant 0 : index
    %2 = vector.load %arg2[%c0_3, %c0_4, %c0_5] : memref<4x8x200xf32, #tpu.memory_space<vmem>>, vector<1x8x200xf32>
    %3 = vector.shape_cast %2 : vector<1x8x200xf32> to vector<8x200xf32>
    %c0_6 = arith.constant 0 : index
    %c0_7 = arith.constant 0 : index
    %c0_8 = arith.constant 0 : index
    %4 = vector.load %arg3[%c0_6, %c0_7, %c0_8] : memref<4x8x1xf32, #tpu.memory_space<vmem>>, vector<1x8x1xf32>
    %5 = vector.shape_cast %4 : vector<1x8x1xf32> to vector<8x1xf32>
    %c42_i32 = arith.constant 42 : i32
    %6 = tpu.dynamic_rotate %1 by %c42_i32 dim 1 : vector<8x512xf32>, i32 -> vector<8x512xf32>
    %c0_9 = arith.constant 0 : index
    %c0_10 = arith.constant 0 : index
    %7 = vector.load %arg7[%c0_9, %c0_10] : memref<200x512xf32, #tpu.memory_space<vmem>>, vector<8x512xf32>
    tpu.vector_store %arg7[%c0_9, %c0_10], %6 {strides = array<i32>} : memref<200x512xf32, #tpu.memory_space<vmem>>, vector<8x512xf32>,
    %c41_i32 = arith.constant 41 : i32
    %8 = tpu.dynamic_rotate %1 by %c41_i32 dim 1 : vector<8x512xf32>, i32 -> vector<8x512xf32>
    %c8 = arith.constant 8 : index
    %c0_11 = arith.constant 0 : index
    %9 = vector.load %arg7[%c8, %c0_11] : memref<200x512xf32, #tpu.memory_space<vmem>>, vector<8x512xf32>
    tpu.vector_store %arg7[%c8, %c0_11], %8 {strides = array<i32>} : memref<200x512xf32, #tpu.memory_space<vmem>>, vector<8x512xf32>,
    %c40_i32 = arith.constant 40 : i32
    %10 = tpu.dynamic_rotate %1 by %c40_i32 dim 1 : vector<8x512xf32>, i32 -> vector<8x512xf32>
    %c16 = arith.constant 16 : index
    %c0_12 = arith.constant 0 : index
    %11 = vector.load %arg7[%c16, %c0_12] : memref<200x512xf32, #tpu.memory_space<vmem>>, vector<8x512xf32>
    tpu.vector_store %arg7[%c16, %c0_12], %10 {strides = array<i32>} : memref<200x512xf32, #tpu.memory_space<vmem>>, vector<8x512xf32>,
    %c39_i32 = arith.constant 39 : i32
    %12 = tpu.dynamic_rotate %1 by %c39_i32 dim 1 : vector<8x512xf32>, i32 -> vector<8x512xf32>
    %c24 = arith.constant 24 : index
    %c0_13 = arith.constant 0 : index
    %13 = vector.load %arg7[%c24, %c0_13] : memref<200x512xf32, #tpu.memory_space<vmem>>, vector<8x512xf32>
    tpu.vector_store %arg7[%c24, %c0_13], %12 {strides = array<i32>} : memref<200x512xf32, #tpu.memory_space<vmem>>, vector<8x512xf32>,
    %c38_i32 = arith.constant 38 : i32
    %14 = tpu.dynamic_rotate %1 by %c38_i32 dim 1 : vector<8x512xf32>, i32 -> vector<8x512xf32>
    %c32 = arith.constant 32 : index
    %c0_14 = arith.constant 0 : index
    %15 = vector.load %arg7[%c32, %c0_14] : memref<200x512xf32, #tpu.memory_space<vmem>>, vector<8x512xf32>
    tpu.vector_store %arg7[%c32, %c0_14], %14 {strides = array<i32>} : memref<200x512xf32, #tpu.memory_space<vmem>>, vector<8x512xf32>,
    %c22_i32 = arith.constant 22 : i32
    %16 = tpu.dynamic_rotate %1 by %c22_i32 dim 1 : vector<8x512xf32>, i32 -> vector<8x512xf32>
    %c40 = arith.constant 40 : index
    %c0_15 = arith.constant 0 : index
    %17 = vector.load %arg7[%c40, %c0_15] : memref<200x512xf32, #tpu.memory_space<vmem>>, vector<8x512xf32>
    tpu.vector_store %arg7[%c40, %c0_15], %16 {strides = array<i32>} : memref<200x512xf32, #tpu.memory_space<vmem>>, vector<8x512xf32>,
    %c21_i32 = arith.constant 21 : i32
    %18 = tpu.dynamic_rotate %1 by %c21_i32 dim 1 : vector<8x512xf32>, i32 -> vector<8x512xf32>
    %c48 = arith.constant 48 : index
    %c0_16 = arith.constant 0 : index
    %19 = vector.load %arg7[%c48, %c0_16] : memref<200x512xf32, #tpu.memory_space<vmem>>, vector<8x512xf32>
    tpu.vector_store %arg7[%c48, %c0_16], %18 {strides = array<i32>} : memref<200x512xf32, #tpu.memory_space<vmem>>, vector<8x512xf32>,
    %c20_i32 = arith.constant 20 : i32
    %20 = tpu.dynamic_rotate %1 by %c20_i32 dim 1 : vector<8x512xf32>, i32 -> vector<8x512xf32>
    %c56 = arith.constant 56 : index
    %c0_17 = arith.constant 0 : index
    %21 = vector.load %arg7[%c56, %c0_17] : memref<200x512xf32, #tpu.memory_space<vmem>>, vector<8x512xf32>
    tpu.vector_store %arg7[%c56, %c0_17], %20 {strides = array<i32>} : memref<200x512xf32, #tpu.memory_space<vmem>>, vector<8x512xf32>,
    %c19_i32 = arith.constant 19 : i32
    %22 = tpu.dynamic_rotate %1 by %c19_i32 dim 1 : vector<8x512xf32>, i32 -> vector<8x512xf32>
    %c64 = arith.constant 64 : index
    %c0_18 = arith.constant 0 : index
    %23 = vector.load %arg7[%c64, %c0_18] : memref<200x512xf32, #tpu.memory_space<vmem>>, vector<8x512xf32>
    tpu.vector_store %arg7[%c64, %c0_18], %22 {strides = array<i32>} : memref<200x512xf32, #tpu.memory_space<vmem>>, vector<8x512xf32>,
    %c18_i32 = arith.constant 18 : i32
    %24 = tpu.dynamic_rotate %1 by %c18_i32 dim 1 : vector<8x512xf32>, i32 -> vector<8x512xf32>
    %c72 = arith.constant 72 : index
    %c0_19 = arith.constant 0 : index
    %25 = vector.load %arg7[%c72, %c0_19] : memref<200x512xf32, #tpu.memory_space<vmem>>, vector<8x512xf32>
    tpu.vector_store %arg7[%c72, %c0_19], %24 {strides = array<i32>} : memref<200x512xf32, #tpu.memory_space<vmem>>, vector<8x512xf32>,
    %c2_i32 = arith.constant 2 : i32
    %26 = tpu.dynamic_rotate %1 by %c2_i32 dim 1 : vector<8x512xf32>, i32 -> vector<8x512xf32>
    %c80 = arith.constant 80 : index
    %c0_20 = arith.constant 0 : index
    %27 = vector.load %arg7[%c80, %c0_20] : memref<200x512xf32, #tpu.memory_space<vmem>>, vector<8x512xf32>
    tpu.vector_store %arg7[%c80, %c0_20], %26 {strides = array<i32>} : memref<200x512xf32, #tpu.memory_space<vmem>>, vector<8x512xf32>,
    %c1_i32 = arith.constant 1 : i32
    %28 = tpu.dynamic_rotate %1 by %c1_i32 dim 1 : vector<8x512xf32>, i32 -> vector<8x512xf32>
    %c88 = arith.constant 88 : index
    %c0_21 = arith.constant 0 : index
    %29 = vector.load %arg7[%c88, %c0_21] : memref<200x512xf32, #tpu.memory_space<vmem>>, vector<8x512xf32>
    tpu.vector_store %arg7[%c88, %c0_21], %28 {strides = array<i32>} : memref<200x512xf32, #tpu.memory_space<vmem>>, vector<8x512xf32>,
    %c96 = arith.constant 96 : index
    %c0_22 = arith.constant 0 : index
    %30 = vector.load %arg7[%c96, %c0_22] : memref<200x512xf32, #tpu.memory_space<vmem>>, vector<8x512xf32>
    tpu.vector_store %arg7[%c96, %c0_22], %1 {strides = array<i32>} : memref<200x512xf32, #tpu.memory_space<vmem>>, vector<8x512xf32>,
    %c511_i32 = arith.constant 511 : i32
    %31 = tpu.dynamic_rotate %1 by %c511_i32 dim 1 : vector<8x512xf32>, i32 -> vector<8x512xf32>
    %c104 = arith.constant 104 : index
    %c0_23 = arith.constant 0 : index
    %32 = vector.load %arg7[%c104, %c0_23] : memref<200x512xf32, #tpu.memory_space<vmem>>, vector<8x512xf32>
    tpu.vector_store %arg7[%c104, %c0_23], %31 {strides = array<i32>} : memref<200x512xf32, #tpu.memory_space<vmem>>, vector<8x512xf32>,
    %c510_i32 = arith.constant 510 : i32
    %33 = tpu.dynamic_rotate %1 by %c510_i32 dim 1 : vector<8x512xf32>, i32 -> vector<8x512xf32>
    %c112 = arith.constant 112 : index
    %c0_24 = arith.constant 0 : index
    %34 = vector.load %arg7[%c112, %c0_24] : memref<200x512xf32, #tpu.memory_space<vmem>>, vector<8x512xf32>
    tpu.vector_store %arg7[%c112, %c0_24], %33 {strides = array<i32>} : memref<200x512xf32, #tpu.memory_space<vmem>>, vector<8x512xf32>,
    %c494_i32 = arith.constant 494 : i32
    %35 = tpu.dynamic_rotate %1 by %c494_i32 dim 1 : vector<8x512xf32>, i32 -> vector<8x512xf32>
    %c120 = arith.constant 120 : index
    %c0_25 = arith.constant 0 : index
    %36 = vector.load %arg7[%c120, %c0_25] : memref<200x512xf32, #tpu.memory_space<vmem>>, vector<8x512xf32>
    tpu.vector_store %arg7[%c120, %c0_25], %35 {strides = array<i32>} : memref<200x512xf32, #tpu.memory_space<vmem>>, vector<8x512xf32>,
    %c493_i32 = arith.constant 493 : i32
    %37 = tpu.dynamic_rotate %1 by %c493_i32 dim 1 : vector<8x512xf32>, i32 -> vector<8x512xf32>
    %c128 = arith.constant 128 : index
    %c0_26 = arith.constant 0 : index
    %38 = vector.load %arg7[%c128, %c0_26] : memref<200x512xf32, #tpu.memory_space<vmem>>, vector<8x512xf32>
    tpu.vector_store %arg7[%c128, %c0_26], %37 {strides = array<i32>} : memref<200x512xf32, #tpu.memory_space<vmem>>, vector<8x512xf32>,
    %c492_i32 = arith.constant 492 : i32
    %39 = tpu.dynamic_rotate %1 by %c492_i32 dim 1 : vector<8x512xf32>, i32 -> vector<8x512xf32>
    %c136 = arith.constant 136 : index
    %c0_27 = arith.constant 0 : index
    %40 = vector.load %arg7[%c136, %c0_27] : memref<200x512xf32, #tpu.memory_space<vmem>>, vector<8x512xf32>
    tpu.vector_store %arg7[%c136, %c0_27], %39 {strides = array<i32>} : memref<200x512xf32, #tpu.memory_space<vmem>>, vector<8x512xf32>,
    %c491_i32 = arith.constant 491 : i32
    %41 = tpu.dynamic_rotate %1 by %c491_i32 dim 1 : vector<8x512xf32>, i32 -> vector<8x512xf32>
    %c144 = arith.constant 144 : index
    %c0_28 = arith.constant 0 : index
    %42 = vector.load %arg7[%c144, %c0_28] : memref<200x512xf32, #tpu.memory_space<vmem>>, vector<8x512xf32>
    tpu.vector_store %arg7[%c144, %c0_28], %41 {strides = array<i32>} : memref<200x512xf32, #tpu.memory_space<vmem>>, vector<8x512xf32>,
    %c490_i32 = arith.constant 490 : i32
    %43 = tpu.dynamic_rotate %1 by %c490_i32 dim 1 : vector<8x512xf32>, i32 -> vector<8x512xf32>
    %c152 = arith.constant 152 : index
    %c0_29 = arith.constant 0 : index
    %44 = vector.load %arg7[%c152, %c0_29] : memref<200x512xf32, #tpu.memory_space<vmem>>, vector<8x512xf32>
    tpu.vector_store %arg7[%c152, %c0_29], %43 {strides = array<i32>} : memref<200x512xf32, #tpu.memory_space<vmem>>, vector<8x512xf32>,
    %c474_i32 = arith.constant 474 : i32
    %45 = tpu.dynamic_rotate %1 by %c474_i32 dim 1 : vector<8x512xf32>, i32 -> vector<8x512xf32>
    %c160 = arith.constant 160 : index
    %c0_30 = arith.constant 0 : index
    %46 = vector.load %arg7[%c160, %c0_30] : memref<200x512xf32, #tpu.memory_space<vmem>>, vector<8x512xf32>
    tpu.vector_store %arg7[%c160, %c0_30], %45 {strides = array<i32>} : memref<200x512xf32, #tpu.memory_space<vmem>>, vector<8x512xf32>,
    %c473_i32 = arith.constant 473 : i32
    %47 = tpu.dynamic_rotate %1 by %c473_i32 dim 1 : vector<8x512xf32>, i32 -> vector<8x512xf32>
    %c168 = arith.constant 168 : index
    %c0_31 = arith.constant 0 : index
    %48 = vector.load %arg7[%c168, %c0_31] : memref<200x512xf32, #tpu.memory_space<vmem>>, vector<8x512xf32>
    tpu.vector_store %arg7[%c168, %c0_31], %47 {strides = array<i32>} : memref<200x512xf32, #tpu.memory_space<vmem>>, vector<8x512xf32>,
    %c472_i32 = arith.constant 472 : i32
    %49 = tpu.dynamic_rotate %1 by %c472_i32 dim 1 : vector<8x512xf32>, i32 -> vector<8x512xf32>
    %c176 = arith.constant 176 : index
    %c0_32 = arith.constant 0 : index
    %50 = vector.load %arg7[%c176, %c0_32] : memref<200x512xf32, #tpu.memory_space<vmem>>, vector<8x512xf32>
    tpu.vector_store %arg7[%c176, %c0_32], %49 {strides = array<i32>} : memref<200x512xf32, #tpu.memory_space<vmem>>, vector<8x512xf32>,
    %c471_i32 = arith.constant 471 : i32
    %51 = tpu.dynamic_rotate %1 by %c471_i32 dim 1 : vector<8x512xf32>, i32 -> vector<8x512xf32>
    %c184 = arith.constant 184 : index
    %c0_33 = arith.constant 0 : index
    %52 = vector.load %arg7[%c184, %c0_33] : memref<200x512xf32, #tpu.memory_space<vmem>>, vector<8x512xf32>
    tpu.vector_store %arg7[%c184, %c0_33], %51 {strides = array<i32>} : memref<200x512xf32, #tpu.memory_space<vmem>>, vector<8x512xf32>,
    %c470_i32 = arith.constant 470 : i32
    %53 = tpu.dynamic_rotate %1 by %c470_i32 dim 1 : vector<8x512xf32>, i32 -> vector<8x512xf32>
    %c192 = arith.constant 192 : index
    %c0_34 = arith.constant 0 : index
    %54 = vector.load %arg7[%c192, %c0_34] : memref<200x512xf32, #tpu.memory_space<vmem>>, vector<8x512xf32>
    tpu.vector_store %arg7[%c192, %c0_34], %53 {strides = array<i32>} : memref<200x512xf32, #tpu.memory_space<vmem>>, vector<8x512xf32>,
    %c0_35 = arith.constant 0 : index
    %c0_36 = arith.constant 0 : index
    %55 = vector.load %arg7[%c0_35, %c0_36] : memref<200x512xf32, #tpu.memory_space<vmem>>, vector<200x512xf32>
    %cst = arith.constant dense<0.000000e+00> : vector<8x512xf32>
    %56 = tpu.matmul %3, %55, %cst {dimension_numbers = #tpu.dot_dimension_numbers<[1], [0], [0], [1], [0, 0, 1, 1], [], []>} : vector<8x200xf32>, vector<200x512xf32>, vector<8x512xf32> -> vector<8x512xf32>
    %57 = vector.broadcast %5 : vector<8x1xf32> to vector<8x512xf32>
    %58 = arith.addf %56, %57 : vector<8x512xf32>
    %cst_37 = arith.constant 0.000000e+00 : f32
    %59 = vector.broadcast %cst_37 : f32 to vector<8x512xf32>
    %60 = arith.maximumf %58, %59 : vector<8x512xf32>
    %61 = vector.broadcast %0 : vector<1x512xf32> to vector<8x512xf32>
    %62 = arith.mulf %60, %61 : vector<8x512xf32>
    %c0_38 = arith.constant 0 : index
    %c0_39 = arith.constant 0 : index
    %c0_40 = arith.constant 0 : index
    %63 = vector.load %arg4[%c0_38, %c0_39, %c0_40] : memref<4x8x200xf32, #tpu.memory_space<vmem>>, vector<1x8x200xf32>
    %64 = vector.shape_cast %63 : vector<1x8x200xf32> to vector<8x200xf32>
    %c0_41 = arith.constant 0 : index
    %c0_42 = arith.constant 0 : index
    %c0_43 = arith.constant 0 : index
    %65 = vector.load %arg5[%c0_41, %c0_42, %c0_43] : memref<4x8x1xf32, #tpu.memory_space<vmem>>, vector<1x8x1xf32>
    %66 = vector.shape_cast %65 : vector<1x8x1xf32> to vector<8x1xf32>
    %c42_i32_44 = arith.constant 42 : i32
    %67 = tpu.dynamic_rotate %62 by %c42_i32_44 dim 1 : vector<8x512xf32>, i32 -> vector<8x512xf32>
    %c0_45 = arith.constant 0 : index
    %c0_46 = arith.constant 0 : index
    %68 = vector.load %arg7[%c0_45, %c0_46] : memref<200x512xf32, #tpu.memory_space<vmem>>, vector<8x512xf32>
    tpu.vector_store %arg7[%c0_45, %c0_46], %67 {strides = array<i32>} : memref<200x512xf32, #tpu.memory_space<vmem>>, vector<8x512xf32>,
    %c41_i32_47 = arith.constant 41 : i32
    %69 = tpu.dynamic_rotate %62 by %c41_i32_47 dim 1 : vector<8x512xf32>, i32 -> vector<8x512xf32>
    %c8_48 = arith.constant 8 : index
    %c0_49 = arith.constant 0 : index
    %70 = vector.load %arg7[%c8_48, %c0_49] : memref<200x512xf32, #tpu.memory_space<vmem>>, vector<8x512xf32>
    tpu.vector_store %arg7[%c8_48, %c0_49], %69 {strides = array<i32>} : memref<200x512xf32, #tpu.memory_space<vmem>>, vector<8x512xf32>,
    %c40_i32_50 = arith.constant 40 : i32
    %71 = tpu.dynamic_rotate %62 by %c40_i32_50 dim 1 : vector<8x512xf32>, i32 -> vector<8x512xf32>
    %c16_51 = arith.constant 16 : index
    %c0_52 = arith.constant 0 : index
    %72 = vector.load %arg7[%c16_51, %c0_52] : memref<200x512xf32, #tpu.memory_space<vmem>>, vector<8x512xf32>
    tpu.vector_store %arg7[%c16_51, %c0_52], %71 {strides = array<i32>} : memref<200x512xf32, #tpu.memory_space<vmem>>, vector<8x512xf32>,
    %c39_i32_53 = arith.constant 39 : i32
    %73 = tpu.dynamic_rotate %62 by %c39_i32_53 dim 1 : vector<8x512xf32>, i32 -> vector<8x512xf32>
    %c24_54 = arith.constant 24 : index
    %c0_55 = arith.constant 0 : index
    %74 = vector.load %arg7[%c24_54, %c0_55] : memref<200x512xf32, #tpu.memory_space<vmem>>, vector<8x512xf32>
    tpu.vector_store %arg7[%c24_54, %c0_55], %73 {strides = array<i32>} : memref<200x512xf32, #tpu.memory_space<vmem>>, vector<8x512xf32>,
    %c38_i32_56 = arith.constant 38 : i32
    %75 = tpu.dynamic_rotate %62 by %c38_i32_56 dim 1 : vector<8x512xf32>, i32 -> vector<8x512xf32>
    %c32_57 = arith.constant 32 : index
    %c0_58 = arith.constant 0 : index
    %76 = vector.load %arg7[%c32_57, %c0_58] : memref<200x512xf32, #tpu.memory_space<vmem>>, vector<8x512xf32>
    tpu.vector_store %arg7[%c32_57, %c0_58], %75 {strides = array<i32>} : memref<200x512xf32, #tpu.memory_space<vmem>>, vector<8x512xf32>,
    %c22_i32_59 = arith.constant 22 : i32
    %77 = tpu.dynamic_rotate %62 by %c22_i32_59 dim 1 : vector<8x512xf32>, i32 -> vector<8x512xf32>
    %c40_60 = arith.constant 40 : index
    %c0_61 = arith.constant 0 : index
    %78 = vector.load %arg7[%c40_60, %c0_61] : memref<200x512xf32, #tpu.memory_space<vmem>>, vector<8x512xf32>
    tpu.vector_store %arg7[%c40_60, %c0_61], %77 {strides = array<i32>} : memref<200x512xf32, #tpu.memory_space<vmem>>, vector<8x512xf32>,
    %c21_i32_62 = arith.constant 21 : i32
    %79 = tpu.dynamic_rotate %62 by %c21_i32_62 dim 1 : vector<8x512xf32>, i32 -> vector<8x512xf32>
    %c48_63 = arith.constant 48 : index
    %c0_64 = arith.constant 0 : index
    %80 = vector.load %arg7[%c48_63, %c0_64] : memref<200x512xf32, #tpu.memory_space<vmem>>, vector<8x512xf32>
    tpu.vector_store %arg7[%c48_63, %c0_64], %79 {strides = array<i32>} : memref<200x512xf32, #tpu.memory_space<vmem>>, vector<8x512xf32>,
    %c20_i32_65 = arith.constant 20 : i32
    %81 = tpu.dynamic_rotate %62 by %c20_i32_65 dim 1 : vector<8x512xf32>, i32 -> vector<8x512xf32>
    %c56_66 = arith.constant 56 : index
    %c0_67 = arith.constant 0 : index
    %82 = vector.load %arg7[%c56_66, %c0_67] : memref<200x512xf32, #tpu.memory_space<vmem>>, vector<8x512xf32>
    tpu.vector_store %arg7[%c56_66, %c0_67], %81 {strides = array<i32>} : memref<200x512xf32, #tpu.memory_space<vmem>>, vector<8x512xf32>,
    %c19_i32_68 = arith.constant 19 : i32
    %83 = tpu.dynamic_rotate %62 by %c19_i32_68 dim 1 : vector<8x512xf32>, i32 -> vector<8x512xf32>
    %c64_69 = arith.constant 64 : index
    %c0_70 = arith.constant 0 : index
    %84 = vector.load %arg7[%c64_69, %c0_70] : memref<200x512xf32, #tpu.memory_space<vmem>>, vector<8x512xf32>
    tpu.vector_store %arg7[%c64_69, %c0_70], %83 {strides = array<i32>} : memref<200x512xf32, #tpu.memory_space<vmem>>, vector<8x512xf32>,
    %c18_i32_71 = arith.constant 18 : i32
    %85 = tpu.dynamic_rotate %62 by %c18_i32_71 dim 1 : vector<8x512xf32>, i32 -> vector<8x512xf32>
    %c72_72 = arith.constant 72 : index
    %c0_73 = arith.constant 0 : index
    %86 = vector.load %arg7[%c72_72, %c0_73] : memref<200x512xf32, #tpu.memory_space<vmem>>, vector<8x512xf32>
    tpu.vector_store %arg7[%c72_72, %c0_73], %85 {strides = array<i32>} : memref<200x512xf32, #tpu.memory_space<vmem>>, vector<8x512xf32>,
    %c2_i32_74 = arith.constant 2 : i32
    %87 = tpu.dynamic_rotate %62 by %c2_i32_74 dim 1 : vector<8x512xf32>, i32 -> vector<8x512xf32>
    %c80_75 = arith.constant 80 : index
    %c0_76 = arith.constant 0 : index
    %88 = vector.load %arg7[%c80_75, %c0_76] : memref<200x512xf32, #tpu.memory_space<vmem>>, vector<8x512xf32>
    tpu.vector_store %arg7[%c80_75, %c0_76], %87 {strides = array<i32>} : memref<200x512xf32, #tpu.memory_space<vmem>>, vector<8x512xf32>,
    %c1_i32_77 = arith.constant 1 : i32
    %89 = tpu.dynamic_rotate %62 by %c1_i32_77 dim 1 : vector<8x512xf32>, i32 -> vector<8x512xf32>
    %c88_78 = arith.constant 88 : index
    %c0_79 = arith.constant 0 : index
    %90 = vector.load %arg7[%c88_78, %c0_79] : memref<200x512xf32, #tpu.memory_space<vmem>>, vector<8x512xf32>
    tpu.vector_store %arg7[%c88_78, %c0_79], %89 {strides = array<i32>} : memref<200x512xf32, #tpu.memory_space<vmem>>, vector<8x512xf32>,
    %c96_80 = arith.constant 96 : index
    %c0_81 = arith.constant 0 : index
    %91 = vector.load %arg7[%c96_80, %c0_81] : memref<200x512xf32, #tpu.memory_space<vmem>>, vector<8x512xf32>
    tpu.vector_store %arg7[%c96_80, %c0_81], %62 {strides = array<i32>} : memref<200x512xf32, #tpu.memory_space<vmem>>, vector<8x512xf32>,
    %c511_i32_82 = arith.constant 511 : i32
    %92 = tpu.dynamic_rotate %62 by %c511_i32_82 dim 1 : vector<8x512xf32>, i32 -> vector<8x512xf32>
    %c104_83 = arith.constant 104 : index
    %c0_84 = arith.constant 0 : index
    %93 = vector.load %arg7[%c104_83, %c0_84] : memref<200x512xf32, #tpu.memory_space<vmem>>, vector<8x512xf32>
    tpu.vector_store %arg7[%c104_83, %c0_84], %92 {strides = array<i32>} : memref<200x512xf32, #tpu.memory_space<vmem>>, vector<8x512xf32>,
    %c510_i32_85 = arith.constant 510 : i32
    %94 = tpu.dynamic_rotate %62 by %c510_i32_85 dim 1 : vector<8x512xf32>, i32 -> vector<8x512xf32>
    %c112_86 = arith.constant 112 : index
    %c0_87 = arith.constant 0 : index
    %95 = vector.load %arg7[%c112_86, %c0_87] : memref<200x512xf32, #tpu.memory_space<vmem>>, vector<8x512xf32>
    tpu.vector_store %arg7[%c112_86, %c0_87], %94 {strides = array<i32>} : memref<200x512xf32, #tpu.memory_space<vmem>>, vector<8x512xf32>,
    %c494_i32_88 = arith.constant 494 : i32
    %96 = tpu.dynamic_rotate %62 by %c494_i32_88 dim 1 : vector<8x512xf32>, i32 -> vector<8x512xf32>
    %c120_89 = arith.constant 120 : index
    %c0_90 = arith.constant 0 : index
    %97 = vector.load %arg7[%c120_89, %c0_90] : memref<200x512xf32, #tpu.memory_space<vmem>>, vector<8x512xf32>
    tpu.vector_store %arg7[%c120_89, %c0_90], %96 {strides = array<i32>} : memref<200x512xf32, #tpu.memory_space<vmem>>, vector<8x512xf32>,
    %c493_i32_91 = arith.constant 493 : i32
    %98 = tpu.dynamic_rotate %62 by %c493_i32_91 dim 1 : vector<8x512xf32>, i32 -> vector<8x512xf32>
    %c128_92 = arith.constant 128 : index
    %c0_93 = arith.constant 0 : index
    %99 = vector.load %arg7[%c128_92, %c0_93] : memref<200x512xf32, #tpu.memory_space<vmem>>, vector<8x512xf32>
    tpu.vector_store %arg7[%c128_92, %c0_93], %98 {strides = array<i32>} : memref<200x512xf32, #tpu.memory_space<vmem>>, vector<8x512xf32>,
    %c492_i32_94 = arith.constant 492 : i32
    %100 = tpu.dynamic_rotate %62 by %c492_i32_94 dim 1 : vector<8x512xf32>, i32 -> vector<8x512xf32>
    %c136_95 = arith.constant 136 : index
    %c0_96 = arith.constant 0 : index
    %101 = vector.load %arg7[%c136_95, %c0_96] : memref<200x512xf32, #tpu.memory_space<vmem>>, vector<8x512xf32>
    tpu.vector_store %arg7[%c136_95, %c0_96], %100 {strides = array<i32>} : memref<200x512xf32, #tpu.memory_space<vmem>>, vector<8x512xf32>,
    %c491_i32_97 = arith.constant 491 : i32
    %102 = tpu.dynamic_rotate %62 by %c491_i32_97 dim 1 : vector<8x512xf32>, i32 -> vector<8x512xf32>
    %c144_98 = arith.constant 144 : index
    %c0_99 = arith.constant 0 : index
    %103 = vector.load %arg7[%c144_98, %c0_99] : memref<200x512xf32, #tpu.memory_space<vmem>>, vector<8x512xf32>
    tpu.vector_store %arg7[%c144_98, %c0_99], %102 {strides = array<i32>} : memref<200x512xf32, #tpu.memory_space<vmem>>, vector<8x512xf32>,
    %c490_i32_100 = arith.constant 490 : i32
    %104 = tpu.dynamic_rotate %62 by %c490_i32_100 dim 1 : vector<8x512xf32>, i32 -> vector<8x512xf32>
    %c152_101 = arith.constant 152 : index
    %c0_102 = arith.constant 0 : index
    %105 = vector.load %arg7[%c152_101, %c0_102] : memref<200x512xf32, #tpu.memory_space<vmem>>, vector<8x512xf32>
    tpu.vector_store %arg7[%c152_101, %c0_102], %104 {strides = array<i32>} : memref<200x512xf32, #tpu.memory_space<vmem>>, vector<8x512xf32>,
    %c474_i32_103 = arith.constant 474 : i32
    %106 = tpu.dynamic_rotate %62 by %c474_i32_103 dim 1 : vector<8x512xf32>, i32 -> vector<8x512xf32>
    %c160_104 = arith.constant 160 : index
    %c0_105 = arith.constant 0 : index
    %107 = vector.load %arg7[%c160_104, %c0_105] : memref<200x512xf32, #tpu.memory_space<vmem>>, vector<8x512xf32>
    tpu.vector_store %arg7[%c160_104, %c0_105], %106 {strides = array<i32>} : memref<200x512xf32, #tpu.memory_space<vmem>>, vector<8x512xf32>,
    %c473_i32_106 = arith.constant 473 : i32
    %108 = tpu.dynamic_rotate %62 by %c473_i32_106 dim 1 : vector<8x512xf32>, i32 -> vector<8x512xf32>
    %c168_107 = arith.constant 168 : index
    %c0_108 = arith.constant 0 : index
    %109 = vector.load %arg7[%c168_107, %c0_108] : memref<200x512xf32, #tpu.memory_space<vmem>>, vector<8x512xf32>
    tpu.vector_store %arg7[%c168_107, %c0_108], %108 {strides = array<i32>} : memref<200x512xf32, #tpu.memory_space<vmem>>, vector<8x512xf32>,
    %c472_i32_109 = arith.constant 472 : i32
    %110 = tpu.dynamic_rotate %62 by %c472_i32_109 dim 1 : vector<8x512xf32>, i32 -> vector<8x512xf32>
    %c176_110 = arith.constant 176 : index
    %c0_111 = arith.constant 0 : index
    %111 = vector.load %arg7[%c176_110, %c0_111] : memref<200x512xf32, #tpu.memory_space<vmem>>, vector<8x512xf32>
    tpu.vector_store %arg7[%c176_110, %c0_111], %110 {strides = array<i32>} : memref<200x512xf32, #tpu.memory_space<vmem>>, vector<8x512xf32>,
    %c471_i32_112 = arith.constant 471 : i32
    %112 = tpu.dynamic_rotate %62 by %c471_i32_112 dim 1 : vector<8x512xf32>, i32 -> vector<8x512xf32>
    %c184_113 = arith.constant 184 : index
    %c0_114 = arith.constant 0 : index
    %113 = vector.load %arg7[%c184_113, %c0_114] : memref<200x512xf32, #tpu.memory_space<vmem>>, vector<8x512xf32>
    tpu.vector_store %arg7[%c184_113, %c0_114], %112 {strides = array<i32>} : memref<200x512xf32, #tpu.memory_space<vmem>>, vector<8x512xf32>,
    %c470_i32_115 = arith.constant 470 : i32
    %114 = tpu.dynamic_rotate %62 by %c470_i32_115 dim 1 : vector<8x512xf32>, i32 -> vector<8x512xf32>
    %c192_116 = arith.constant 192 : index
    %c0_117 = arith.constant 0 : index
    %115 = vector.load %arg7[%c192_116, %c0_117] : memref<200x512xf32, #tpu.memory_space<vmem>>, vector<8x512xf32>
    tpu.vector_store %arg7[%c192_116, %c0_117], %114 {strides = array<i32>} : memref<200x512xf32, #tpu.memory_space<vmem>>, vector<8x512xf32>,
    %c0_118 = arith.constant 0 : index
    %c0_119 = arith.constant 0 : index
    %116 = vector.load %arg7[%c0_118, %c0_119] : memref<200x512xf32, #tpu.memory_space<vmem>>, vector<200x512xf32>
    %cst_120 = arith.constant dense<0.000000e+00> : vector<8x512xf32>
    %117 = tpu.matmul %64, %116, %cst_120 {dimension_numbers = #tpu.dot_dimension_numbers<[1], [0], [0], [1], [0, 0, 1, 1], [], []>} : vector<8x200xf32>, vector<200x512xf32>, vector<8x512xf32> -> vector<8x512xf32>
    %118 = vector.broadcast %66 : vector<8x1xf32> to vector<8x512xf32>
    %119 = arith.addf %117, %118 : vector<8x512xf32>
    %cst_121 = arith.constant 0.000000e+00 : f32
    %120 = vector.broadcast %cst_121 : f32 to vector<8x512xf32>
    %121 = arith.maximumf %119, %120 : vector<8x512xf32>
    %122 = vector.broadcast %0 : vector<1x512xf32> to vector<8x512xf32>
    %123 = arith.mulf %121, %122 : vector<8x512xf32>
    %124 = arith.addf %123, %1 : vector<8x512xf32>
    %c1 = arith.constant 1 : index
    %c0_122 = arith.constant 0 : index
    %c0_123 = arith.constant 0 : index
    %125 = vector.load %arg2[%c1, %c0_122, %c0_123] : memref<4x8x200xf32, #tpu.memory_space<vmem>>, vector<1x8x200xf32>
    %126 = vector.shape_cast %125 : vector<1x8x200xf32> to vector<8x200xf32>
    %c1_124 = arith.constant 1 : index
    %c0_125 = arith.constant 0 : index
    %c0_126 = arith.constant 0 : index
    %127 = vector.load %arg3[%c1_124, %c0_125, %c0_126] : memref<4x8x1xf32, #tpu.memory_space<vmem>>, vector<1x8x1xf32>
    %128 = vector.shape_cast %127 : vector<1x8x1xf32> to vector<8x1xf32>
    %c42_i32_127 = arith.constant 42 : i32
    %129 = tpu.dynamic_rotate %124 by %c42_i32_127 dim 1 : vector<8x512xf32>, i32 -> vector<8x512xf32>
    %c0_128 = arith.constant 0 : index
    %c0_129 = arith.constant 0 : index
    %130 = vector.load %arg7[%c0_128, %c0_129] : memref<200x512xf32, #tpu.memory_space<vmem>>, vector<8x512xf32>
    tpu.vector_store %arg7[%c0_128, %c0_129], %129 {strides = array<i32>} : memref<200x512xf32, #tpu.memory_space<vmem>>, vector<8x512xf32>,
    %c41_i32_130 = arith.constant 41 : i32
    %131 = tpu.dynamic_rotate %124 by %c41_i32_130 dim 1 : vector<8x512xf32>, i32 -> vector<8x512xf32>
    %c8_131 = arith.constant 8 : index
    %c0_132 = arith.constant 0 : index
    %132 = vector.load %arg7[%c8_131, %c0_132] : memref<200x512xf32, #tpu.memory_space<vmem>>, vector<8x512xf32>
    tpu.vector_store %arg7[%c8_131, %c0_132], %131 {strides = array<i32>} : memref<200x512xf32, #tpu.memory_space<vmem>>, vector<8x512xf32>,
    %c40_i32_133 = arith.constant 40 : i32
    %133 = tpu.dynamic_rotate %124 by %c40_i32_133 dim 1 : vector<8x512xf32>, i32 -> vector<8x512xf32>
    %c16_134 = arith.constant 16 : index
    %c0_135 = arith.constant 0 : index
    %134 = vector.load %arg7[%c16_134, %c0_135] : memref<200x512xf32, #tpu.memory_space<vmem>>, vector<8x512xf32>
    tpu.vector_store %arg7[%c16_134, %c0_135], %133 {strides = array<i32>} : memref<200x512xf32, #tpu.memory_space<vmem>>, vector<8x512xf32>,
    %c39_i32_136 = arith.constant 39 : i32
    %135 = tpu.dynamic_rotate %124 by %c39_i32_136 dim 1 : vector<8x512xf32>, i32 -> vector<8x512xf32>
    %c24_137 = arith.constant 24 : index
    %c0_138 = arith.constant 0 : index
    %136 = vector.load %arg7[%c24_137, %c0_138] : memref<200x512xf32, #tpu.memory_space<vmem>>, vector<8x512xf32>
    tpu.vector_store %arg7[%c24_137, %c0_138], %135 {strides = array<i32>} : memref<200x512xf32, #tpu.memory_space<vmem>>, vector<8x512xf32>,
    %c38_i32_139 = arith.constant 38 : i32
    %137 = tpu.dynamic_rotate %124 by %c38_i32_139 dim 1 : vector<8x512xf32>, i32 -> vector<8x512xf32>
    %c32_140 = arith.constant 32 : index
    %c0_141 = arith.constant 0 : index
    %138 = vector.load %arg7[%c32_140, %c0_141] : memref<200x512xf32, #tpu.memory_space<vmem>>, vector<8x512xf32>
    tpu.vector_store %arg7[%c32_140, %c0_141], %137 {strides = array<i32>} : memref<200x512xf32, #tpu.memory_space<vmem>>, vector<8x512xf32>,
    %c22_i32_142 = arith.constant 22 : i32
    %139 = tpu.dynamic_rotate %124 by %c22_i32_142 dim 1 : vector<8x512xf32>, i32 -> vector<8x512xf32>
    %c40_143 = arith.constant 40 : index
    %c0_144 = arith.constant 0 : index
    %140 = vector.load %arg7[%c40_143, %c0_144] : memref<200x512xf32, #tpu.memory_space<vmem>>, vector<8x512xf32>
    tpu.vector_store %arg7[%c40_143, %c0_144], %139 {strides = array<i32>} : memref<200x512xf32, #tpu.memory_space<vmem>>, vector<8x512xf32>,
    %c21_i32_145 = arith.constant 21 : i32
    %141 = tpu.dynamic_rotate %124 by %c21_i32_145 dim 1 : vector<8x512xf32>, i32 -> vector<8x512xf32>
    %c48_146 = arith.constant 48 : index
    %c0_147 = arith.constant 0 : index
    %142 = vector.load %arg7[%c48_146, %c0_147] : memref<200x512xf32, #tpu.memory_space<vmem>>, vector<8x512xf32>
    tpu.vector_store %arg7[%c48_146, %c0_147], %141 {strides = array<i32>} : memref<200x512xf32, #tpu.memory_space<vmem>>, vector<8x512xf32>,
    %c20_i32_148 = arith.constant 20 : i32
    %143 = tpu.dynamic_rotate %124 by %c20_i32_148 dim 1 : vector<8x512xf32>, i32 -> vector<8x512xf32>
    %c56_149 = arith.constant 56 : index
    %c0_150 = arith.constant 0 : index
    %144 = vector.load %arg7[%c56_149, %c0_150] : memref<200x512xf32, #tpu.memory_space<vmem>>, vector<8x512xf32>
    tpu.vector_store %arg7[%c56_149, %c0_150], %143 {strides = array<i32>} : memref<200x512xf32, #tpu.memory_space<vmem>>, vector<8x512xf32>,
    %c19_i32_151 = arith.constant 19 : i32
    %145 = tpu.dynamic_rotate %124 by %c19_i32_151 dim 1 : vector<8x512xf32>, i32 -> vector<8x512xf32>
    %c64_152 = arith.constant 64 : index
    %c0_153 = arith.constant 0 : index
    %146 = vector.load %arg7[%c64_152, %c0_153] : memref<200x512xf32, #tpu.memory_space<vmem>>, vector<8x512xf32>
    tpu.vector_store %arg7[%c64_152, %c0_153], %145 {strides = array<i32>} : memref<200x512xf32, #tpu.memory_space<vmem>>, vector<8x512xf32>,
    %c18_i32_154 = arith.constant 18 : i32
    %147 = tpu.dynamic_rotate %124 by %c18_i32_154 dim 1 : vector<8x512xf32>, i32 -> vector<8x512xf32>
    %c72_155 = arith.constant 72 : index
    %c0_156 = arith.constant 0 : index
    %148 = vector.load %arg7[%c72_155, %c0_156] : memref<200x512xf32, #tpu.memory_space<vmem>>, vector<8x512xf32>
    tpu.vector_store %arg7[%c72_155, %c0_156], %147 {strides = array<i32>} : memref<200x512xf32, #tpu.memory_space<vmem>>, vector<8x512xf32>,
    %c2_i32_157 = arith.constant 2 : i32
    %149 = tpu.dynamic_rotate %124 by %c2_i32_157 dim 1 : vector<8x512xf32>, i32 -> vector<8x512xf32>
    %c80_158 = arith.constant 80 : index
    %c0_159 = arith.constant 0 : index
    %150 = vector.load %arg7[%c80_158, %c0_159] : memref<200x512xf32, #tpu.memory_space<vmem>>, vector<8x512xf32>
    tpu.vector_store %arg7[%c80_158, %c0_159], %149 {strides = array<i32>} : memref<200x512xf32, #tpu.memory_space<vmem>>, vector<8x512xf32>,
    %c1_i32_160 = arith.constant 1 : i32
    %151 = tpu.dynamic_rotate %124 by %c1_i32_160 dim 1 : vector<8x512xf32>, i32 -> vector<8x512xf32>
    %c88_161 = arith.constant 88 : index
    %c0_162 = arith.constant 0 : index
    %152 = vector.load %arg7[%c88_161, %c0_162] : memref<200x512xf32, #tpu.memory_space<vmem>>, vector<8x512xf32>
    tpu.vector_store %arg7[%c88_161, %c0_162], %151 {strides = array<i32>} : memref<200x512xf32, #tpu.memory_space<vmem>>, vector<8x512xf32>,
    %c96_163 = arith.constant 96 : index
    %c0_164 = arith.constant 0 : index
    %153 = vector.load %arg7[%c96_163, %c0_164] : memref<200x512xf32, #tpu.memory_space<vmem>>, vector<8x512xf32>
    tpu.vector_store %arg7[%c96_163, %c0_164], %124 {strides = array<i32>} : memref<200x512xf32, #tpu.memory_space<vmem>>, vector<8x512xf32>,
    %c511_i32_165 = arith.constant 511 : i32
    %154 = tpu.dynamic_rotate %124 by %c511_i32_165 dim 1 : vector<8x512xf32>, i32 -> vector<8x512xf32>
    %c104_166 = arith.constant 104 : index
    %c0_167 = arith.constant 0 : index
    %155 = vector.load %arg7[%c104_166, %c0_167] : memref<200x512xf32, #tpu.memory_space<vmem>>, vector<8x512xf32>
    tpu.vector_store %arg7[%c104_166, %c0_167], %154 {strides = array<i32>} : memref<200x512xf32, #tpu.memory_space<vmem>>, vector<8x512xf32>,
    %c510_i32_168 = arith.constant 510 : i32
    %156 = tpu.dynamic_rotate %124 by %c510_i32_168 dim 1 : vector<8x512xf32>, i32 -> vector<8x512xf32>
    %c112_169 = arith.constant 112 : index
    %c0_170 = arith.constant 0 : index
    %157 = vector.load %arg7[%c112_169, %c0_170] : memref<200x512xf32, #tpu.memory_space<vmem>>, vector<8x512xf32>
    tpu.vector_store %arg7[%c112_169, %c0_170], %156 {strides = array<i32>} : memref<200x512xf32, #tpu.memory_space<vmem>>, vector<8x512xf32>,
    %c494_i32_171 = arith.constant 494 : i32
    %158 = tpu.dynamic_rotate %124 by %c494_i32_171 dim 1 : vector<8x512xf32>, i32 -> vector<8x512xf32>
    %c120_172 = arith.constant 120 : index
    %c0_173 = arith.constant 0 : index
    %159 = vector.load %arg7[%c120_172, %c0_173] : memref<200x512xf32, #tpu.memory_space<vmem>>, vector<8x512xf32>
    tpu.vector_store %arg7[%c120_172, %c0_173], %158 {strides = array<i32>} : memref<200x512xf32, #tpu.memory_space<vmem>>, vector<8x512xf32>,
    %c493_i32_174 = arith.constant 493 : i32
    %160 = tpu.dynamic_rotate %124 by %c493_i32_174 dim 1 : vector<8x512xf32>, i32 -> vector<8x512xf32>
    %c128_175 = arith.constant 128 : index
    %c0_176 = arith.constant 0 : index
    %161 = vector.load %arg7[%c128_175, %c0_176] : memref<200x512xf32, #tpu.memory_space<vmem>>, vector<8x512xf32>
    tpu.vector_store %arg7[%c128_175, %c0_176], %160 {strides = array<i32>} : memref<200x512xf32, #tpu.memory_space<vmem>>, vector<8x512xf32>,
    %c492_i32_177 = arith.constant 492 : i32
    %162 = tpu.dynamic_rotate %124 by %c492_i32_177 dim 1 : vector<8x512xf32>, i32 -> vector<8x512xf32>
    %c136_178 = arith.constant 136 : index
    %c0_179 = arith.constant 0 : index
    %163 = vector.load %arg7[%c136_178, %c0_179] : memref<200x512xf32, #tpu.memory_space<vmem>>, vector<8x512xf32>
    tpu.vector_store %arg7[%c136_178, %c0_179], %162 {strides = array<i32>} : memref<200x512xf32, #tpu.memory_space<vmem>>, vector<8x512xf32>,
    %c491_i32_180 = arith.constant 491 : i32
    %164 = tpu.dynamic_rotate %124 by %c491_i32_180 dim 1 : vector<8x512xf32>, i32 -> vector<8x512xf32>
    %c144_181 = arith.constant 144 : index
    %c0_182 = arith.constant 0 : index
    %165 = vector.load %arg7[%c144_181, %c0_182] : memref<200x512xf32, #tpu.memory_space<vmem>>, vector<8x512xf32>
    tpu.vector_store %arg7[%c144_181, %c0_182], %164 {strides = array<i32>} : memref<200x512xf32, #tpu.memory_space<vmem>>, vector<8x512xf32>,
    %c490_i32_183 = arith.constant 490 : i32
    %166 = tpu.dynamic_rotate %124 by %c490_i32_183 dim 1 : vector<8x512xf32>, i32 -> vector<8x512xf32>
    %c152_184 = arith.constant 152 : index
    %c0_185 = arith.constant 0 : index
    %167 = vector.load %arg7[%c152_184, %c0_185] : memref<200x512xf32, #tpu.memory_space<vmem>>, vector<8x512xf32>
    tpu.vector_store %arg7[%c152_184, %c0_185], %166 {strides = array<i32>} : memref<200x512xf32, #tpu.memory_space<vmem>>, vector<8x512xf32>,
    %c474_i32_186 = arith.constant 474 : i32
    %168 = tpu.dynamic_rotate %124 by %c474_i32_186 dim 1 : vector<8x512xf32>, i32 -> vector<8x512xf32>
    %c160_187 = arith.constant 160 : index
    %c0_188 = arith.constant 0 : index
    %169 = vector.load %arg7[%c160_187, %c0_188] : memref<200x512xf32, #tpu.memory_space<vmem>>, vector<8x512xf32>
    tpu.vector_store %arg7[%c160_187, %c0_188], %168 {strides = array<i32>} : memref<200x512xf32, #tpu.memory_space<vmem>>, vector<8x512xf32>,
    %c473_i32_189 = arith.constant 473 : i32
    %170 = tpu.dynamic_rotate %124 by %c473_i32_189 dim 1 : vector<8x512xf32>, i32 -> vector<8x512xf32>
    %c168_190 = arith.constant 168 : index
    %c0_191 = arith.constant 0 : index
    %171 = vector.load %arg7[%c168_190, %c0_191] : memref<200x512xf32, #tpu.memory_space<vmem>>, vector<8x512xf32>
    tpu.vector_store %arg7[%c168_190, %c0_191], %170 {strides = array<i32>} : memref<200x512xf32, #tpu.memory_space<vmem>>, vector<8x512xf32>,
    %c472_i32_192 = arith.constant 472 : i32
    %172 = tpu.dynamic_rotate %124 by %c472_i32_192 dim 1 : vector<8x512xf32>, i32 -> vector<8x512xf32>
    %c176_193 = arith.constant 176 : index
    %c0_194 = arith.constant 0 : index
    %173 = vector.load %arg7[%c176_193, %c0_194] : memref<200x512xf32, #tpu.memory_space<vmem>>, vector<8x512xf32>
    tpu.vector_store %arg7[%c176_193, %c0_194], %172 {strides = array<i32>} : memref<200x512xf32, #tpu.memory_space<vmem>>, vector<8x512xf32>,
    %c471_i32_195 = arith.constant 471 : i32
    %174 = tpu.dynamic_rotate %124 by %c471_i32_195 dim 1 : vector<8x512xf32>, i32 -> vector<8x512xf32>
    %c184_196 = arith.constant 184 : index
    %c0_197 = arith.constant 0 : index
    %175 = vector.load %arg7[%c184_196, %c0_197] : memref<200x512xf32, #tpu.memory_space<vmem>>, vector<8x512xf32>
    tpu.vector_store %arg7[%c184_196, %c0_197], %174 {strides = array<i32>} : memref<200x512xf32, #tpu.memory_space<vmem>>, vector<8x512xf32>,
    %c470_i32_198 = arith.constant 470 : i32
    %176 = tpu.dynamic_rotate %124 by %c470_i32_198 dim 1 : vector<8x512xf32>, i32 -> vector<8x512xf32>
    %c192_199 = arith.constant 192 : index
    %c0_200 = arith.constant 0 : index
    %177 = vector.load %arg7[%c192_199, %c0_200] : memref<200x512xf32, #tpu.memory_space<vmem>>, vector<8x512xf32>
    tpu.vector_store %arg7[%c192_199, %c0_200], %176 {strides = array<i32>} : memref<200x512xf32, #tpu.memory_space<vmem>>, vector<8x512xf32>,
    %c0_201 = arith.constant 0 : index
    %c0_202 = arith.constant 0 : index
    %178 = vector.load %arg7[%c0_201, %c0_202] : memref<200x512xf32, #tpu.memory_space<vmem>>, vector<200x512xf32>
    %cst_203 = arith.constant dense<0.000000e+00> : vector<8x512xf32>
    %179 = tpu.matmul %126, %178, %cst_203 {dimension_numbers = #tpu.dot_dimension_numbers<[1], [0], [0], [1], [0, 0, 1, 1], [], []>} : vector<8x200xf32>, vector<200x512xf32>, vector<8x512xf32> -> vector<8x512xf32>
    %180 = vector.broadcast %128 : vector<8x1xf32> to vector<8x512xf32>
    %181 = arith.addf %179, %180 : vector<8x512xf32>
    %cst_204 = arith.constant 0.000000e+00 : f32
    %182 = vector.broadcast %cst_204 : f32 to vector<8x512xf32>
    %183 = arith.maximumf %181, %182 : vector<8x512xf32>
    %184 = vector.broadcast %0 : vector<1x512xf32> to vector<8x512xf32>
    %185 = arith.mulf %183, %184 : vector<8x512xf32>
    %c1_205 = arith.constant 1 : index
    %c0_206 = arith.constant 0 : index
    %c0_207 = arith.constant 0 : index
    %186 = vector.load %arg4[%c1_205, %c0_206, %c0_207] : memref<4x8x200xf32, #tpu.memory_space<vmem>>, vector<1x8x200xf32>
    %187 = vector.shape_cast %186 : vector<1x8x200xf32> to vector<8x200xf32>
    %c1_208 = arith.constant 1 : index
    %c0_209 = arith.constant 0 : index
    %c0_210 = arith.constant 0 : index
    %188 = vector.load %arg5[%c1_208, %c0_209, %c0_210] : memref<4x8x1xf32, #tpu.memory_space<vmem>>, vector<1x8x1xf32>
    %189 = vector.shape_cast %188 : vector<1x8x1xf32> to vector<8x1xf32>
    %c42_i32_211 = arith.constant 42 : i32
    %190 = tpu.dynamic_rotate %185 by %c42_i32_211 dim 1 : vector<8x512xf32>, i32 -> vector<8x512xf32>
    %c0_212 = arith.constant 0 : index
    %c0_213 = arith.constant 0 : index
    %191 = vector.load %arg7[%c0_212, %c0_213] : memref<200x512xf32, #tpu.memory_space<vmem>>, vector<8x512xf32>
    tpu.vector_store %arg7[%c0_212, %c0_213], %190 {strides = array<i32>} : memref<200x512xf32, #tpu.memory_space<vmem>>, vector<8x512xf32>,
    %c41_i32_214 = arith.constant 41 : i32
    %192 = tpu.dynamic_rotate %185 by %c41_i32_214 dim 1 : vector<8x512xf32>, i32 -> vector<8x512xf32>
    %c8_215 = arith.constant 8 : index
    %c0_216 = arith.constant 0 : index
    %193 = vector.load %arg7[%c8_215, %c0_216] : memref<200x512xf32, #tpu.memory_space<vmem>>, vector<8x512xf32>
    tpu.vector_store %arg7[%c8_215, %c0_216], %192 {strides = array<i32>} : memref<200x512xf32, #tpu.memory_space<vmem>>, vector<8x512xf32>,
    %c40_i32_217 = arith.constant 40 : i32
    %194 = tpu.dynamic_rotate %185 by %c40_i32_217 dim 1 : vector<8x512xf32>, i32 -> vector<8x512xf32>
    %c16_218 = arith.constant 16 : index
    %c0_219 = arith.constant 0 : index
    %195 = vector.load %arg7[%c16_218, %c0_219] : memref<200x512xf32, #tpu.memory_space<vmem>>, vector<8x512xf32>
    tpu.vector_store %arg7[%c16_218, %c0_219], %194 {strides = array<i32>} : memref<200x512xf32, #tpu.memory_space<vmem>>, vector<8x512xf32>,
    %c39_i32_220 = arith.constant 39 : i32
    %196 = tpu.dynamic_rotate %185 by %c39_i32_220 dim 1 : vector<8x512xf32>, i32 -> vector<8x512xf32>
    %c24_221 = arith.constant 24 : index
    %c0_222 = arith.constant 0 : index
    %197 = vector.load %arg7[%c24_221, %c0_222] : memref<200x512xf32, #tpu.memory_space<vmem>>, vector<8x512xf32>
    tpu.vector_store %arg7[%c24_221, %c0_222], %196 {strides = array<i32>} : memref<200x512xf32, #tpu.memory_space<vmem>>, vector<8x512xf32>,
    %c38_i32_223 = arith.constant 38 : i32
    %198 = tpu.dynamic_rotate %185 by %c38_i32_223 dim 1 : vector<8x512xf32>, i32 -> vector<8x512xf32>
    %c32_224 = arith.constant 32 : index
    %c0_225 = arith.constant 0 : index
    %199 = vector.load %arg7[%c32_224, %c0_225] : memref<200x512xf32, #tpu.memory_space<vmem>>, vector<8x512xf32>
    tpu.vector_store %arg7[%c32_224, %c0_225], %198 {strides = array<i32>} : memref<200x512xf32, #tpu.memory_space<vmem>>, vector<8x512xf32>,
    %c22_i32_226 = arith.constant 22 : i32
    %200 = tpu.dynamic_rotate %185 by %c22_i32_226 dim 1 : vector<8x512xf32>, i32 -> vector<8x512xf32>
    %c40_227 = arith.constant 40 : index
    %c0_228 = arith.constant 0 : index
    %201 = vector.load %arg7[%c40_227, %c0_228] : memref<200x512xf32, #tpu.memory_space<vmem>>, vector<8x512xf32>
    tpu.vector_store %arg7[%c40_227, %c0_228], %200 {strides = array<i32>} : memref<200x512xf32, #tpu.memory_space<vmem>>, vector<8x512xf32>,
    %c21_i32_229 = arith.constant 21 : i32
    %202 = tpu.dynamic_rotate %185 by %c21_i32_229 dim 1 : vector<8x512xf32>, i32 -> vector<8x512xf32>
    %c48_230 = arith.constant 48 : index
    %c0_231 = arith.constant 0 : index
    %203 = vector.load %arg7[%c48_230, %c0_231] : memref<200x512xf32, #tpu.memory_space<vmem>>, vector<8x512xf32>
    tpu.vector_store %arg7[%c48_230, %c0_231], %202 {strides = array<i32>} : memref<200x512xf32, #tpu.memory_space<vmem>>, vector<8x512xf32>,
    %c20_i32_232 = arith.constant 20 : i32
    %204 = tpu.dynamic_rotate %185 by %c20_i32_232 dim 1 : vector<8x512xf32>, i32 -> vector<8x512xf32>
    %c56_233 = arith.constant 56 : index
    %c0_234 = arith.constant 0 : index
    %205 = vector.load %arg7[%c56_233, %c0_234] : memref<200x512xf32, #tpu.memory_space<vmem>>, vector<8x512xf32>
    tpu.vector_store %arg7[%c56_233, %c0_234], %204 {strides = array<i32>} : memref<200x512xf32, #tpu.memory_space<vmem>>, vector<8x512xf32>,
    %c19_i32_235 = arith.constant 19 : i32
    %206 = tpu.dynamic_rotate %185 by %c19_i32_235 dim 1 : vector<8x512xf32>, i32 -> vector<8x512xf32>
    %c64_236 = arith.constant 64 : index
    %c0_237 = arith.constant 0 : index
    %207 = vector.load %arg7[%c64_236, %c0_237] : memref<200x512xf32, #tpu.memory_space<vmem>>, vector<8x512xf32>
    tpu.vector_store %arg7[%c64_236, %c0_237], %206 {strides = array<i32>} : memref<200x512xf32, #tpu.memory_space<vmem>>, vector<8x512xf32>,
    %c18_i32_238 = arith.constant 18 : i32
    %208 = tpu.dynamic_rotate %185 by %c18_i32_238 dim 1 : vector<8x512xf32>, i32 -> vector<8x512xf32>
    %c72_239 = arith.constant 72 : index
    %c0_240 = arith.constant 0 : index
    %209 = vector.load %arg7[%c72_239, %c0_240] : memref<200x512xf32, #tpu.memory_space<vmem>>, vector<8x512xf32>
    tpu.vector_store %arg7[%c72_239, %c0_240], %208 {strides = array<i32>} : memref<200x512xf32, #tpu.memory_space<vmem>>, vector<8x512xf32>,
    %c2_i32_241 = arith.constant 2 : i32
    %210 = tpu.dynamic_rotate %185 by %c2_i32_241 dim 1 : vector<8x512xf32>, i32 -> vector<8x512xf32>
    %c80_242 = arith.constant 80 : index
    %c0_243 = arith.constant 0 : index
    %211 = vector.load %arg7[%c80_242, %c0_243] : memref<200x512xf32, #tpu.memory_space<vmem>>, vector<8x512xf32>
    tpu.vector_store %arg7[%c80_242, %c0_243], %210 {strides = array<i32>} : memref<200x512xf32, #tpu.memory_space<vmem>>, vector<8x512xf32>,
    %c1_i32_244 = arith.constant 1 : i32
    %212 = tpu.dynamic_rotate %185 by %c1_i32_244 dim 1 : vector<8x512xf32>, i32 -> vector<8x512xf32>
    %c88_245 = arith.constant 88 : index
    %c0_246 = arith.constant 0 : index
    %213 = vector.load %arg7[%c88_245, %c0_246] : memref<200x512xf32, #tpu.memory_space<vmem>>, vector<8x512xf32>
    tpu.vector_store %arg7[%c88_245, %c0_246], %212 {strides = array<i32>} : memref<200x512xf32, #tpu.memory_space<vmem>>, vector<8x512xf32>,
    %c96_247 = arith.constant 96 : index
    %c0_248 = arith.constant 0 : index
    %214 = vector.load %arg7[%c96_247, %c0_248] : memref<200x512xf32, #tpu.memory_space<vmem>>, vector<8x512xf32>
    tpu.vector_store %arg7[%c96_247, %c0_248], %185 {strides = array<i32>} : memref<200x512xf32, #tpu.memory_space<vmem>>, vector<8x512xf32>,
    %c511_i32_249 = arith.constant 511 : i32
    %215 = tpu.dynamic_rotate %185 by %c511_i32_249 dim 1 : vector<8x512xf32>, i32 -> vector<8x512xf32>
    %c104_250 = arith.constant 104 : index
    %c0_251 = arith.constant 0 : index
    %216 = vector.load %arg7[%c104_250, %c0_251] : memref<200x512xf32, #tpu.memory_space<vmem>>, vector<8x512xf32>
    tpu.vector_store %arg7[%c104_250, %c0_251], %215 {strides = array<i32>} : memref<200x512xf32, #tpu.memory_space<vmem>>, vector<8x512xf32>,
    %c510_i32_252 = arith.constant 510 : i32
    %217 = tpu.dynamic_rotate %185 by %c510_i32_252 dim 1 : vector<8x512xf32>, i32 -> vector<8x512xf32>
    %c112_253 = arith.constant 112 : index
    %c0_254 = arith.constant 0 : index
    %218 = vector.load %arg7[%c112_253, %c0_254] : memref<200x512xf32, #tpu.memory_space<vmem>>, vector<8x512xf32>
    tpu.vector_store %arg7[%c112_253, %c0_254], %217 {strides = array<i32>} : memref<200x512xf32, #tpu.memory_space<vmem>>, vector<8x512xf32>,
    %c494_i32_255 = arith.constant 494 : i32
    %219 = tpu.dynamic_rotate %185 by %c494_i32_255 dim 1 : vector<8x512xf32>, i32 -> vector<8x512xf32>
    %c120_256 = arith.constant 120 : index
    %c0_257 = arith.constant 0 : index
    %220 = vector.load %arg7[%c120_256, %c0_257] : memref<200x512xf32, #tpu.memory_space<vmem>>, vector<8x512xf32>
    tpu.vector_store %arg7[%c120_256, %c0_257], %219 {strides = array<i32>} : memref<200x512xf32, #tpu.memory_space<vmem>>, vector<8x512xf32>,
    %c493_i32_258 = arith.constant 493 : i32
    %221 = tpu.dynamic_rotate %185 by %c493_i32_258 dim 1 : vector<8x512xf32>, i32 -> vector<8x512xf32>
    %c128_259 = arith.constant 128 : index
    %c0_260 = arith.constant 0 : index
    %222 = vector.load %arg7[%c128_259, %c0_260] : memref<200x512xf32, #tpu.memory_space<vmem>>, vector<8x512xf32>
    tpu.vector_store %arg7[%c128_259, %c0_260], %221 {strides = array<i32>} : memref<200x512xf32, #tpu.memory_space<vmem>>, vector<8x512xf32>,
    %c492_i32_261 = arith.constant 492 : i32
    %223 = tpu.dynamic_rotate %185 by %c492_i32_261 dim 1 : vector<8x512xf32>, i32 -> vector<8x512xf32>
    %c136_262 = arith.constant 136 : index
    %c0_263 = arith.constant 0 : index
    %224 = vector.load %arg7[%c136_262, %c0_263] : memref<200x512xf32, #tpu.memory_space<vmem>>, vector<8x512xf32>
    tpu.vector_store %arg7[%c136_262, %c0_263], %223 {strides = array<i32>} : memref<200x512xf32, #tpu.memory_space<vmem>>, vector<8x512xf32>,
    %c491_i32_264 = arith.constant 491 : i32
    %225 = tpu.dynamic_rotate %185 by %c491_i32_264 dim 1 : vector<8x512xf32>, i32 -> vector<8x512xf32>
    %c144_265 = arith.constant 144 : index
    %c0_266 = arith.constant 0 : index
    %226 = vector.load %arg7[%c144_265, %c0_266] : memref<200x512xf32, #tpu.memory_space<vmem>>, vector<8x512xf32>
    tpu.vector_store %arg7[%c144_265, %c0_266], %225 {strides = array<i32>} : memref<200x512xf32, #tpu.memory_space<vmem>>, vector<8x512xf32>,
    %c490_i32_267 = arith.constant 490 : i32
    %227 = tpu.dynamic_rotate %185 by %c490_i32_267 dim 1 : vector<8x512xf32>, i32 -> vector<8x512xf32>
    %c152_268 = arith.constant 152 : index
    %c0_269 = arith.constant 0 : index
    %228 = vector.load %arg7[%c152_268, %c0_269] : memref<200x512xf32, #tpu.memory_space<vmem>>, vector<8x512xf32>
    tpu.vector_store %arg7[%c152_268, %c0_269], %227 {strides = array<i32>} : memref<200x512xf32, #tpu.memory_space<vmem>>, vector<8x512xf32>,
    %c474_i32_270 = arith.constant 474 : i32
    %229 = tpu.dynamic_rotate %185 by %c474_i32_270 dim 1 : vector<8x512xf32>, i32 -> vector<8x512xf32>
    %c160_271 = arith.constant 160 : index
    %c0_272 = arith.constant 0 : index
    %230 = vector.load %arg7[%c160_271, %c0_272] : memref<200x512xf32, #tpu.memory_space<vmem>>, vector<8x512xf32>
    tpu.vector_store %arg7[%c160_271, %c0_272], %229 {strides = array<i32>} : memref<200x512xf32, #tpu.memory_space<vmem>>, vector<8x512xf32>,
    %c473_i32_273 = arith.constant 473 : i32
    %231 = tpu.dynamic_rotate %185 by %c473_i32_273 dim 1 : vector<8x512xf32>, i32 -> vector<8x512xf32>
    %c168_274 = arith.constant 168 : index
    %c0_275 = arith.constant 0 : index
    %232 = vector.load %arg7[%c168_274, %c0_275] : memref<200x512xf32, #tpu.memory_space<vmem>>, vector<8x512xf32>
    tpu.vector_store %arg7[%c168_274, %c0_275], %231 {strides = array<i32>} : memref<200x512xf32, #tpu.memory_space<vmem>>, vector<8x512xf32>,
    %c472_i32_276 = arith.constant 472 : i32
    %233 = tpu.dynamic_rotate %185 by %c472_i32_276 dim 1 : vector<8x512xf32>, i32 -> vector<8x512xf32>
    %c176_277 = arith.constant 176 : index
    %c0_278 = arith.constant 0 : index
    %234 = vector.load %arg7[%c176_277, %c0_278] : memref<200x512xf32, #tpu.memory_space<vmem>>, vector<8x512xf32>
    tpu.vector_store %arg7[%c176_277, %c0_278], %233 {strides = array<i32>} : memref<200x512xf32, #tpu.memory_space<vmem>>, vector<8x512xf32>,
    %c471_i32_279 = arith.constant 471 : i32
    %235 = tpu.dynamic_rotate %185 by %c471_i32_279 dim 1 : vector<8x512xf32>, i32 -> vector<8x512xf32>
    %c184_280 = arith.constant 184 : index
    %c0_281 = arith.constant 0 : index
    %236 = vector.load %arg7[%c184_280, %c0_281] : memref<200x512xf32, #tpu.memory_space<vmem>>, vector<8x512xf32>
    tpu.vector_store %arg7[%c184_280, %c0_281], %235 {strides = array<i32>} : memref<200x512xf32, #tpu.memory_space<vmem>>, vector<8x512xf32>,
    %c470_i32_282 = arith.constant 470 : i32
    %237 = tpu.dynamic_rotate %185 by %c470_i32_282 dim 1 : vector<8x512xf32>, i32 -> vector<8x512xf32>
    %c192_283 = arith.constant 192 : index
    %c0_284 = arith.constant 0 : index
    %238 = vector.load %arg7[%c192_283, %c0_284] : memref<200x512xf32, #tpu.memory_space<vmem>>, vector<8x512xf32>
    tpu.vector_store %arg7[%c192_283, %c0_284], %237 {strides = array<i32>} : memref<200x512xf32, #tpu.memory_space<vmem>>, vector<8x512xf32>,
    %c0_285 = arith.constant 0 : index
    %c0_286 = arith.constant 0 : index
    %239 = vector.load %arg7[%c0_285, %c0_286] : memref<200x512xf32, #tpu.memory_space<vmem>>, vector<200x512xf32>
    %cst_287 = arith.constant dense<0.000000e+00> : vector<8x512xf32>
    %240 = tpu.matmul %187, %239, %cst_287 {dimension_numbers = #tpu.dot_dimension_numbers<[1], [0], [0], [1], [0, 0, 1, 1], [], []>} : vector<8x200xf32>, vector<200x512xf32>, vector<8x512xf32> -> vector<8x512xf32>
    %241 = vector.broadcast %189 : vector<8x1xf32> to vector<8x512xf32>
    %242 = arith.addf %240, %241 : vector<8x512xf32>
    %cst_288 = arith.constant 0.000000e+00 : f32
    %243 = vector.broadcast %cst_288 : f32 to vector<8x512xf32>
    %244 = arith.maximumf %242, %243 : vector<8x512xf32>
    %245 = vector.broadcast %0 : vector<1x512xf32> to vector<8x512xf32>
    %246 = arith.mulf %244, %245 : vector<8x512xf32>
    %247 = arith.addf %246, %124 : vector<8x512xf32>
    %c2 = arith.constant 2 : index
    %c0_289 = arith.constant 0 : index
    %c0_290 = arith.constant 0 : index
    %248 = vector.load %arg2[%c2, %c0_289, %c0_290] : memref<4x8x200xf32, #tpu.memory_space<vmem>>, vector<1x8x200xf32>
    %249 = vector.shape_cast %248 : vector<1x8x200xf32> to vector<8x200xf32>
    %c2_291 = arith.constant 2 : index
    %c0_292 = arith.constant 0 : index
    %c0_293 = arith.constant 0 : index
    %250 = vector.load %arg3[%c2_291, %c0_292, %c0_293] : memref<4x8x1xf32, #tpu.memory_space<vmem>>, vector<1x8x1xf32>
    %251 = vector.shape_cast %250 : vector<1x8x1xf32> to vector<8x1xf32>
    %c42_i32_294 = arith.constant 42 : i32
    %252 = tpu.dynamic_rotate %247 by %c42_i32_294 dim 1 : vector<8x512xf32>, i32 -> vector<8x512xf32>
    %c0_295 = arith.constant 0 : index
    %c0_296 = arith.constant 0 : index
    %253 = vector.load %arg7[%c0_295, %c0_296] : memref<200x512xf32, #tpu.memory_space<vmem>>, vector<8x512xf32>
    tpu.vector_store %arg7[%c0_295, %c0_296], %252 {strides = array<i32>} : memref<200x512xf32, #tpu.memory_space<vmem>>, vector<8x512xf32>,
    %c41_i32_297 = arith.constant 41 : i32
    %254 = tpu.dynamic_rotate %247 by %c41_i32_297 dim 1 : vector<8x512xf32>, i32 -> vector<8x512xf32>
    %c8_298 = arith.constant 8 : index
    %c0_299 = arith.constant 0 : index
    %255 = vector.load %arg7[%c8_298, %c0_299] : memref<200x512xf32, #tpu.memory_space<vmem>>, vector<8x512xf32>
    tpu.vector_store %arg7[%c8_298, %c0_299], %254 {strides = array<i32>} : memref<200x512xf32, #tpu.memory_space<vmem>>, vector<8x512xf32>,
    %c40_i32_300 = arith.constant 40 : i32
    %256 = tpu.dynamic_rotate %247 by %c40_i32_300 dim 1 : vector<8x512xf32>, i32 -> vector<8x512xf32>
    %c16_301 = arith.constant 16 : index
    %c0_302 = arith.constant 0 : index
    %257 = vector.load %arg7[%c16_301, %c0_302] : memref<200x512xf32, #tpu.memory_space<vmem>>, vector<8x512xf32>
    tpu.vector_store %arg7[%c16_301, %c0_302], %256 {strides = array<i32>} : memref<200x512xf32, #tpu.memory_space<vmem>>, vector<8x512xf32>,
    %c39_i32_303 = arith.constant 39 : i32
    %258 = tpu.dynamic_rotate %247 by %c39_i32_303 dim 1 : vector<8x512xf32>, i32 -> vector<8x512xf32>
    %c24_304 = arith.constant 24 : index
    %c0_305 = arith.constant 0 : index
    %259 = vector.load %arg7[%c24_304, %c0_305] : memref<200x512xf32, #tpu.memory_space<vmem>>, vector<8x512xf32>
    tpu.vector_store %arg7[%c24_304, %c0_305], %258 {strides = array<i32>} : memref<200x512xf32, #tpu.memory_space<vmem>>, vector<8x512xf32>,
    %c38_i32_306 = arith.constant 38 : i32
    %260 = tpu.dynamic_rotate %247 by %c38_i32_306 dim 1 : vector<8x512xf32>, i32 -> vector<8x512xf32>
    %c32_307 = arith.constant 32 : index
    %c0_308 = arith.constant 0 : index
    %261 = vector.load %arg7[%c32_307, %c0_308] : memref<200x512xf32, #tpu.memory_space<vmem>>, vector<8x512xf32>
    tpu.vector_store %arg7[%c32_307, %c0_308], %260 {strides = array<i32>} : memref<200x512xf32, #tpu.memory_space<vmem>>, vector<8x512xf32>,
    %c22_i32_309 = arith.constant 22 : i32
    %262 = tpu.dynamic_rotate %247 by %c22_i32_309 dim 1 : vector<8x512xf32>, i32 -> vector<8x512xf32>
    %c40_310 = arith.constant 40 : index
    %c0_311 = arith.constant 0 : index
    %263 = vector.load %arg7[%c40_310, %c0_311] : memref<200x512xf32, #tpu.memory_space<vmem>>, vector<8x512xf32>
    tpu.vector_store %arg7[%c40_310, %c0_311], %262 {strides = array<i32>} : memref<200x512xf32, #tpu.memory_space<vmem>>, vector<8x512xf32>,
    %c21_i32_312 = arith.constant 21 : i32
    %264 = tpu.dynamic_rotate %247 by %c21_i32_312 dim 1 : vector<8x512xf32>, i32 -> vector<8x512xf32>
    %c48_313 = arith.constant 48 : index
    %c0_314 = arith.constant 0 : index
    %265 = vector.load %arg7[%c48_313, %c0_314] : memref<200x512xf32, #tpu.memory_space<vmem>>, vector<8x512xf32>
    tpu.vector_store %arg7[%c48_313, %c0_314], %264 {strides = array<i32>} : memref<200x512xf32, #tpu.memory_space<vmem>>, vector<8x512xf32>,
    %c20_i32_315 = arith.constant 20 : i32
    %266 = tpu.dynamic_rotate %247 by %c20_i32_315 dim 1 : vector<8x512xf32>, i32 -> vector<8x512xf32>
    %c56_316 = arith.constant 56 : index
    %c0_317 = arith.constant 0 : index
    %267 = vector.load %arg7[%c56_316, %c0_317] : memref<200x512xf32, #tpu.memory_space<vmem>>, vector<8x512xf32>
    tpu.vector_store %arg7[%c56_316, %c0_317], %266 {strides = array<i32>} : memref<200x512xf32, #tpu.memory_space<vmem>>, vector<8x512xf32>,
    %c19_i32_318 = arith.constant 19 : i32
    %268 = tpu.dynamic_rotate %247 by %c19_i32_318 dim 1 : vector<8x512xf32>, i32 -> vector<8x512xf32>
    %c64_319 = arith.constant 64 : index
    %c0_320 = arith.constant 0 : index
    %269 = vector.load %arg7[%c64_319, %c0_320] : memref<200x512xf32, #tpu.memory_space<vmem>>, vector<8x512xf32>
    tpu.vector_store %arg7[%c64_319, %c0_320], %268 {strides = array<i32>} : memref<200x512xf32, #tpu.memory_space<vmem>>, vector<8x512xf32>,
    %c18_i32_321 = arith.constant 18 : i32
    %270 = tpu.dynamic_rotate %247 by %c18_i32_321 dim 1 : vector<8x512xf32>, i32 -> vector<8x512xf32>
    %c72_322 = arith.constant 72 : index
    %c0_323 = arith.constant 0 : index
    %271 = vector.load %arg7[%c72_322, %c0_323] : memref<200x512xf32, #tpu.memory_space<vmem>>, vector<8x512xf32>
    tpu.vector_store %arg7[%c72_322, %c0_323], %270 {strides = array<i32>} : memref<200x512xf32, #tpu.memory_space<vmem>>, vector<8x512xf32>,
    %c2_i32_324 = arith.constant 2 : i32
    %272 = tpu.dynamic_rotate %247 by %c2_i32_324 dim 1 : vector<8x512xf32>, i32 -> vector<8x512xf32>
    %c80_325 = arith.constant 80 : index
    %c0_326 = arith.constant 0 : index
    %273 = vector.load %arg7[%c80_325, %c0_326] : memref<200x512xf32, #tpu.memory_space<vmem>>, vector<8x512xf32>
    tpu.vector_store %arg7[%c80_325, %c0_326], %272 {strides = array<i32>} : memref<200x512xf32, #tpu.memory_space<vmem>>, vector<8x512xf32>,
    %c1_i32_327 = arith.constant 1 : i32
    %274 = tpu.dynamic_rotate %247 by %c1_i32_327 dim 1 : vector<8x512xf32>, i32 -> vector<8x512xf32>
    %c88_328 = arith.constant 88 : index
    %c0_329 = arith.constant 0 : index
    %275 = vector.load %arg7[%c88_328, %c0_329] : memref<200x512xf32, #tpu.memory_space<vmem>>, vector<8x512xf32>
    tpu.vector_store %arg7[%c88_328, %c0_329], %274 {strides = array<i32>} : memref<200x512xf32, #tpu.memory_space<vmem>>, vector<8x512xf32>,
    %c96_330 = arith.constant 96 : index
    %c0_331 = arith.constant 0 : index
    %276 = vector.load %arg7[%c96_330, %c0_331] : memref<200x512xf32, #tpu.memory_space<vmem>>, vector<8x512xf32>
    tpu.vector_store %arg7[%c96_330, %c0_331], %247 {strides = array<i32>} : memref<200x512xf32, #tpu.memory_space<vmem>>, vector<8x512xf32>,
    %c511_i32_332 = arith.constant 511 : i32
    %277 = tpu.dynamic_rotate %247 by %c511_i32_332 dim 1 : vector<8x512xf32>, i32 -> vector<8x512xf32>
    %c104_333 = arith.constant 104 : index
    %c0_334 = arith.constant 0 : index
    %278 = vector.load %arg7[%c104_333, %c0_334] : memref<200x512xf32, #tpu.memory_space<vmem>>, vector<8x512xf32>
    tpu.vector_store %arg7[%c104_333, %c0_334], %277 {strides = array<i32>} : memref<200x512xf32, #tpu.memory_space<vmem>>, vector<8x512xf32>,
    %c510_i32_335 = arith.constant 510 : i32
    %279 = tpu.dynamic_rotate %247 by %c510_i32_335 dim 1 : vector<8x512xf32>, i32 -> vector<8x512xf32>
    %c112_336 = arith.constant 112 : index
    %c0_337 = arith.constant 0 : index
    %280 = vector.load %arg7[%c112_336, %c0_337] : memref<200x512xf32, #tpu.memory_space<vmem>>, vector<8x512xf32>
    tpu.vector_store %arg7[%c112_336, %c0_337], %279 {strides = array<i32>} : memref<200x512xf32, #tpu.memory_space<vmem>>, vector<8x512xf32>,
    %c494_i32_338 = arith.constant 494 : i32
    %281 = tpu.dynamic_rotate %247 by %c494_i32_338 dim 1 : vector<8x512xf32>, i32 -> vector<8x512xf32>
    %c120_339 = arith.constant 120 : index
    %c0_340 = arith.constant 0 : index
    %282 = vector.load %arg7[%c120_339, %c0_340] : memref<200x512xf32, #tpu.memory_space<vmem>>, vector<8x512xf32>
    tpu.vector_store %arg7[%c120_339, %c0_340], %281 {strides = array<i32>} : memref<200x512xf32, #tpu.memory_space<vmem>>, vector<8x512xf32>,
    %c493_i32_341 = arith.constant 493 : i32
    %283 = tpu.dynamic_rotate %247 by %c493_i32_341 dim 1 : vector<8x512xf32>, i32 -> vector<8x512xf32>
    %c128_342 = arith.constant 128 : index
    %c0_343 = arith.constant 0 : index
    %284 = vector.load %arg7[%c128_342, %c0_343] : memref<200x512xf32, #tpu.memory_space<vmem>>, vector<8x512xf32>
    tpu.vector_store %arg7[%c128_342, %c0_343], %283 {strides = array<i32>} : memref<200x512xf32, #tpu.memory_space<vmem>>, vector<8x512xf32>,
    %c492_i32_344 = arith.constant 492 : i32
    %285 = tpu.dynamic_rotate %247 by %c492_i32_344 dim 1 : vector<8x512xf32>, i32 -> vector<8x512xf32>
    %c136_345 = arith.constant 136 : index
    %c0_346 = arith.constant 0 : index
    %286 = vector.load %arg7[%c136_345, %c0_346] : memref<200x512xf32, #tpu.memory_space<vmem>>, vector<8x512xf32>
    tpu.vector_store %arg7[%c136_345, %c0_346], %285 {strides = array<i32>} : memref<200x512xf32, #tpu.memory_space<vmem>>, vector<8x512xf32>,
    %c491_i32_347 = arith.constant 491 : i32
    %287 = tpu.dynamic_rotate %247 by %c491_i32_347 dim 1 : vector<8x512xf32>, i32 -> vector<8x512xf32>
    %c144_348 = arith.constant 144 : index
    %c0_349 = arith.constant 0 : index
    %288 = vector.load %arg7[%c144_348, %c0_349] : memref<200x512xf32, #tpu.memory_space<vmem>>, vector<8x512xf32>
    tpu.vector_store %arg7[%c144_348, %c0_349], %287 {strides = array<i32>} : memref<200x512xf32, #tpu.memory_space<vmem>>, vector<8x512xf32>,
    %c490_i32_350 = arith.constant 490 : i32
    %289 = tpu.dynamic_rotate %247 by %c490_i32_350 dim 1 : vector<8x512xf32>, i32 -> vector<8x512xf32>
    %c152_351 = arith.constant 152 : index
    %c0_352 = arith.constant 0 : index
    %290 = vector.load %arg7[%c152_351, %c0_352] : memref<200x512xf32, #tpu.memory_space<vmem>>, vector<8x512xf32>
    tpu.vector_store %arg7[%c152_351, %c0_352], %289 {strides = array<i32>} : memref<200x512xf32, #tpu.memory_space<vmem>>, vector<8x512xf32>,
    %c474_i32_353 = arith.constant 474 : i32
    %291 = tpu.dynamic_rotate %247 by %c474_i32_353 dim 1 : vector<8x512xf32>, i32 -> vector<8x512xf32>
    %c160_354 = arith.constant 160 : index
    %c0_355 = arith.constant 0 : index
    %292 = vector.load %arg7[%c160_354, %c0_355] : memref<200x512xf32, #tpu.memory_space<vmem>>, vector<8x512xf32>
    tpu.vector_store %arg7[%c160_354, %c0_355], %291 {strides = array<i32>} : memref<200x512xf32, #tpu.memory_space<vmem>>, vector<8x512xf32>,
    %c473_i32_356 = arith.constant 473 : i32
    %293 = tpu.dynamic_rotate %247 by %c473_i32_356 dim 1 : vector<8x512xf32>, i32 -> vector<8x512xf32>
    %c168_357 = arith.constant 168 : index
    %c0_358 = arith.constant 0 : index
    %294 = vector.load %arg7[%c168_357, %c0_358] : memref<200x512xf32, #tpu.memory_space<vmem>>, vector<8x512xf32>
    tpu.vector_store %arg7[%c168_357, %c0_358], %293 {strides = array<i32>} : memref<200x512xf32, #tpu.memory_space<vmem>>, vector<8x512xf32>,
    %c472_i32_359 = arith.constant 472 : i32
    %295 = tpu.dynamic_rotate %247 by %c472_i32_359 dim 1 : vector<8x512xf32>, i32 -> vector<8x512xf32>
    %c176_360 = arith.constant 176 : index
    %c0_361 = arith.constant 0 : index
    %296 = vector.load %arg7[%c176_360, %c0_361] : memref<200x512xf32, #tpu.memory_space<vmem>>, vector<8x512xf32>
    tpu.vector_store %arg7[%c176_360, %c0_361], %295 {strides = array<i32>} : memref<200x512xf32, #tpu.memory_space<vmem>>, vector<8x512xf32>,
    %c471_i32_362 = arith.constant 471 : i32
    %297 = tpu.dynamic_rotate %247 by %c471_i32_362 dim 1 : vector<8x512xf32>, i32 -> vector<8x512xf32>
    %c184_363 = arith.constant 184 : index
    %c0_364 = arith.constant 0 : index
    %298 = vector.load %arg7[%c184_363, %c0_364] : memref<200x512xf32, #tpu.memory_space<vmem>>, vector<8x512xf32>
    tpu.vector_store %arg7[%c184_363, %c0_364], %297 {strides = array<i32>} : memref<200x512xf32, #tpu.memory_space<vmem>>, vector<8x512xf32>,
    %c470_i32_365 = arith.constant 470 : i32
    %299 = tpu.dynamic_rotate %247 by %c470_i32_365 dim 1 : vector<8x512xf32>, i32 -> vector<8x512xf32>
    %c192_366 = arith.constant 192 : index
    %c0_367 = arith.constant 0 : index
    %300 = vector.load %arg7[%c192_366, %c0_367] : memref<200x512xf32, #tpu.memory_space<vmem>>, vector<8x512xf32>
    tpu.vector_store %arg7[%c192_366, %c0_367], %299 {strides = array<i32>} : memref<200x512xf32, #tpu.memory_space<vmem>>, vector<8x512xf32>,
    %c0_368 = arith.constant 0 : index
    %c0_369 = arith.constant 0 : index
    %301 = vector.load %arg7[%c0_368, %c0_369] : memref<200x512xf32, #tpu.memory_space<vmem>>, vector<200x512xf32>
    %cst_370 = arith.constant dense<0.000000e+00> : vector<8x512xf32>
    %302 = tpu.matmul %249, %301, %cst_370 {dimension_numbers = #tpu.dot_dimension_numbers<[1], [0], [0], [1], [0, 0, 1, 1], [], []>} : vector<8x200xf32>, vector<200x512xf32>, vector<8x512xf32> -> vector<8x512xf32>
    %303 = vector.broadcast %251 : vector<8x1xf32> to vector<8x512xf32>
    %304 = arith.addf %302, %303 : vector<8x512xf32>
    %cst_371 = arith.constant 0.000000e+00 : f32
    %305 = vector.broadcast %cst_371 : f32 to vector<8x512xf32>
    %306 = arith.maximumf %304, %305 : vector<8x512xf32>
    %307 = vector.broadcast %0 : vector<1x512xf32> to vector<8x512xf32>
    %308 = arith.mulf %306, %307 : vector<8x512xf32>
    %c2_372 = arith.constant 2 : index
    %c0_373 = arith.constant 0 : index
    %c0_374 = arith.constant 0 : index
    %309 = vector.load %arg4[%c2_372, %c0_373, %c0_374] : memref<4x8x200xf32, #tpu.memory_space<vmem>>, vector<1x8x200xf32>
    %310 = vector.shape_cast %309 : vector<1x8x200xf32> to vector<8x200xf32>
    %c2_375 = arith.constant 2 : index
    %c0_376 = arith.constant 0 : index
    %c0_377 = arith.constant 0 : index
    %311 = vector.load %arg5[%c2_375, %c0_376, %c0_377] : memref<4x8x1xf32, #tpu.memory_space<vmem>>, vector<1x8x1xf32>
    %312 = vector.shape_cast %311 : vector<1x8x1xf32> to vector<8x1xf32>
    %c42_i32_378 = arith.constant 42 : i32
    %313 = tpu.dynamic_rotate %308 by %c42_i32_378 dim 1 : vector<8x512xf32>, i32 -> vector<8x512xf32>
    %c0_379 = arith.constant 0 : index
    %c0_380 = arith.constant 0 : index
    %314 = vector.load %arg7[%c0_379, %c0_380] : memref<200x512xf32, #tpu.memory_space<vmem>>, vector<8x512xf32>
    tpu.vector_store %arg7[%c0_379, %c0_380], %313 {strides = array<i32>} : memref<200x512xf32, #tpu.memory_space<vmem>>, vector<8x512xf32>,
    %c41_i32_381 = arith.constant 41 : i32
    %315 = tpu.dynamic_rotate %308 by %c41_i32_381 dim 1 : vector<8x512xf32>, i32 -> vector<8x512xf32>
    %c8_382 = arith.constant 8 : index
    %c0_383 = arith.constant 0 : index
    %316 = vector.load %arg7[%c8_382, %c0_383] : memref<200x512xf32, #tpu.memory_space<vmem>>, vector<8x512xf32>
    tpu.vector_store %arg7[%c8_382, %c0_383], %315 {strides = array<i32>} : memref<200x512xf32, #tpu.memory_space<vmem>>, vector<8x512xf32>,
    %c40_i32_384 = arith.constant 40 : i32
    %317 = tpu.dynamic_rotate %308 by %c40_i32_384 dim 1 : vector<8x512xf32>, i32 -> vector<8x512xf32>
    %c16_385 = arith.constant 16 : index
    %c0_386 = arith.constant 0 : index
    %318 = vector.load %arg7[%c16_385, %c0_386] : memref<200x512xf32, #tpu.memory_space<vmem>>, vector<8x512xf32>
    tpu.vector_store %arg7[%c16_385, %c0_386], %317 {strides = array<i32>} : memref<200x512xf32, #tpu.memory_space<vmem>>, vector<8x512xf32>,
    %c39_i32_387 = arith.constant 39 : i32
    %319 = tpu.dynamic_rotate %308 by %c39_i32_387 dim 1 : vector<8x512xf32>, i32 -> vector<8x512xf32>
    %c24_388 = arith.constant 24 : index
    %c0_389 = arith.constant 0 : index
    %320 = vector.load %arg7[%c24_388, %c0_389] : memref<200x512xf32, #tpu.memory_space<vmem>>, vector<8x512xf32>
    tpu.vector_store %arg7[%c24_388, %c0_389], %319 {strides = array<i32>} : memref<200x512xf32, #tpu.memory_space<vmem>>, vector<8x512xf32>,
    %c38_i32_390 = arith.constant 38 : i32
    %321 = tpu.dynamic_rotate %308 by %c38_i32_390 dim 1 : vector<8x512xf32>, i32 -> vector<8x512xf32>
    %c32_391 = arith.constant 32 : index
    %c0_392 = arith.constant 0 : index
    %322 = vector.load %arg7[%c32_391, %c0_392] : memref<200x512xf32, #tpu.memory_space<vmem>>, vector<8x512xf32>
    tpu.vector_store %arg7[%c32_391, %c0_392], %321 {strides = array<i32>} : memref<200x512xf32, #tpu.memory_space<vmem>>, vector<8x512xf32>,
    %c22_i32_393 = arith.constant 22 : i32
    %323 = tpu.dynamic_rotate %308 by %c22_i32_393 dim 1 : vector<8x512xf32>, i32 -> vector<8x512xf32>
    %c40_394 = arith.constant 40 : index
    %c0_395 = arith.constant 0 : index
    %324 = vector.load %arg7[%c40_394, %c0_395] : memref<200x512xf32, #tpu.memory_space<vmem>>, vector<8x512xf32>
    tpu.vector_store %arg7[%c40_394, %c0_395], %323 {strides = array<i32>} : memref<200x512xf32, #tpu.memory_space<vmem>>, vector<8x512xf32>,
    %c21_i32_396 = arith.constant 21 : i32
    %325 = tpu.dynamic_rotate %308 by %c21_i32_396 dim 1 : vector<8x512xf32>, i32 -> vector<8x512xf32>
    %c48_397 = arith.constant 48 : index
    %c0_398 = arith.constant 0 : index
    %326 = vector.load %arg7[%c48_397, %c0_398] : memref<200x512xf32, #tpu.memory_space<vmem>>, vector<8x512xf32>
    tpu.vector_store %arg7[%c48_397, %c0_398], %325 {strides = array<i32>} : memref<200x512xf32, #tpu.memory_space<vmem>>, vector<8x512xf32>,
    %c20_i32_399 = arith.constant 20 : i32
    %327 = tpu.dynamic_rotate %308 by %c20_i32_399 dim 1 : vector<8x512xf32>, i32 -> vector<8x512xf32>
    %c56_400 = arith.constant 56 : index
    %c0_401 = arith.constant 0 : index
    %328 = vector.load %arg7[%c56_400, %c0_401] : memref<200x512xf32, #tpu.memory_space<vmem>>, vector<8x512xf32>
    tpu.vector_store %arg7[%c56_400, %c0_401], %327 {strides = array<i32>} : memref<200x512xf32, #tpu.memory_space<vmem>>, vector<8x512xf32>,
    %c19_i32_402 = arith.constant 19 : i32
    %329 = tpu.dynamic_rotate %308 by %c19_i32_402 dim 1 : vector<8x512xf32>, i32 -> vector<8x512xf32>
    %c64_403 = arith.constant 64 : index
    %c0_404 = arith.constant 0 : index
    %330 = vector.load %arg7[%c64_403, %c0_404] : memref<200x512xf32, #tpu.memory_space<vmem>>, vector<8x512xf32>
    tpu.vector_store %arg7[%c64_403, %c0_404], %329 {strides = array<i32>} : memref<200x512xf32, #tpu.memory_space<vmem>>, vector<8x512xf32>,
    %c18_i32_405 = arith.constant 18 : i32
    %331 = tpu.dynamic_rotate %308 by %c18_i32_405 dim 1 : vector<8x512xf32>, i32 -> vector<8x512xf32>
    %c72_406 = arith.constant 72 : index
    %c0_407 = arith.constant 0 : index
    %332 = vector.load %arg7[%c72_406, %c0_407] : memref<200x512xf32, #tpu.memory_space<vmem>>, vector<8x512xf32>
    tpu.vector_store %arg7[%c72_406, %c0_407], %331 {strides = array<i32>} : memref<200x512xf32, #tpu.memory_space<vmem>>, vector<8x512xf32>,
    %c2_i32_408 = arith.constant 2 : i32
    %333 = tpu.dynamic_rotate %308 by %c2_i32_408 dim 1 : vector<8x512xf32>, i32 -> vector<8x512xf32>
    %c80_409 = arith.constant 80 : index
    %c0_410 = arith.constant 0 : index
    %334 = vector.load %arg7[%c80_409, %c0_410] : memref<200x512xf32, #tpu.memory_space<vmem>>, vector<8x512xf32>
    tpu.vector_store %arg7[%c80_409, %c0_410], %333 {strides = array<i32>} : memref<200x512xf32, #tpu.memory_space<vmem>>, vector<8x512xf32>,
    %c1_i32_411 = arith.constant 1 : i32
    %335 = tpu.dynamic_rotate %308 by %c1_i32_411 dim 1 : vector<8x512xf32>, i32 -> vector<8x512xf32>
    %c88_412 = arith.constant 88 : index
    %c0_413 = arith.constant 0 : index
    %336 = vector.load %arg7[%c88_412, %c0_413] : memref<200x512xf32, #tpu.memory_space<vmem>>, vector<8x512xf32>
    tpu.vector_store %arg7[%c88_412, %c0_413], %335 {strides = array<i32>} : memref<200x512xf32, #tpu.memory_space<vmem>>, vector<8x512xf32>,
    %c96_414 = arith.constant 96 : index
    %c0_415 = arith.constant 0 : index
    %337 = vector.load %arg7[%c96_414, %c0_415] : memref<200x512xf32, #tpu.memory_space<vmem>>, vector<8x512xf32>
    tpu.vector_store %arg7[%c96_414, %c0_415], %308 {strides = array<i32>} : memref<200x512xf32, #tpu.memory_space<vmem>>, vector<8x512xf32>,
    %c511_i32_416 = arith.constant 511 : i32
    %338 = tpu.dynamic_rotate %308 by %c511_i32_416 dim 1 : vector<8x512xf32>, i32 -> vector<8x512xf32>
    %c104_417 = arith.constant 104 : index
    %c0_418 = arith.constant 0 : index
    %339 = vector.load %arg7[%c104_417, %c0_418] : memref<200x512xf32, #tpu.memory_space<vmem>>, vector<8x512xf32>
    tpu.vector_store %arg7[%c104_417, %c0_418], %338 {strides = array<i32>} : memref<200x512xf32, #tpu.memory_space<vmem>>, vector<8x512xf32>,
    %c510_i32_419 = arith.constant 510 : i32
    %340 = tpu.dynamic_rotate %308 by %c510_i32_419 dim 1 : vector<8x512xf32>, i32 -> vector<8x512xf32>
    %c112_420 = arith.constant 112 : index
    %c0_421 = arith.constant 0 : index
    %341 = vector.load %arg7[%c112_420, %c0_421] : memref<200x512xf32, #tpu.memory_space<vmem>>, vector<8x512xf32>
    tpu.vector_store %arg7[%c112_420, %c0_421], %340 {strides = array<i32>} : memref<200x512xf32, #tpu.memory_space<vmem>>, vector<8x512xf32>,
    %c494_i32_422 = arith.constant 494 : i32
    %342 = tpu.dynamic_rotate %308 by %c494_i32_422 dim 1 : vector<8x512xf32>, i32 -> vector<8x512xf32>
    %c120_423 = arith.constant 120 : index
    %c0_424 = arith.constant 0 : index
    %343 = vector.load %arg7[%c120_423, %c0_424] : memref<200x512xf32, #tpu.memory_space<vmem>>, vector<8x512xf32>
    tpu.vector_store %arg7[%c120_423, %c0_424], %342 {strides = array<i32>} : memref<200x512xf32, #tpu.memory_space<vmem>>, vector<8x512xf32>,
    %c493_i32_425 = arith.constant 493 : i32
    %344 = tpu.dynamic_rotate %308 by %c493_i32_425 dim 1 : vector<8x512xf32>, i32 -> vector<8x512xf32>
    %c128_426 = arith.constant 128 : index
    %c0_427 = arith.constant 0 : index
    %345 = vector.load %arg7[%c128_426, %c0_427] : memref<200x512xf32, #tpu.memory_space<vmem>>, vector<8x512xf32>
    tpu.vector_store %arg7[%c128_426, %c0_427], %344 {strides = array<i32>} : memref<200x512xf32, #tpu.memory_space<vmem>>, vector<8x512xf32>,
    %c492_i32_428 = arith.constant 492 : i32
    %346 = tpu.dynamic_rotate %308 by %c492_i32_428 dim 1 : vector<8x512xf32>, i32 -> vector<8x512xf32>
    %c136_429 = arith.constant 136 : index
    %c0_430 = arith.constant 0 : index
    %347 = vector.load %arg7[%c136_429, %c0_430] : memref<200x512xf32, #tpu.memory_space<vmem>>, vector<8x512xf32>
    tpu.vector_store %arg7[%c136_429, %c0_430], %346 {strides = array<i32>} : memref<200x512xf32, #tpu.memory_space<vmem>>, vector<8x512xf32>,
    %c491_i32_431 = arith.constant 491 : i32
    %348 = tpu.dynamic_rotate %308 by %c491_i32_431 dim 1 : vector<8x512xf32>, i32 -> vector<8x512xf32>
    %c144_432 = arith.constant 144 : index
    %c0_433 = arith.constant 0 : index
    %349 = vector.load %arg7[%c144_432, %c0_433] : memref<200x512xf32, #tpu.memory_space<vmem>>, vector<8x512xf32>
    tpu.vector_store %arg7[%c144_432, %c0_433], %348 {strides = array<i32>} : memref<200x512xf32, #tpu.memory_space<vmem>>, vector<8x512xf32>,
    %c490_i32_434 = arith.constant 490 : i32
    %350 = tpu.dynamic_rotate %308 by %c490_i32_434 dim 1 : vector<8x512xf32>, i32 -> vector<8x512xf32>
    %c152_435 = arith.constant 152 : index
    %c0_436 = arith.constant 0 : index
    %351 = vector.load %arg7[%c152_435, %c0_436] : memref<200x512xf32, #tpu.memory_space<vmem>>, vector<8x512xf32>
    tpu.vector_store %arg7[%c152_435, %c0_436], %350 {strides = array<i32>} : memref<200x512xf32, #tpu.memory_space<vmem>>, vector<8x512xf32>,
    %c474_i32_437 = arith.constant 474 : i32
    %352 = tpu.dynamic_rotate %308 by %c474_i32_437 dim 1 : vector<8x512xf32>, i32 -> vector<8x512xf32>
    %c160_438 = arith.constant 160 : index
    %c0_439 = arith.constant 0 : index
    %353 = vector.load %arg7[%c160_438, %c0_439] : memref<200x512xf32, #tpu.memory_space<vmem>>, vector<8x512xf32>
    tpu.vector_store %arg7[%c160_438, %c0_439], %352 {strides = array<i32>} : memref<200x512xf32, #tpu.memory_space<vmem>>, vector<8x512xf32>,
    %c473_i32_440 = arith.constant 473 : i32
    %354 = tpu.dynamic_rotate %308 by %c473_i32_440 dim 1 : vector<8x512xf32>, i32 -> vector<8x512xf32>
    %c168_441 = arith.constant 168 : index
    %c0_442 = arith.constant 0 : index
    %355 = vector.load %arg7[%c168_441, %c0_442] : memref<200x512xf32, #tpu.memory_space<vmem>>, vector<8x512xf32>
    tpu.vector_store %arg7[%c168_441, %c0_442], %354 {strides = array<i32>} : memref<200x512xf32, #tpu.memory_space<vmem>>, vector<8x512xf32>,
    %c472_i32_443 = arith.constant 472 : i32
    %356 = tpu.dynamic_rotate %308 by %c472_i32_443 dim 1 : vector<8x512xf32>, i32 -> vector<8x512xf32>
    %c176_444 = arith.constant 176 : index
    %c0_445 = arith.constant 0 : index
    %357 = vector.load %arg7[%c176_444, %c0_445] : memref<200x512xf32, #tpu.memory_space<vmem>>, vector<8x512xf32>
    tpu.vector_store %arg7[%c176_444, %c0_445], %356 {strides = array<i32>} : memref<200x512xf32, #tpu.memory_space<vmem>>, vector<8x512xf32>,
    %c471_i32_446 = arith.constant 471 : i32
    %358 = tpu.dynamic_rotate %308 by %c471_i32_446 dim 1 : vector<8x512xf32>, i32 -> vector<8x512xf32>
    %c184_447 = arith.constant 184 : index
    %c0_448 = arith.constant 0 : index
    %359 = vector.load %arg7[%c184_447, %c0_448] : memref<200x512xf32, #tpu.memory_space<vmem>>, vector<8x512xf32>
    tpu.vector_store %arg7[%c184_447, %c0_448], %358 {strides = array<i32>} : memref<200x512xf32, #tpu.memory_space<vmem>>, vector<8x512xf32>,
    %c470_i32_449 = arith.constant 470 : i32
    %360 = tpu.dynamic_rotate %308 by %c470_i32_449 dim 1 : vector<8x512xf32>, i32 -> vector<8x512xf32>
    %c192_450 = arith.constant 192 : index
    %c0_451 = arith.constant 0 : index
    %361 = vector.load %arg7[%c192_450, %c0_451] : memref<200x512xf32, #tpu.memory_space<vmem>>, vector<8x512xf32>
    tpu.vector_store %arg7[%c192_450, %c0_451], %360 {strides = array<i32>} : memref<200x512xf32, #tpu.memory_space<vmem>>, vector<8x512xf32>,
    %c0_452 = arith.constant 0 : index
    %c0_453 = arith.constant 0 : index
    %362 = vector.load %arg7[%c0_452, %c0_453] : memref<200x512xf32, #tpu.memory_space<vmem>>, vector<200x512xf32>
    %cst_454 = arith.constant dense<0.000000e+00> : vector<8x512xf32>
    %363 = tpu.matmul %310, %362, %cst_454 {dimension_numbers = #tpu.dot_dimension_numbers<[1], [0], [0], [1], [0, 0, 1, 1], [], []>} : vector<8x200xf32>, vector<200x512xf32>, vector<8x512xf32> -> vector<8x512xf32>
    %364 = vector.broadcast %312 : vector<8x1xf32> to vector<8x512xf32>
    %365 = arith.addf %363, %364 : vector<8x512xf32>
    %cst_455 = arith.constant 0.000000e+00 : f32
    %366 = vector.broadcast %cst_455 : f32 to vector<8x512xf32>
    %367 = arith.maximumf %365, %366 : vector<8x512xf32>
    %368 = vector.broadcast %0 : vector<1x512xf32> to vector<8x512xf32>
    %369 = arith.mulf %367, %368 : vector<8x512xf32>
    %370 = arith.addf %369, %247 : vector<8x512xf32>
    %c3 = arith.constant 3 : index
    %c0_456 = arith.constant 0 : index
    %c0_457 = arith.constant 0 : index
    %371 = vector.load %arg2[%c3, %c0_456, %c0_457] : memref<4x8x200xf32, #tpu.memory_space<vmem>>, vector<1x8x200xf32>
    %372 = vector.shape_cast %371 : vector<1x8x200xf32> to vector<8x200xf32>
    %c3_458 = arith.constant 3 : index
    %c0_459 = arith.constant 0 : index
    %c0_460 = arith.constant 0 : index
    %373 = vector.load %arg3[%c3_458, %c0_459, %c0_460] : memref<4x8x1xf32, #tpu.memory_space<vmem>>, vector<1x8x1xf32>
    %374 = vector.shape_cast %373 : vector<1x8x1xf32> to vector<8x1xf32>
    %c42_i32_461 = arith.constant 42 : i32
    %375 = tpu.dynamic_rotate %370 by %c42_i32_461 dim 1 : vector<8x512xf32>, i32 -> vector<8x512xf32>
    %c0_462 = arith.constant 0 : index
    %c0_463 = arith.constant 0 : index
    %376 = vector.load %arg7[%c0_462, %c0_463] : memref<200x512xf32, #tpu.memory_space<vmem>>, vector<8x512xf32>
    tpu.vector_store %arg7[%c0_462, %c0_463], %375 {strides = array<i32>} : memref<200x512xf32, #tpu.memory_space<vmem>>, vector<8x512xf32>,
    %c41_i32_464 = arith.constant 41 : i32
    %377 = tpu.dynamic_rotate %370 by %c41_i32_464 dim 1 : vector<8x512xf32>, i32 -> vector<8x512xf32>
    %c8_465 = arith.constant 8 : index
    %c0_466 = arith.constant 0 : index
    %378 = vector.load %arg7[%c8_465, %c0_466] : memref<200x512xf32, #tpu.memory_space<vmem>>, vector<8x512xf32>
    tpu.vector_store %arg7[%c8_465, %c0_466], %377 {strides = array<i32>} : memref<200x512xf32, #tpu.memory_space<vmem>>, vector<8x512xf32>,
    %c40_i32_467 = arith.constant 40 : i32
    %379 = tpu.dynamic_rotate %370 by %c40_i32_467 dim 1 : vector<8x512xf32>, i32 -> vector<8x512xf32>
    %c16_468 = arith.constant 16 : index
    %c0_469 = arith.constant 0 : index
    %380 = vector.load %arg7[%c16_468, %c0_469] : memref<200x512xf32, #tpu.memory_space<vmem>>, vector<8x512xf32>
    tpu.vector_store %arg7[%c16_468, %c0_469], %379 {strides = array<i32>} : memref<200x512xf32, #tpu.memory_space<vmem>>, vector<8x512xf32>,
    %c39_i32_470 = arith.constant 39 : i32
    %381 = tpu.dynamic_rotate %370 by %c39_i32_470 dim 1 : vector<8x512xf32>, i32 -> vector<8x512xf32>
    %c24_471 = arith.constant 24 : index
    %c0_472 = arith.constant 0 : index
    %382 = vector.load %arg7[%c24_471, %c0_472] : memref<200x512xf32, #tpu.memory_space<vmem>>, vector<8x512xf32>
    tpu.vector_store %arg7[%c24_471, %c0_472], %381 {strides = array<i32>} : memref<200x512xf32, #tpu.memory_space<vmem>>, vector<8x512xf32>,
    %c38_i32_473 = arith.constant 38 : i32
    %383 = tpu.dynamic_rotate %370 by %c38_i32_473 dim 1 : vector<8x512xf32>, i32 -> vector<8x512xf32>
    %c32_474 = arith.constant 32 : index
    %c0_475 = arith.constant 0 : index
    %384 = vector.load %arg7[%c32_474, %c0_475] : memref<200x512xf32, #tpu.memory_space<vmem>>, vector<8x512xf32>
    tpu.vector_store %arg7[%c32_474, %c0_475], %383 {strides = array<i32>} : memref<200x512xf32, #tpu.memory_space<vmem>>, vector<8x512xf32>,
    %c22_i32_476 = arith.constant 22 : i32
    %385 = tpu.dynamic_rotate %370 by %c22_i32_476 dim 1 : vector<8x512xf32>, i32 -> vector<8x512xf32>
    %c40_477 = arith.constant 40 : index
    %c0_478 = arith.constant 0 : index
    %386 = vector.load %arg7[%c40_477, %c0_478] : memref<200x512xf32, #tpu.memory_space<vmem>>, vector<8x512xf32>
    tpu.vector_store %arg7[%c40_477, %c0_478], %385 {strides = array<i32>} : memref<200x512xf32, #tpu.memory_space<vmem>>, vector<8x512xf32>,
    %c21_i32_479 = arith.constant 21 : i32
    %387 = tpu.dynamic_rotate %370 by %c21_i32_479 dim 1 : vector<8x512xf32>, i32 -> vector<8x512xf32>
    %c48_480 = arith.constant 48 : index
    %c0_481 = arith.constant 0 : index
    %388 = vector.load %arg7[%c48_480, %c0_481] : memref<200x512xf32, #tpu.memory_space<vmem>>, vector<8x512xf32>
    tpu.vector_store %arg7[%c48_480, %c0_481], %387 {strides = array<i32>} : memref<200x512xf32, #tpu.memory_space<vmem>>, vector<8x512xf32>,
    %c20_i32_482 = arith.constant 20 : i32
    %389 = tpu.dynamic_rotate %370 by %c20_i32_482 dim 1 : vector<8x512xf32>, i32 -> vector<8x512xf32>
    %c56_483 = arith.constant 56 : index
    %c0_484 = arith.constant 0 : index
    %390 = vector.load %arg7[%c56_483, %c0_484] : memref<200x512xf32, #tpu.memory_space<vmem>>, vector<8x512xf32>
    tpu.vector_store %arg7[%c56_483, %c0_484], %389 {strides = array<i32>} : memref<200x512xf32, #tpu.memory_space<vmem>>, vector<8x512xf32>,
    %c19_i32_485 = arith.constant 19 : i32
    %391 = tpu.dynamic_rotate %370 by %c19_i32_485 dim 1 : vector<8x512xf32>, i32 -> vector<8x512xf32>
    %c64_486 = arith.constant 64 : index
    %c0_487 = arith.constant 0 : index
    %392 = vector.load %arg7[%c64_486, %c0_487] : memref<200x512xf32, #tpu.memory_space<vmem>>, vector<8x512xf32>
    tpu.vector_store %arg7[%c64_486, %c0_487], %391 {strides = array<i32>} : memref<200x512xf32, #tpu.memory_space<vmem>>, vector<8x512xf32>,
    %c18_i32_488 = arith.constant 18 : i32
    %393 = tpu.dynamic_rotate %370 by %c18_i32_488 dim 1 : vector<8x512xf32>, i32 -> vector<8x512xf32>
    %c72_489 = arith.constant 72 : index
    %c0_490 = arith.constant 0 : index
    %394 = vector.load %arg7[%c72_489, %c0_490] : memref<200x512xf32, #tpu.memory_space<vmem>>, vector<8x512xf32>
    tpu.vector_store %arg7[%c72_489, %c0_490], %393 {strides = array<i32>} : memref<200x512xf32, #tpu.memory_space<vmem>>, vector<8x512xf32>,
    %c2_i32_491 = arith.constant 2 : i32
    %395 = tpu.dynamic_rotate %370 by %c2_i32_491 dim 1 : vector<8x512xf32>, i32 -> vector<8x512xf32>
    %c80_492 = arith.constant 80 : index
    %c0_493 = arith.constant 0 : index
    %396 = vector.load %arg7[%c80_492, %c0_493] : memref<200x512xf32, #tpu.memory_space<vmem>>, vector<8x512xf32>
    tpu.vector_store %arg7[%c80_492, %c0_493], %395 {strides = array<i32>} : memref<200x512xf32, #tpu.memory_space<vmem>>, vector<8x512xf32>,
    %c1_i32_494 = arith.constant 1 : i32
    %397 = tpu.dynamic_rotate %370 by %c1_i32_494 dim 1 : vector<8x512xf32>, i32 -> vector<8x512xf32>
    %c88_495 = arith.constant 88 : index
    %c0_496 = arith.constant 0 : index
    %398 = vector.load %arg7[%c88_495, %c0_496] : memref<200x512xf32, #tpu.memory_space<vmem>>, vector<8x512xf32>
    tpu.vector_store %arg7[%c88_495, %c0_496], %397 {strides = array<i32>} : memref<200x512xf32, #tpu.memory_space<vmem>>, vector<8x512xf32>,
    %c96_497 = arith.constant 96 : index
    %c0_498 = arith.constant 0 : index
    %399 = vector.load %arg7[%c96_497, %c0_498] : memref<200x512xf32, #tpu.memory_space<vmem>>, vector<8x512xf32>
    tpu.vector_store %arg7[%c96_497, %c0_498], %370 {strides = array<i32>} : memref<200x512xf32, #tpu.memory_space<vmem>>, vector<8x512xf32>,
    %c511_i32_499 = arith.constant 511 : i32
    %400 = tpu.dynamic_rotate %370 by %c511_i32_499 dim 1 : vector<8x512xf32>, i32 -> vector<8x512xf32>
    %c104_500 = arith.constant 104 : index
    %c0_501 = arith.constant 0 : index
    %401 = vector.load %arg7[%c104_500, %c0_501] : memref<200x512xf32, #tpu.memory_space<vmem>>, vector<8x512xf32>
    tpu.vector_store %arg7[%c104_500, %c0_501], %400 {strides = array<i32>} : memref<200x512xf32, #tpu.memory_space<vmem>>, vector<8x512xf32>,
    %c510_i32_502 = arith.constant 510 : i32
    %402 = tpu.dynamic_rotate %370 by %c510_i32_502 dim 1 : vector<8x512xf32>, i32 -> vector<8x512xf32>
    %c112_503 = arith.constant 112 : index
    %c0_504 = arith.constant 0 : index
    %403 = vector.load %arg7[%c112_503, %c0_504] : memref<200x512xf32, #tpu.memory_space<vmem>>, vector<8x512xf32>
    tpu.vector_store %arg7[%c112_503, %c0_504], %402 {strides = array<i32>} : memref<200x512xf32, #tpu.memory_space<vmem>>, vector<8x512xf32>,
    %c494_i32_505 = arith.constant 494 : i32
    %404 = tpu.dynamic_rotate %370 by %c494_i32_505 dim 1 : vector<8x512xf32>, i32 -> vector<8x512xf32>
    %c120_506 = arith.constant 120 : index
    %c0_507 = arith.constant 0 : index
    %405 = vector.load %arg7[%c120_506, %c0_507] : memref<200x512xf32, #tpu.memory_space<vmem>>, vector<8x512xf32>
    tpu.vector_store %arg7[%c120_506, %c0_507], %404 {strides = array<i32>} : memref<200x512xf32, #tpu.memory_space<vmem>>, vector<8x512xf32>,
    %c493_i32_508 = arith.constant 493 : i32
    %406 = tpu.dynamic_rotate %370 by %c493_i32_508 dim 1 : vector<8x512xf32>, i32 -> vector<8x512xf32>
    %c128_509 = arith.constant 128 : index
    %c0_510 = arith.constant 0 : index
    %407 = vector.load %arg7[%c128_509, %c0_510] : memref<200x512xf32, #tpu.memory_space<vmem>>, vector<8x512xf32>
    tpu.vector_store %arg7[%c128_509, %c0_510], %406 {strides = array<i32>} : memref<200x512xf32, #tpu.memory_space<vmem>>, vector<8x512xf32>,
    %c492_i32_511 = arith.constant 492 : i32
    %408 = tpu.dynamic_rotate %370 by %c492_i32_511 dim 1 : vector<8x512xf32>, i32 -> vector<8x512xf32>
    %c136_512 = arith.constant 136 : index
    %c0_513 = arith.constant 0 : index
    %409 = vector.load %arg7[%c136_512, %c0_513] : memref<200x512xf32, #tpu.memory_space<vmem>>, vector<8x512xf32>
    tpu.vector_store %arg7[%c136_512, %c0_513], %408 {strides = array<i32>} : memref<200x512xf32, #tpu.memory_space<vmem>>, vector<8x512xf32>,
    %c491_i32_514 = arith.constant 491 : i32
    %410 = tpu.dynamic_rotate %370 by %c491_i32_514 dim 1 : vector<8x512xf32>, i32 -> vector<8x512xf32>
    %c144_515 = arith.constant 144 : index
    %c0_516 = arith.constant 0 : index
    %411 = vector.load %arg7[%c144_515, %c0_516] : memref<200x512xf32, #tpu.memory_space<vmem>>, vector<8x512xf32>
    tpu.vector_store %arg7[%c144_515, %c0_516], %410 {strides = array<i32>} : memref<200x512xf32, #tpu.memory_space<vmem>>, vector<8x512xf32>,
    %c490_i32_517 = arith.constant 490 : i32
    %412 = tpu.dynamic_rotate %370 by %c490_i32_517 dim 1 : vector<8x512xf32>, i32 -> vector<8x512xf32>
    %c152_518 = arith.constant 152 : index
    %c0_519 = arith.constant 0 : index
    %413 = vector.load %arg7[%c152_518, %c0_519] : memref<200x512xf32, #tpu.memory_space<vmem>>, vector<8x512xf32>
    tpu.vector_store %arg7[%c152_518, %c0_519], %412 {strides = array<i32>} : memref<200x512xf32, #tpu.memory_space<vmem>>, vector<8x512xf32>,
    %c474_i32_520 = arith.constant 474 : i32
    %414 = tpu.dynamic_rotate %370 by %c474_i32_520 dim 1 : vector<8x512xf32>, i32 -> vector<8x512xf32>
    %c160_521 = arith.constant 160 : index
    %c0_522 = arith.constant 0 : index
    %415 = vector.load %arg7[%c160_521, %c0_522] : memref<200x512xf32, #tpu.memory_space<vmem>>, vector<8x512xf32>
    tpu.vector_store %arg7[%c160_521, %c0_522], %414 {strides = array<i32>} : memref<200x512xf32, #tpu.memory_space<vmem>>, vector<8x512xf32>,
    %c473_i32_523 = arith.constant 473 : i32
    %416 = tpu.dynamic_rotate %370 by %c473_i32_523 dim 1 : vector<8x512xf32>, i32 -> vector<8x512xf32>
    %c168_524 = arith.constant 168 : index
    %c0_525 = arith.constant 0 : index
    %417 = vector.load %arg7[%c168_524, %c0_525] : memref<200x512xf32, #tpu.memory_space<vmem>>, vector<8x512xf32>
    tpu.vector_store %arg7[%c168_524, %c0_525], %416 {strides = array<i32>} : memref<200x512xf32, #tpu.memory_space<vmem>>, vector<8x512xf32>,
    %c472_i32_526 = arith.constant 472 : i32
    %418 = tpu.dynamic_rotate %370 by %c472_i32_526 dim 1 : vector<8x512xf32>, i32 -> vector<8x512xf32>
    %c176_527 = arith.constant 176 : index
    %c0_528 = arith.constant 0 : index
    %419 = vector.load %arg7[%c176_527, %c0_528] : memref<200x512xf32, #tpu.memory_space<vmem>>, vector<8x512xf32>
    tpu.vector_store %arg7[%c176_527, %c0_528], %418 {strides = array<i32>} : memref<200x512xf32, #tpu.memory_space<vmem>>, vector<8x512xf32>,
    %c471_i32_529 = arith.constant 471 : i32
    %420 = tpu.dynamic_rotate %370 by %c471_i32_529 dim 1 : vector<8x512xf32>, i32 -> vector<8x512xf32>
    %c184_530 = arith.constant 184 : index
    %c0_531 = arith.constant 0 : index
    %421 = vector.load %arg7[%c184_530, %c0_531] : memref<200x512xf32, #tpu.memory_space<vmem>>, vector<8x512xf32>
    tpu.vector_store %arg7[%c184_530, %c0_531], %420 {strides = array<i32>} : memref<200x512xf32, #tpu.memory_space<vmem>>, vector<8x512xf32>,
    %c470_i32_532 = arith.constant 470 : i32
    %422 = tpu.dynamic_rotate %370 by %c470_i32_532 dim 1 : vector<8x512xf32>, i32 -> vector<8x512xf32>
    %c192_533 = arith.constant 192 : index
    %c0_534 = arith.constant 0 : index
    %423 = vector.load %arg7[%c192_533, %c0_534] : memref<200x512xf32, #tpu.memory_space<vmem>>, vector<8x512xf32>
    tpu.vector_store %arg7[%c192_533, %c0_534], %422 {strides = array<i32>} : memref<200x512xf32, #tpu.memory_space<vmem>>, vector<8x512xf32>,
    %c0_535 = arith.constant 0 : index
    %c0_536 = arith.constant 0 : index
    %424 = vector.load %arg7[%c0_535, %c0_536] : memref<200x512xf32, #tpu.memory_space<vmem>>, vector<200x512xf32>
    %cst_537 = arith.constant dense<0.000000e+00> : vector<8x512xf32>
    %425 = tpu.matmul %372, %424, %cst_537 {dimension_numbers = #tpu.dot_dimension_numbers<[1], [0], [0], [1], [0, 0, 1, 1], [], []>} : vector<8x200xf32>, vector<200x512xf32>, vector<8x512xf32> -> vector<8x512xf32>
    %426 = vector.broadcast %374 : vector<8x1xf32> to vector<8x512xf32>
    %427 = arith.addf %425, %426 : vector<8x512xf32>
    %cst_538 = arith.constant 0.000000e+00 : f32
    %428 = vector.broadcast %cst_538 : f32 to vector<8x512xf32>
    %429 = arith.maximumf %427, %428 : vector<8x512xf32>
    %430 = vector.broadcast %0 : vector<1x512xf32> to vector<8x512xf32>
    %431 = arith.mulf %429, %430 : vector<8x512xf32>
    %c3_539 = arith.constant 3 : index
    %c0_540 = arith.constant 0 : index
    %c0_541 = arith.constant 0 : index
    %432 = vector.load %arg4[%c3_539, %c0_540, %c0_541] : memref<4x8x200xf32, #tpu.memory_space<vmem>>, vector<1x8x200xf32>
    %433 = vector.shape_cast %432 : vector<1x8x200xf32> to vector<8x200xf32>
    %c3_542 = arith.constant 3 : index
    %c0_543 = arith.constant 0 : index
    %c0_544 = arith.constant 0 : index
    %434 = vector.load %arg5[%c3_542, %c0_543, %c0_544] : memref<4x8x1xf32, #tpu.memory_space<vmem>>, vector<1x8x1xf32>
    %435 = vector.shape_cast %434 : vector<1x8x1xf32> to vector<8x1xf32>
    %c42_i32_545 = arith.constant 42 : i32
    %436 = tpu.dynamic_rotate %431 by %c42_i32_545 dim 1 : vector<8x512xf32>, i32 -> vector<8x512xf32>
    %c0_546 = arith.constant 0 : index
    %c0_547 = arith.constant 0 : index
    %437 = vector.load %arg7[%c0_546, %c0_547] : memref<200x512xf32, #tpu.memory_space<vmem>>, vector<8x512xf32>
    tpu.vector_store %arg7[%c0_546, %c0_547], %436 {strides = array<i32>} : memref<200x512xf32, #tpu.memory_space<vmem>>, vector<8x512xf32>,
    %c41_i32_548 = arith.constant 41 : i32
    %438 = tpu.dynamic_rotate %431 by %c41_i32_548 dim 1 : vector<8x512xf32>, i32 -> vector<8x512xf32>
    %c8_549 = arith.constant 8 : index
    %c0_550 = arith.constant 0 : index
    %439 = vector.load %arg7[%c8_549, %c0_550] : memref<200x512xf32, #tpu.memory_space<vmem>>, vector<8x512xf32>
    tpu.vector_store %arg7[%c8_549, %c0_550], %438 {strides = array<i32>} : memref<200x512xf32, #tpu.memory_space<vmem>>, vector<8x512xf32>,
    %c40_i32_551 = arith.constant 40 : i32
    %440 = tpu.dynamic_rotate %431 by %c40_i32_551 dim 1 : vector<8x512xf32>, i32 -> vector<8x512xf32>
    %c16_552 = arith.constant 16 : index
    %c0_553 = arith.constant 0 : index
    %441 = vector.load %arg7[%c16_552, %c0_553] : memref<200x512xf32, #tpu.memory_space<vmem>>, vector<8x512xf32>
    tpu.vector_store %arg7[%c16_552, %c0_553], %440 {strides = array<i32>} : memref<200x512xf32, #tpu.memory_space<vmem>>, vector<8x512xf32>,
    %c39_i32_554 = arith.constant 39 : i32
    %442 = tpu.dynamic_rotate %431 by %c39_i32_554 dim 1 : vector<8x512xf32>, i32 -> vector<8x512xf32>
    %c24_555 = arith.constant 24 : index
    %c0_556 = arith.constant 0 : index
    %443 = vector.load %arg7[%c24_555, %c0_556] : memref<200x512xf32, #tpu.memory_space<vmem>>, vector<8x512xf32>
    tpu.vector_store %arg7[%c24_555, %c0_556], %442 {strides = array<i32>} : memref<200x512xf32, #tpu.memory_space<vmem>>, vector<8x512xf32>,
    %c38_i32_557 = arith.constant 38 : i32
    %444 = tpu.dynamic_rotate %431 by %c38_i32_557 dim 1 : vector<8x512xf32>, i32 -> vector<8x512xf32>
    %c32_558 = arith.constant 32 : index
    %c0_559 = arith.constant 0 : index
    %445 = vector.load %arg7[%c32_558, %c0_559] : memref<200x512xf32, #tpu.memory_space<vmem>>, vector<8x512xf32>
    tpu.vector_store %arg7[%c32_558, %c0_559], %444 {strides = array<i32>} : memref<200x512xf32, #tpu.memory_space<vmem>>, vector<8x512xf32>,
    %c22_i32_560 = arith.constant 22 : i32
    %446 = tpu.dynamic_rotate %431 by %c22_i32_560 dim 1 : vector<8x512xf32>, i32 -> vector<8x512xf32>
    %c40_561 = arith.constant 40 : index
    %c0_562 = arith.constant 0 : index
    %447 = vector.load %arg7[%c40_561, %c0_562] : memref<200x512xf32, #tpu.memory_space<vmem>>, vector<8x512xf32>
    tpu.vector_store %arg7[%c40_561, %c0_562], %446 {strides = array<i32>} : memref<200x512xf32, #tpu.memory_space<vmem>>, vector<8x512xf32>,
    %c21_i32_563 = arith.constant 21 : i32
    %448 = tpu.dynamic_rotate %431 by %c21_i32_563 dim 1 : vector<8x512xf32>, i32 -> vector<8x512xf32>
    %c48_564 = arith.constant 48 : index
    %c0_565 = arith.constant 0 : index
    %449 = vector.load %arg7[%c48_564, %c0_565] : memref<200x512xf32, #tpu.memory_space<vmem>>, vector<8x512xf32>
    tpu.vector_store %arg7[%c48_564, %c0_565], %448 {strides = array<i32>} : memref<200x512xf32, #tpu.memory_space<vmem>>, vector<8x512xf32>,
    %c20_i32_566 = arith.constant 20 : i32
    %450 = tpu.dynamic_rotate %431 by %c20_i32_566 dim 1 : vector<8x512xf32>, i32 -> vector<8x512xf32>
    %c56_567 = arith.constant 56 : index
    %c0_568 = arith.constant 0 : index
    %451 = vector.load %arg7[%c56_567, %c0_568] : memref<200x512xf32, #tpu.memory_space<vmem>>, vector<8x512xf32>
    tpu.vector_store %arg7[%c56_567, %c0_568], %450 {strides = array<i32>} : memref<200x512xf32, #tpu.memory_space<vmem>>, vector<8x512xf32>,
    %c19_i32_569 = arith.constant 19 : i32
    %452 = tpu.dynamic_rotate %431 by %c19_i32_569 dim 1 : vector<8x512xf32>, i32 -> vector<8x512xf32>
    %c64_570 = arith.constant 64 : index
    %c0_571 = arith.constant 0 : index
    %453 = vector.load %arg7[%c64_570, %c0_571] : memref<200x512xf32, #tpu.memory_space<vmem>>, vector<8x512xf32>
    tpu.vector_store %arg7[%c64_570, %c0_571], %452 {strides = array<i32>} : memref<200x512xf32, #tpu.memory_space<vmem>>, vector<8x512xf32>,
    %c18_i32_572 = arith.constant 18 : i32
    %454 = tpu.dynamic_rotate %431 by %c18_i32_572 dim 1 : vector<8x512xf32>, i32 -> vector<8x512xf32>
    %c72_573 = arith.constant 72 : index
    %c0_574 = arith.constant 0 : index
    %455 = vector.load %arg7[%c72_573, %c0_574] : memref<200x512xf32, #tpu.memory_space<vmem>>, vector<8x512xf32>
    tpu.vector_store %arg7[%c72_573, %c0_574], %454 {strides = array<i32>} : memref<200x512xf32, #tpu.memory_space<vmem>>, vector<8x512xf32>,
    %c2_i32_575 = arith.constant 2 : i32
    %456 = tpu.dynamic_rotate %431 by %c2_i32_575 dim 1 : vector<8x512xf32>, i32 -> vector<8x512xf32>
    %c80_576 = arith.constant 80 : index
    %c0_577 = arith.constant 0 : index
    %457 = vector.load %arg7[%c80_576, %c0_577] : memref<200x512xf32, #tpu.memory_space<vmem>>, vector<8x512xf32>
    tpu.vector_store %arg7[%c80_576, %c0_577], %456 {strides = array<i32>} : memref<200x512xf32, #tpu.memory_space<vmem>>, vector<8x512xf32>,
    %c1_i32_578 = arith.constant 1 : i32
    %458 = tpu.dynamic_rotate %431 by %c1_i32_578 dim 1 : vector<8x512xf32>, i32 -> vector<8x512xf32>
    %c88_579 = arith.constant 88 : index
    %c0_580 = arith.constant 0 : index
    %459 = vector.load %arg7[%c88_579, %c0_580] : memref<200x512xf32, #tpu.memory_space<vmem>>, vector<8x512xf32>
    tpu.vector_store %arg7[%c88_579, %c0_580], %458 {strides = array<i32>} : memref<200x512xf32, #tpu.memory_space<vmem>>, vector<8x512xf32>,
    %c96_581 = arith.constant 96 : index
    %c0_582 = arith.constant 0 : index
    %460 = vector.load %arg7[%c96_581, %c0_582] : memref<200x512xf32, #tpu.memory_space<vmem>>, vector<8x512xf32>
    tpu.vector_store %arg7[%c96_581, %c0_582], %431 {strides = array<i32>} : memref<200x512xf32, #tpu.memory_space<vmem>>, vector<8x512xf32>,
    %c511_i32_583 = arith.constant 511 : i32
    %461 = tpu.dynamic_rotate %431 by %c511_i32_583 dim 1 : vector<8x512xf32>, i32 -> vector<8x512xf32>
    %c104_584 = arith.constant 104 : index
    %c0_585 = arith.constant 0 : index
    %462 = vector.load %arg7[%c104_584, %c0_585] : memref<200x512xf32, #tpu.memory_space<vmem>>, vector<8x512xf32>
    tpu.vector_store %arg7[%c104_584, %c0_585], %461 {strides = array<i32>} : memref<200x512xf32, #tpu.memory_space<vmem>>, vector<8x512xf32>,
    %c510_i32_586 = arith.constant 510 : i32
    %463 = tpu.dynamic_rotate %431 by %c510_i32_586 dim 1 : vector<8x512xf32>, i32 -> vector<8x512xf32>
    %c112_587 = arith.constant 112 : index
    %c0_588 = arith.constant 0 : index
    %464 = vector.load %arg7[%c112_587, %c0_588] : memref<200x512xf32, #tpu.memory_space<vmem>>, vector<8x512xf32>
    tpu.vector_store %arg7[%c112_587, %c0_588], %463 {strides = array<i32>} : memref<200x512xf32, #tpu.memory_space<vmem>>, vector<8x512xf32>,
    %c494_i32_589 = arith.constant 494 : i32
    %465 = tpu.dynamic_rotate %431 by %c494_i32_589 dim 1 : vector<8x512xf32>, i32 -> vector<8x512xf32>
    %c120_590 = arith.constant 120 : index
    %c0_591 = arith.constant 0 : index
    %466 = vector.load %arg7[%c120_590, %c0_591] : memref<200x512xf32, #tpu.memory_space<vmem>>, vector<8x512xf32>
    tpu.vector_store %arg7[%c120_590, %c0_591], %465 {strides = array<i32>} : memref<200x512xf32, #tpu.memory_space<vmem>>, vector<8x512xf32>,
    %c493_i32_592 = arith.constant 493 : i32
    %467 = tpu.dynamic_rotate %431 by %c493_i32_592 dim 1 : vector<8x512xf32>, i32 -> vector<8x512xf32>
    %c128_593 = arith.constant 128 : index
    %c0_594 = arith.constant 0 : index
    %468 = vector.load %arg7[%c128_593, %c0_594] : memref<200x512xf32, #tpu.memory_space<vmem>>, vector<8x512xf32>
    tpu.vector_store %arg7[%c128_593, %c0_594], %467 {strides = array<i32>} : memref<200x512xf32, #tpu.memory_space<vmem>>, vector<8x512xf32>,
    %c492_i32_595 = arith.constant 492 : i32
    %469 = tpu.dynamic_rotate %431 by %c492_i32_595 dim 1 : vector<8x512xf32>, i32 -> vector<8x512xf32>
    %c136_596 = arith.constant 136 : index
    %c0_597 = arith.constant 0 : index
    %470 = vector.load %arg7[%c136_596, %c0_597] : memref<200x512xf32, #tpu.memory_space<vmem>>, vector<8x512xf32>
    tpu.vector_store %arg7[%c136_596, %c0_597], %469 {strides = array<i32>} : memref<200x512xf32, #tpu.memory_space<vmem>>, vector<8x512xf32>,
    %c491_i32_598 = arith.constant 491 : i32
    %471 = tpu.dynamic_rotate %431 by %c491_i32_598 dim 1 : vector<8x512xf32>, i32 -> vector<8x512xf32>
    %c144_599 = arith.constant 144 : index
    %c0_600 = arith.constant 0 : index
    %472 = vector.load %arg7[%c144_599, %c0_600] : memref<200x512xf32, #tpu.memory_space<vmem>>, vector<8x512xf32>
    tpu.vector_store %arg7[%c144_599, %c0_600], %471 {strides = array<i32>} : memref<200x512xf32, #tpu.memory_space<vmem>>, vector<8x512xf32>,
    %c490_i32_601 = arith.constant 490 : i32
    %473 = tpu.dynamic_rotate %431 by %c490_i32_601 dim 1 : vector<8x512xf32>, i32 -> vector<8x512xf32>
    %c152_602 = arith.constant 152 : index
    %c0_603 = arith.constant 0 : index
    %474 = vector.load %arg7[%c152_602, %c0_603] : memref<200x512xf32, #tpu.memory_space<vmem>>, vector<8x512xf32>
    tpu.vector_store %arg7[%c152_602, %c0_603], %473 {strides = array<i32>} : memref<200x512xf32, #tpu.memory_space<vmem>>, vector<8x512xf32>,
    %c474_i32_604 = arith.constant 474 : i32
    %475 = tpu.dynamic_rotate %431 by %c474_i32_604 dim 1 : vector<8x512xf32>, i32 -> vector<8x512xf32>
    %c160_605 = arith.constant 160 : index
    %c0_606 = arith.constant 0 : index
    %476 = vector.load %arg7[%c160_605, %c0_606] : memref<200x512xf32, #tpu.memory_space<vmem>>, vector<8x512xf32>
    tpu.vector_store %arg7[%c160_605, %c0_606], %475 {strides = array<i32>} : memref<200x512xf32, #tpu.memory_space<vmem>>, vector<8x512xf32>,
    %c473_i32_607 = arith.constant 473 : i32
    %477 = tpu.dynamic_rotate %431 by %c473_i32_607 dim 1 : vector<8x512xf32>, i32 -> vector<8x512xf32>
    %c168_608 = arith.constant 168 : index
    %c0_609 = arith.constant 0 : index
    %478 = vector.load %arg7[%c168_608, %c0_609] : memref<200x512xf32, #tpu.memory_space<vmem>>, vector<8x512xf32>
    tpu.vector_store %arg7[%c168_608, %c0_609], %477 {strides = array<i32>} : memref<200x512xf32, #tpu.memory_space<vmem>>, vector<8x512xf32>,
    %c472_i32_610 = arith.constant 472 : i32
    %479 = tpu.dynamic_rotate %431 by %c472_i32_610 dim 1 : vector<8x512xf32>, i32 -> vector<8x512xf32>
    %c176_611 = arith.constant 176 : index
    %c0_612 = arith.constant 0 : index
    %480 = vector.load %arg7[%c176_611, %c0_612] : memref<200x512xf32, #tpu.memory_space<vmem>>, vector<8x512xf32>
    tpu.vector_store %arg7[%c176_611, %c0_612], %479 {strides = array<i32>} : memref<200x512xf32, #tpu.memory_space<vmem>>, vector<8x512xf32>,
    %c471_i32_613 = arith.constant 471 : i32
    %481 = tpu.dynamic_rotate %431 by %c471_i32_613 dim 1 : vector<8x512xf32>, i32 -> vector<8x512xf32>
    %c184_614 = arith.constant 184 : index
    %c0_615 = arith.constant 0 : index
    %482 = vector.load %arg7[%c184_614, %c0_615] : memref<200x512xf32, #tpu.memory_space<vmem>>, vector<8x512xf32>
    tpu.vector_store %arg7[%c184_614, %c0_615], %481 {strides = array<i32>} : memref<200x512xf32, #tpu.memory_space<vmem>>, vector<8x512xf32>,
    %c470_i32_616 = arith.constant 470 : i32
    %483 = tpu.dynamic_rotate %431 by %c470_i32_616 dim 1 : vector<8x512xf32>, i32 -> vector<8x512xf32>
    %c192_617 = arith.constant 192 : index
    %c0_618 = arith.constant 0 : index
    %484 = vector.load %arg7[%c192_617, %c0_618] : memref<200x512xf32, #tpu.memory_space<vmem>>, vector<8x512xf32>
    tpu.vector_store %arg7[%c192_617, %c0_618], %483 {strides = array<i32>} : memref<200x512xf32, #tpu.memory_space<vmem>>, vector<8x512xf32>,
    %c0_619 = arith.constant 0 : index
    %c0_620 = arith.constant 0 : index
    %485 = vector.load %arg7[%c0_619, %c0_620] : memref<200x512xf32, #tpu.memory_space<vmem>>, vector<200x512xf32>
    %cst_621 = arith.constant dense<0.000000e+00> : vector<8x512xf32>
    %486 = tpu.matmul %433, %485, %cst_621 {dimension_numbers = #tpu.dot_dimension_numbers<[1], [0], [0], [1], [0, 0, 1, 1], [], []>} : vector<8x200xf32>, vector<200x512xf32>, vector<8x512xf32> -> vector<8x512xf32>
    %487 = vector.broadcast %435 : vector<8x1xf32> to vector<8x512xf32>
    %488 = arith.addf %486, %487 : vector<8x512xf32>
    %cst_622 = arith.constant 0.000000e+00 : f32
    %489 = vector.broadcast %cst_622 : f32 to vector<8x512xf32>
    %490 = arith.maximumf %488, %489 : vector<8x512xf32>
    %491 = vector.broadcast %0 : vector<1x512xf32> to vector<8x512xf32>
    %492 = arith.mulf %490, %491 : vector<8x512xf32>
    %493 = arith.addf %492, %370 : vector<8x512xf32>
    %c0_623 = arith.constant 0 : index
    %c0_624 = arith.constant 0 : index
    %494 = vector.load %arg6[%c0_623, %c0_624] : memref<8x512xf32, #tpu.memory_space<vmem>>, vector<8x512xf32>
    tpu.vector_store %arg6[%c0_623, %c0_624], %493 {strides = array<i32>} : memref<8x512xf32, #tpu.memory_space<vmem>>, vector<8x512xf32>,
    return
  }
}

</mosaic_0001>

<llo_original>
// kernel: convnet_forward.1
$region0: #{convnet_forward.1}
  #allocation0 [shape = 'u32[]', space=smem, size = 0x4, offset = 0x4, fixed_abs, tag = 'smem constant byte address 0x4 - core index']
  #allocation1 [shape = 'u32[144,128]{1,0:T(1,128)}', space=vmem, size = 0x12000, scoped, tag = 'internal scratch']
  #allocation2 [shape = 'f32[200,512]{1,0:T(8,128)}', space=vmem, size = 0x64000, scoped, tag = 'scratch operand']
  %s0 = inlined_call_operand.vmem [shape: f32[8,512], index: 0, kind: input, shape index: {}]
  %s1 = inlined_call_operand.vmem [shape: f32[1,512], index: 1, kind: input, shape index: {}]
  %s2 = inlined_call_operand.vmem [shape: f32[4,8,200], index: 2, kind: input, shape index: {}]
  %s3 = inlined_call_operand.vmem [shape: f32[4,8,1], index: 3, kind: input, shape index: {}]
  %s4 = inlined_call_operand.vmem [shape: f32[4,8,200], index: 4, kind: input, shape index: {}]
  %s5 = inlined_call_operand.vmem [shape: f32[4,8,1], index: 5, kind: input, shape index: {}]
  %s6 = inlined_call_operand.vmem [shape: f32[8,512], index: 6, kind: output, shape index: {}]
  %s7 = sld [smem:[#allocation0]]
  $region34: #{convnet_forward.1} parent=0
    _
  %s9 = ssub.s32 1, %s7
  %s10 = scalar_select 0, %s9, %s7
  // Predicated region
  $region2: #{convnet_forward.1} parent=0 // pred_check
    _
  $region3: #{convnet_forward.1} parent=0 // pred_check_branch
    %12 = sbr.rel (0) target = $region5
  $region4: #{convnet_forward.1} parent=0 // pred_region
    _
  $region5: #{convnet_forward.1} parent=0 // pred_fallthru
    _
  // Predicated region
  $region6: #{convnet_forward.1} parent=0 // pred_check
    _
  $region7: #{convnet_forward.1} parent=0 // pred_check_branch
    %14 = sbr.rel (0) target = $region9
  $region8: #{convnet_forward.1} parent=0 // pred_region
    _
  $region9: #{convnet_forward.1} parent=0 // pred_fallthru
    _
  // Predicated region
  $region10: #{convnet_forward.1} parent=0 // pred_check
    _
  $region11: #{convnet_forward.1} parent=0 // pred_check_branch
    %16 = sbr.rel (0) target = $region13
  $region12: #{convnet_forward.1} parent=0 // pred_region
    _
  $region13: #{convnet_forward.1} parent=0 // pred_fallthru
    _
  // Predicated region
  $region14: #{convnet_forward.1} parent=0 // pred_check
    _
  $region15: #{convnet_forward.1} parent=0 // pred_check_branch
    %18 = sbr.rel (0) target = $region17
  $region16: #{convnet_forward.1} parent=0 // pred_region
    _
  $region17: #{convnet_forward.1} parent=0 // pred_fallthru
    _
  // Predicated region
  $region18: #{convnet_forward.1} parent=0 // pred_check
    _
  $region19: #{convnet_forward.1} parent=0 // pred_check_branch
    %20 = sbr.rel (0) target = $region21
  $region20: #{convnet_forward.1} parent=0 // pred_region
    _
  $region21: #{convnet_forward.1} parent=0 // pred_fallthru
    _
  // Predicated region
  $region22: #{convnet_forward.1} parent=0 // pred_check
    _
  $region23: #{convnet_forward.1} parent=0 // pred_check_branch
    %22 = sbr.rel (0) target = $region25
  $region24: #{convnet_forward.1} parent=0 // pred_region
    _
  $region25: #{convnet_forward.1} parent=0 // pred_fallthru
    _
  %v23 = vld [vmem:[%s1] sm:$0xf]
  %v24 = vld [vmem:[%s0] sm:$0xff]
  %v25 = vld [vmem:[%s0 + $0x8] sm:$0xff]
  %v26 = vld [vmem:[%s0 + $0x10] sm:$0xff]
  %v27 = vld [vmem:[%s0 + $0x18] sm:$0xff]
  %v28 = vld [vmem:[%s2] sm:$0xff]
  %v29 = vld [vmem:[%s2 + $0x8] sm:$0xff]
  %v30 = vld [vmem:[%s3] sm:$0xff]
  %31 = vrot.lane.b32.xlu0 %v24, 42
  %v32 = vpop.permute.xlu0 %31
  %33 = vrot.lane.b32.xlu0 %v25, 42
  %v34 = vpop.permute.xlu0 %33
  %35 = vrot.lane.b32.xlu0 %v26, 42
  %v36 = vpop.permute.xlu0 %35
  %37 = vrot.lane.b32.xlu0 %v27, 42
  %v38 = vpop.permute.xlu0 %37
  %v39 = vlaneseq
  %v40 = vand.u32 %v39, 127
  %vm41 = vcmp.lt.s32.totalorder %v40, 42
  %v42 = vsel %vm41, %v36, %v38
  %v43 = vsel %vm41, %v34, %v36
  %v44 = vsel %vm41, %v32, %v34
  %v45 = vsel %vm41, %v38, %v32
  %46 = vst [vmem:[#allocation2] sm:$0xff] %v45
  %47 = vst [vmem:[#allocation2 + $0x8] sm:$0xff] %v44
  %48 = vst [vmem:[#allocation2 + $0x10] sm:$0xff] %v43
  %49 = vst [vmem:[#allocation2 + $0x18] sm:$0xff] %v42
  %50 = vrot.lane.b32.xlu0 %v24, 41
  %v51 = vpop.permute.xlu0 %50
  %52 = vrot.lane.b32.xlu0 %v25, 41
  %v53 = vpop.permute.xlu0 %52
  %54 = vrot.lane.b32.xlu0 %v26, 41
  %v55 = vpop.permute.xlu0 %54
  %56 = vrot.lane.b32.xlu0 %v27, 41
  %v57 = vpop.permute.xlu0 %56
  %vm58 = vcmp.lt.s32.totalorder %v40, 41
  %v59 = vsel %vm58, %v55, %v57
  %v60 = vsel %vm58, %v53, %v55
  %v61 = vsel %vm58, %v51, %v53
  %v62 = vsel %vm58, %v57, %v51
  %63 = vst [vmem:[#allocation2 + $0x20] sm:$0xff] %v62
  %64 = vst [vmem:[#allocation2 + $0x28] sm:$0xff] %v61
  %65 = vst [vmem:[#allocation2 + $0x30] sm:$0xff] %v60
  %66 = vst [vmem:[#allocation2 + $0x38] sm:$0xff] %v59
  %67 = vrot.lane.b32.xlu0 %v24, 40
  %v68 = vpop.permute.xlu0 %67
  %69 = vrot.lane.b32.xlu0 %v25, 40
  %v70 = vpop.permute.xlu0 %69
  %71 = vrot.lane.b32.xlu0 %v26, 40
  %v72 = vpop.permute.xlu0 %71
  %73 = vrot.lane.b32.xlu0 %v27, 40
  %v74 = vpop.permute.xlu0 %73
  %vm75 = vcmp.lt.s32.totalorder %v40, 40
  %v76 = vsel %vm75, %v72, %v74
  %v77 = vsel %vm75, %v70, %v72
  %v78 = vsel %vm75, %v68, %v70
  %v79 = vsel %vm75, %v74, %v68
  %80 = vst [vmem:[#allocation2 + $0x40] sm:$0xff] %v79
  %81 = vst [vmem:[#allocation2 + $0x48] sm:$0xff] %v78
  %82 = vst [vmem:[#allocation2 + $0x50] sm:$0xff] %v77
  %83 = vst [vmem:[#allocation2 + $0x58] sm:$0xff] %v76
  %84 = vrot.lane.b32.xlu0 %v24, 39
  %v85 = vpop.permute.xlu0 %84
  %86 = vrot.lane.b32.xlu0 %v25, 39
  %v87 = vpop.permute.xlu0 %86
  %88 = vrot.lane.b32.xlu0 %v26, 39
  %v89 = vpop.permute.xlu0 %88
  %90 = vrot.lane.b32.xlu0 %v27, 39
  %v91 = vpop.permute.xlu0 %90
  %vm92 = vcmp.lt.s32.totalorder %v40, 39
  %v93 = vsel %vm92, %v89, %v91
  %v94 = vsel %vm92, %v87, %v89
  %v95 = vsel %vm92, %v85, %v87
  %v96 = vsel %vm92, %v91, %v85
  %97 = vst [vmem:[#allocation2 + $0x60] sm:$0xff] %v96
  %98 = vst [vmem:[#allocation2 + $0x68] sm:$0xff] %v95
  %99 = vst [vmem:[#allocation2 + $0x70] sm:$0xff] %v94
  %100 = vst [vmem:[#allocation2 + $0x78] sm:$0xff] %v93
  %101 = vrot.lane.b32.xlu0 %v24, 38
  %v102 = vpop.permute.xlu0 %101
  %103 = vrot.lane.b32.xlu0 %v25, 38
  %v104 = vpop.permute.xlu0 %103
  %105 = vrot.lane.b32.xlu0 %v26, 38
  %v106 = vpop.permute.xlu0 %105
  %107 = vrot.lane.b32.xlu0 %v27, 38
  %v108 = vpop.permute.xlu0 %107
  %vm109 = vcmp.lt.s32.totalorder %v40, 38
  %v110 = vsel %vm109, %v106, %v108
  %v111 = vsel %vm109, %v104, %v106
  %v112 = vsel %vm109, %v102, %v104
  %v113 = vsel %vm109, %v108, %v102
  %114 = vst [vmem:[#allocation2 + $0x80] sm:$0xff] %v113
  %115 = vst [vmem:[#allocation2 + $0x88] sm:$0xff] %v112
  %116 = vst [vmem:[#allocation2 + $0x90] sm:$0xff] %v111
  %117 = vst [vmem:[#allocation2 + $0x98] sm:$0xff] %v110
  %118 = vrot.lane.b32.xlu0 %v24, 22
  %v119 = vpop.permute.xlu0 %118
  %120 = vrot.lane.b32.xlu0 %v25, 22
  %v121 = vpop.permute.xlu0 %120
  %122 = vrot.lane.b32.xlu0 %v26, 22
  %v123 = vpop.permute.xlu0 %122
  %124 = vrot.lane.b32.xlu0 %v27, 22
  %v125 = vpop.permute.xlu0 %124
  %vm126 = vcmp.lt.s32.totalorder %v40, 22
  %v127 = vsel %vm126, %v123, %v125
  %v128 = vsel %vm126, %v121, %v123
  %v129 = vsel %vm126, %v119, %v121
  %v130 = vsel %vm126, %v125, %v119
  %131 = vst [vmem:[#allocation2 + $0xa0] sm:$0xff] %v130
  %132 = vst [vmem:[#allocation2 + $0xa8] sm:$0xff] %v129
  %133 = vst [vmem:[#allocation2 + $0xb0] sm:$0xff] %v128
  %134 = vst [vmem:[#allocation2 + $0xb8] sm:$0xff] %v127
  %135 = vrot.lane.b32.xlu0 %v24, 21
  %v136 = vpop.permute.xlu0 %135
  %137 = vrot.lane.b32.xlu0 %v25, 21
  %v138 = vpop.permute.xlu0 %137
  %139 = vrot.lane.b32.xlu0 %v26, 21
  %v140 = vpop.permute.xlu0 %139
  %141 = vrot.lane.b32.xlu0 %v27, 21
  %v142 = vpop.permute.xlu0 %141
  %vm143 = vcmp.lt.s32.totalorder %v40, 21
  %v144 = vsel %vm143, %v140, %v142
  %v145 = vsel %vm143, %v138, %v140
  %v146 = vsel %vm143, %v136, %v138
  %v147 = vsel %vm143, %v142, %v136
  %148 = vst [vmem:[#allocation2 + $0xc0] sm:$0xff] %v147
  %149 = vst [vmem:[#allocation2 + $0xc8] sm:$0xff] %v146
  %150 = vst [vmem:[#allocation2 + $0xd0] sm:$0xff] %v145
  %151 = vst [vmem:[#allocation2 + $0xd8] sm:$0xff] %v144
  %152 = vrot.lane.b32.xlu0 %v24, 20
  %v153 = vpop.permute.xlu0 %152
  %154 = vrot.lane.b32.xlu0 %v25, 20
  %v155 = vpop.permute.xlu0 %154
  %156 = vrot.lane.b32.xlu0 %v26, 20
  %v157 = vpop.permute.xlu0 %156
  %158 = vrot.lane.b32.xlu0 %v27, 20
  %v159 = vpop.permute.xlu0 %158
  %vm160 = vcmp.lt.s32.totalorder %v40, 20
  %v161 = vsel %vm160, %v157, %v159
  %v162 = vsel %vm160, %v155, %v157
  %v163 = vsel %vm160, %v153, %v155
  %v164 = vsel %vm160, %v159, %v153
  %165 = vst [vmem:[#allocation2 + $0xe0] sm:$0xff] %v164
  %166 = vst [vmem:[#allocation2 + $0xe8] sm:$0xff] %v163
  %167 = vst [vmem:[#allocation2 + $0xf0] sm:$0xff] %v162
  %168 = vst [vmem:[#allocation2 + $0xf8] sm:$0xff] %v161
  %169 = vrot.lane.b32.xlu0 %v24, 19
  %v170 = vpop.permute.xlu0 %169
  %171 = vrot.lane.b32.xlu0 %v25, 19
  %v172 = vpop.permute.xlu0 %171
  %173 = vrot.lane.b32.xlu0 %v26, 19
  %v174 = vpop.permute.xlu0 %173
  %175 = vrot.lane.b32.xlu0 %v27, 19
  %v176 = vpop.permute.xlu0 %175
  %vm177 = vcmp.lt.s32.totalorder %v40, 19
  %v178 = vsel %vm177, %v174, %v176
  %v179 = vsel %vm177, %v172, %v174
  %v180 = vsel %vm177, %v170, %v172
  %v181 = vsel %vm177, %v176, %v170
  %182 = vst [vmem:[#allocation2 + $0x100] sm:$0xff] %v181
  %183 = vst [vmem:[#allocation2 + $0x108] sm:$0xff] %v180
  %184 = vst [vmem:[#allocation2 + $0x110] sm:$0xff] %v179
  %185 = vst [vmem:[#allocation2 + $0x118] sm:$0xff] %v178
  %186 = vrot.lane.b32.xlu0 %v24, 18
  %v187 = vpop.permute.xlu0 %186
  %188 = vrot.lane.b32.xlu0 %v25, 18
  %v189 = vpop.permute.xlu0 %188
  %190 = vrot.lane.b32.xlu0 %v26, 18
  %v191 = vpop.permute.xlu0 %190
  %192 = vrot.lane.b32.xlu0 %v27, 18
  %v193 = vpop.permute.xlu0 %192
  %vm194 = vcmp.lt.s32.totalorder %v40, 18
  %v195 = vsel %vm194, %v191, %v193
  %v196 = vsel %vm194, %v189, %v191
  %v197 = vsel %vm194, %v187, %v189
  %v198 = vsel %vm194, %v193, %v187
  %199 = vst [vmem:[#allocation2 + $0x120] sm:$0xff] %v198
  %200 = vst [vmem:[#allocation2 + $0x128] sm:$0xff] %v197
  %201 = vst [vmem:[#allocation2 + $0x130] sm:$0xff] %v196
  %202 = vst [vmem:[#allocation2 + $0x138] sm:$0xff] %v195
  %203 = vrot.lane.b32.xlu0 %v24, 2
  %v204 = vpop.permute.xlu0 %203
  %205 = vrot.lane.b32.xlu0 %v25, 2
  %v206 = vpop.permute.xlu0 %205
  %207 = vrot.lane.b32.xlu0 %v26, 2
  %v208 = vpop.permute.xlu0 %207
  %209 = vrot.lane.b32.xlu0 %v27, 2
  %v210 = vpop.permute.xlu0 %209
  %vm211 = vcmp.lt.s32.totalorder %v40, 2
  %v212 = vsel %vm211, %v208, %v210
  %v213 = vsel %vm211, %v206, %v208
  %v214 = vsel %vm211, %v204, %v206
  %v215 = vsel %vm211, %v210, %v204
  %216 = vst [vmem:[#allocation2 + $0x140] sm:$0xff] %v215
  %217 = vst [vmem:[#allocation2 + $0x148] sm:$0xff] %v214
  %218 = vst [vmem:[#allocation2 + $0x150] sm:$0xff] %v213
  %219 = vst [vmem:[#allocation2 + $0x158] sm:$0xff] %v212
  %220 = vrot.lane.b32.xlu0 %v24, 1
  %v221 = vpop.permute.xlu0 %220
  %222 = vrot.lane.b32.xlu0 %v25, 1
  %v223 = vpop.permute.xlu0 %222
  %224 = vrot.lane.b32.xlu0 %v26, 1
  %v225 = vpop.permute.xlu0 %224
  %226 = vrot.lane.b32.xlu0 %v27, 1
  %v227 = vpop.permute.xlu0 %226
  %vm228 = vcmp.lt.s32.totalorder %v40, 1
  %v229 = vsel %vm228, %v225, %v227
  %v230 = vsel %vm228, %v223, %v225
  %v231 = vsel %vm228, %v221, %v223
  %v232 = vsel %vm228, %v227, %v221
  %233 = vst [vmem:[#allocation2 + $0x160] sm:$0xff] %v232
  %234 = vst [vmem:[#allocation2 + $0x168] sm:$0xff] %v231
  %235 = vst [vmem:[#allocation2 + $0x170] sm:$0xff] %v230
  %236 = vst [vmem:[#allocation2 + $0x178] sm:$0xff] %v229
  %237 = vst [vmem:[#allocation2 + $0x180] sm:$0xff] %v24
  %238 = vst [vmem:[#allocation2 + $0x188] sm:$0xff] %v25
  %239 = vst [vmem:[#allocation2 + $0x190] sm:$0xff] %v26
  %240 = vst [vmem:[#allocation2 + $0x198] sm:$0xff] %v27
  %241 = vrot.lane.b32.xlu0 %v24, 127
  %v242 = vpop.permute.xlu0 %241
  %243 = vrot.lane.b32.xlu0 %v25, 127
  %v244 = vpop.permute.xlu0 %243
  %245 = vrot.lane.b32.xlu0 %v26, 127
  %v246 = vpop.permute.xlu0 %245
  %247 = vrot.lane.b32.xlu0 %v27, 127
  %v248 = vpop.permute.xlu0 %247
  %vm249 = vcmp.lt.s32.totalorder %v40, 127
  %v250 = vsel %vm249, %v246, %v248
  %v251 = vsel %vm249, %v244, %v246
  %v252 = vsel %vm249, %v242, %v244
  %v253 = vsel %vm249, %v248, %v242
  %254 = vst [vmem:[#allocation2 + $0x1a0] sm:$0xff] %v252
  %255 = vst [vmem:[#allocation2 + $0x1a8] sm:$0xff] %v251
  %256 = vst [vmem:[#allocation2 + $0x1b0] sm:$0xff] %v250
  %257 = vst [vmem:[#allocation2 + $0x1b8] sm:$0xff] %v253
  %258 = vrot.lane.b32.xlu0 %v24, 126
  %v259 = vpop.permute.xlu0 %258
  %260 = vrot.lane.b32.xlu0 %v25, 126
  %v261 = vpop.permute.xlu0 %260
  %262 = vrot.lane.b32.xlu0 %v26, 126
  %v263 = vpop.permute.xlu0 %262
  %264 = vrot.lane.b32.xlu0 %v27, 126
  %v265 = vpop.permute.xlu0 %264
  %vm266 = vcmp.lt.s32.totalorder %v40, 126
  %v267 = vsel %vm266, %v263, %v265
  %v268 = vsel %vm266, %v261, %v263
  %v269 = vsel %vm266, %v259, %v261
  %v270 = vsel %vm266, %v265, %v259
  %271 = vst [vmem:[#allocation2 + $0x1c0] sm:$0xff] %v269
  %272 = vst [vmem:[#allocation2 + $0x1c8] sm:$0xff] %v268
  %273 = vst [vmem:[#allocation2 + $0x1d0] sm:$0xff] %v267
  %274 = vst [vmem:[#allocation2 + $0x1d8] sm:$0xff] %v270
  %275 = vrot.lane.b32.xlu0 %v24, 110
  %v276 = vpop.permute.xlu0 %275
  %277 = vrot.lane.b32.xlu0 %v25, 110
  %v278 = vpop.permute.xlu0 %277
  %279 = vrot.lane.b32.xlu0 %v26, 110
  %v280 = vpop.permute.xlu0 %279
  %281 = vrot.lane.b32.xlu0 %v27, 110
  %v282 = vpop.permute.xlu0 %281
  %vm283 = vcmp.lt.s32.totalorder %v40, 110
  %v284 = vsel %vm283, %v280, %v282
  %v285 = vsel %vm283, %v278, %v280
  %v286 = vsel %vm283, %v276, %v278
  %v287 = vsel %vm283, %v282, %v276
  %288 = vst [vmem:[#allocation2 + $0x1e0] sm:$0xff] %v286
  %289 = vst [vmem:[#allocation2 + $0x1e8] sm:$0xff] %v285
  %290 = vst [vmem:[#allocation2 + $0x1f0] sm:$0xff] %v284
  %291 = vst [vmem:[#allocation2 + $0x1f8] sm:$0xff] %v287
  %292 = vrot.lane.b32.xlu0 %v24, 109
  %v293 = vpop.permute.xlu0 %292
  %294 = vrot.lane.b32.xlu0 %v25, 109
  %v295 = vpop.permute.xlu0 %294
  %296 = vrot.lane.b32.xlu0 %v26, 109
  %v297 = vpop.permute.xlu0 %296
  %298 = vrot.lane.b32.xlu0 %v27, 109
  %v299 = vpop.permute.xlu0 %298
  %vm300 = vcmp.lt.s32.totalorder %v40, 109
  %v301 = vsel %vm300, %v297, %v299
  %v302 = vsel %vm300, %v295, %v297
  %v303 = vsel %vm300, %v293, %v295
  %v304 = vsel %vm300, %v299, %v293
  %305 = vst [vmem:[#allocation2 + $0x200] sm:$0xff] %v303
  %306 = vst [vmem:[#allocation2 + $0x208] sm:$0xff] %v302
  %307 = vst [vmem:[#allocation2 + $0x210] sm:$0xff] %v301
  %308 = vst [vmem:[#allocation2 + $0x218] sm:$0xff] %v304
  %309 = vrot.lane.b32.xlu0 %v24, 108
  %v310 = vpop.permute.xlu0 %309
  %311 = vrot.lane.b32.xlu0 %v25, 108
  %v312 = vpop.permute.xlu0 %311
  %313 = vrot.lane.b32.xlu0 %v26, 108
  %v314 = vpop.permute.xlu0 %313
  %315 = vrot.lane.b32.xlu0 %v27, 108
  %v316 = vpop.permute.xlu0 %315
  %vm317 = vcmp.lt.s32.totalorder %v40, 108
  %v318 = vsel %vm317, %v314, %v316
  %v319 = vsel %vm317, %v312, %v314
  %v320 = vsel %vm317, %v310, %v312
  %v321 = vsel %vm317, %v316, %v310
  %322 = vst [vmem:[#allocation2 + $0x220] sm:$0xff] %v320
  %323 = vst [vmem:[#allocation2 + $0x228] sm:$0xff] %v319
  %324 = vst [vmem:[#allocation2 + $0x230] sm:$0xff] %v318
  %325 = vst [vmem:[#allocation2 + $0x238] sm:$0xff] %v321
  %326 = vrot.lane.b32.xlu0 %v24, 107
  %v327 = vpop.permute.xlu0 %326
  %328 = vrot.lane.b32.xlu0 %v25, 107
  %v329 = vpop.permute.xlu0 %328
  %330 = vrot.lane.b32.xlu0 %v26, 107
  %v331 = vpop.permute.xlu0 %330
  %332 = vrot.lane.b32.xlu0 %v27, 107
  %v333 = vpop.permute.xlu0 %332
  %vm334 = vcmp.lt.s32.totalorder %v40, 107
  %v335 = vsel %vm334, %v331, %v333
  %v336 = vsel %vm334, %v329, %v331
  %v337 = vsel %vm334, %v327, %v329
  %v338 = vsel %vm334, %v333, %v327
  %339 = vst [vmem:[#allocation2 + $0x240] sm:$0xff] %v337
  %340 = vst [vmem:[#allocation2 + $0x248] sm:$0xff] %v336
  %341 = vst [vmem:[#allocation2 + $0x250] sm:$0xff] %v335
  %342 = vst [vmem:[#allocation2 + $0x258] sm:$0xff] %v338
  %343 = vrot.lane.b32.xlu0 %v24, 106
  %v344 = vpop.permute.xlu0 %343
  %345 = vrot.lane.b32.xlu0 %v25, 106
  %v346 = vpop.permute.xlu0 %345
  %347 = vrot.lane.b32.xlu0 %v26, 106
  %v348 = vpop.permute.xlu0 %347
  %349 = vrot.lane.b32.xlu0 %v27, 106
  %v350 = vpop.permute.xlu0 %349
  %vm351 = vcmp.lt.s32.totalorder %v40, 106
  %v352 = vsel %vm351, %v348, %v350
  %v353 = vsel %vm351, %v346, %v348
  %v354 = vsel %vm351, %v344, %v346
  %v355 = vsel %vm351, %v350, %v344
  %356 = vst [vmem:[#allocation2 + $0x260] sm:$0xff] %v354
  %357 = vst [vmem:[#allocation2 + $0x268] sm:$0xff] %v353
  %358 = vst [vmem:[#allocation2 + $0x270] sm:$0xff] %v352
  %359 = vst [vmem:[#allocation2 + $0x278] sm:$0xff] %v355
  %360 = vrot.lane.b32.xlu0 %v24, 90
  %v361 = vpop.permute.xlu0 %360
  %362 = vrot.lane.b32.xlu0 %v25, 90
  %v363 = vpop.permute.xlu0 %362
  %364 = vrot.lane.b32.xlu0 %v26, 90
  %v365 = vpop.permute.xlu0 %364
  %366 = vrot.lane.b32.xlu0 %v27, 90
  %v367 = vpop.permute.xlu0 %366
  %vm368 = vcmp.lt.s32.totalorder %v40, 90
  %v369 = vsel %vm368, %v365, %v367
  %v370 = vsel %vm368, %v363, %v365
  %v371 = vsel %vm368, %v361, %v363
  %v372 = vsel %vm368, %v367, %v361
  %373 = vst [vmem:[#allocation2 + $0x280] sm:$0xff] %v371
  %374 = vst [vmem:[#allocation2 + $0x288] sm:$0xff] %v370
  %375 = vst [vmem:[#allocation2 + $0x290] sm:$0xff] %v369
  %376 = vst [vmem:[#allocation2 + $0x298] sm:$0xff] %v372
  %377 = vrot.lane.b32.xlu0 %v24, 89
  %v378 = vpop.permute.xlu0 %377
  %379 = vrot.lane.b32.xlu0 %v25, 89
  %v380 = vpop.permute.xlu0 %379
  %381 = vrot.lane.b32.xlu0 %v26, 89
  %v382 = vpop.permute.xlu0 %381
  %383 = vrot.lane.b32.xlu0 %v27, 89
  %v384 = vpop.permute.xlu0 %383
  %vm385 = vcmp.lt.s32.totalorder %v40, 89
  %v386 = vsel %vm385, %v382, %v384
  %v387 = vsel %vm385, %v380, %v382
  %v388 = vsel %vm385, %v378, %v380
  %v389 = vsel %vm385, %v384, %v378
  %390 = vst [vmem:[#allocation2 + $0x2a0] sm:$0xff] %v388
  %391 = vst [vmem:[#allocation2 + $0x2a8] sm:$0xff] %v387
  %392 = vst [vmem:[#allocation2 + $0x2b0] sm:$0xff] %v386
  %393 = vst [vmem:[#allocation2 + $0x2b8] sm:$0xff] %v389
  %394 = vrot.lane.b32.xlu0 %v24, 88
  %v395 = vpop.permute.xlu0 %394
  %396 = vrot.lane.b32.xlu0 %v25, 88
  %v397 = vpop.permute.xlu0 %396
  %398 = vrot.lane.b32.xlu0 %v26, 88
  %v399 = vpop.permute.xlu0 %398
  %400 = vrot.lane.b32.xlu0 %v27, 88
  %v401 = vpop.permute.xlu0 %400
  %vm402 = vcmp.lt.s32.totalorder %v40, 88
  %v403 = vsel %vm402, %v399, %v401
  %v404 = vsel %vm402, %v397, %v399
  %v405 = vsel %vm402, %v395, %v397
  %v406 = vsel %vm402, %v401, %v395
  %407 = vst [vmem:[#allocation2 + $0x2c0] sm:$0xff] %v405
  %408 = vst [vmem:[#allocation2 + $0x2c8] sm:$0xff] %v404
  %409 = vst [vmem:[#allocation2 + $0x2d0] sm:$0xff] %v403
  %410 = vst [vmem:[#allocation2 + $0x2d8] sm:$0xff] %v406
  %411 = vrot.lane.b32.xlu0 %v24, 87
  %v412 = vpop.permute.xlu0 %411
  %413 = vrot.lane.b32.xlu0 %v25, 87
  %v414 = vpop.permute.xlu0 %413
  %415 = vrot.lane.b32.xlu0 %v26, 87
  %v416 = vpop.permute.xlu0 %415
  %417 = vrot.lane.b32.xlu0 %v27, 87
  %v418 = vpop.permute.xlu0 %417
  %vm419 = vcmp.lt.s32.totalorder %v40, 87
  %v420 = vsel %vm419, %v416, %v418
  %v421 = vsel %vm419, %v414, %v416
  %v422 = vsel %vm419, %v412, %v414
  %v423 = vsel %vm419, %v418, %v412
  %424 = vst [vmem:[#allocation2 + $0x2e0] sm:$0xff] %v422
  %425 = vst [vmem:[#allocation2 + $0x2e8] sm:$0xff] %v421
  %426 = vst [vmem:[#allocation2 + $0x2f0] sm:$0xff] %v420
  %427 = vst [vmem:[#allocation2 + $0x2f8] sm:$0xff] %v423
  %428 = vrot.lane.b32.xlu0 %v24, 86
  %v429 = vpop.permute.xlu0 %428
  %430 = vrot.lane.b32.xlu0 %v25, 86
  %v431 = vpop.permute.xlu0 %430
  %432 = vrot.lane.b32.xlu0 %v26, 86
  %v433 = vpop.permute.xlu0 %432
  %434 = vrot.lane.b32.xlu0 %v27, 86
  %v435 = vpop.permute.xlu0 %434
  %vm436 = vcmp.lt.s32.totalorder %v40, 86
  %v437 = vsel %vm436, %v433, %v435
  %v438 = vsel %vm436, %v431, %v433
  %v439 = vsel %vm436, %v429, %v431
  %v440 = vsel %vm436, %v435, %v429
  %441 = vst [vmem:[#allocation2 + $0x300] sm:$0xff] %v439
  %442 = vst [vmem:[#allocation2 + $0x308] sm:$0xff] %v438
  %443 = vst [vmem:[#allocation2 + $0x310] sm:$0xff] %v437
  %444 = vst [vmem:[#allocation2 + $0x318] sm:$0xff] %v440
  %v445 = vld [vmem:[#allocation2] sm:$0xff]
  %v446 = vld [vmem:[#allocation2 + $0x8] sm:$0xff]
  %v447 = vld [vmem:[#allocation2 + $0x10] sm:$0xff]
  %v448 = vld [vmem:[#allocation2 + $0x18] sm:$0xff]
  %v449 = vld [vmem:[#allocation2 + $0x20] sm:$0xff]
  %v450 = vld [vmem:[#allocation2 + $0x28] sm:$0xff]
  %v451 = vld [vmem:[#allocation2 + $0x30] sm:$0xff]
  %v452 = vld [vmem:[#allocation2 + $0x38] sm:$0xff]
  %v453 = vld [vmem:[#allocation2 + $0x40] sm:$0xff]
  %v454 = vld [vmem:[#allocation2 + $0x48] sm:$0xff]
  %v455 = vld [vmem:[#allocation2 + $0x50] sm:$0xff]
  %v456 = vld [vmem:[#allocation2 + $0x58] sm:$0xff]
  %v457 = vld [vmem:[#allocation2 + $0x60] sm:$0xff]
  %v458 = vld [vmem:[#allocation2 + $0x68] sm:$0xff]
  %v459 = vld [vmem:[#allocation2 + $0x70] sm:$0xff]
  %v460 = vld [vmem:[#allocation2 + $0x78] sm:$0xff]
  %v461 = vld [vmem:[#allocation2 + $0x80] sm:$0xff]
  %v462 = vld [vmem:[#allocation2 + $0x88] sm:$0xff]
  %v463 = vld [vmem:[#allocation2 + $0x90] sm:$0xff]
  %v464 = vld [vmem:[#allocation2 + $0x98] sm:$0xff]
  %v465 = vld [vmem:[#allocation2 + $0xa0] sm:$0xff]
  %v466 = vld [vmem:[#allocation2 + $0xa8] sm:$0xff]
  %v467 = vld [vmem:[#allocation2 + $0xb0] sm:$0xff]
  %v468 = vld [vmem:[#allocation2 + $0xb8] sm:$0xff]
  %v469 = vld [vmem:[#allocation2 + $0xc0] sm:$0xff]
  %v470 = vld [vmem:[#allocation2 + $0xc8] sm:$0xff]
  %v471 = vld [vmem:[#allocation2 + $0xd0] sm:$0xff]
  %v472 = vld [vmem:[#allocation2 + $0xd8] sm:$0xff]
  %v473 = vld [vmem:[#allocation2 + $0xe0] sm:$0xff]
  %v474 = vld [vmem:[#allocation2 + $0xe8] sm:$0xff]
  %v475 = vld [vmem:[#allocation2 + $0xf0] sm:$0xff]
  %v476 = vld [vmem:[#allocation2 + $0xf8] sm:$0xff]
  %v477 = vld [vmem:[#allocation2 + $0x100] sm:$0xff]
  %v478 = vld [vmem:[#allocation2 + $0x108] sm:$0xff]
  %v479 = vld [vmem:[#allocation2 + $0x110] sm:$0xff]
  %v480 = vld [vmem:[#allocation2 + $0x118] sm:$0xff]
  %v481 = vld [vmem:[#allocation2 + $0x120] sm:$0xff]
  %v482 = vld [vmem:[#allocation2 + $0x128] sm:$0xff]
  %v483 = vld [vmem:[#allocation2 + $0x130] sm:$0xff]
  %v484 = vld [vmem:[#allocation2 + $0x138] sm:$0xff]
  %v485 = vld [vmem:[#allocation2 + $0x140] sm:$0xff]
  %v486 = vld [vmem:[#allocation2 + $0x148] sm:$0xff]
  %v487 = vld [vmem:[#allocation2 + $0x150] sm:$0xff]
  %v488 = vld [vmem:[#allocation2 + $0x158] sm:$0xff]
  %v489 = vld [vmem:[#allocation2 + $0x160] sm:$0xff]
  %v490 = vld [vmem:[#allocation2 + $0x168] sm:$0xff]
  %v491 = vld [vmem:[#allocation2 + $0x170] sm:$0xff]
  %v492 = vld [vmem:[#allocation2 + $0x178] sm:$0xff]
  %v493 = vld [vmem:[#allocation2 + $0x180] sm:$0xff]
  %v494 = vld [vmem:[#allocation2 + $0x188] sm:$0xff]
  %v495 = vld [vmem:[#allocation2 + $0x190] sm:$0xff]
  %v496 = vld [vmem:[#allocation2 + $0x198] sm:$0xff]
  %v497 = vld [vmem:[#allocation2 + $0x1a0] sm:$0xff]
  %v498 = vld [vmem:[#allocation2 + $0x1a8] sm:$0xff]
  %v499 = vld [vmem:[#allocation2 + $0x1b0] sm:$0xff]
  %v500 = vld [vmem:[#allocation2 + $0x1b8] sm:$0xff]
  %v501 = vld [vmem:[#allocation2 + $0x1c0] sm:$0xff]
  %v502 = vld [vmem:[#allocation2 + $0x1c8] sm:$0xff]
  %v503 = vld [vmem:[#allocation2 + $0x1d0] sm:$0xff]
  %v504 = vld [vmem:[#allocation2 + $0x1d8] sm:$0xff]
  %v505 = vld [vmem:[#allocation2 + $0x1e0] sm:$0xff]
  %v506 = vld [vmem:[#allocation2 + $0x1e8] sm:$0xff]
  %v507 = vld [vmem:[#allocation2 + $0x1f0] sm:$0xff]
  %v508 = vld [vmem:[#allocation2 + $0x1f8] sm:$0xff]
  %v509 = vld [vmem:[#allocation2 + $0x200] sm:$0xff]
  %v510 = vld [vmem:[#allocation2 + $0x208] sm:$0xff]
  %v511 = vld [vmem:[#allocation2 + $0x210] sm:$0xff]
  %v512 = vld [vmem:[#allocation2 + $0x218] sm:$0xff]
  %v513 = vld [vmem:[#allocation2 + $0x220] sm:$0xff]
  %v514 = vld [vmem:[#allocation2 + $0x228] sm:$0xff]
  %v515 = vld [vmem:[#allocation2 + $0x230] sm:$0xff]
  %v516 = vld [vmem:[#allocation2 + $0x238] sm:$0xff]
  %v517 = vld [vmem:[#allocation2 + $0x240] sm:$0xff]
  %v518 = vld [vmem:[#allocation2 + $0x248] sm:$0xff]
  %v519 = vld [vmem:[#allocation2 + $0x250] sm:$0xff]
  %v520 = vld [vmem:[#allocation2 + $0x258] sm:$0xff]
  %v521 = vld [vmem:[#allocation2 + $0x260] sm:$0xff]
  %v522 = vld [vmem:[#allocation2 + $0x268] sm:$0xff]
  %v523 = vld [vmem:[#allocation2 + $0x270] sm:$0xff]
  %v524 = vld [vmem:[#allocation2 + $0x278] sm:$0xff]
  %v525 = vld [vmem:[#allocation2 + $0x280] sm:$0xff]
  %v526 = vld [vmem:[#allocation2 + $0x288] sm:$0xff]
  %v527 = vld [vmem:[#allocation2 + $0x290] sm:$0xff]
  %v528 = vld [vmem:[#allocation2 + $0x298] sm:$0xff]
  %v529 = vld [vmem:[#allocation2 + $0x2a0] sm:$0xff]
  %v530 = vld [vmem:[#allocation2 + $0x2a8] sm:$0xff]
  %v531 = vld [vmem:[#allocation2 + $0x2b0] sm:$0xff]
  %v532 = vld [vmem:[#allocation2 + $0x2b8] sm:$0xff]
  %v533 = vld [vmem:[#allocation2 + $0x2c0] sm:$0xff]
  %v534 = vld [vmem:[#allocation2 + $0x2c8] sm:$0xff]
  %v535 = vld [vmem:[#allocation2 + $0x2d0] sm:$0xff]
  %v536 = vld [vmem:[#allocation2 + $0x2d8] sm:$0xff]
  %v537 = vld [vmem:[#allocation2 + $0x2e0] sm:$0xff]
  %v538 = vld [vmem:[#allocation2 + $0x2e8] sm:$0xff]
  %v539 = vld [vmem:[#allocation2 + $0x2f0] sm:$0xff]
  %v540 = vld [vmem:[#allocation2 + $0x2f8] sm:$0xff]
  %v541 = vld [vmem:[#allocation2 + $0x300] sm:$0xff]
  %v542 = vld [vmem:[#allocation2 + $0x308] sm:$0xff]
  %v543 = vld [vmem:[#allocation2 + $0x310] sm:$0xff]
  %v544 = vld [vmem:[#allocation2 + $0x318] sm:$0xff]
  %546 = vset.pattern.permute.xlu0 0
  %547 = vperm.xlu0 %546, %v30
  %v548 = vpop.permute.xlu0 %547
  %vm550 = vcmask 588800
  %v552 = vsel %vm550, %v29, 0
  %554 = vmatprep.subr.mxu0 %v446
  %555 = vmatpush1.msra.mxu0 %v445
  %556 = vmatprep.subr.mxu0 %v450
  %557 = vmatpush1.msra.mxu0 %v449
  %558 = vmatprep.subr.mxu0 %v454
  %559 = vmatpush1.msra.mxu0 %v453
  %560 = vmatprep.subr.mxu0 %v458
  %561 = vmatpush1.msra.mxu0 %v457
  %562 = vmatprep.subr.mxu0 %v462
  %563 = vmatpush1.msra.mxu0 %v461
  %564 = vmatprep.subr.mxu0 %v466
  %565 = vmatpush1.msra.mxu0 %v465
  %566 = vmatprep.subr.mxu0 %v470
  %567 = vmatpush1.msra.mxu0 %v469
  %568 = vmatprep.subr.mxu0 %v474
  %569 = vmatpush1.msra.mxu0 %v473
  %570 = vmatprep.subr.mxu0 %v478
  %571 = vmatpush1.msra.mxu0 %v477
  %572 = vmatprep.subr.mxu0 %v482
  %573 = vmatpush1.msra.mxu0 %v481
  %574 = vmatprep.subr.mxu0 %v486
  %575 = vmatpush1.msra.mxu0 %v485
  %576 = vmatprep.subr.mxu0 %v490
  %577 = vmatpush1.msra.mxu0 %v489
  %578 = vmatprep.subr.mxu0 %v494
  %579 = vmatpush1.msra.mxu0 %v493
  %580 = vmatprep.subr.mxu0 %v498
  %581 = vmatpush1.msra.mxu0 %v497
  %582 = vmatprep.subr.mxu0 %v502
  %583 = vmatpush1.msra.mxu0 %v501
  %584 = vmatprep.subr.mxu0 %v506
  %585 = vmatpush1.msra.mxu0 %v505
  %586 = vmatprep.subr.mxu0 %v510
  %587 = vmatpush1.msra.mxu0 %v509
  %588 = vmatprep.subr.mxu0 %v514
  %589 = vmatpush1.msra.mxu0 %v513
  %590 = vmatprep.subr.mxu0 %v518
  %591 = vmatpush1.msra.mxu0 %v517
  %592 = vmatprep.subr.mxu0 %v522
  %593 = vmatpush1.msra.mxu0 %v521
  %594 = vmatprep.subr.mxu0 %v526
  %595 = vmatpush1.msra.mxu0 %v525
  %596 = vmatprep.subr.mxu0 %v530
  %597 = vmatpush1.msra.mxu0 %v529
  %598 = vmatprep.subr.mxu0 %v534
  %599 = vmatpush1.msra.mxu0 %v533
  %600 = vmatprep.subr.mxu0 %v538
  %601 = vmatpush1.msra.mxu0 %v537
  %602 = vmatprep.subr.mxu0 %v542
  %603 = vmatpush1.msra.mxu0 %v541
  %604 = vmatprep.subr.mxu0 0.0
  %605 = vmatpush1.msra.mxu0 0.0
  %606 = vmatprep.subr.mxu0 0.0
  %607 = vmatpush1.msra.mxu0 0.0
  %608 = vmatprep.subr.mxu0 0.0
  %609 = vmatpush1.msra.mxu0 0.0
  %610 = vmatprep.subr.mxu0 0.0
  %611 = vmatpush1.msra.mxu0 0.0
  %612 = vmatprep.subr.mxu0 0.0
  %613 = vmatpush1.msra.mxu0 0.0
  %614 = vmatprep.subr.mxu0 0.0
  %615 = vmatpush1.msra.mxu0 0.0
  %616 = vmatprep.subr.mxu0 0.0
  %617 = vmatpush1.msra.mxu0 0.0
  %618 = vmatprep.mubr.f32.mxu0 %v552
  %619 = vmatmul.mubr.f32.gmra.mrb[0].mxu0 %v28
  %v620 = vpop.f32.mrb[0].mxu0
  %v621 = vadd.f32 %v548, %v620
  %v622 = vpop.f32.mrb[0].mxu0
  %v623 = vadd.f32 %v548, %v622
  %624 = vdwg.mxu0
  %625 = vmatprep.subr.mxu0 %v448
  %626 = vmatpush1.msra.mxu0 %v447
  %627 = vmatprep.subr.mxu0 %v452
  %628 = vmatpush1.msra.mxu0 %v451
  %629 = vmatprep.subr.mxu0 %v456
  %630 = vmatpush1.msra.mxu0 %v455
  %631 = vmatprep.subr.mxu0 %v460
  %632 = vmatpush1.msra.mxu0 %v459
  %633 = vmatprep.subr.mxu0 %v464
  %634 = vmatpush1.msra.mxu0 %v463
  %635 = vmatprep.subr.mxu0 %v468
  %636 = vmatpush1.msra.mxu0 %v467
  %637 = vmatprep.subr.mxu0 %v472
  %638 = vmatpush1.msra.mxu0 %v471
  %639 = vmatprep.subr.mxu0 %v476
  %640 = vmatpush1.msra.mxu0 %v475
  %641 = vmatprep.subr.mxu0 %v480
  %642 = vmatpush1.msra.mxu0 %v479
  %643 = vmatprep.subr.mxu0 %v484
  %644 = vmatpush1.msra.mxu0 %v483
  %645 = vmatprep.subr.mxu0 %v488
  %646 = vmatpush1.msra.mxu0 %v487
  %647 = vmatprep.subr.mxu0 %v492
  %648 = vmatpush1.msra.mxu0 %v491
  %649 = vmatprep.subr.mxu0 %v496
  %650 = vmatpush1.msra.mxu0 %v495
  %651 = vmatprep.subr.mxu0 %v500
  %652 = vmatpush1.msra.mxu0 %v499
  %653 = vmatprep.subr.mxu0 %v504
  %654 = vmatpush1.msra.mxu0 %v503
  %655 = vmatprep.subr.mxu0 %v508
  %656 = vmatpush1.msra.mxu0 %v507
  %657 = vmatprep.subr.mxu0 %v512
  %658 = vmatpush1.msra.mxu0 %v511
  %659 = vmatprep.subr.mxu0 %v516
  %660 = vmatpush1.msra.mxu0 %v515
  %661 = vmatprep.subr.mxu0 %v520
  %662 = vmatpush1.msra.mxu0 %v519
  %663 = vmatprep.subr.mxu0 %v524
  %664 = vmatpush1.msra.mxu0 %v523
  %665 = vmatprep.subr.mxu0 %v528
  %666 = vmatpush1.msra.mxu0 %v527
  %667 = vmatprep.subr.mxu0 %v532
  %668 = vmatpush1.msra.mxu0 %v531
  %669 = vmatprep.subr.mxu0 %v536
  %670 = vmatpush1.msra.mxu0 %v535
  %671 = vmatprep.subr.mxu0 %v540
  %672 = vmatpush1.msra.mxu0 %v539
  %673 = vmatprep.subr.mxu0 %v544
  %674 = vmatpush1.msra.mxu0 %v543
  %675 = vmatprep.subr.mxu0 0.0
  %676 = vmatpush1.msra.mxu0 0.0
  %677 = vmatprep.subr.mxu0 0.0
  %678 = vmatpush1.msra.mxu0 0.0
  %679 = vmatprep.subr.mxu0 0.0
  %680 = vmatpush1.msra.mxu0 0.0
  %681 = vmatprep.subr.mxu0 0.0
  %682 = vmatpush1.msra.mxu0 0.0
  %683 = vmatprep.subr.mxu0 0.0
  %684 = vmatpush1.msra.mxu0 0.0
  %685 = vmatprep.subr.mxu0 0.0
  %686 = vmatpush1.msra.mxu0 0.0
  %687 = vmatprep.subr.mxu0 0.0
  %688 = vmatpush1.msra.mxu0 0.0
  %689 = vmatprep.mubr.f32.mxu0 %v552
  %690 = vmatmul.mubr.f32.gmra.mrb[0].mxu0 %v28
  %v691 = vpop.f32.mrb[0].mxu0
  %v692 = vadd.f32 %v548, %v691
  %v693 = vpop.f32.mrb[0].mxu0
  %v694 = vadd.f32 %v548, %v693
  %695 = vdwg.mxu0
  %v696 = vmax.f32 %v621, 0.0
  %v697 = vmax.f32 %v623, 0.0
  %v698 = vmax.f32 %v692, 0.0
  %v699 = vmax.f32 %v694, 0.0
  %v701 = vlaneseq
  %v702 = vshrl.u32 %v701, 7
  %v703 = vsub.s32 0, %v702
  %v704 = vrot.slane %v23, %v703
  %v705 = vlaneseq
  %v706 = vshrl.u32 %v705, 7
  %v707 = vsub.s32 1, %v706
  %v708 = vrot.slane %v23, %v707
  %v709 = vlaneseq
  %v710 = vshrl.u32 %v709, 7
  %v711 = vsub.s32 2, %v710
  %v712 = vrot.slane %v23, %v711
  %v713 = vlaneseq
  %v714 = vshrl.u32 %v713, 7
  %v715 = vsub.s32 3, %v714
  %v716 = vrot.slane %v23, %v715
  %v721 = vmul.f32 %v696, %v704
  %v722 = vmul.f32 %v697, %v708
  %v723 = vmul.f32 %v698, %v712
  %v724 = vmul.f32 %v699, %v716
  %v725 = vld [vmem:[%s4] sm:$0xff]
  %v726 = vld [vmem:[%s4 + $0x8] sm:$0xff]
  %v727 = vld [vmem:[%s5] sm:$0xff]
  %728 = vrot.lane.b32.xlu0 %v721, 42
  %v729 = vpop.permute.xlu0 %728
  %730 = vrot.lane.b32.xlu0 %v722, 42
  %v731 = vpop.permute.xlu0 %730
  %732 = vrot.lane.b32.xlu0 %v723, 42
  %v733 = vpop.permute.xlu0 %732
  %734 = vrot.lane.b32.xlu0 %v724, 42
  %v735 = vpop.permute.xlu0 %734
  %v736 = vsel %vm41, %v733, %v735
  %v737 = vsel %vm41, %v731, %v733
  %v738 = vsel %vm41, %v729, %v731
  %v739 = vsel %vm41, %v735, %v729
  %740 = vst [vmem:[#allocation2] sm:$0xff] %v739
  %741 = vst [vmem:[#allocation2 + $0x8] sm:$0xff] %v738
  %742 = vst [vmem:[#allocation2 + $0x10] sm:$0xff] %v737
  %743 = vst [vmem:[#allocation2 + $0x18] sm:$0xff] %v736
  %744 = vrot.lane.b32.xlu0 %v721, 41
  %v745 = vpop.permute.xlu0 %744
  %746 = vrot.lane.b32.xlu0 %v722, 41
  %v747 = vpop.permute.xlu0 %746
  %748 = vrot.lane.b32.xlu0 %v723, 41
  %v749 = vpop.permute.xlu0 %748
  %750 = vrot.lane.b32.xlu0 %v724, 41
  %v751 = vpop.permute.xlu0 %750
  %v752 = vsel %vm58, %v749, %v751
  %v753 = vsel %vm58, %v747, %v749
  %v754 = vsel %vm58, %v745, %v747
  %v755 = vsel %vm58, %v751, %v745
  %756 = vst [vmem:[#allocation2 + $0x20] sm:$0xff] %v755
  %757 = vst [vmem:[#allocation2 + $0x28] sm:$0xff] %v754
  %758 = vst [vmem:[#allocation2 + $0x30] sm:$0xff] %v753
  %759 = vst [vmem:[#allocation2 + $0x38] sm:$0xff] %v752
  %760 = vrot.lane.b32.xlu0 %v721, 40
  %v761 = vpop.permute.xlu0 %760
  %762 = vrot.lane.b32.xlu0 %v722, 40
  %v763 = vpop.permute.xlu0 %762
  %764 = vrot.lane.b32.xlu0 %v723, 40
  %v765 = vpop.permute.xlu0 %764
  %766 = vrot.lane.b32.xlu0 %v724, 40
  %v767 = vpop.permute.xlu0 %766
  %v768 = vsel %vm75, %v765, %v767
  %v769 = vsel %vm75, %v763, %v765
  %v770 = vsel %vm75, %v761, %v763
  %v771 = vsel %vm75, %v767, %v761
  %772 = vst [vmem:[#allocation2 + $0x40] sm:$0xff] %v771
  %773 = vst [vmem:[#allocation2 + $0x48] sm:$0xff] %v770
  %774 = vst [vmem:[#allocation2 + $0x50] sm:$0xff] %v769
  %775 = vst [vmem:[#allocation2 + $0x58] sm:$0xff] %v768
  %776 = vrot.lane.b32.xlu0 %v721, 39
  %v777 = vpop.permute.xlu0 %776
  %778 = vrot.lane.b32.xlu0 %v722, 39
  %v779 = vpop.permute.xlu0 %778
  %780 = vrot.lane.b32.xlu0 %v723, 39
  %v781 = vpop.permute.xlu0 %780
  %782 = vrot.lane.b32.xlu0 %v724, 39
  %v783 = vpop.permute.xlu0 %782
  %v784 = vsel %vm92, %v781, %v783
  %v785 = vsel %vm92, %v779, %v781
  %v786 = vsel %vm92, %v777, %v779
  %v787 = vsel %vm92, %v783, %v777
  %788 = vst [vmem:[#allocation2 + $0x60] sm:$0xff] %v787
  %789 = vst [vmem:[#allocation2 + $0x68] sm:$0xff] %v786
  %790 = vst [vmem:[#allocation2 + $0x70] sm:$0xff] %v785
  %791 = vst [vmem:[#allocation2 + $0x78] sm:$0xff] %v784
  %792 = vrot.lane.b32.xlu0 %v721, 38
  %v793 = vpop.permute.xlu0 %792
  %794 = vrot.lane.b32.xlu0 %v722, 38
  %v795 = vpop.permute.xlu0 %794
  %796 = vrot.lane.b32.xlu0 %v723, 38
  %v797 = vpop.permute.xlu0 %796
  %798 = vrot.lane.b32.xlu0 %v724, 38
  %v799 = vpop.permute.xlu0 %798
  %v800 = vsel %vm109, %v797, %v799
  %v801 = vsel %vm109, %v795, %v797
  %v802 = vsel %vm109, %v793, %v795
  %v803 = vsel %vm109, %v799, %v793
  %804 = vst [vmem:[#allocation2 + $0x80] sm:$0xff] %v803
  %805 = vst [vmem:[#allocation2 + $0x88] sm:$0xff] %v802
  %806 = vst [vmem:[#allocation2 + $0x90] sm:$0xff] %v801
  %807 = vst [vmem:[#allocation2 + $0x98] sm:$0xff] %v800
  %808 = vrot.lane.b32.xlu0 %v721, 22
  %v809 = vpop.permute.xlu0 %808
  %810 = vrot.lane.b32.xlu0 %v722, 22
  %v811 = vpop.permute.xlu0 %810
  %812 = vrot.lane.b32.xlu0 %v723, 22
  %v813 = vpop.permute.xlu0 %812
  %814 = vrot.lane.b32.xlu0 %v724, 22
  %v815 = vpop.permute.xlu0 %814
  %v816 = vsel %vm126, %v813, %v815
  %v817 = vsel %vm126, %v811, %v813
  %v818 = vsel %vm126, %v809, %v811
  %v819 = vsel %vm126, %v815, %v809
  %820 = vst [vmem:[#allocation2 + $0xa0] sm:$0xff] %v819
  %821 = vst [vmem:[#allocation2 + $0xa8] sm:$0xff] %v818
  %822 = vst [vmem:[#allocation2 + $0xb0] sm:$0xff] %v817
  %823 = vst [vmem:[#allocation2 + $0xb8] sm:$0xff] %v816
  %824 = vrot.lane.b32.xlu0 %v721, 21
  %v825 = vpop.permute.xlu0 %824
  %826 = vrot.lane.b32.xlu0 %v722, 21
  %v827 = vpop.permute.xlu0 %826
  %828 = vrot.lane.b32.xlu0 %v723, 21
  %v829 = vpop.permute.xlu0 %828
  %830 = vrot.lane.b32.xlu0 %v724, 21
  %v831 = vpop.permute.xlu0 %830
  %v832 = vsel %vm143, %v829, %v831
  %v833 = vsel %vm143, %v827, %v829
  %v834 = vsel %vm143, %v825, %v827
  %v835 = vsel %vm143, %v831, %v825
  %836 = vst [vmem:[#allocation2 + $0xc0] sm:$0xff] %v835
  %837 = vst [vmem:[#allocation2 + $0xc8] sm:$0xff] %v834
  %838 = vst [vmem:[#allocation2 + $0xd0] sm:$0xff] %v833
  %839 = vst [vmem:[#allocation2 + $0xd8] sm:$0xff] %v832
  %840 = vrot.lane.b32.xlu0 %v721, 20
  %v841 = vpop.permute.xlu0 %840
  %842 = vrot.lane.b32.xlu0 %v722, 20
  %v843 = vpop.permute.xlu0 %842
  %844 = vrot.lane.b32.xlu0 %v723, 20
  %v845 = vpop.permute.xlu0 %844
  %846 = vrot.lane.b32.xlu0 %v724, 20
  %v847 = vpop.permute.xlu0 %846
  %v848 = vsel %vm160, %v845, %v847
  %v849 = vsel %vm160, %v843, %v845
  %v850 = vsel %vm160, %v841, %v843
  %v851 = vsel %vm160, %v847, %v841
  %852 = vst [vmem:[#allocation2 + $0xe0] sm:$0xff] %v851
  %853 = vst [vmem:[#allocation2 + $0xe8] sm:$0xff] %v850
  %854 = vst [vmem:[#allocation2 + $0xf0] sm:$0xff] %v849
  %855 = vst [vmem:[#allocation2 + $0xf8] sm:$0xff] %v848
  %856 = vrot.lane.b32.xlu0 %v721, 19
  %v857 = vpop.permute.xlu0 %856
  %858 = vrot.lane.b32.xlu0 %v722, 19
  %v859 = vpop.permute.xlu0 %858
  %860 = vrot.lane.b32.xlu0 %v723, 19
  %v861 = vpop.permute.xlu0 %860
  %862 = vrot.lane.b32.xlu0 %v724, 19
  %v863 = vpop.permute.xlu0 %862
  %v864 = vsel %vm177, %v861, %v863
  %v865 = vsel %vm177, %v859, %v861
  %v866 = vsel %vm177, %v857, %v859
  %v867 = vsel %vm177, %v863, %v857
  %868 = vst [vmem:[#allocation2 + $0x100] sm:$0xff] %v867
  %869 = vst [vmem:[#allocation2 + $0x108] sm:$0xff] %v866
  %870 = vst [vmem:[#allocation2 + $0x110] sm:$0xff] %v865
  %871 = vst [vmem:[#allocation2 + $0x118] sm:$0xff] %v864
  %872 = vrot.lane.b32.xlu0 %v721, 18
  %v873 = vpop.permute.xlu0 %872
  %874 = vrot.lane.b32.xlu0 %v722, 18
  %v875 = vpop.permute.xlu0 %874
  %876 = vrot.lane.b32.xlu0 %v723, 18
  %v877 = vpop.permute.xlu0 %876
  %878 = vrot.lane.b32.xlu0 %v724, 18
  %v879 = vpop.permute.xlu0 %878
  %v880 = vsel %vm194, %v877, %v879
  %v881 = vsel %vm194, %v875, %v877
  %v882 = vsel %vm194, %v873, %v875
  %v883 = vsel %vm194, %v879, %v873
  %884 = vst [vmem:[#allocation2 + $0x120] sm:$0xff] %v883
  %885 = vst [vmem:[#allocation2 + $0x128] sm:$0xff] %v882
  %886 = vst [vmem:[#allocation2 + $0x130] sm:$0xff] %v881
  %887 = vst [vmem:[#allocation2 + $0x138] sm:$0xff] %v880
  %888 = vrot.lane.b32.xlu0 %v721, 2
  %v889 = vpop.permute.xlu0 %888
  %890 = vrot.lane.b32.xlu0 %v722, 2
  %v891 = vpop.permute.xlu0 %890
  %892 = vrot.lane.b32.xlu0 %v723, 2
  %v893 = vpop.permute.xlu0 %892
  %894 = vrot.lane.b32.xlu0 %v724, 2
  %v895 = vpop.permute.xlu0 %894
  %v896 = vsel %vm211, %v893, %v895
  %v897 = vsel %vm211, %v891, %v893
  %v898 = vsel %vm211, %v889, %v891
  %v899 = vsel %vm211, %v895, %v889
  %900 = vst [vmem:[#allocation2 + $0x140] sm:$0xff] %v899
  %901 = vst [vmem:[#allocation2 + $0x148] sm:$0xff] %v898
  %902 = vst [vmem:[#allocation2 + $0x150] sm:$0xff] %v897
  %903 = vst [vmem:[#allocation2 + $0x158] sm:$0xff] %v896
  %904 = vrot.lane.b32.xlu0 %v721, 1
  %v905 = vpop.permute.xlu0 %904
  %906 = vrot.lane.b32.xlu0 %v722, 1
  %v907 = vpop.permute.xlu0 %906
  %908 = vrot.lane.b32.xlu0 %v723, 1
  %v909 = vpop.permute.xlu0 %908
  %910 = vrot.lane.b32.xlu0 %v724, 1
  %v911 = vpop.permute.xlu0 %910
  %v912 = vsel %vm228, %v909, %v911
  %v913 = vsel %vm228, %v907, %v909
  %v914 = vsel %vm228, %v905, %v907
  %v915 = vsel %vm228, %v911, %v905
  %916 = vst [vmem:[#allocation2 + $0x160] sm:$0xff] %v915
  %917 = vst [vmem:[#allocation2 + $0x168] sm:$0xff] %v914
  %918 = vst [vmem:[#allocation2 + $0x170] sm:$0xff] %v913
  %919 = vst [vmem:[#allocation2 + $0x178] sm:$0xff] %v912
  %920 = vst [vmem:[#allocation2 + $0x180] sm:$0xff] %v721
  %921 = vst [vmem:[#allocation2 + $0x188] sm:$0xff] %v722
  %922 = vst [vmem:[#allocation2 + $0x190] sm:$0xff] %v723
  %923 = vst [vmem:[#allocation2 + $0x198] sm:$0xff] %v724
  %924 = vrot.lane.b32.xlu0 %v721, 127
  %v925 = vpop.permute.xlu0 %924
  %926 = vrot.lane.b32.xlu0 %v722, 127
  %v927 = vpop.permute.xlu0 %926
  %928 = vrot.lane.b32.xlu0 %v723, 127
  %v929 = vpop.permute.xlu0 %928
  %930 = vrot.lane.b32.xlu0 %v724, 127
  %v931 = vpop.permute.xlu0 %930
  %v932 = vsel %vm249, %v929, %v931
  %v933 = vsel %vm249, %v927, %v929
  %v934 = vsel %vm249, %v925, %v927
  %v935 = vsel %vm249, %v931, %v925
  %936 = vst [vmem:[#allocation2 + $0x1a0] sm:$0xff] %v934
  %937 = vst [vmem:[#allocation2 + $0x1a8] sm:$0xff] %v933
  %938 = vst [vmem:[#allocation2 + $0x1b0] sm:$0xff] %v932
  %939 = vst [vmem:[#allocation2 + $0x1b8] sm:$0xff] %v935
  %940 = vrot.lane.b32.xlu0 %v721, 126
  %v941 = vpop.permute.xlu0 %940
  %942 = vrot.lane.b32.xlu0 %v722, 126
  %v943 = vpop.permute.xlu0 %942
  %944 = vrot.lane.b32.xlu0 %v723, 126
  %v945 = vpop.permute.xlu0 %944
  %946 = vrot.lane.b32.xlu0 %v724, 126
  %v947 = vpop.permute.xlu0 %946
  %v948 = vsel %vm266, %v945, %v947
  %v949 = vsel %vm266, %v943, %v945
  %v950 = vsel %vm266, %v941, %v943
  %v951 = vsel %vm266, %v947, %v941
  %952 = vst [vmem:[#allocation2 + $0x1c0] sm:$0xff] %v950
  %953 = vst [vmem:[#allocation2 + $0x1c8] sm:$0xff] %v949
  %954 = vst [vmem:[#allocation2 + $0x1d0] sm:$0xff] %v948
  %955 = vst [vmem:[#allocation2 + $0x1d8] sm:$0xff] %v951
  %956 = vrot.lane.b32.xlu0 %v721, 110
  %v957 = vpop.permute.xlu0 %956
  %958 = vrot.lane.b32.xlu0 %v722, 110
  %v959 = vpop.permute.xlu0 %958
  %960 = vrot.lane.b32.xlu0 %v723, 110
  %v961 = vpop.permute.xlu0 %960
  %962 = vrot.lane.b32.xlu0 %v724, 110
  %v963 = vpop.permute.xlu0 %962
  %v964 = vsel %vm283, %v961, %v963
  %v965 = vsel %vm283, %v959, %v961
  %v966 = vsel %vm283, %v957, %v959
  %v967 = vsel %vm283, %v963, %v957
  %968 = vst [vmem:[#allocation2 + $0x1e0] sm:$0xff] %v966
  %969 = vst [vmem:[#allocation2 + $0x1e8] sm:$0xff] %v965
  %970 = vst [vmem:[#allocation2 + $0x1f0] sm:$0xff] %v964
  %971 = vst [vmem:[#allocation2 + $0x1f8] sm:$0xff] %v967
  %972 = vrot.lane.b32.xlu0 %v721, 109
  %v973 = vpop.permute.xlu0 %972
  %974 = vrot.lane.b32.xlu0 %v722, 109
  %v975 = vpop.permute.xlu0 %974
  %976 = vrot.lane.b32.xlu0 %v723, 109
  %v977 = vpop.permute.xlu0 %976
  %978 = vrot.lane.b32.xlu0 %v724, 109
  %v979 = vpop.permute.xlu0 %978
  %v980 = vsel %vm300, %v977, %v979
  %v981 = vsel %vm300, %v975, %v977
  %v982 = vsel %vm300, %v973, %v975
  %v983 = vsel %vm300, %v979, %v973
  %984 = vst [vmem:[#allocation2 + $0x200] sm:$0xff] %v982
  %985 = vst [vmem:[#allocation2 + $0x208] sm:$0xff] %v981
  %986 = vst [vmem:[#allocation2 + $0x210] sm:$0xff] %v980
  %987 = vst [vmem:[#allocation2 + $0x218] sm:$0xff] %v983
  %988 = vrot.lane.b32.xlu0 %v721, 108
  %v989 = vpop.permute.xlu0 %988
  %990 = vrot.lane.b32.xlu0 %v722, 108
  %v991 = vpop.permute.xlu0 %990
  %992 = vrot.lane.b32.xlu0 %v723, 108
  %v993 = vpop.permute.xlu0 %992
  %994 = vrot.lane.b32.xlu0 %v724, 108
  %v995 = vpop.permute.xlu0 %994
  %v996 = vsel %vm317, %v993, %v995
  %v997 = vsel %vm317, %v991, %v993
  %v998 = vsel %vm317, %v989, %v991
  %v999 = vsel %vm317, %v995, %v989
  %1000 = vst [vmem:[#allocation2 + $0x220] sm:$0xff] %v998
  %1001 = vst [vmem:[#allocation2 + $0x228] sm:$0xff] %v997
  %1002 = vst [vmem:[#allocation2 + $0x230] sm:$0xff] %v996
  %1003 = vst [vmem:[#allocation2 + $0x238] sm:$0xff] %v999
  %1004 = vrot.lane.b32.xlu0 %v721, 107
  %v1005 = vpop.permute.xlu0 %1004
  %1006 = vrot.lane.b32.xlu0 %v722, 107
  %v1007 = vpop.permute.xlu0 %1006
  %1008 = vrot.lane.b32.xlu0 %v723, 107
  %v1009 = vpop.permute.xlu0 %1008
  %1010 = vrot.lane.b32.xlu0 %v724, 107
  %v1011 = vpop.permute.xlu0 %1010
  %v1012 = vsel %vm334, %v1009, %v1011
  %v1013 = vsel %vm334, %v1007, %v1009
  %v1014 = vsel %vm334, %v1005, %v1007
  %v1015 = vsel %vm334, %v1011, %v1005
  %1016 = vst [vmem:[#allocation2 + $0x240] sm:$0xff] %v1014
  %1017 = vst [vmem:[#allocation2 + $0x248] sm:$0xff] %v1013
  %1018 = vst [vmem:[#allocation2 + $0x250] sm:$0xff] %v1012
  %1019 = vst [vmem:[#allocation2 + $0x258] sm:$0xff] %v1015
  %1020 = vrot.lane.b32.xlu0 %v721, 106
  %v1021 = vpop.permute.xlu0 %1020
  %1022 = vrot.lane.b32.xlu0 %v722, 106
  %v1023 = vpop.permute.xlu0 %1022
  %1024 = vrot.lane.b32.xlu0 %v723, 106
  %v1025 = vpop.permute.xlu0 %1024
  %1026 = vrot.lane.b32.xlu0 %v724, 106
  %v1027 = vpop.permute.xlu0 %1026
  %v1028 = vsel %vm351, %v1025, %v1027
  %v1029 = vsel %vm351, %v1023, %v1025
  %v1030 = vsel %vm351, %v1021, %v1023
  %v1031 = vsel %vm351, %v1027, %v1021
  %1032 = vst [vmem:[#allocation2 + $0x260] sm:$0xff] %v1030
  %1033 = vst [vmem:[#allocation2 + $0x268] sm:$0xff] %v1029
  %1034 = vst [vmem:[#allocation2 + $0x270] sm:$0xff] %v1028
  %1035 = vst [vmem:[#allocation2 + $0x278] sm:$0xff] %v1031
  %1036 = vrot.lane.b32.xlu0 %v721, 90
  %v1037 = vpop.permute.xlu0 %1036
  %1038 = vrot.lane.b32.xlu0 %v722, 90
  %v1039 = vpop.permute.xlu0 %1038
  %1040 = vrot.lane.b32.xlu0 %v723, 90
  %v1041 = vpop.permute.xlu0 %1040
  %1042 = vrot.lane.b32.xlu0 %v724, 90
  %v1043 = vpop.permute.xlu0 %1042
  %v1044 = vsel %vm368, %v1041, %v1043
  %v1045 = vsel %vm368, %v1039, %v1041
  %v1046 = vsel %vm368, %v1037, %v1039
  %v1047 = vsel %vm368, %v1043, %v1037
  %1048 = vst [vmem:[#allocation2 + $0x280] sm:$0xff] %v1046
  %1049 = vst [vmem:[#allocation2 + $0x288] sm:$0xff] %v1045
  %1050 = vst [vmem:[#allocation2 + $0x290] sm:$0xff] %v1044
  %1051 = vst [vmem:[#allocation2 + $0x298] sm:$0xff] %v1047
  %1052 = vrot.lane.b32.xlu0 %v721, 89
  %v1053 = vpop.permute.xlu0 %1052
  %1054 = vrot.lane.b32.xlu0 %v722, 89
  %v1055 = vpop.permute.xlu0 %1054
  %1056 = vrot.lane.b32.xlu0 %v723, 89
  %v1057 = vpop.permute.xlu0 %1056
  %1058 = vrot.lane.b32.xlu0 %v724, 89
  %v1059 = vpop.permute.xlu0 %1058
  %v1060 = vsel %vm385, %v1057, %v1059
  %v1061 = vsel %vm385, %v1055, %v1057
  %v1062 = vsel %vm385, %v1053, %v1055
  %v1063 = vsel %vm385, %v1059, %v1053
  %1064 = vst [vmem:[#allocation2 + $0x2a0] sm:$0xff] %v1062
  %1065 = vst [vmem:[#allocation2 + $0x2a8] sm:$0xff] %v1061
  %1066 = vst [vmem:[#allocation2 + $0x2b0] sm:$0xff] %v1060
  %1067 = vst [vmem:[#allocation2 + $0x2b8] sm:$0xff] %v1063
  %1068 = vrot.lane.b32.xlu0 %v721, 88
  %v1069 = vpop.permute.xlu0 %1068
  %1070 = vrot.lane.b32.xlu0 %v722, 88
  %v1071 = vpop.permute.xlu0 %1070
  %1072 = vrot.lane.b32.xlu0 %v723, 88
  %v1073 = vpop.permute.xlu0 %1072
  %1074 = vrot.lane.b32.xlu0 %v724, 88
  %v1075 = vpop.permute.xlu0 %1074
  %v1076 = vsel %vm402, %v1073, %v1075
  %v1077 = vsel %vm402, %v1071, %v1073
  %v1078 = vsel %vm402, %v1069, %v1071
  %v1079 = vsel %vm402, %v1075, %v1069
  %1080 = vst [vmem:[#allocation2 + $0x2c0] sm:$0xff] %v1078
  %1081 = vst [vmem:[#allocation2 + $0x2c8] sm:$0xff] %v1077
  %1082 = vst [vmem:[#allocation2 + $0x2d0] sm:$0xff] %v1076
  %1083 = vst [vmem:[#allocation2 + $0x2d8] sm:$0xff] %v1079
  %1084 = vrot.lane.b32.xlu0 %v721, 87
  %v1085 = vpop.permute.xlu0 %1084
  %1086 = vrot.lane.b32.xlu0 %v722, 87
  %v1087 = vpop.permute.xlu0 %1086
  %1088 = vrot.lane.b32.xlu0 %v723, 87
  %v1089 = vpop.permute.xlu0 %1088
  %1090 = vrot.lane.b32.xlu0 %v724, 87
  %v1091 = vpop.permute.xlu0 %1090
  %v1092 = vsel %vm419, %v1089, %v1091
  %v1093 = vsel %vm419, %v1087, %v1089
  %v1094 = vsel %vm419, %v1085, %v1087
  %v1095 = vsel %vm419, %v1091, %v1085
  %1096 = vst [vmem:[#allocation2 + $0x2e0] sm:$0xff] %v1094
  %1097 = vst [vmem:[#allocation2 + $0x2e8] sm:$0xff] %v1093
  %1098 = vst [vmem:[#allocation2 + $0x2f0] sm:$0xff] %v1092
  %1099 = vst [vmem:[#allocation2 + $0x2f8] sm:$0xff] %v1095
  %1100 = vrot.lane.b32.xlu0 %v721, 86
  %v1101 = vpop.permute.xlu0 %1100
  %1102 = vrot.lane.b32.xlu0 %v722, 86
  %v1103 = vpop.permute.xlu0 %1102
  %1104 = vrot.lane.b32.xlu0 %v723, 86
  %v1105 = vpop.permute.xlu0 %1104
  %1106 = vrot.lane.b32.xlu0 %v724, 86
  %v1107 = vpop.permute.xlu0 %1106
  %v1108 = vsel %vm436, %v1105, %v1107
  %v1109 = vsel %vm436, %v1103, %v1105
  %v1110 = vsel %vm436, %v1101, %v1103
  %v1111 = vsel %vm436, %v1107, %v1101
  %1112 = vst [vmem:[#allocation2 + $0x300] sm:$0xff] %v1110
  %1113 = vst [vmem:[#allocation2 + $0x308] sm:$0xff] %v1109
  %1114 = vst [vmem:[#allocation2 + $0x310] sm:$0xff] %v1108
  %1115 = vst [vmem:[#allocation2 + $0x318] sm:$0xff] %v1111
  %v1116 = vld [vmem:[#allocation2] sm:$0xff]
  %v1117 = vld [vmem:[#allocation2 + $0x8] sm:$0xff]
  %v1118 = vld [vmem:[#allocation2 + $0x10] sm:$0xff]
  %v1119 = vld [vmem:[#allocation2 + $0x18] sm:$0xff]
  %v1120 = vld [vmem:[#allocation2 + $0x20] sm:$0xff]
  %v1121 = vld [vmem:[#allocation2 + $0x28] sm:$0xff]
  %v1122 = vld [vmem:[#allocation2 + $0x30] sm:$0xff]
  %v1123 = vld [vmem:[#allocation2 + $0x38] sm:$0xff]
  %v1124 = vld [vmem:[#allocation2 + $0x40] sm:$0xff]
  %v1125 = vld [vmem:[#allocation2 + $0x48] sm:$0xff]
  %v1126 = vld [vmem:[#allocation2 + $0x50] sm:$0xff]
  %v1127 = vld [vmem:[#allocation2 + $0x58] sm:$0xff]
  %v1128 = vld [vmem:[#allocation2 + $0x60] sm:$0xff]
  %v1129 = vld [vmem:[#allocation2 + $0x68] sm:$0xff]
  %v1130 = vld [vmem:[#allocation2 + $0x70] sm:$0xff]
  %v1131 = vld [vmem:[#allocation2 + $0x78] sm:$0xff]
  %v1132 = vld [vmem:[#allocation2 + $0x80] sm:$0xff]
  %v1133 = vld [vmem:[#allocation2 + $0x88] sm:$0xff]
  %v1134 = vld [vmem:[#allocation2 + $0x90] sm:$0xff]
  %v1135 = vld [vmem:[#allocation2 + $0x98] sm:$0xff]
  %v1136 = vld [vmem:[#allocation2 + $0xa0] sm:$0xff]
  %v1137 = vld [vmem:[#allocation2 + $0xa8] sm:$0xff]
  %v1138 = vld [vmem:[#allocation2 + $0xb0] sm:$0xff]
  %v1139 = vld [vmem:[#allocation2 + $0xb8] sm:$0xff]
  %v1140 = vld [vmem:[#allocation2 + $0xc0] sm:$0xff]
  %v1141 = vld [vmem:[#allocation2 + $0xc8] sm:$0xff]
  %v1142 = vld [vmem:[#allocation2 + $0xd0] sm:$0xff]
  %v1143 = vld [vmem:[#allocation2 + $0xd8] sm:$0xff]
  %v1144 = vld [vmem:[#allocation2 + $0xe0] sm:$0xff]
  %v1145 = vld [vmem:[#allocation2 + $0xe8] sm:$0xff]
  %v1146 = vld [vmem:[#allocation2 + $0xf0] sm:$0xff]
  %v1147 = vld [vmem:[#allocation2 + $0xf8] sm:$0xff]
  %v1148 = vld [vmem:[#allocation2 + $0x100] sm:$0xff]
  %v1149 = vld [vmem:[#allocation2 + $0x108] sm:$0xff]
  %v1150 = vld [vmem:[#allocation2 + $0x110] sm:$0xff]
  %v1151 = vld [vmem:[#allocation2 + $0x118] sm:$0xff]
  %v1152 = vld [vmem:[#allocation2 + $0x120] sm:$0xff]
  %v1153 = vld [vmem:[#allocation2 + $0x128] sm:$0xff]
  %v1154 = vld [vmem:[#allocation2 + $0x130] sm:$0xff]
  %v1155 = vld [vmem:[#allocation2 + $0x138] sm:$0xff]
  %v1156 = vld [vmem:[#allocation2 + $0x140] sm:$0xff]
  %v1157 = vld [vmem:[#allocation2 + $0x148] sm:$0xff]
  %v1158 = vld [vmem:[#allocation2 + $0x150] sm:$0xff]
  %v1159 = vld [vmem:[#allocation2 + $0x158] sm:$0xff]
  %v1160 = vld [vmem:[#allocation2 + $0x160] sm:$0xff]
  %v1161 = vld [vmem:[#allocation2 + $0x168] sm:$0xff]
  %v1162 = vld [vmem:[#allocation2 + $0x170] sm:$0xff]
  %v1163 = vld [vmem:[#allocation2 + $0x178] sm:$0xff]
  %v1164 = vld [vmem:[#allocation2 + $0x180] sm:$0xff]
  %v1165 = vld [vmem:[#allocation2 + $0x188] sm:$0xff]
  %v1166 = vld [vmem:[#allocation2 + $0x190] sm:$0xff]
  %v1167 = vld [vmem:[#allocation2 + $0x198] sm:$0xff]
  %v1168 = vld [vmem:[#allocation2 + $0x1a0] sm:$0xff]
  %v1169 = vld [vmem:[#allocation2 + $0x1a8] sm:$0xff]
  %v1170 = vld [vmem:[#allocation2 + $0x1b0] sm:$0xff]
  %v1171 = vld [vmem:[#allocation2 + $0x1b8] sm:$0xff]
  %v1172 = vld [vmem:[#allocation2 + $0x1c0] sm:$0xff]
  %v1173 = vld [vmem:[#allocation2 + $0x1c8] sm:$0xff]
  %v1174 = vld [vmem:[#allocation2 + $0x1d0] sm:$0xff]
  %v1175 = vld [vmem:[#allocation2 + $0x1d8] sm:$0xff]
  %v1176 = vld [vmem:[#allocation2 + $0x1e0] sm:$0xff]
  %v1177 = vld [vmem:[#allocation2 + $0x1e8] sm:$0xff]
  %v1178 = vld [vmem:[#allocation2 + $0x1f0] sm:$0xff]
  %v1179 = vld [vmem:[#allocation2 + $0x1f8] sm:$0xff]
  %v1180 = vld [vmem:[#allocation2 + $0x200] sm:$0xff]
  %v1181 = vld [vmem:[#allocation2 + $0x208] sm:$0xff]
  %v1182 = vld [vmem:[#allocation2 + $0x210] sm:$0xff]
  %v1183 = vld [vmem:[#allocation2 + $0x218] sm:$0xff]
  %v1184 = vld [vmem:[#allocation2 + $0x220] sm:$0xff]
  %v1185 = vld [vmem:[#allocation2 + $0x228] sm:$0xff]
  %v1186 = vld [vmem:[#allocation2 + $0x230] sm:$0xff]
  %v1187 = vld [vmem:[#allocation2 + $0x238] sm:$0xff]
  %v1188 = vld [vmem:[#allocation2 + $0x240] sm:$0xff]
  %v1189 = vld [vmem:[#allocation2 + $0x248] sm:$0xff]
  %v1190 = vld [vmem:[#allocation2 + $0x250] sm:$0xff]
  %v1191 = vld [vmem:[#allocation2 + $0x258] sm:$0xff]
  %v1192 = vld [vmem:[#allocation2 + $0x260] sm:$0xff]
  %v1193 = vld [vmem:[#allocation2 + $0x268] sm:$0xff]
  %v1194 = vld [vmem:[#allocation2 + $0x270] sm:$0xff]
  %v1195 = vld [vmem:[#allocation2 + $0x278] sm:$0xff]
  %v1196 = vld [vmem:[#allocation2 + $0x280] sm:$0xff]
  %v1197 = vld [vmem:[#allocation2 + $0x288] sm:$0xff]
  %v1198 = vld [vmem:[#allocation2 + $0x290] sm:$0xff]
  %v1199 = vld [vmem:[#allocation2 + $0x298] sm:$0xff]
  %v1200 = vld [vmem:[#allocation2 + $0x2a0] sm:$0xff]
  %v1201 = vld [vmem:[#allocation2 + $0x2a8] sm:$0xff]
  %v1202 = vld [vmem:[#allocation2 + $0x2b0] sm:$0xff]
  %v1203 = vld [vmem:[#allocation2 + $0x2b8] sm:$0xff]
  %v1204 = vld [vmem:[#allocation2 + $0x2c0] sm:$0xff]
  %v1205 = vld [vmem:[#allocation2 + $0x2c8] sm:$0xff]
  %v1206 = vld [vmem:[#allocation2 + $0x2d0] sm:$0xff]
  %v1207 = vld [vmem:[#allocation2 + $0x2d8] sm:$0xff]
  %v1208 = vld [vmem:[#allocation2 + $0x2e0] sm:$0xff]
  %v1209 = vld [vmem:[#allocation2 + $0x2e8] sm:$0xff]
  %v1210 = vld [vmem:[#allocation2 + $0x2f0] sm:$0xff]
  %v1211 = vld [vmem:[#allocation2 + $0x2f8] sm:$0xff]
  %v1212 = vld [vmem:[#allocation2 + $0x300] sm:$0xff]
  %v1213 = vld [vmem:[#allocation2 + $0x308] sm:$0xff]
  %v1214 = vld [vmem:[#allocation2 + $0x310] sm:$0xff]
  %v1215 = vld [vmem:[#allocation2 + $0x318] sm:$0xff]
  %1217 = vset.pattern.permute.xlu0 0
  %1218 = vperm.xlu0 %1217, %v727
  %v1219 = vpop.permute.xlu0 %1218
  %v1222 = vsel %vm550, %v726, 0
  %1224 = vmatprep.subr.mxu0 %v1117
  %1225 = vmatpush1.msra.mxu0 %v1116
  %1226 = vmatprep.subr.mxu0 %v1121
  %1227 = vmatpush1.msra.mxu0 %v1120
  %1228 = vmatprep.subr.mxu0 %v1125
  %1229 = vmatpush1.msra.mxu0 %v1124
  %1230 = vmatprep.subr.mxu0 %v1129
  %1231 = vmatpush1.msra.mxu0 %v1128
  %1232 = vmatprep.subr.mxu0 %v1133
  %1233 = vmatpush1.msra.mxu0 %v1132
  %1234 = vmatprep.subr.mxu0 %v1137
  %1235 = vmatpush1.msra.mxu0 %v1136
  %1236 = vmatprep.subr.mxu0 %v1141
  %1237 = vmatpush1.msra.mxu0 %v1140
  %1238 = vmatprep.subr.mxu0 %v1145
  %1239 = vmatpush1.msra.mxu0 %v1144
  %1240 = vmatprep.subr.mxu0 %v1149
  %1241 = vmatpush1.msra.mxu0 %v1148
  %1242 = vmatprep.subr.mxu0 %v1153
  %1243 = vmatpush1.msra.mxu0 %v1152
  %1244 = vmatprep.subr.mxu0 %v1157
  %1245 = vmatpush1.msra.mxu0 %v1156
  %1246 = vmatprep.subr.mxu0 %v1161
  %1247 = vmatpush1.msra.mxu0 %v1160
  %1248 = vmatprep.subr.mxu0 %v1165
  %1249 = vmatpush1.msra.mxu0 %v1164
  %1250 = vmatprep.subr.mxu0 %v1169
  %1251 = vmatpush1.msra.mxu0 %v1168
  %1252 = vmatprep.subr.mxu0 %v1173
  %1253 = vmatpush1.msra.mxu0 %v1172
  %1254 = vmatprep.subr.mxu0 %v1177
  %1255 = vmatpush1.msra.mxu0 %v1176
  %1256 = vmatprep.subr.mxu0 %v1181
  %1257 = vmatpush1.msra.mxu0 %v1180
  %1258 = vmatprep.subr.mxu0 %v1185
  %1259 = vmatpush1.msra.mxu0 %v1184
  %1260 = vmatprep.subr.mxu0 %v1189
  %1261 = vmatpush1.msra.mxu0 %v1188
  %1262 = vmatprep.subr.mxu0 %v1193
  %1263 = vmatpush1.msra.mxu0 %v1192
  %1264 = vmatprep.subr.mxu0 %v1197
  %1265 = vmatpush1.msra.mxu0 %v1196
  %1266 = vmatprep.subr.mxu0 %v1201
  %1267 = vmatpush1.msra.mxu0 %v1200
  %1268 = vmatprep.subr.mxu0 %v1205
  %1269 = vmatpush1.msra.mxu0 %v1204
  %1270 = vmatprep.subr.mxu0 %v1209
  %1271 = vmatpush1.msra.mxu0 %v1208
  %1272 = vmatprep.subr.mxu0 %v1213
  %1273 = vmatpush1.msra.mxu0 %v1212
  %1274 = vmatprep.subr.mxu0 0.0
  %1275 = vmatpush1.msra.mxu0 0.0
  %1276 = vmatprep.subr.mxu0 0.0
  %1277 = vmatpush1.msra.mxu0 0.0
  %1278 = vmatprep.subr.mxu0 0.0
  %1279 = vmatpush1.msra.mxu0 0.0
  %1280 = vmatprep.subr.mxu0 0.0
  %1281 = vmatpush1.msra.mxu0 0.0
  %1282 = vmatprep.subr.mxu0 0.0
  %1283 = vmatpush1.msra.mxu0 0.0
  %1284 = vmatprep.subr.mxu0 0.0
  %1285 = vmatpush1.msra.mxu0 0.0
  %1286 = vmatprep.subr.mxu0 0.0
  %1287 = vmatpush1.msra.mxu0 0.0
  %1288 = vmatprep.mubr.f32.mxu0 %v1222
  %1289 = vmatmul.mubr.f32.gmra.mrb[0].mxu0 %v725
  %v1290 = vpop.f32.mrb[0].mxu0
  %v1291 = vadd.f32 %v1219, %v1290
  %v1292 = vpop.f32.mrb[0].mxu0
  %v1293 = vadd.f32 %v1219, %v1292
  %1294 = vdwg.mxu0
  %1295 = vmatprep.subr.mxu0 %v1119
  %1296 = vmatpush1.msra.mxu0 %v1118
  %1297 = vmatprep.subr.mxu0 %v1123
  %1298 = vmatpush1.msra.mxu0 %v1122
  %1299 = vmatprep.subr.mxu0 %v1127
  %1300 = vmatpush1.msra.mxu0 %v1126
  %1301 = vmatprep.subr.mxu0 %v1131
  %1302 = vmatpush1.msra.mxu0 %v1130
  %1303 = vmatprep.subr.mxu0 %v1135
  %1304 = vmatpush1.msra.mxu0 %v1134
  %1305 = vmatprep.subr.mxu0 %v1139
  %1306 = vmatpush1.msra.mxu0 %v1138
  %1307 = vmatprep.subr.mxu0 %v1143
  %1308 = vmatpush1.msra.mxu0 %v1142
  %1309 = vmatprep.subr.mxu0 %v1147
  %1310 = vmatpush1.msra.mxu0 %v1146
  %1311 = vmatprep.subr.mxu0 %v1151
  %1312 = vmatpush1.msra.mxu0 %v1150
  %1313 = vmatprep.subr.mxu0 %v1155
  %1314 = vmatpush1.msra.mxu0 %v1154
  %1315 = vmatprep.subr.mxu0 %v1159
  %1316 = vmatpush1.msra.mxu0 %v1158
  %1317 = vmatprep.subr.mxu0 %v1163
  %1318 = vmatpush1.msra.mxu0 %v1162
  %1319 = vmatprep.subr.mxu0 %v1167
  %1320 = vmatpush1.msra.mxu0 %v1166
  %1321 = vmatprep.subr.mxu0 %v1171
  %1322 = vmatpush1.msra.mxu0 %v1170
  %1323 = vmatprep.subr.mxu0 %v1175
  %1324 = vmatpush1.msra.mxu0 %v1174
  %1325 = vmatprep.subr.mxu0 %v1179
  %1326 = vmatpush1.msra.mxu0 %v1178
  %1327 = vmatprep.subr.mxu0 %v1183
  %1328 = vmatpush1.msra.mxu0 %v1182
  %1329 = vmatprep.subr.mxu0 %v1187
  %1330 = vmatpush1.msra.mxu0 %v1186
  %1331 = vmatprep.subr.mxu0 %v1191
  %1332 = vmatpush1.msra.mxu0 %v1190
  %1333 = vmatprep.subr.mxu0 %v1195
  %1334 = vmatpush1.msra.mxu0 %v1194
  %1335 = vmatprep.subr.mxu0 %v1199
  %1336 = vmatpush1.msra.mxu0 %v1198
  %1337 = vmatprep.subr.mxu0 %v1203
  %1338 = vmatpush1.msra.mxu0 %v1202
  %1339 = vmatprep.subr.mxu0 %v1207
  %1340 = vmatpush1.msra.mxu0 %v1206
  %1341 = vmatprep.subr.mxu0 %v1211
  %1342 = vmatpush1.msra.mxu0 %v1210
  %1343 = vmatprep.subr.mxu0 %v1215
  %1344 = vmatpush1.msra.mxu0 %v1214
  %1345 = vmatprep.subr.mxu0 0.0
  %1346 = vmatpush1.msra.mxu0 0.0
  %1347 = vmatprep.subr.mxu0 0.0
  %1348 = vmatpush1.msra.mxu0 0.0
  %1349 = vmatprep.subr.mxu0 0.0
  %1350 = vmatpush1.msra.mxu0 0.0
  %1351 = vmatprep.subr.mxu0 0.0
  %1352 = vmatpush1.msra.mxu0 0.0
  %1353 = vmatprep.subr.mxu0 0.0
  %1354 = vmatpush1.msra.mxu0 0.0
  %1355 = vmatprep.subr.mxu0 0.0
  %1356 = vmatpush1.msra.mxu0 0.0
  %1357 = vmatprep.subr.mxu0 0.0
  %1358 = vmatpush1.msra.mxu0 0.0
  %1359 = vmatprep.mubr.f32.mxu0 %v1222
  %1360 = vmatmul.mubr.f32.gmra.mrb[0].mxu0 %v725
  %v1361 = vpop.f32.mrb[0].mxu0
  %v1362 = vadd.f32 %v1219, %v1361
  %v1363 = vpop.f32.mrb[0].mxu0
  %v1364 = vadd.f32 %v1219, %v1363
  %1365 = vdwg.mxu0
  %v1366 = vmax.f32 %v1291, 0.0
  %v1367 = vmax.f32 %v1293, 0.0
  %v1368 = vmax.f32 %v1362, 0.0
  %v1369 = vmax.f32 %v1364, 0.0
  %v1370 = vmul.f32 %v1366, %v704
  %v1371 = vmul.f32 %v1367, %v708
  %v1372 = vmul.f32 %v1368, %v712
  %v1373 = vmul.f32 %v1369, %v716
  %v1374 = vadd.f32 %v1370, %v24
  %v1375 = vadd.f32 %v1371, %v25
  %v1376 = vadd.f32 %v1372, %v26
  %v1377 = vadd.f32 %v1373, %v27
  %s1378 = scalar_lea.vmem %s2, 16
  %v1379 = vld [vmem:[%s1378] sm:$0xff]
  %v1380 = vld [vmem:[%s1378 + $0x8] sm:$0xff]
  %s1381 = scalar_lea.vmem %s3, 8
  %v1382 = vld [vmem:[%s1381] sm:$0xff]
  %1383 = vrot.lane.b32.xlu0 %v1374, 42
  %v1384 = vpop.permute.xlu0 %1383
  %1385 = vrot.lane.b32.xlu0 %v1375, 42
  %v1386 = vpop.permute.xlu0 %1385
  %1387 = vrot.lane.b32.xlu0 %v1376, 42
  %v1388 = vpop.permute.xlu0 %1387
  %1389 = vrot.lane.b32.xlu0 %v1377, 42
  %v1390 = vpop.permute.xlu0 %1389
  %v1391 = vsel %vm41, %v1388, %v1390
  %v1392 = vsel %vm41, %v1386, %v1388
  %v1393 = vsel %vm41, %v1384, %v1386
  %v1394 = vsel %vm41, %v1390, %v1384
  %1395 = vst [vmem:[#allocation2] sm:$0xff] %v1394
  %1396 = vst [vmem:[#allocation2 + $0x8] sm:$0xff] %v1393
  %1397 = vst [vmem:[#allocation2 + $0x10] sm:$0xff] %v1392
  %1398 = vst [vmem:[#allocation2 + $0x18] sm:$0xff] %v1391
  %1399 = vrot.lane.b32.xlu0 %v1374, 41
  %v1400 = vpop.permute.xlu0 %1399
  %1401 = vrot.lane.b32.xlu0 %v1375, 41
  %v1402 = vpop.permute.xlu0 %1401
  %1403 = vrot.lane.b32.xlu0 %v1376, 41
  %v1404 = vpop.permute.xlu0 %1403
  %1405 = vrot.lane.b32.xlu0 %v1377, 41
  %v1406 = vpop.permute.xlu0 %1405
  %v1407 = vsel %vm58, %v1404, %v1406
  %v1408 = vsel %vm58, %v1402, %v1404
  %v1409 = vsel %vm58, %v1400, %v1402
  %v1410 = vsel %vm58, %v1406, %v1400
  %1411 = vst [vmem:[#allocation2 + $0x20] sm:$0xff] %v1410
  %1412 = vst [vmem:[#allocation2 + $0x28] sm:$0xff] %v1409
  %1413 = vst [vmem:[#allocation2 + $0x30] sm:$0xff] %v1408
  %1414 = vst [vmem:[#allocation2 + $0x38] sm:$0xff] %v1407
  %1415 = vrot.lane.b32.xlu0 %v1374, 40
  %v1416 = vpop.permute.xlu0 %1415
  %1417 = vrot.lane.b32.xlu0 %v1375, 40
  %v1418 = vpop.permute.xlu0 %1417
  %1419 = vrot.lane.b32.xlu0 %v1376, 40
  %v1420 = vpop.permute.xlu0 %1419
  %1421 = vrot.lane.b32.xlu0 %v1377, 40
  %v1422 = vpop.permute.xlu0 %1421
  %v1423 = vsel %vm75, %v1420, %v1422
  %v1424 = vsel %vm75, %v1418, %v1420
  %v1425 = vsel %vm75, %v1416, %v1418
  %v1426 = vsel %vm75, %v1422, %v1416
  %1427 = vst [vmem:[#allocation2 + $0x40] sm:$0xff] %v1426
  %1428 = vst [vmem:[#allocation2 + $0x48] sm:$0xff] %v1425
  %1429 = vst [vmem:[#allocation2 + $0x50] sm:$0xff] %v1424
  %1430 = vst [vmem:[#allocation2 + $0x58] sm:$0xff] %v1423
  %1431 = vrot.lane.b32.xlu0 %v1374, 39
  %v1432 = vpop.permute.xlu0 %1431
  %1433 = vrot.lane.b32.xlu0 %v1375, 39
  %v1434 = vpop.permute.xlu0 %1433
  %1435 = vrot.lane.b32.xlu0 %v1376, 39
  %v1436 = vpop.permute.xlu0 %1435
  %1437 = vrot.lane.b32.xlu0 %v1377, 39
  %v1438 = vpop.permute.xlu0 %1437
  %v1439 = vsel %vm92, %v1436, %v1438
  %v1440 = vsel %vm92, %v1434, %v1436
  %v1441 = vsel %vm92, %v1432, %v1434
  %v1442 = vsel %vm92, %v1438, %v1432
  %1443 = vst [vmem:[#allocation2 + $0x60] sm:$0xff] %v1442
  %1444 = vst [vmem:[#allocation2 + $0x68] sm:$0xff] %v1441
  %1445 = vst [vmem:[#allocation2 + $0x70] sm:$0xff] %v1440
  %1446 = vst [vmem:[#allocation2 + $0x78] sm:$0xff] %v1439
  %1447 = vrot.lane.b32.xlu0 %v1374, 38
  %v1448 = vpop.permute.xlu0 %1447
  %1449 = vrot.lane.b32.xlu0 %v1375, 38
  %v1450 = vpop.permute.xlu0 %1449
  %1451 = vrot.lane.b32.xlu0 %v1376, 38
  %v1452 = vpop.permute.xlu0 %1451
  %1453 = vrot.lane.b32.xlu0 %v1377, 38
  %v1454 = vpop.permute.xlu0 %1453
  %v1455 = vsel %vm109, %v1452, %v1454
  %v1456 = vsel %vm109, %v1450, %v1452
  %v1457 = vsel %vm109, %v1448, %v1450
  %v1458 = vsel %vm109, %v1454, %v1448
  %1459 = vst [vmem:[#allocation2 + $0x80] sm:$0xff] %v1458
  %1460 = vst [vmem:[#allocation2 + $0x88] sm:$0xff] %v1457
  %1461 = vst [vmem:[#allocation2 + $0x90] sm:$0xff] %v1456
  %1462 = vst [vmem:[#allocation2 + $0x98] sm:$0xff] %v1455
  %1463 = vrot.lane.b32.xlu0 %v1374, 22
  %v1464 = vpop.permute.xlu0 %1463
  %1465 = vrot.lane.b32.xlu0 %v1375, 22
  %v1466 = vpop.permute.xlu0 %1465
  %1467 = vrot.lane.b32.xlu0 %v1376, 22
  %v1468 = vpop.permute.xlu0 %1467
  %1469 = vrot.lane.b32.xlu0 %v1377, 22
  %v1470 = vpop.permute.xlu0 %1469
  %v1471 = vsel %vm126, %v1468, %v1470
  %v1472 = vsel %vm126, %v1466, %v1468
  %v1473 = vsel %vm126, %v1464, %v1466
  %v1474 = vsel %vm126, %v1470, %v1464
  %1475 = vst [vmem:[#allocation2 + $0xa0] sm:$0xff] %v1474
  %1476 = vst [vmem:[#allocation2 + $0xa8] sm:$0xff] %v1473
  %1477 = vst [vmem:[#allocation2 + $0xb0] sm:$0xff] %v1472
  %1478 = vst [vmem:[#allocation2 + $0xb8] sm:$0xff] %v1471
  %1479 = vrot.lane.b32.xlu0 %v1374, 21
  %v1480 = vpop.permute.xlu0 %1479
  %1481 = vrot.lane.b32.xlu0 %v1375, 21
  %v1482 = vpop.permute.xlu0 %1481
  %1483 = vrot.lane.b32.xlu0 %v1376, 21
  %v1484 = vpop.permute.xlu0 %1483
  %1485 = vrot.lane.b32.xlu0 %v1377, 21
  %v1486 = vpop.permute.xlu0 %1485
  %v1487 = vsel %vm143, %v1484, %v1486
  %v1488 = vsel %vm143, %v1482, %v1484
  %v1489 = vsel %vm143, %v1480, %v1482
  %v1490 = vsel %vm143, %v1486, %v1480
  %1491 = vst [vmem:[#allocation2 + $0xc0] sm:$0xff] %v1490
  %1492 = vst [vmem:[#allocation2 + $0xc8] sm:$0xff] %v1489
  %1493 = vst [vmem:[#allocation2 + $0xd0] sm:$0xff] %v1488
  %1494 = vst [vmem:[#allocation2 + $0xd8] sm:$0xff] %v1487
  %1495 = vrot.lane.b32.xlu0 %v1374, 20
  %v1496 = vpop.permute.xlu0 %1495
  %1497 = vrot.lane.b32.xlu0 %v1375, 20
  %v1498 = vpop.permute.xlu0 %1497
  %1499 = vrot.lane.b32.xlu0 %v1376, 20
  %v1500 = vpop.permute.xlu0 %1499
  %1501 = vrot.lane.b32.xlu0 %v1377, 20
  %v1502 = vpop.permute.xlu0 %1501
  %v1503 = vsel %vm160, %v1500, %v1502
  %v1504 = vsel %vm160, %v1498, %v1500
  %v1505 = vsel %vm160, %v1496, %v1498
  %v1506 = vsel %vm160, %v1502, %v1496
  %1507 = vst [vmem:[#allocation2 + $0xe0] sm:$0xff] %v1506
  %1508 = vst [vmem:[#allocation2 + $0xe8] sm:$0xff] %v1505
  %1509 = vst [vmem:[#allocation2 + $0xf0] sm:$0xff] %v1504
  %1510 = vst [vmem:[#allocation2 + $0xf8] sm:$0xff] %v1503
  %1511 = vrot.lane.b32.xlu0 %v1374, 19
  %v1512 = vpop.permute.xlu0 %1511
  %1513 = vrot.lane.b32.xlu0 %v1375, 19
  %v1514 = vpop.permute.xlu0 %1513
  %1515 = vrot.lane.b32.xlu0 %v1376, 19
  %v1516 = vpop.permute.xlu0 %1515
  %1517 = vrot.lane.b32.xlu0 %v1377, 19
  %v1518 = vpop.permute.xlu0 %1517
  %v1519 = vsel %vm177, %v1516, %v1518
  %v1520 = vsel %vm177, %v1514, %v1516
  %v1521 = vsel %vm177, %v1512, %v1514
  %v1522 = vsel %vm177, %v1518, %v1512
  %1523 = vst [vmem:[#allocation2 + $0x100] sm:$0xff] %v1522
  %1524 = vst [vmem:[#allocation2 + $0x108] sm:$0xff] %v1521
  %1525 = vst [vmem:[#allocation2 + $0x110] sm:$0xff] %v1520
  %1526 = vst [vmem:[#allocation2 + $0x118] sm:$0xff] %v1519
  %1527 = vrot.lane.b32.xlu0 %v1374, 18
  %v1528 = vpop.permute.xlu0 %1527
  %1529 = vrot.lane.b32.xlu0 %v1375, 18
  %v1530 = vpop.permute.xlu0 %1529
  %1531 = vrot.lane.b32.xlu0 %v1376, 18
  %v1532 = vpop.permute.xlu0 %1531
  %1533 = vrot.lane.b32.xlu0 %v1377, 18
  %v1534 = vpop.permute.xlu0 %1533
  %v1535 = vsel %vm194, %v1532, %v1534
  %v1536 = vsel %vm194, %v1530, %v1532
  %v1537 = vsel %vm194, %v1528, %v1530
  %v1538 = vsel %vm194, %v1534, %v1528
  %1539 = vst [vmem:[#allocation2 + $0x120] sm:$0xff] %v1538
  %1540 = vst [vmem:[#allocation2 + $0x128] sm:$0xff] %v1537
  %1541 = vst [vmem:[#allocation2 + $0x130] sm:$0xff] %v1536
  %1542 = vst [vmem:[#allocation2 + $0x138] sm:$0xff] %v1535
  %1543 = vrot.lane.b32.xlu0 %v1374, 2
  %v1544 = vpop.permute.xlu0 %1543
  %1545 = vrot.lane.b32.xlu0 %v1375, 2
  %v1546 = vpop.permute.xlu0 %1545
  %1547 = vrot.lane.b32.xlu0 %v1376, 2
  %v1548 = vpop.permute.xlu0 %1547
  %1549 = vrot.lane.b32.xlu0 %v1377, 2
  %v1550 = vpop.permute.xlu0 %1549
  %v1551 = vsel %vm211, %v1548, %v1550
  %v1552 = vsel %vm211, %v1546, %v1548
  %v1553 = vsel %vm211, %v1544, %v1546
  %v1554 = vsel %vm211, %v1550, %v1544
  %1555 = vst [vmem:[#allocation2 + $0x140] sm:$0xff] %v1554
  %1556 = vst [vmem:[#allocation2 + $0x148] sm:$0xff] %v1553
  %1557 = vst [vmem:[#allocation2 + $0x150] sm:$0xff] %v1552
  %1558 = vst [vmem:[#allocation2 + $0x158] sm:$0xff] %v1551
  %1559 = vrot.lane.b32.xlu0 %v1374, 1
  %v1560 = vpop.permute.xlu0 %1559
  %1561 = vrot.lane.b32.xlu0 %v1375, 1
  %v1562 = vpop.permute.xlu0 %1561
  %1563 = vrot.lane.b32.xlu0 %v1376, 1
  %v1564 = vpop.permute.xlu0 %1563
  %1565 = vrot.lane.b32.xlu0 %v1377, 1
  %v1566 = vpop.permute.xlu0 %1565
  %v1567 = vsel %vm228, %v1564, %v1566
  %v1568 = vsel %vm228, %v1562, %v1564
  %v1569 = vsel %vm228, %v1560, %v1562
  %v1570 = vsel %vm228, %v1566, %v1560
  %1571 = vst [vmem:[#allocation2 + $0x160] sm:$0xff] %v1570
  %1572 = vst [vmem:[#allocation2 + $0x168] sm:$0xff] %v1569
  %1573 = vst [vmem:[#allocation2 + $0x170] sm:$0xff] %v1568
  %1574 = vst [vmem:[#allocation2 + $0x178] sm:$0xff] %v1567
  %1575 = vst [vmem:[#allocation2 + $0x180] sm:$0xff] %v1374
  %1576 = vst [vmem:[#allocation2 + $0x188] sm:$0xff] %v1375
  %1577 = vst [vmem:[#allocation2 + $0x190] sm:$0xff] %v1376
  %1578 = vst [vmem:[#allocation2 + $0x198] sm:$0xff] %v1377
  %1579 = vrot.lane.b32.xlu0 %v1374, 127
  %v1580 = vpop.permute.xlu0 %1579
  %1581 = vrot.lane.b32.xlu0 %v1375, 127
  %v1582 = vpop.permute.xlu0 %1581
  %1583 = vrot.lane.b32.xlu0 %v1376, 127
  %v1584 = vpop.permute.xlu0 %1583
  %1585 = vrot.lane.b32.xlu0 %v1377, 127
  %v1586 = vpop.permute.xlu0 %1585
  %v1587 = vsel %vm249, %v1584, %v1586
  %v1588 = vsel %vm249, %v1582, %v1584
  %v1589 = vsel %vm249, %v1580, %v1582
  %v1590 = vsel %vm249, %v1586, %v1580
  %1591 = vst [vmem:[#allocation2 + $0x1a0] sm:$0xff] %v1589
  %1592 = vst [vmem:[#allocation2 + $0x1a8] sm:$0xff] %v1588
  %1593 = vst [vmem:[#allocation2 + $0x1b0] sm:$0xff] %v1587
  %1594 = vst [vmem:[#allocation2 + $0x1b8] sm:$0xff] %v1590
  %1595 = vrot.lane.b32.xlu0 %v1374, 126
  %v1596 = vpop.permute.xlu0 %1595
  %1597 = vrot.lane.b32.xlu0 %v1375, 126
  %v1598 = vpop.permute.xlu0 %1597
  %1599 = vrot.lane.b32.xlu0 %v1376, 126
  %v1600 = vpop.permute.xlu0 %1599
  %1601 = vrot.lane.b32.xlu0 %v1377, 126
  %v1602 = vpop.permute.xlu0 %1601
  %v1603 = vsel %vm266, %v1600, %v1602
  %v1604 = vsel %vm266, %v1598, %v1600
  %v1605 = vsel %vm266, %v1596, %v1598
  %v1606 = vsel %vm266, %v1602, %v1596
  %1607 = vst [vmem:[#allocation2 + $0x1c0] sm:$0xff] %v1605
  %1608 = vst [vmem:[#allocation2 + $0x1c8] sm:$0xff] %v1604
  %1609 = vst [vmem:[#allocation2 + $0x1d0] sm:$0xff] %v1603
  %1610 = vst [vmem:[#allocation2 + $0x1d8] sm:$0xff] %v1606
  %1611 = vrot.lane.b32.xlu0 %v1374, 110
  %v1612 = vpop.permute.xlu0 %1611
  %1613 = vrot.lane.b32.xlu0 %v1375, 110
  %v1614 = vpop.permute.xlu0 %1613
  %1615 = vrot.lane.b32.xlu0 %v1376, 110
  %v1616 = vpop.permute.xlu0 %1615
  %1617 = vrot.lane.b32.xlu0 %v1377, 110
  %v1618 = vpop.permute.xlu0 %1617
  %v1619 = vsel %vm283, %v1616, %v1618
  %v1620 = vsel %vm283, %v1614, %v1616
  %v1621 = vsel %vm283, %v1612, %v1614
  %v1622 = vsel %vm283, %v1618, %v1612
  %1623 = vst [vmem:[#allocation2 + $0x1e0] sm:$0xff] %v1621
  %1624 = vst [vmem:[#allocation2 + $0x1e8] sm:$0xff] %v1620
  %1625 = vst [vmem:[#allocation2 + $0x1f0] sm:$0xff] %v1619
  %1626 = vst [vmem:[#allocation2 + $0x1f8] sm:$0xff] %v1622
  %1627 = vrot.lane.b32.xlu0 %v1374, 109
  %v1628 = vpop.permute.xlu0 %1627
  %1629 = vrot.lane.b32.xlu0 %v1375, 109
  %v1630 = vpop.permute.xlu0 %1629
  %1631 = vrot.lane.b32.xlu0 %v1376, 109
  %v1632 = vpop.permute.xlu0 %1631
  %1633 = vrot.lane.b32.xlu0 %v1377, 109
  %v1634 = vpop.permute.xlu0 %1633
  %v1635 = vsel %vm300, %v1632, %v1634
  %v1636 = vsel %vm300, %v1630, %v1632
  %v1637 = vsel %vm300, %v1628, %v1630
  %v1638 = vsel %vm300, %v1634, %v1628
  %1639 = vst [vmem:[#allocation2 + $0x200] sm:$0xff] %v1637
  %1640 = vst [vmem:[#allocation2 + $0x208] sm:$0xff] %v1636
  %1641 = vst [vmem:[#allocation2 + $0x210] sm:$0xff] %v1635
  %1642 = vst [vmem:[#allocation2 + $0x218] sm:$0xff] %v1638
  %1643 = vrot.lane.b32.xlu0 %v1374, 108
  %v1644 = vpop.permute.xlu0 %1643
  %1645 = vrot.lane.b32.xlu0 %v1375, 108
  %v1646 = vpop.permute.xlu0 %1645
  %1647 = vrot.lane.b32.xlu0 %v1376, 108
  %v1648 = vpop.permute.xlu0 %1647
  %1649 = vrot.lane.b32.xlu0 %v1377, 108
  %v1650 = vpop.permute.xlu0 %1649
  %v1651 = vsel %vm317, %v1648, %v1650
  %v1652 = vsel %vm317, %v1646, %v1648
  %v1653 = vsel %vm317, %v1644, %v1646
  %v1654 = vsel %vm317, %v1650, %v1644
  %1655 = vst [vmem:[#allocation2 + $0x220] sm:$0xff] %v1653
  %1656 = vst [vmem:[#allocation2 + $0x228] sm:$0xff] %v1652
  %1657 = vst [vmem:[#allocation2 + $0x230] sm:$0xff] %v1651
  %1658 = vst [vmem:[#allocation2 + $0x238] sm:$0xff] %v1654
  %1659 = vrot.lane.b32.xlu0 %v1374, 107
  %v1660 = vpop.permute.xlu0 %1659
  %1661 = vrot.lane.b32.xlu0 %v1375, 107
  %v1662 = vpop.permute.xlu0 %1661
  %1663 = vrot.lane.b32.xlu0 %v1376, 107
  %v1664 = vpop.permute.xlu0 %1663
  %1665 = vrot.lane.b32.xlu0 %v1377, 107
  %v1666 = vpop.permute.xlu0 %1665
  %v1667 = vsel %vm334, %v1664, %v1666
  %v1668 = vsel %vm334, %v1662, %v1664
  %v1669 = vsel %vm334, %v1660, %v1662
  %v1670 = vsel %vm334, %v1666, %v1660
  %1671 = vst [vmem:[#allocation2 + $0x240] sm:$0xff] %v1669
  %1672 = vst [vmem:[#allocation2 + $0x248] sm:$0xff] %v1668
  %1673 = vst [vmem:[#allocation2 + $0x250] sm:$0xff] %v1667
  %1674 = vst [vmem:[#allocation2 + $0x258] sm:$0xff] %v1670
  %1675 = vrot.lane.b32.xlu0 %v1374, 106
  %v1676 = vpop.permute.xlu0 %1675
  %1677 = vrot.lane.b32.xlu0 %v1375, 106
  %v1678 = vpop.permute.xlu0 %1677
  %1679 = vrot.lane.b32.xlu0 %v1376, 106
  %v1680 = vpop.permute.xlu0 %1679
  %1681 = vrot.lane.b32.xlu0 %v1377, 106
  %v1682 = vpop.permute.xlu0 %1681
  %v1683 = vsel %vm351, %v1680, %v1682
  %v1684 = vsel %vm351, %v1678, %v1680
  %v1685 = vsel %vm351, %v1676, %v1678
  %v1686 = vsel %vm351, %v1682, %v1676
  %1687 = vst [vmem:[#allocation2 + $0x260] sm:$0xff] %v1685
  %1688 = vst [vmem:[#allocation2 + $0x268] sm:$0xff] %v1684
  %1689 = vst [vmem:[#allocation2 + $0x270] sm:$0xff] %v1683
  %1690 = vst [vmem:[#allocation2 + $0x278] sm:$0xff] %v1686
  %1691 = vrot.lane.b32.xlu0 %v1374, 90
  %v1692 = vpop.permute.xlu0 %1691
  %1693 = vrot.lane.b32.xlu0 %v1375, 90
  %v1694 = vpop.permute.xlu0 %1693
  %1695 = vrot.lane.b32.xlu0 %v1376, 90
  %v1696 = vpop.permute.xlu0 %1695
  %1697 = vrot.lane.b32.xlu0 %v1377, 90
  %v1698 = vpop.permute.xlu0 %1697
  %v1699 = vsel %vm368, %v1696, %v1698
  %v1700 = vsel %vm368, %v1694, %v1696
  %v1701 = vsel %vm368, %v1692, %v1694
  %v1702 = vsel %vm368, %v1698, %v1692
  %1703 = vst [vmem:[#allocation2 + $0x280] sm:$0xff] %v1701
  %1704 = vst [vmem:[#allocation2 + $0x288] sm:$0xff] %v1700
  %1705 = vst [vmem:[#allocation2 + $0x290] sm:$0xff] %v1699
  %1706 = vst [vmem:[#allocation2 + $0x298] sm:$0xff] %v1702
  %1707 = vrot.lane.b32.xlu0 %v1374, 89
  %v1708 = vpop.permute.xlu0 %1707
  %1709 = vrot.lane.b32.xlu0 %v1375, 89
  %v1710 = vpop.permute.xlu0 %1709
  %1711 = vrot.lane.b32.xlu0 %v1376, 89
  %v1712 = vpop.permute.xlu0 %1711
  %1713 = vrot.lane.b32.xlu0 %v1377, 89
  %v1714 = vpop.permute.xlu0 %1713
  %v1715 = vsel %vm385, %v1712, %v1714
  %v1716 = vsel %vm385, %v1710, %v1712
  %v1717 = vsel %vm385, %v1708, %v1710
  %v1718 = vsel %vm385, %v1714, %v1708
  %1719 = vst [vmem:[#allocation2 + $0x2a0] sm:$0xff] %v1717
  %1720 = vst [vmem:[#allocation2 + $0x2a8] sm:$0xff] %v1716
  %1721 = vst [vmem:[#allocation2 + $0x2b0] sm:$0xff] %v1715
  %1722 = vst [vmem:[#allocation2 + $0x2b8] sm:$0xff] %v1718
  %1723 = vrot.lane.b32.xlu0 %v1374, 88
  %v1724 = vpop.permute.xlu0 %1723
  %1725 = vrot.lane.b32.xlu0 %v1375, 88
  %v1726 = vpop.permute.xlu0 %1725
  %1727 = vrot.lane.b32.xlu0 %v1376, 88
  %v1728 = vpop.permute.xlu0 %1727
  %1729 = vrot.lane.b32.xlu0 %v1377, 88
  %v1730 = vpop.permute.xlu0 %1729
  %v1731 = vsel %vm402, %v1728, %v1730
  %v1732 = vsel %vm402, %v1726, %v1728
  %v1733 = vsel %vm402, %v1724, %v1726
  %v1734 = vsel %vm402, %v1730, %v1724
  %1735 = vst [vmem:[#allocation2 + $0x2c0] sm:$0xff] %v1733
  %1736 = vst [vmem:[#allocation2 + $0x2c8] sm:$0xff] %v1732
  %1737 = vst [vmem:[#allocation2 + $0x2d0] sm:$0xff] %v1731
  %1738 = vst [vmem:[#allocation2 + $0x2d8] sm:$0xff] %v1734
  %1739 = vrot.lane.b32.xlu0 %v1374, 87
  %v1740 = vpop.permute.xlu0 %1739
  %1741 = vrot.lane.b32.xlu0 %v1375, 87
  %v1742 = vpop.permute.xlu0 %1741
  %1743 = vrot.lane.b32.xlu0 %v1376, 87
  %v1744 = vpop.permute.xlu0 %1743
  %1745 = vrot.lane.b32.xlu0 %v1377, 87
  %v1746 = vpop.permute.xlu0 %1745
  %v1747 = vsel %vm419, %v1744, %v1746
  %v1748 = vsel %vm419, %v1742, %v1744
  %v1749 = vsel %vm419, %v1740, %v1742
  %v1750 = vsel %vm419, %v1746, %v1740
  %1751 = vst [vmem:[#allocation2 + $0x2e0] sm:$0xff] %v1749
  %1752 = vst [vmem:[#allocation2 + $0x2e8] sm:$0xff] %v1748
  %1753 = vst [vmem:[#allocation2 + $0x2f0] sm:$0xff] %v1747
  %1754 = vst [vmem:[#allocation2 + $0x2f8] sm:$0xff] %v1750
  %1755 = vrot.lane.b32.xlu0 %v1374, 86
  %v1756 = vpop.permute.xlu0 %1755
  %1757 = vrot.lane.b32.xlu0 %v1375, 86
  %v1758 = vpop.permute.xlu0 %1757
  %1759 = vrot.lane.b32.xlu0 %v1376, 86
  %v1760 = vpop.permute.xlu0 %1759
  %1761 = vrot.lane.b32.xlu0 %v1377, 86
  %v1762 = vpop.permute.xlu0 %1761
  %v1763 = vsel %vm436, %v1760, %v1762
  %v1764 = vsel %vm436, %v1758, %v1760
  %v1765 = vsel %vm436, %v1756, %v1758
  %v1766 = vsel %vm436, %v1762, %v1756
  %1767 = vst [vmem:[#allocation2 + $0x300] sm:$0xff] %v1765
  %1768 = vst [vmem:[#allocation2 + $0x308] sm:$0xff] %v1764
  %1769 = vst [vmem:[#allocation2 + $0x310] sm:$0xff] %v1763
  %1770 = vst [vmem:[#allocation2 + $0x318] sm:$0xff] %v1766
  %v1771 = vld [vmem:[#allocation2] sm:$0xff]
  %v1772 = vld [vmem:[#allocation2 + $0x8] sm:$0xff]
  %v1773 = vld [vmem:[#allocation2 + $0x10] sm:$0xff]
  %v1774 = vld [vmem:[#allocation2 + $0x18] sm:$0xff]
  %v1775 = vld [vmem:[#allocation2 + $0x20] sm:$0xff]
  %v1776 = vld [vmem:[#allocation2 + $0x28] sm:$0xff]
  %v1777 = vld [vmem:[#allocation2 + $0x30] sm:$0xff]
  %v1778 = vld [vmem:[#allocation2 + $0x38] sm:$0xff]
  %v1779 = vld [vmem:[#allocation2 + $0x40] sm:$0xff]
  %v1780 = vld [vmem:[#allocation2 + $0x48] sm:$0xff]
  %v1781 = vld [vmem:[#allocation2 + $0x50] sm:$0xff]
  %v1782 = vld [vmem:[#allocation2 + $0x58] sm:$0xff]
  %v1783 = vld [vmem:[#allocation2 + $0x60] sm:$0xff]
  %v1784 = vld [vmem:[#allocation2 + $0x68] sm:$0xff]
  %v1785 = vld [vmem:[#allocation2 + $0x70] sm:$0xff]
  %v1786 = vld [vmem:[#allocation2 + $0x78] sm:$0xff]
  %v1787 = vld [vmem:[#allocation2 + $0x80] sm:$0xff]
  %v1788 = vld [vmem:[#allocation2 + $0x88] sm:$0xff]
  %v1789 = vld [vmem:[#allocation2 + $0x90] sm:$0xff]
  %v1790 = vld [vmem:[#allocation2 + $0x98] sm:$0xff]
  %v1791 = vld [vmem:[#allocation2 + $0xa0] sm:$0xff]
  %v1792 = vld [vmem:[#allocation2 + $0xa8] sm:$0xff]
  %v1793 = vld [vmem:[#allocation2 + $0xb0] sm:$0xff]
  %v1794 = vld [vmem:[#allocation2 + $0xb8] sm:$0xff]
  %v1795 = vld [vmem:[#allocation2 + $0xc0] sm:$0xff]
  %v1796 = vld [vmem:[#allocation2 + $0xc8] sm:$0xff]
  %v1797 = vld [vmem:[#allocation2 + $0xd0] sm:$0xff]
  %v1798 = vld [vmem:[#allocation2 + $0xd8] sm:$0xff]
  %v1799 = vld [vmem:[#allocation2 + $0xe0] sm:$0xff]
  %v1800 = vld [vmem:[#allocation2 + $0xe8] sm:$0xff]
  %v1801 = vld [vmem:[#allocation2 + $0xf0] sm:$0xff]
  %v1802 = vld [vmem:[#allocation2 + $0xf8] sm:$0xff]
  %v1803 = vld [vmem:[#allocation2 + $0x100] sm:$0xff]
  %v1804 = vld [vmem:[#allocation2 + $0x108] sm:$0xff]
  %v1805 = vld [vmem:[#allocation2 + $0x110] sm:$0xff]
  %v1806 = vld [vmem:[#allocation2 + $0x118] sm:$0xff]
  %v1807 = vld [vmem:[#allocation2 + $0x120] sm:$0xff]
  %v1808 = vld [vmem:[#allocation2 + $0x128] sm:$0xff]
  %v1809 = vld [vmem:[#allocation2 + $0x130] sm:$0xff]
  %v1810 = vld [vmem:[#allocation2 + $0x138] sm:$0xff]
  %v1811 = vld [vmem:[#allocation2 + $0x140] sm:$0xff]
  %v1812 = vld [vmem:[#allocation2 + $0x148] sm:$0xff]
  %v1813 = vld [vmem:[#allocation2 + $0x150] sm:$0xff]
  %v1814 = vld [vmem:[#allocation2 + $0x158] sm:$0xff]
  %v1815 = vld [vmem:[#allocation2 + $0x160] sm:$0xff]
  %v1816 = vld [vmem:[#allocation2 + $0x168] sm:$0xff]
  %v1817 = vld [vmem:[#allocation2 + $0x170] sm:$0xff]
  %v1818 = vld [vmem:[#allocation2 + $0x178] sm:$0xff]
  %v1819 = vld [vmem:[#allocation2 + $0x180] sm:$0xff]
  %v1820 = vld [vmem:[#allocation2 + $0x188] sm:$0xff]
  %v1821 = vld [vmem:[#allocation2 + $0x190] sm:$0xff]
  %v1822 = vld [vmem:[#allocation2 + $0x198] sm:$0xff]
  %v1823 = vld [vmem:[#allocation2 + $0x1a0] sm:$0xff]
  %v1824 = vld [vmem:[#allocation2 + $0x1a8] sm:$0xff]
  %v1825 = vld [vmem:[#allocation2 + $0x1b0] sm:$0xff]
  %v1826 = vld [vmem:[#allocation2 + $0x1b8] sm:$0xff]
  %v1827 = vld [vmem:[#allocation2 + $0x1c0] sm:$0xff]
  %v1828 = vld [vmem:[#allocation2 + $0x1c8] sm:$0xff]
  %v1829 = vld [vmem:[#allocation2 + $0x1d0] sm:$0xff]
  %v1830 = vld [vmem:[#allocation2 + $0x1d8] sm:$0xff]
  %v1831 = vld [vmem:[#allocation2 + $0x1e0] sm:$0xff]
  %v1832 = vld [vmem:[#allocation2 + $0x1e8] sm:$0xff]
  %v1833 = vld [vmem:[#allocation2 + $0x1f0] sm:$0xff]
  %v1834 = vld [vmem:[#allocation2 + $0x1f8] sm:$0xff]
  %v1835 = vld [vmem:[#allocation2 + $0x200] sm:$0xff]
  %v1836 = vld [vmem:[#allocation2 + $0x208] sm:$0xff]
  %v1837 = vld [vmem:[#allocation2 + $0x210] sm:$0xff]
  %v1838 = vld [vmem:[#allocation2 + $0x218] sm:$0xff]
  %v1839 = vld [vmem:[#allocation2 + $0x220] sm:$0xff]
  %v1840 = vld [vmem:[#allocation2 + $0x228] sm:$0xff]
  %v1841 = vld [vmem:[#allocation2 + $0x230] sm:$0xff]
  %v1842 = vld [vmem:[#allocation2 + $0x238] sm:$0xff]
  %v1843 = vld [vmem:[#allocation2 + $0x240] sm:$0xff]
  %v1844 = vld [vmem:[#allocation2 + $0x248] sm:$0xff]
  %v1845 = vld [vmem:[#allocation2 + $0x250] sm:$0xff]
  %v1846 = vld [vmem:[#allocation2 + $0x258] sm:$0xff]
  %v1847 = vld [vmem:[#allocation2 + $0x260] sm:$0xff]
  %v1848 = vld [vmem:[#allocation2 + $0x268] sm:$0xff]
  %v1849 = vld [vmem:[#allocation2 + $0x270] sm:$0xff]
  %v1850 = vld [vmem:[#allocation2 + $0x278] sm:$0xff]
  %v1851 = vld [vmem:[#allocation2 + $0x280] sm:$0xff]
  %v1852 = vld [vmem:[#allocation2 + $0x288] sm:$0xff]
  %v1853 = vld [vmem:[#allocation2 + $0x290] sm:$0xff]
  %v1854 = vld [vmem:[#allocation2 + $0x298] sm:$0xff]
  %v1855 = vld [vmem:[#allocation2 + $0x2a0] sm:$0xff]
  %v1856 = vld [vmem:[#allocation2 + $0x2a8] sm:$0xff]
  %v1857 = vld [vmem:[#allocation2 + $0x2b0] sm:$0xff]
  %v1858 = vld [vmem:[#allocation2 + $0x2b8] sm:$0xff]
  %v1859 = vld [vmem:[#allocation2 + $0x2c0] sm:$0xff]
  %v1860 = vld [vmem:[#allocation2 + $0x2c8] sm:$0xff]
  %v1861 = vld [vmem:[#allocation2 + $0x2d0] sm:$0xff]
  %v1862 = vld [vmem:[#allocation2 + $0x2d8] sm:$0xff]
  %v1863 = vld [vmem:[#allocation2 + $0x2e0] sm:$0xff]
  %v1864 = vld [vmem:[#allocation2 + $0x2e8] sm:$0xff]
  %v1865 = vld [vmem:[#allocation2 + $0x2f0] sm:$0xff]
  %v1866 = vld [vmem:[#allocation2 + $0x2f8] sm:$0xff]
  %v1867 = vld [vmem:[#allocation2 + $0x300] sm:$0xff]
  %v1868 = vld [vmem:[#allocation2 + $0x308] sm:$0xff]
  %v1869 = vld [vmem:[#allocation2 + $0x310] sm:$0xff]
  %v1870 = vld [vmem:[#allocation2 + $0x318] sm:$0xff]
  %1872 = vset.pattern.permute.xlu0 0
  %1873 = vperm.xlu0 %1872, %v1382
  %v1874 = vpop.permute.xlu0 %1873
  %v1877 = vsel %vm550, %v1380, 0
  %1879 = vmatprep.subr.mxu0 %v1772
  %1880 = vmatpush1.msra.mxu0 %v1771
  %1881 = vmatprep.subr.mxu0 %v1776
  %1882 = vmatpush1.msra.mxu0 %v1775
  %1883 = vmatprep.subr.mxu0 %v1780
  %1884 = vmatpush1.msra.mxu0 %v1779
  %1885 = vmatprep.subr.mxu0 %v1784
  %1886 = vmatpush1.msra.mxu0 %v1783
  %1887 = vmatprep.subr.mxu0 %v1788
  %1888 = vmatpush1.msra.mxu0 %v1787
  %1889 = vmatprep.subr.mxu0 %v1792
  %1890 = vmatpush1.msra.mxu0 %v1791
  %1891 = vmatprep.subr.mxu0 %v1796
  %1892 = vmatpush1.msra.mxu0 %v1795
  %1893 = vmatprep.subr.mxu0 %v1800
  %1894 = vmatpush1.msra.mxu0 %v1799
  %1895 = vmatprep.subr.mxu0 %v1804
  %1896 = vmatpush1.msra.mxu0 %v1803
  %1897 = vmatprep.subr.mxu0 %v1808
  %1898 = vmatpush1.msra.mxu0 %v1807
  %1899 = vmatprep.subr.mxu0 %v1812
  %1900 = vmatpush1.msra.mxu0 %v1811
  %1901 = vmatprep.subr.mxu0 %v1816
  %1902 = vmatpush1.msra.mxu0 %v1815
  %1903 = vmatprep.subr.mxu0 %v1820
  %1904 = vmatpush1.msra.mxu0 %v1819
  %1905 = vmatprep.subr.mxu0 %v1824
  %1906 = vmatpush1.msra.mxu0 %v1823
  %1907 = vmatprep.subr.mxu0 %v1828
  %1908 = vmatpush1.msra.mxu0 %v1827
  %1909 = vmatprep.subr.mxu0 %v1832
  %1910 = vmatpush1.msra.mxu0 %v1831
  %1911 = vmatprep.subr.mxu0 %v1836
  %1912 = vmatpush1.msra.mxu0 %v1835
  %1913 = vmatprep.subr.mxu0 %v1840
  %1914 = vmatpush1.msra.mxu0 %v1839
  %1915 = vmatprep.subr.mxu0 %v1844
  %1916 = vmatpush1.msra.mxu0 %v1843
  %1917 = vmatprep.subr.mxu0 %v1848
  %1918 = vmatpush1.msra.mxu0 %v1847
  %1919 = vmatprep.subr.mxu0 %v1852
  %1920 = vmatpush1.msra.mxu0 %v1851
  %1921 = vmatprep.subr.mxu0 %v1856
  %1922 = vmatpush1.msra.mxu0 %v1855
  %1923 = vmatprep.subr.mxu0 %v1860
  %1924 = vmatpush1.msra.mxu0 %v1859
  %1925 = vmatprep.subr.mxu0 %v1864
  %1926 = vmatpush1.msra.mxu0 %v1863
  %1927 = vmatprep.subr.mxu0 %v1868
  %1928 = vmatpush1.msra.mxu0 %v1867
  %1929 = vmatprep.subr.mxu0 0.0
  %1930 = vmatpush1.msra.mxu0 0.0
  %1931 = vmatprep.subr.mxu0 0.0
  %1932 = vmatpush1.msra.mxu0 0.0
  %1933 = vmatprep.subr.mxu0 0.0
  %1934 = vmatpush1.msra.mxu0 0.0
  %1935 = vmatprep.subr.mxu0 0.0
  %1936 = vmatpush1.msra.mxu0 0.0
  %1937 = vmatprep.subr.mxu0 0.0
  %1938 = vmatpush1.msra.mxu0 0.0
  %1939 = vmatprep.subr.mxu0 0.0
  %1940 = vmatpush1.msra.mxu0 0.0
  %1941 = vmatprep.subr.mxu0 0.0
  %1942 = vmatpush1.msra.mxu0 0.0
  %1943 = vmatprep.mubr.f32.mxu0 %v1877
  %1944 = vmatmul.mubr.f32.gmra.mrb[0].mxu0 %v1379
  %v1945 = vpop.f32.mrb[0].mxu0
  %v1946 = vadd.f32 %v1874, %v1945
  %v1947 = vpop.f32.mrb[0].mxu0
  %v1948 = vadd.f32 %v1874, %v1947
  %1949 = vdwg.mxu0
  %1950 = vmatprep.subr.mxu0 %v1774
  %1951 = vmatpush1.msra.mxu0 %v1773
  %1952 = vmatprep.subr.mxu0 %v1778
  %1953 = vmatpush1.msra.mxu0 %v1777
  %1954 = vmatprep.subr.mxu0 %v1782
  %1955 = vmatpush1.msra.mxu0 %v1781
  %1956 = vmatprep.subr.mxu0 %v1786
  %1957 = vmatpush1.msra.mxu0 %v1785
  %1958 = vmatprep.subr.mxu0 %v1790
  %1959 = vmatpush1.msra.mxu0 %v1789
  %1960 = vmatprep.subr.mxu0 %v1794
  %1961 = vmatpush1.msra.mxu0 %v1793
  %1962 = vmatprep.subr.mxu0 %v1798
  %1963 = vmatpush1.msra.mxu0 %v1797
  %1964 = vmatprep.subr.mxu0 %v1802
  %1965 = vmatpush1.msra.mxu0 %v1801
  %1966 = vmatprep.subr.mxu0 %v1806
  %1967 = vmatpush1.msra.mxu0 %v1805
  %1968 = vmatprep.subr.mxu0 %v1810
  %1969 = vmatpush1.msra.mxu0 %v1809
  %1970 = vmatprep.subr.mxu0 %v1814
  %1971 = vmatpush1.msra.mxu0 %v1813
  %1972 = vmatprep.subr.mxu0 %v1818
  %1973 = vmatpush1.msra.mxu0 %v1817
  %1974 = vmatprep.subr.mxu0 %v1822
  %1975 = vmatpush1.msra.mxu0 %v1821
  %1976 = vmatprep.subr.mxu0 %v1826
  %1977 = vmatpush1.msra.mxu0 %v1825
  %1978 = vmatprep.subr.mxu0 %v1830
  %1979 = vmatpush1.msra.mxu0 %v1829
  %1980 = vmatprep.subr.mxu0 %v1834
  %1981 = vmatpush1.msra.mxu0 %v1833
  %1982 = vmatprep.subr.mxu0 %v1838
  %1983 = vmatpush1.msra.mxu0 %v1837
  %1984 = vmatprep.subr.mxu0 %v1842
  %1985 = vmatpush1.msra.mxu0 %v1841
  %1986 = vmatprep.subr.mxu0 %v1846
  %1987 = vmatpush1.msra.mxu0 %v1845
  %1988 = vmatprep.subr.mxu0 %v1850
  %1989 = vmatpush1.msra.mxu0 %v1849
  %1990 = vmatprep.subr.mxu0 %v1854
  %1991 = vmatpush1.msra.mxu0 %v1853
  %1992 = vmatprep.subr.mxu0 %v1858
  %1993 = vmatpush1.msra.mxu0 %v1857
  %1994 = vmatprep.subr.mxu0 %v1862
  %1995 = vmatpush1.msra.mxu0 %v1861
  %1996 = vmatprep.subr.mxu0 %v1866
  %1997 = vmatpush1.msra.mxu0 %v1865
  %1998 = vmatprep.subr.mxu0 %v1870
  %1999 = vmatpush1.msra.mxu0 %v1869
  %2000 = vmatprep.subr.mxu0 0.0
  %2001 = vmatpush1.msra.mxu0 0.0
  %2002 = vmatprep.subr.mxu0 0.0
  %2003 = vmatpush1.msra.mxu0 0.0
  %2004 = vmatprep.subr.mxu0 0.0
  %2005 = vmatpush1.msra.mxu0 0.0
  %2006 = vmatprep.subr.mxu0 0.0
  %2007 = vmatpush1.msra.mxu0 0.0
  %2008 = vmatprep.subr.mxu0 0.0
  %2009 = vmatpush1.msra.mxu0 0.0
  %2010 = vmatprep.subr.mxu0 0.0
  %2011 = vmatpush1.msra.mxu0 0.0
  %2012 = vmatprep.subr.mxu0 0.0
  %2013 = vmatpush1.msra.mxu0 0.0
  %2014 = vmatprep.mubr.f32.mxu0 %v1877
  %2015 = vmatmul.mubr.f32.gmra.mrb[0].mxu0 %v1379
  %v2016 = vpop.f32.mrb[0].mxu0
  %v2017 = vadd.f32 %v1874, %v2016
  %v2018 = vpop.f32.mrb[0].mxu0
  %v2019 = vadd.f32 %v1874, %v2018
  %2020 = vdwg.mxu0
  %v2021 = vmax.f32 %v1946, 0.0
  %v2022 = vmax.f32 %v1948, 0.0
  %v2023 = vmax.f32 %v2017, 0.0
  %v2024 = vmax.f32 %v2019, 0.0
  %v2025 = vmul.f32 %v2021, %v704
  %v2026 = vmul.f32 %v2022, %v708
  %v2027 = vmul.f32 %v2023, %v712
  %v2028 = vmul.f32 %v2024, %v716
  %s2029 = scalar_lea.vmem %s4, 16
  %v2030 = vld [vmem:[%s2029] sm:$0xff]
  %v2031 = vld [vmem:[%s2029 + $0x8] sm:$0xff]
  %s2032 = scalar_lea.vmem %s5, 8
  %v2033 = vld [vmem:[%s2032] sm:$0xff]
  %2034 = vrot.lane.b32.xlu0 %v2025, 42
  %v2035 = vpop.permute.xlu0 %2034
  %2036 = vrot.lane.b32.xlu0 %v2026, 42
  %v2037 = vpop.permute.xlu0 %2036
  %2038 = vrot.lane.b32.xlu0 %v2027, 42
  %v2039 = vpop.permute.xlu0 %2038
  %2040 = vrot.lane.b32.xlu0 %v2028, 42
  %v2041 = vpop.permute.xlu0 %2040
  %v2042 = vsel %vm41, %v2039, %v2041
  %v2043 = vsel %vm41, %v2037, %v2039
  %v2044 = vsel %vm41, %v2035, %v2037
  %v2045 = vsel %vm41, %v2041, %v2035
  %2046 = vst [vmem:[#allocation2] sm:$0xff] %v2045
  %2047 = vst [vmem:[#allocation2 + $0x8] sm:$0xff] %v2044
  %2048 = vst [vmem:[#allocation2 + $0x10] sm:$0xff] %v2043
  %2049 = vst [vmem:[#allocation2 + $0x18] sm:$0xff] %v2042
  %2050 = vrot.lane.b32.xlu0 %v2025, 41
  %v2051 = vpop.permute.xlu0 %2050
  %2052 = vrot.lane.b32.xlu0 %v2026, 41
  %v2053 = vpop.permute.xlu0 %2052
  %2054 = vrot.lane.b32.xlu0 %v2027, 41
  %v2055 = vpop.permute.xlu0 %2054
  %2056 = vrot.lane.b32.xlu0 %v2028, 41
  %v2057 = vpop.permute.xlu0 %2056
  %v2058 = vsel %vm58, %v2055, %v2057
  %v2059 = vsel %vm58, %v2053, %v2055
  %v2060 = vsel %vm58, %v2051, %v2053
  %v2061 = vsel %vm58, %v2057, %v2051
  %2062 = vst [vmem:[#allocation2 + $0x20] sm:$0xff] %v2061
  %2063 = vst [vmem:[#allocation2 + $0x28] sm:$0xff] %v2060
  %2064 = vst [vmem:[#allocation2 + $0x30] sm:$0xff] %v2059
  %2065 = vst [vmem:[#allocation2 + $0x38] sm:$0xff] %v2058
  %2066 = vrot.lane.b32.xlu0 %v2025, 40
  %v2067 = vpop.permute.xlu0 %2066
  %2068 = vrot.lane.b32.xlu0 %v2026, 40
  %v2069 = vpop.permute.xlu0 %2068
  %2070 = vrot.lane.b32.xlu0 %v2027, 40
  %v2071 = vpop.permute.xlu0 %2070
  %2072 = vrot.lane.b32.xlu0 %v2028, 40
  %v2073 = vpop.permute.xlu0 %2072
  %v2074 = vsel %vm75, %v2071, %v2073
  %v2075 = vsel %vm75, %v2069, %v2071
  %v2076 = vsel %vm75, %v2067, %v2069
  %v2077 = vsel %vm75, %v2073, %v2067
  %2078 = vst [vmem:[#allocation2 + $0x40] sm:$0xff] %v2077
  %2079 = vst [vmem:[#allocation2 + $0x48] sm:$0xff] %v2076
  %2080 = vst [vmem:[#allocation2 + $0x50] sm:$0xff] %v2075
  %2081 = vst [vmem:[#allocation2 + $0x58] sm:$0xff] %v2074
  %2082 = vrot.lane.b32.xlu0 %v2025, 39
  %v2083 = vpop.permute.xlu0 %2082
  %2084 = vrot.lane.b32.xlu0 %v2026, 39
  %v2085 = vpop.permute.xlu0 %2084
  %2086 = vrot.lane.b32.xlu0 %v2027, 39
  %v2087 = vpop.permute.xlu0 %2086
  %2088 = vrot.lane.b32.xlu0 %v2028, 39
  %v2089 = vpop.permute.xlu0 %2088
  %v2090 = vsel %vm92, %v2087, %v2089
  %v2091 = vsel %vm92, %v2085, %v2087
  %v2092 = vsel %vm92, %v2083, %v2085
  %v2093 = vsel %vm92, %v2089, %v2083
  %2094 = vst [vmem:[#allocation2 + $0x60] sm:$0xff] %v2093
  %2095 = vst [vmem:[#allocation2 + $0x68] sm:$0xff] %v2092
  %2096 = vst [vmem:[#allocation2 + $0x70] sm:$0xff] %v2091
  %2097 = vst [vmem:[#allocation2 + $0x78] sm:$0xff] %v2090
  %2098 = vrot.lane.b32.xlu0 %v2025, 38
  %v2099 = vpop.permute.xlu0 %2098
  %2100 = vrot.lane.b32.xlu0 %v2026, 38
  %v2101 = vpop.permute.xlu0 %2100
  %2102 = vrot.lane.b32.xlu0 %v2027, 38
  %v2103 = vpop.permute.xlu0 %2102
  %2104 = vrot.lane.b32.xlu0 %v2028, 38
  %v2105 = vpop.permute.xlu0 %2104
  %v2106 = vsel %vm109, %v2103, %v2105
  %v2107 = vsel %vm109, %v2101, %v2103
  %v2108 = vsel %vm109, %v2099, %v2101
  %v2109 = vsel %vm109, %v2105, %v2099
  %2110 = vst [vmem:[#allocation2 + $0x80] sm:$0xff] %v2109
  %2111 = vst [vmem:[#allocation2 + $0x88] sm:$0xff] %v2108
  %2112 = vst [vmem:[#allocation2 + $0x90] sm:$0xff] %v2107
  %2113 = vst [vmem:[#allocation2 + $0x98] sm:$0xff] %v2106
  %2114 = vrot.lane.b32.xlu0 %v2025, 22
  %v2115 = vpop.permute.xlu0 %2114
  %2116 = vrot.lane.b32.xlu0 %v2026, 22
  %v2117 = vpop.permute.xlu0 %2116
  %2118 = vrot.lane.b32.xlu0 %v2027, 22
  %v2119 = vpop.permute.xlu0 %2118
  %2120 = vrot.lane.b32.xlu0 %v2028, 22
  %v2121 = vpop.permute.xlu0 %2120
  %v2122 = vsel %vm126, %v2119, %v2121
  %v2123 = vsel %vm126, %v2117, %v2119
  %v2124 = vsel %vm126, %v2115, %v2117
  %v2125 = vsel %vm126, %v2121, %v2115
  %2126 = vst [vmem:[#allocation2 + $0xa0] sm:$0xff] %v2125
  %2127 = vst [vmem:[#allocation2 + $0xa8] sm:$0xff] %v2124
  %2128 = vst [vmem:[#allocation2 + $0xb0] sm:$0xff] %v2123
  %2129 = vst [vmem:[#allocation2 + $0xb8] sm:$0xff] %v2122
  %2130 = vrot.lane.b32.xlu0 %v2025, 21
  %v2131 = vpop.permute.xlu0 %2130
  %2132 = vrot.lane.b32.xlu0 %v2026, 21
  %v2133 = vpop.permute.xlu0 %2132
  %2134 = vrot.lane.b32.xlu0 %v2027, 21
  %v2135 = vpop.permute.xlu0 %2134
  %2136 = vrot.lane.b32.xlu0 %v2028, 21
  %v2137 = vpop.permute.xlu0 %2136
  %v2138 = vsel %vm143, %v2135, %v2137
  %v2139 = vsel %vm143, %v2133, %v2135
  %v2140 = vsel %vm143, %v2131, %v2133
  %v2141 = vsel %vm143, %v2137, %v2131
  %2142 = vst [vmem:[#allocation2 + $0xc0] sm:$0xff] %v2141
  %2143 = vst [vmem:[#allocation2 + $0xc8] sm:$0xff] %v2140
  %2144 = vst [vmem:[#allocation2 + $0xd0] sm:$0xff] %v2139
  %2145 = vst [vmem:[#allocation2 + $0xd8] sm:$0xff] %v2138
  %2146 = vrot.lane.b32.xlu0 %v2025, 20
  %v2147 = vpop.permute.xlu0 %2146
  %2148 = vrot.lane.b32.xlu0 %v2026, 20
  %v2149 = vpop.permute.xlu0 %2148
  %2150 = vrot.lane.b32.xlu0 %v2027, 20
  %v2151 = vpop.permute.xlu0 %2150
  %2152 = vrot.lane.b32.xlu0 %v2028, 20
  %v2153 = vpop.permute.xlu0 %2152
  %v2154 = vsel %vm160, %v2151, %v2153
  %v2155 = vsel %vm160, %v2149, %v2151
  %v2156 = vsel %vm160, %v2147, %v2149
  %v2157 = vsel %vm160, %v2153, %v2147
  %2158 = vst [vmem:[#allocation2 + $0xe0] sm:$0xff] %v2157
  %2159 = vst [vmem:[#allocation2 + $0xe8] sm:$0xff] %v2156
  %2160 = vst [vmem:[#allocation2 + $0xf0] sm:$0xff] %v2155
  %2161 = vst [vmem:[#allocation2 + $0xf8] sm:$0xff] %v2154
  %2162 = vrot.lane.b32.xlu0 %v2025, 19
  %v2163 = vpop.permute.xlu0 %2162
  %2164 = vrot.lane.b32.xlu0 %v2026, 19
  %v2165 = vpop.permute.xlu0 %2164
  %2166 = vrot.lane.b32.xlu0 %v2027, 19
  %v2167 = vpop.permute.xlu0 %2166
  %2168 = vrot.lane.b32.xlu0 %v2028, 19
  %v2169 = vpop.permute.xlu0 %2168
  %v2170 = vsel %vm177, %v2167, %v2169
  %v2171 = vsel %vm177, %v2165, %v2167
  %v2172 = vsel %vm177, %v2163, %v2165
  %v2173 = vsel %vm177, %v2169, %v2163
  %2174 = vst [vmem:[#allocation2 + $0x100] sm:$0xff] %v2173
  %2175 = vst [vmem:[#allocation2 + $0x108] sm:$0xff] %v2172
  %2176 = vst [vmem:[#allocation2 + $0x110] sm:$0xff] %v2171
  %2177 = vst [vmem:[#allocation2 + $0x118] sm:$0xff] %v2170
  %2178 = vrot.lane.b32.xlu0 %v2025, 18
  %v2179 = vpop.permute.xlu0 %2178
  %2180 = vrot.lane.b32.xlu0 %v2026, 18
  %v2181 = vpop.permute.xlu0 %2180
  %2182 = vrot.lane.b32.xlu0 %v2027, 18
  %v2183 = vpop.permute.xlu0 %2182
  %2184 = vrot.lane.b32.xlu0 %v2028, 18
  %v2185 = vpop.permute.xlu0 %2184
  %v2186 = vsel %vm194, %v2183, %v2185
  %v2187 = vsel %vm194, %v2181, %v2183
  %v2188 = vsel %vm194, %v2179, %v2181
  %v2189 = vsel %vm194, %v2185, %v2179
  %2190 = vst [vmem:[#allocation2 + $0x120] sm:$0xff] %v2189
  %2191 = vst [vmem:[#allocation2 + $0x128] sm:$0xff] %v2188
  %2192 = vst [vmem:[#allocation2 + $0x130] sm:$0xff] %v2187
  %2193 = vst [vmem:[#allocation2 + $0x138] sm:$0xff] %v2186
  %2194 = vrot.lane.b32.xlu0 %v2025, 2
  %v2195 = vpop.permute.xlu0 %2194
  %2196 = vrot.lane.b32.xlu0 %v2026, 2
  %v2197 = vpop.permute.xlu0 %2196
  %2198 = vrot.lane.b32.xlu0 %v2027, 2
  %v2199 = vpop.permute.xlu0 %2198
  %2200 = vrot.lane.b32.xlu0 %v2028, 2
  %v2201 = vpop.permute.xlu0 %2200
  %v2202 = vsel %vm211, %v2199, %v2201
  %v2203 = vsel %vm211, %v2197, %v2199
  %v2204 = vsel %vm211, %v2195, %v2197
  %v2205 = vsel %vm211, %v2201, %v2195
  %2206 = vst [vmem:[#allocation2 + $0x140] sm:$0xff] %v2205
  %2207 = vst [vmem:[#allocation2 + $0x148] sm:$0xff] %v2204
  %2208 = vst [vmem:[#allocation2 + $0x150] sm:$0xff] %v2203
  %2209 = vst [vmem:[#allocation2 + $0x158] sm:$0xff] %v2202
  %2210 = vrot.lane.b32.xlu0 %v2025, 1
  %v2211 = vpop.permute.xlu0 %2210
  %2212 = vrot.lane.b32.xlu0 %v2026, 1
  %v2213 = vpop.permute.xlu0 %2212
  %2214 = vrot.lane.b32.xlu0 %v2027, 1
  %v2215 = vpop.permute.xlu0 %2214
  %2216 = vrot.lane.b32.xlu0 %v2028, 1
  %v2217 = vpop.permute.xlu0 %2216
  %v2218 = vsel %vm228, %v2215, %v2217
  %v2219 = vsel %vm228, %v2213, %v2215
  %v2220 = vsel %vm228, %v2211, %v2213
  %v2221 = vsel %vm228, %v2217, %v2211
  %2222 = vst [vmem:[#allocation2 + $0x160] sm:$0xff] %v2221
  %2223 = vst [vmem:[#allocation2 + $0x168] sm:$0xff] %v2220
  %2224 = vst [vmem:[#allocation2 + $0x170] sm:$0xff] %v2219
  %2225 = vst [vmem:[#allocation2 + $0x178] sm:$0xff] %v2218
  %2226 = vst [vmem:[#allocation2 + $0x180] sm:$0xff] %v2025
  %2227 = vst [vmem:[#allocation2 + $0x188] sm:$0xff] %v2026
  %2228 = vst [vmem:[#allocation2 + $0x190] sm:$0xff] %v2027
  %2229 = vst [vmem:[#allocation2 + $0x198] sm:$0xff] %v2028
  %2230 = vrot.lane.b32.xlu0 %v2025, 127
  %v2231 = vpop.permute.xlu0 %2230
  %2232 = vrot.lane.b32.xlu0 %v2026, 127
  %v2233 = vpop.permute.xlu0 %2232
  %2234 = vrot.lane.b32.xlu0 %v2027, 127
  %v2235 = vpop.permute.xlu0 %2234
  %2236 = vrot.lane.b32.xlu0 %v2028, 127
  %v2237 = vpop.permute.xlu0 %2236
  %v2238 = vsel %vm249, %v2235, %v2237
  %v2239 = vsel %vm249, %v2233, %v2235
  %v2240 = vsel %vm249, %v2231, %v2233
  %v2241 = vsel %vm249, %v2237, %v2231
  %2242 = vst [vmem:[#allocation2 + $0x1a0] sm:$0xff] %v2240
  %2243 = vst [vmem:[#allocation2 + $0x1a8] sm:$0xff] %v2239
  %2244 = vst [vmem:[#allocation2 + $0x1b0] sm:$0xff] %v2238
  %2245 = vst [vmem:[#allocation2 + $0x1b8] sm:$0xff] %v2241
  %2246 = vrot.lane.b32.xlu0 %v2025, 126
  %v2247 = vpop.permute.xlu0 %2246
  %2248 = vrot.lane.b32.xlu0 %v2026, 126
  %v2249 = vpop.permute.xlu0 %2248
  %2250 = vrot.lane.b32.xlu0 %v2027, 126
  %v2251 = vpop.permute.xlu0 %2250
  %2252 = vrot.lane.b32.xlu0 %v2028, 126
  %v2253 = vpop.permute.xlu0 %2252
  %v2254 = vsel %vm266, %v2251, %v2253
  %v2255 = vsel %vm266, %v2249, %v2251
  %v2256 = vsel %vm266, %v2247, %v2249
  %v2257 = vsel %vm266, %v2253, %v2247
  %2258 = vst [vmem:[#allocation2 + $0x1c0] sm:$0xff] %v2256
  %2259 = vst [vmem:[#allocation2 + $0x1c8] sm:$0xff] %v2255
  %2260 = vst [vmem:[#allocation2 + $0x1d0] sm:$0xff] %v2254
  %2261 = vst [vmem:[#allocation2 + $0x1d8] sm:$0xff] %v2257
  %2262 = vrot.lane.b32.xlu0 %v2025, 110
  %v2263 = vpop.permute.xlu0 %2262
  %2264 = vrot.lane.b32.xlu0 %v2026, 110
  %v2265 = vpop.permute.xlu0 %2264
  %2266 = vrot.lane.b32.xlu0 %v2027, 110
  %v2267 = vpop.permute.xlu0 %2266
  %2268 = vrot.lane.b32.xlu0 %v2028, 110
  %v2269 = vpop.permute.xlu0 %2268
  %v2270 = vsel %vm283, %v2267, %v2269
  %v2271 = vsel %vm283, %v2265, %v2267
  %v2272 = vsel %vm283, %v2263, %v2265
  %v2273 = vsel %vm283, %v2269, %v2263
  %2274 = vst [vmem:[#allocation2 + $0x1e0] sm:$0xff] %v2272
  %2275 = vst [vmem:[#allocation2 + $0x1e8] sm:$0xff] %v2271
  %2276 = vst [vmem:[#allocation2 + $0x1f0] sm:$0xff] %v2270
  %2277 = vst [vmem:[#allocation2 + $0x1f8] sm:$0xff] %v2273
  %2278 = vrot.lane.b32.xlu0 %v2025, 109
  %v2279 = vpop.permute.xlu0 %2278
  %2280 = vrot.lane.b32.xlu0 %v2026, 109
  %v2281 = vpop.permute.xlu0 %2280
  %2282 = vrot.lane.b32.xlu0 %v2027, 109
  %v2283 = vpop.permute.xlu0 %2282
  %2284 = vrot.lane.b32.xlu0 %v2028, 109
  %v2285 = vpop.permute.xlu0 %2284
  %v2286 = vsel %vm300, %v2283, %v2285
  %v2287 = vsel %vm300, %v2281, %v2283
  %v2288 = vsel %vm300, %v2279, %v2281
  %v2289 = vsel %vm300, %v2285, %v2279
  %2290 = vst [vmem:[#allocation2 + $0x200] sm:$0xff] %v2288
  %2291 = vst [vmem:[#allocation2 + $0x208] sm:$0xff] %v2287
  %2292 = vst [vmem:[#allocation2 + $0x210] sm:$0xff] %v2286
  %2293 = vst [vmem:[#allocation2 + $0x218] sm:$0xff] %v2289
  %2294 = vrot.lane.b32.xlu0 %v2025, 108
  %v2295 = vpop.permute.xlu0 %2294
  %2296 = vrot.lane.b32.xlu0 %v2026, 108
  %v2297 = vpop.permute.xlu0 %2296
  %2298 = vrot.lane.b32.xlu0 %v2027, 108
  %v2299 = vpop.permute.xlu0 %2298
  %2300 = vrot.lane.b32.xlu0 %v2028, 108
  %v2301 = vpop.permute.xlu0 %2300
  %v2302 = vsel %vm317, %v2299, %v2301
  %v2303 = vsel %vm317, %v2297, %v2299
  %v2304 = vsel %vm317, %v2295, %v2297
  %v2305 = vsel %vm317, %v2301, %v2295
  %2306 = vst [vmem:[#allocation2 + $0x220] sm:$0xff] %v2304
  %2307 = vst [vmem:[#allocation2 + $0x228] sm:$0xff] %v2303
  %2308 = vst [vmem:[#allocation2 + $0x230] sm:$0xff] %v2302
  %2309 = vst [vmem:[#allocation2 + $0x238] sm:$0xff] %v2305
  %2310 = vrot.lane.b32.xlu0 %v2025, 107
  %v2311 = vpop.permute.xlu0 %2310
  %2312 = vrot.lane.b32.xlu0 %v2026, 107
  %v2313 = vpop.permute.xlu0 %2312
  %2314 = vrot.lane.b32.xlu0 %v2027, 107
  %v2315 = vpop.permute.xlu0 %2314
  %2316 = vrot.lane.b32.xlu0 %v2028, 107
  %v2317 = vpop.permute.xlu0 %2316
  %v2318 = vsel %vm334, %v2315, %v2317
  %v2319 = vsel %vm334, %v2313, %v2315
  %v2320 = vsel %vm334, %v2311, %v2313
  %v2321 = vsel %vm334, %v2317, %v2311
  %2322 = vst [vmem:[#allocation2 + $0x240] sm:$0xff] %v2320
  %2323 = vst [vmem:[#allocation2 + $0x248] sm:$0xff] %v2319
  %2324 = vst [vmem:[#allocation2 + $0x250] sm:$0xff] %v2318
  %2325 = vst [vmem:[#allocation2 + $0x258] sm:$0xff] %v2321
  %2326 = vrot.lane.b32.xlu0 %v2025, 106
  %v2327 = vpop.permute.xlu0 %2326
  %2328 = vrot.lane.b32.xlu0 %v2026, 106
  %v2329 = vpop.permute.xlu0 %2328
  %2330 = vrot.lane.b32.xlu0 %v2027, 106
  %v2331 = vpop.permute.xlu0 %2330
  %2332 = vrot.lane.b32.xlu0 %v2028, 106
  %v2333 = vpop.permute.xlu0 %2332
  %v2334 = vsel %vm351, %v2331, %v2333
  %v2335 = vsel %vm351, %v2329, %v2331
  %v2336 = vsel %vm351, %v2327, %v2329
  %v2337 = vsel %vm351, %v2333, %v2327
  %2338 = vst [vmem:[#allocation2 + $0x260] sm:$0xff] %v2336
  %2339 = vst [vmem:[#allocation2 + $0x268] sm:$0xff] %v2335
  %2340 = vst [vmem:[#allocation2 + $0x270] sm:$0xff] %v2334
  %2341 = vst [vmem:[#allocation2 + $0x278] sm:$0xff] %v2337
  %2342 = vrot.lane.b32.xlu0 %v2025, 90
  %v2343 = vpop.permute.xlu0 %2342
  %2344 = vrot.lane.b32.xlu0 %v2026, 90
  %v2345 = vpop.permute.xlu0 %2344
  %2346 = vrot.lane.b32.xlu0 %v2027, 90
  %v2347 = vpop.permute.xlu0 %2346
  %2348 = vrot.lane.b32.xlu0 %v2028, 90
  %v2349 = vpop.permute.xlu0 %2348
  %v2350 = vsel %vm368, %v2347, %v2349
  %v2351 = vsel %vm368, %v2345, %v2347
  %v2352 = vsel %vm368, %v2343, %v2345
  %v2353 = vsel %vm368, %v2349, %v2343
  %2354 = vst [vmem:[#allocation2 + $0x280] sm:$0xff] %v2352
  %2355 = vst [vmem:[#allocation2 + $0x288] sm:$0xff] %v2351
  %2356 = vst [vmem:[#allocation2 + $0x290] sm:$0xff] %v2350
  %2357 = vst [vmem:[#allocation2 + $0x298] sm:$0xff] %v2353
  %2358 = vrot.lane.b32.xlu0 %v2025, 89
  %v2359 = vpop.permute.xlu0 %2358
  %2360 = vrot.lane.b32.xlu0 %v2026, 89
  %v2361 = vpop.permute.xlu0 %2360
  %2362 = vrot.lane.b32.xlu0 %v2027, 89
  %v2363 = vpop.permute.xlu0 %2362
  %2364 = vrot.lane.b32.xlu0 %v2028, 89
  %v2365 = vpop.permute.xlu0 %2364
  %v2366 = vsel %vm385, %v2363, %v2365
  %v2367 = vsel %vm385, %v2361, %v2363
  %v2368 = vsel %vm385, %v2359, %v2361
  %v2369 = vsel %vm385, %v2365, %v2359
  %2370 = vst [vmem:[#allocation2 + $0x2a0] sm:$0xff] %v2368
  %2371 = vst [vmem:[#allocation2 + $0x2a8] sm:$0xff] %v2367
  %2372 = vst [vmem:[#allocation2 + $0x2b0] sm:$0xff] %v2366
  %2373 = vst [vmem:[#allocation2 + $0x2b8] sm:$0xff] %v2369
  %2374 = vrot.lane.b32.xlu0 %v2025, 88
  %v2375 = vpop.permute.xlu0 %2374
  %2376 = vrot.lane.b32.xlu0 %v2026, 88
  %v2377 = vpop.permute.xlu0 %2376
  %2378 = vrot.lane.b32.xlu0 %v2027, 88
  %v2379 = vpop.permute.xlu0 %2378
  %2380 = vrot.lane.b32.xlu0 %v2028, 88
  %v2381 = vpop.permute.xlu0 %2380
  %v2382 = vsel %vm402, %v2379, %v2381
  %v2383 = vsel %vm402, %v2377, %v2379
  %v2384 = vsel %vm402, %v2375, %v2377
  %v2385 = vsel %vm402, %v2381, %v2375
  %2386 = vst [vmem:[#allocation2 + $0x2c0] sm:$0xff] %v2384
  %2387 = vst [vmem:[#allocation2 + $0x2c8] sm:$0xff] %v2383
  %2388 = vst [vmem:[#allocation2 + $0x2d0] sm:$0xff] %v2382
  %2389 = vst [vmem:[#allocation2 + $0x2d8] sm:$0xff] %v2385
  %2390 = vrot.lane.b32.xlu0 %v2025, 87
  %v2391 = vpop.permute.xlu0 %2390
  %2392 = vrot.lane.b32.xlu0 %v2026, 87
  %v2393 = vpop.permute.xlu0 %2392
  %2394 = vrot.lane.b32.xlu0 %v2027, 87
  %v2395 = vpop.permute.xlu0 %2394
  %2396 = vrot.lane.b32.xlu0 %v2028, 87
  %v2397 = vpop.permute.xlu0 %2396
  %v2398 = vsel %vm419, %v2395, %v2397
  %v2399 = vsel %vm419, %v2393, %v2395
  %v2400 = vsel %vm419, %v2391, %v2393
  %v2401 = vsel %vm419, %v2397, %v2391
  %2402 = vst [vmem:[#allocation2 + $0x2e0] sm:$0xff] %v2400
  %2403 = vst [vmem:[#allocation2 + $0x2e8] sm:$0xff] %v2399
  %2404 = vst [vmem:[#allocation2 + $0x2f0] sm:$0xff] %v2398
  %2405 = vst [vmem:[#allocation2 + $0x2f8] sm:$0xff] %v2401
  %2406 = vrot.lane.b32.xlu0 %v2025, 86
  %v2407 = vpop.permute.xlu0 %2406
  %2408 = vrot.lane.b32.xlu0 %v2026, 86
  %v2409 = vpop.permute.xlu0 %2408
  %2410 = vrot.lane.b32.xlu0 %v2027, 86
  %v2411 = vpop.permute.xlu0 %2410
  %2412 = vrot.lane.b32.xlu0 %v2028, 86
  %v2413 = vpop.permute.xlu0 %2412
  %v2414 = vsel %vm436, %v2411, %v2413
  %v2415 = vsel %vm436, %v2409, %v2411
  %v2416 = vsel %vm436, %v2407, %v2409
  %v2417 = vsel %vm436, %v2413, %v2407
  %2418 = vst [vmem:[#allocation2 + $0x300] sm:$0xff] %v2416
  %2419 = vst [vmem:[#allocation2 + $0x308] sm:$0xff] %v2415
  %2420 = vst [vmem:[#allocation2 + $0x310] sm:$0xff] %v2414
  %2421 = vst [vmem:[#allocation2 + $0x318] sm:$0xff] %v2417
  %v2422 = vld [vmem:[#allocation2] sm:$0xff]
  %v2423 = vld [vmem:[#allocation2 + $0x8] sm:$0xff]
  %v2424 = vld [vmem:[#allocation2 + $0x10] sm:$0xff]
  %v2425 = vld [vmem:[#allocation2 + $0x18] sm:$0xff]
  %v2426 = vld [vmem:[#allocation2 + $0x20] sm:$0xff]
  %v2427 = vld [vmem:[#allocation2 + $0x28] sm:$0xff]
  %v2428 = vld [vmem:[#allocation2 + $0x30] sm:$0xff]
  %v2429 = vld [vmem:[#allocation2 + $0x38] sm:$0xff]
  %v2430 = vld [vmem:[#allocation2 + $0x40] sm:$0xff]
  %v2431 = vld [vmem:[#allocation2 + $0x48] sm:$0xff]
  %v2432 = vld [vmem:[#allocation2 + $0x50] sm:$0xff]
  %v2433 = vld [vmem:[#allocation2 + $0x58] sm:$0xff]
  %v2434 = vld [vmem:[#allocation2 + $0x60] sm:$0xff]
  %v2435 = vld [vmem:[#allocation2 + $0x68] sm:$0xff]
  %v2436 = vld [vmem:[#allocation2 + $0x70] sm:$0xff]
  %v2437 = vld [vmem:[#allocation2 + $0x78] sm:$0xff]
  %v2438 = vld [vmem:[#allocation2 + $0x80] sm:$0xff]
  %v2439 = vld [vmem:[#allocation2 + $0x88] sm:$0xff]
  %v2440 = vld [vmem:[#allocation2 + $0x90] sm:$0xff]
  %v2441 = vld [vmem:[#allocation2 + $0x98] sm:$0xff]
  %v2442 = vld [vmem:[#allocation2 + $0xa0] sm:$0xff]
  %v2443 = vld [vmem:[#allocation2 + $0xa8] sm:$0xff]
  %v2444 = vld [vmem:[#allocation2 + $0xb0] sm:$0xff]
  %v2445 = vld [vmem:[#allocation2 + $0xb8] sm:$0xff]
  %v2446 = vld [vmem:[#allocation2 + $0xc0] sm:$0xff]
  %v2447 = vld [vmem:[#allocation2 + $0xc8] sm:$0xff]
  %v2448 = vld [vmem:[#allocation2 + $0xd0] sm:$0xff]
  %v2449 = vld [vmem:[#allocation2 + $0xd8] sm:$0xff]
  %v2450 = vld [vmem:[#allocation2 + $0xe0] sm:$0xff]
  %v2451 = vld [vmem:[#allocation2 + $0xe8] sm:$0xff]
  %v2452 = vld [vmem:[#allocation2 + $0xf0] sm:$0xff]
  %v2453 = vld [vmem:[#allocation2 + $0xf8] sm:$0xff]
  %v2454 = vld [vmem:[#allocation2 + $0x100] sm:$0xff]
  %v2455 = vld [vmem:[#allocation2 + $0x108] sm:$0xff]
  %v2456 = vld [vmem:[#allocation2 + $0x110] sm:$0xff]
  %v2457 = vld [vmem:[#allocation2 + $0x118] sm:$0xff]
  %v2458 = vld [vmem:[#allocation2 + $0x120] sm:$0xff]
  %v2459 = vld [vmem:[#allocation2 + $0x128] sm:$0xff]
  %v2460 = vld [vmem:[#allocation2 + $0x130] sm:$0xff]
  %v2461 = vld [vmem:[#allocation2 + $0x138] sm:$0xff]
  %v2462 = vld [vmem:[#allocation2 + $0x140] sm:$0xff]
  %v2463 = vld [vmem:[#allocation2 + $0x148] sm:$0xff]
  %v2464 = vld [vmem:[#allocation2 + $0x150] sm:$0xff]
  %v2465 = vld [vmem:[#allocation2 + $0x158] sm:$0xff]
  %v2466 = vld [vmem:[#allocation2 + $0x160] sm:$0xff]
  %v2467 = vld [vmem:[#allocation2 + $0x168] sm:$0xff]
  %v2468 = vld [vmem:[#allocation2 + $0x170] sm:$0xff]
  %v2469 = vld [vmem:[#allocation2 + $0x178] sm:$0xff]
  %v2470 = vld [vmem:[#allocation2 + $0x180] sm:$0xff]
  %v2471 = vld [vmem:[#allocation2 + $0x188] sm:$0xff]
  %v2472 = vld [vmem:[#allocation2 + $0x190] sm:$0xff]
  %v2473 = vld [vmem:[#allocation2 + $0x198] sm:$0xff]
  %v2474 = vld [vmem:[#allocation2 + $0x1a0] sm:$0xff]
  %v2475 = vld [vmem:[#allocation2 + $0x1a8] sm:$0xff]
  %v2476 = vld [vmem:[#allocation2 + $0x1b0] sm:$0xff]
  %v2477 = vld [vmem:[#allocation2 + $0x1b8] sm:$0xff]
  %v2478 = vld [vmem:[#allocation2 + $0x1c0] sm:$0xff]
  %v2479 = vld [vmem:[#allocation2 + $0x1c8] sm:$0xff]
  %v2480 = vld [vmem:[#allocation2 + $0x1d0] sm:$0xff]
  %v2481 = vld [vmem:[#allocation2 + $0x1d8] sm:$0xff]
  %v2482 = vld [vmem:[#allocation2 + $0x1e0] sm:$0xff]
  %v2483 = vld [vmem:[#allocation2 + $0x1e8] sm:$0xff]
  %v2484 = vld [vmem:[#allocation2 + $0x1f0] sm:$0xff]
  %v2485 = vld [vmem:[#allocation2 + $0x1f8] sm:$0xff]
  %v2486 = vld [vmem:[#allocation2 + $0x200] sm:$0xff]
  %v2487 = vld [vmem:[#allocation2 + $0x208] sm:$0xff]
  %v2488 = vld [vmem:[#allocation2 + $0x210] sm:$0xff]
  %v2489 = vld [vmem:[#allocation2 + $0x218] sm:$0xff]
  %v2490 = vld [vmem:[#allocation2 + $0x220] sm:$0xff]
  %v2491 = vld [vmem:[#allocation2 + $0x228] sm:$0xff]
  %v2492 = vld [vmem:[#allocation2 + $0x230] sm:$0xff]
  %v2493 = vld [vmem:[#allocation2 + $0x238] sm:$0xff]
  %v2494 = vld [vmem:[#allocation2 + $0x240] sm:$0xff]
  %v2495 = vld [vmem:[#allocation2 + $0x248] sm:$0xff]
  %v2496 = vld [vmem:[#allocation2 + $0x250] sm:$0xff]
  %v2497 = vld [vmem:[#allocation2 + $0x258] sm:$0xff]
  %v2498 = vld [vmem:[#allocation2 + $0x260] sm:$0xff]
  %v2499 = vld [vmem:[#allocation2 + $0x268] sm:$0xff]
  %v2500 = vld [vmem:[#allocation2 + $0x270] sm:$0xff]
  %v2501 = vld [vmem:[#allocation2 + $0x278] sm:$0xff]
  %v2502 = vld [vmem:[#allocation2 + $0x280] sm:$0xff]
  %v2503 = vld [vmem:[#allocation2 + $0x288] sm:$0xff]
  %v2504 = vld [vmem:[#allocation2 + $0x290] sm:$0xff]
  %v2505 = vld [vmem:[#allocation2 + $0x298] sm:$0xff]
  %v2506 = vld [vmem:[#allocation2 + $0x2a0] sm:$0xff]
  %v2507 = vld [vmem:[#allocation2 + $0x2a8] sm:$0xff]
  %v2508 = vld [vmem:[#allocation2 + $0x2b0] sm:$0xff]
  %v2509 = vld [vmem:[#allocation2 + $0x2b8] sm:$0xff]
  %v2510 = vld [vmem:[#allocation2 + $0x2c0] sm:$0xff]
  %v2511 = vld [vmem:[#allocation2 + $0x2c8] sm:$0xff]
  %v2512 = vld [vmem:[#allocation2 + $0x2d0] sm:$0xff]
  %v2513 = vld [vmem:[#allocation2 + $0x2d8] sm:$0xff]
  %v2514 = vld [vmem:[#allocation2 + $0x2e0] sm:$0xff]
  %v2515 = vld [vmem:[#allocation2 + $0x2e8] sm:$0xff]
  %v2516 = vld [vmem:[#allocation2 + $0x2f0] sm:$0xff]
  %v2517 = vld [vmem:[#allocation2 + $0x2f8] sm:$0xff]
  %v2518 = vld [vmem:[#allocation2 + $0x300] sm:$0xff]
  %v2519 = vld [vmem:[#allocation2 + $0x308] sm:$0xff]
  %v2520 = vld [vmem:[#allocation2 + $0x310] sm:$0xff]
  %v2521 = vld [vmem:[#allocation2 + $0x318] sm:$0xff]
  %2523 = vset.pattern.permute.xlu0 0
  %2524 = vperm.xlu0 %2523, %v2033
  %v2525 = vpop.permute.xlu0 %2524
  %v2528 = vsel %vm550, %v2031, 0
  %2530 = vmatprep.subr.mxu0 %v2423
  %2531 = vmatpush1.msra.mxu0 %v2422
  %2532 = vmatprep.subr.mxu0 %v2427
  %2533 = vmatpush1.msra.mxu0 %v2426
  %2534 = vmatprep.subr.mxu0 %v2431
  %2535 = vmatpush1.msra.mxu0 %v2430
  %2536 = vmatprep.subr.mxu0 %v2435
  %2537 = vmatpush1.msra.mxu0 %v2434
  %2538 = vmatprep.subr.mxu0 %v2439
  %2539 = vmatpush1.msra.mxu0 %v2438
  %2540 = vmatprep.subr.mxu0 %v2443
  %2541 = vmatpush1.msra.mxu0 %v2442
  %2542 = vmatprep.subr.mxu0 %v2447
  %2543 = vmatpush1.msra.mxu0 %v2446
  %2544 = vmatprep.subr.mxu0 %v2451
  %2545 = vmatpush1.msra.mxu0 %v2450
  %2546 = vmatprep.subr.mxu0 %v2455
  %2547 = vmatpush1.msra.mxu0 %v2454
  %2548 = vmatprep.subr.mxu0 %v2459
  %2549 = vmatpush1.msra.mxu0 %v2458
  %2550 = vmatprep.subr.mxu0 %v2463
  %2551 = vmatpush1.msra.mxu0 %v2462
  %2552 = vmatprep.subr.mxu0 %v2467
  %2553 = vmatpush1.msra.mxu0 %v2466
  %2554 = vmatprep.subr.mxu0 %v2471
  %2555 = vmatpush1.msra.mxu0 %v2470
  %2556 = vmatprep.subr.mxu0 %v2475
  %2557 = vmatpush1.msra.mxu0 %v2474
  %2558 = vmatprep.subr.mxu0 %v2479
  %2559 = vmatpush1.msra.mxu0 %v2478
  %2560 = vmatprep.subr.mxu0 %v2483
  %2561 = vmatpush1.msra.mxu0 %v2482
  %2562 = vmatprep.subr.mxu0 %v2487
  %2563 = vmatpush1.msra.mxu0 %v2486
  %2564 = vmatprep.subr.mxu0 %v2491
  %2565 = vmatpush1.msra.mxu0 %v2490
  %2566 = vmatprep.subr.mxu0 %v2495
  %2567 = vmatpush1.msra.mxu0 %v2494
  %2568 = vmatprep.subr.mxu0 %v2499
  %2569 = vmatpush1.msra.mxu0 %v2498
  %2570 = vmatprep.subr.mxu0 %v2503
  %2571 = vmatpush1.msra.mxu0 %v2502
  %2572 = vmatprep.subr.mxu0 %v2507
  %2573 = vmatpush1.msra.mxu0 %v2506
  %2574 = vmatprep.subr.mxu0 %v2511
  %2575 = vmatpush1.msra.mxu0 %v2510
  %2576 = vmatprep.subr.mxu0 %v2515
  %2577 = vmatpush1.msra.mxu0 %v2514
  %2578 = vmatprep.subr.mxu0 %v2519
  %2579 = vmatpush1.msra.mxu0 %v2518
  %2580 = vmatprep.subr.mxu0 0.0
  %2581 = vmatpush1.msra.mxu0 0.0
  %2582 = vmatprep.subr.mxu0 0.0
  %2583 = vmatpush1.msra.mxu0 0.0
  %2584 = vmatprep.subr.mxu0 0.0
  %2585 = vmatpush1.msra.mxu0 0.0
  %2586 = vmatprep.subr.mxu0 0.0
  %2587 = vmatpush1.msra.mxu0 0.0
  %2588 = vmatprep.subr.mxu0 0.0
  %2589 = vmatpush1.msra.mxu0 0.0
  %2590 = vmatprep.subr.mxu0 0.0
  %2591 = vmatpush1.msra.mxu0 0.0
  %2592 = vmatprep.subr.mxu0 0.0
  %2593 = vmatpush1.msra.mxu0 0.0
  %2594 = vmatprep.mubr.f32.mxu0 %v2528
  %2595 = vmatmul.mubr.f32.gmra.mrb[0].mxu0 %v2030
  %v2596 = vpop.f32.mrb[0].mxu0
  %v2597 = vadd.f32 %v2525, %v2596
  %v2598 = vpop.f32.mrb[0].mxu0
  %v2599 = vadd.f32 %v2525, %v2598
  %2600 = vdwg.mxu0
  %2601 = vmatprep.subr.mxu0 %v2425
  %2602 = vmatpush1.msra.mxu0 %v2424
  %2603 = vmatprep.subr.mxu0 %v2429
  %2604 = vmatpush1.msra.mxu0 %v2428
  %2605 = vmatprep.subr.mxu0 %v2433
  %2606 = vmatpush1.msra.mxu0 %v2432
  %2607 = vmatprep.subr.mxu0 %v2437
  %2608 = vmatpush1.msra.mxu0 %v2436
  %2609 = vmatprep.subr.mxu0 %v2441
  %2610 = vmatpush1.msra.mxu0 %v2440
  %2611 = vmatprep.subr.mxu0 %v2445
  %2612 = vmatpush1.msra.mxu0 %v2444
  %2613 = vmatprep.subr.mxu0 %v2449
  %2614 = vmatpush1.msra.mxu0 %v2448
  %2615 = vmatprep.subr.mxu0 %v2453
  %2616 = vmatpush1.msra.mxu0 %v2452
  %2617 = vmatprep.subr.mxu0 %v2457
  %2618 = vmatpush1.msra.mxu0 %v2456
  %2619 = vmatprep.subr.mxu0 %v2461
  %2620 = vmatpush1.msra.mxu0 %v2460
  %2621 = vmatprep.subr.mxu0 %v2465
  %2622 = vmatpush1.msra.mxu0 %v2464
  %2623 = vmatprep.subr.mxu0 %v2469
  %2624 = vmatpush1.msra.mxu0 %v2468
  %2625 = vmatprep.subr.mxu0 %v2473
  %2626 = vmatpush1.msra.mxu0 %v2472
  %2627 = vmatprep.subr.mxu0 %v2477
  %2628 = vmatpush1.msra.mxu0 %v2476
  %2629 = vmatprep.subr.mxu0 %v2481
  %2630 = vmatpush1.msra.mxu0 %v2480
  %2631 = vmatprep.subr.mxu0 %v2485
  %2632 = vmatpush1.msra.mxu0 %v2484
  %2633 = vmatprep.subr.mxu0 %v2489
  %2634 = vmatpush1.msra.mxu0 %v2488
  %2635 = vmatprep.subr.mxu0 %v2493
  %2636 = vmatpush1.msra.mxu0 %v2492
  %2637 = vmatprep.subr.mxu0 %v2497
  %2638 = vmatpush1.msra.mxu0 %v2496
  %2639 = vmatprep.subr.mxu0 %v2501
  %2640 = vmatpush1.msra.mxu0 %v2500
  %2641 = vmatprep.subr.mxu0 %v2505
  %2642 = vmatpush1.msra.mxu0 %v2504
  %2643 = vmatprep.subr.mxu0 %v2509
  %2644 = vmatpush1.msra.mxu0 %v2508
  %2645 = vmatprep.subr.mxu0 %v2513
  %2646 = vmatpush1.msra.mxu0 %v2512
  %2647 = vmatprep.subr.mxu0 %v2517
  %2648 = vmatpush1.msra.mxu0 %v2516
  %2649 = vmatprep.subr.mxu0 %v2521
  %2650 = vmatpush1.msra.mxu0 %v2520
  %2651 = vmatprep.subr.mxu0 0.0
  %2652 = vmatpush1.msra.mxu0 0.0
  %2653 = vmatprep.subr.mxu0 0.0
  %2654 = vmatpush1.msra.mxu0 0.0
  %2655 = vmatprep.subr.mxu0 0.0
  %2656 = vmatpush1.msra.mxu0 0.0
  %2657 = vmatprep.subr.mxu0 0.0
  %2658 = vmatpush1.msra.mxu0 0.0
  %2659 = vmatprep.subr.mxu0 0.0
  %2660 = vmatpush1.msra.mxu0 0.0
  %2661 = vmatprep.subr.mxu0 0.0
  %2662 = vmatpush1.msra.mxu0 0.0
  %2663 = vmatprep.subr.mxu0 0.0
  %2664 = vmatpush1.msra.mxu0 0.0
  %2665 = vmatprep.mubr.f32.mxu0 %v2528
  %2666 = vmatmul.mubr.f32.gmra.mrb[0].mxu0 %v2030
  %v2667 = vpop.f32.mrb[0].mxu0
  %v2668 = vadd.f32 %v2525, %v2667
  %v2669 = vpop.f32.mrb[0].mxu0
  %v2670 = vadd.f32 %v2525, %v2669
  %2671 = vdwg.mxu0
  %v2672 = vmax.f32 %v2597, 0.0
  %v2673 = vmax.f32 %v2599, 0.0
  %v2674 = vmax.f32 %v2668, 0.0
  %v2675 = vmax.f32 %v2670, 0.0
  %v2676 = vmul.f32 %v2672, %v704
  %v2677 = vmul.f32 %v2673, %v708
  %v2678 = vmul.f32 %v2674, %v712
  %v2679 = vmul.f32 %v2675, %v716
  %v2680 = vadd.f32 %v2676, %v1374
  %v2681 = vadd.f32 %v2677, %v1375
  %v2682 = vadd.f32 %v2678, %v1376
  %v2683 = vadd.f32 %v2679, %v1377
  %s2684 = scalar_lea.vmem %s2, 32
  %v2685 = vld [vmem:[%s2684] sm:$0xff]
  %v2686 = vld [vmem:[%s2684 + $0x8] sm:$0xff]
  %s2687 = scalar_lea.vmem %s3, 16
  %v2688 = vld [vmem:[%s2687] sm:$0xff]
  %2689 = vrot.lane.b32.xlu0 %v2680, 42
  %v2690 = vpop.permute.xlu0 %2689
  %2691 = vrot.lane.b32.xlu0 %v2681, 42
  %v2692 = vpop.permute.xlu0 %2691
  %2693 = vrot.lane.b32.xlu0 %v2682, 42
  %v2694 = vpop.permute.xlu0 %2693
  %2695 = vrot.lane.b32.xlu0 %v2683, 42
  %v2696 = vpop.permute.xlu0 %2695
  %v2697 = vsel %vm41, %v2694, %v2696
  %v2698 = vsel %vm41, %v2692, %v2694
  %v2699 = vsel %vm41, %v2690, %v2692
  %v2700 = vsel %vm41, %v2696, %v2690
  %2701 = vst [vmem:[#allocation2] sm:$0xff] %v2700
  %2702 = vst [vmem:[#allocation2 + $0x8] sm:$0xff] %v2699
  %2703 = vst [vmem:[#allocation2 + $0x10] sm:$0xff] %v2698
  %2704 = vst [vmem:[#allocation2 + $0x18] sm:$0xff] %v2697
  %2705 = vrot.lane.b32.xlu0 %v2680, 41
  %v2706 = vpop.permute.xlu0 %2705
  %2707 = vrot.lane.b32.xlu0 %v2681, 41
  %v2708 = vpop.permute.xlu0 %2707
  %2709 = vrot.lane.b32.xlu0 %v2682, 41
  %v2710 = vpop.permute.xlu0 %2709
  %2711 = vrot.lane.b32.xlu0 %v2683, 41
  %v2712 = vpop.permute.xlu0 %2711
  %v2713 = vsel %vm58, %v2710, %v2712
  %v2714 = vsel %vm58, %v2708, %v2710
  %v2715 = vsel %vm58, %v2706, %v2708
  %v2716 = vsel %vm58, %v2712, %v2706
  %2717 = vst [vmem:[#allocation2 + $0x20] sm:$0xff] %v2716
  %2718 = vst [vmem:[#allocation2 + $0x28] sm:$0xff] %v2715
  %2719 = vst [vmem:[#allocation2 + $0x30] sm:$0xff] %v2714
  %2720 = vst [vmem:[#allocation2 + $0x38] sm:$0xff] %v2713
  %2721 = vrot.lane.b32.xlu0 %v2680, 40
  %v2722 = vpop.permute.xlu0 %2721
  %2723 = vrot.lane.b32.xlu0 %v2681, 40
  %v2724 = vpop.permute.xlu0 %2723
  %2725 = vrot.lane.b32.xlu0 %v2682, 40
  %v2726 = vpop.permute.xlu0 %2725
  %2727 = vrot.lane.b32.xlu0 %v2683, 40
  %v2728 = vpop.permute.xlu0 %2727
  %v2729 = vsel %vm75, %v2726, %v2728
  %v2730 = vsel %vm75, %v2724, %v2726
  %v2731 = vsel %vm75, %v2722, %v2724
  %v2732 = vsel %vm75, %v2728, %v2722
  %2733 = vst [vmem:[#allocation2 + $0x40] sm:$0xff] %v2732
  %2734 = vst [vmem:[#allocation2 + $0x48] sm:$0xff] %v2731
  %2735 = vst [vmem:[#allocation2 + $0x50] sm:$0xff] %v2730
  %2736 = vst [vmem:[#allocation2 + $0x58] sm:$0xff] %v2729
  %2737 = vrot.lane.b32.xlu0 %v2680, 39
  %v2738 = vpop.permute.xlu0 %2737
  %2739 = vrot.lane.b32.xlu0 %v2681, 39
  %v2740 = vpop.permute.xlu0 %2739
  %2741 = vrot.lane.b32.xlu0 %v2682, 39
  %v2742 = vpop.permute.xlu0 %2741
  %2743 = vrot.lane.b32.xlu0 %v2683, 39
  %v2744 = vpop.permute.xlu0 %2743
  %v2745 = vsel %vm92, %v2742, %v2744
  %v2746 = vsel %vm92, %v2740, %v2742
  %v2747 = vsel %vm92, %v2738, %v2740
  %v2748 = vsel %vm92, %v2744, %v2738
  %2749 = vst [vmem:[#allocation2 + $0x60] sm:$0xff] %v2748
  %2750 = vst [vmem:[#allocation2 + $0x68] sm:$0xff] %v2747
  %2751 = vst [vmem:[#allocation2 + $0x70] sm:$0xff] %v2746
  %2752 = vst [vmem:[#allocation2 + $0x78] sm:$0xff] %v2745
  %2753 = vrot.lane.b32.xlu0 %v2680, 38
  %v2754 = vpop.permute.xlu0 %2753
  %2755 = vrot.lane.b32.xlu0 %v2681, 38
  %v2756 = vpop.permute.xlu0 %2755
  %2757 = vrot.lane.b32.xlu0 %v2682, 38
  %v2758 = vpop.permute.xlu0 %2757
  %2759 = vrot.lane.b32.xlu0 %v2683, 38
  %v2760 = vpop.permute.xlu0 %2759
  %v2761 = vsel %vm109, %v2758, %v2760
  %v2762 = vsel %vm109, %v2756, %v2758
  %v2763 = vsel %vm109, %v2754, %v2756
  %v2764 = vsel %vm109, %v2760, %v2754
  %2765 = vst [vmem:[#allocation2 + $0x80] sm:$0xff] %v2764
  %2766 = vst [vmem:[#allocation2 + $0x88] sm:$0xff] %v2763
  %2767 = vst [vmem:[#allocation2 + $0x90] sm:$0xff] %v2762
  %2768 = vst [vmem:[#allocation2 + $0x98] sm:$0xff] %v2761
  %2769 = vrot.lane.b32.xlu0 %v2680, 22
  %v2770 = vpop.permute.xlu0 %2769
  %2771 = vrot.lane.b32.xlu0 %v2681, 22
  %v2772 = vpop.permute.xlu0 %2771
  %2773 = vrot.lane.b32.xlu0 %v2682, 22
  %v2774 = vpop.permute.xlu0 %2773
  %2775 = vrot.lane.b32.xlu0 %v2683, 22
  %v2776 = vpop.permute.xlu0 %2775
  %v2777 = vsel %vm126, %v2774, %v2776
  %v2778 = vsel %vm126, %v2772, %v2774
  %v2779 = vsel %vm126, %v2770, %v2772
  %v2780 = vsel %vm126, %v2776, %v2770
  %2781 = vst [vmem:[#allocation2 + $0xa0] sm:$0xff] %v2780
  %2782 = vst [vmem:[#allocation2 + $0xa8] sm:$0xff] %v2779
  %2783 = vst [vmem:[#allocation2 + $0xb0] sm:$0xff] %v2778
  %2784 = vst [vmem:[#allocation2 + $0xb8] sm:$0xff] %v2777
  %2785 = vrot.lane.b32.xlu0 %v2680, 21
  %v2786 = vpop.permute.xlu0 %2785
  %2787 = vrot.lane.b32.xlu0 %v2681, 21
  %v2788 = vpop.permute.xlu0 %2787
  %2789 = vrot.lane.b32.xlu0 %v2682, 21
  %v2790 = vpop.permute.xlu0 %2789
  %2791 = vrot.lane.b32.xlu0 %v2683, 21
  %v2792 = vpop.permute.xlu0 %2791
  %v2793 = vsel %vm143, %v2790, %v2792
  %v2794 = vsel %vm143, %v2788, %v2790
  %v2795 = vsel %vm143, %v2786, %v2788
  %v2796 = vsel %vm143, %v2792, %v2786
  %2797 = vst [vmem:[#allocation2 + $0xc0] sm:$0xff] %v2796
  %2798 = vst [vmem:[#allocation2 + $0xc8] sm:$0xff] %v2795
  %2799 = vst [vmem:[#allocation2 + $0xd0] sm:$0xff] %v2794
  %2800 = vst [vmem:[#allocation2 + $0xd8] sm:$0xff] %v2793
  %2801 = vrot.lane.b32.xlu0 %v2680, 20
  %v2802 = vpop.permute.xlu0 %2801
  %2803 = vrot.lane.b32.xlu0 %v2681, 20
  %v2804 = vpop.permute.xlu0 %2803
  %2805 = vrot.lane.b32.xlu0 %v2682, 20
  %v2806 = vpop.permute.xlu0 %2805
  %2807 = vrot.lane.b32.xlu0 %v2683, 20
  %v2808 = vpop.permute.xlu0 %2807
  %v2809 = vsel %vm160, %v2806, %v2808
  %v2810 = vsel %vm160, %v2804, %v2806
  %v2811 = vsel %vm160, %v2802, %v2804
  %v2812 = vsel %vm160, %v2808, %v2802
  %2813 = vst [vmem:[#allocation2 + $0xe0] sm:$0xff] %v2812
  %2814 = vst [vmem:[#allocation2 + $0xe8] sm:$0xff] %v2811
  %2815 = vst [vmem:[#allocation2 + $0xf0] sm:$0xff] %v2810
  %2816 = vst [vmem:[#allocation2 + $0xf8] sm:$0xff] %v2809
  %2817 = vrot.lane.b32.xlu0 %v2680, 19
  %v2818 = vpop.permute.xlu0 %2817
  %2819 = vrot.lane.b32.xlu0 %v2681, 19
  %v2820 = vpop.permute.xlu0 %2819
  %2821 = vrot.lane.b32.xlu0 %v2682, 19
  %v2822 = vpop.permute.xlu0 %2821
  %2823 = vrot.lane.b32.xlu0 %v2683, 19
  %v2824 = vpop.permute.xlu0 %2823
  %v2825 = vsel %vm177, %v2822, %v2824
  %v2826 = vsel %vm177, %v2820, %v2822
  %v2827 = vsel %vm177, %v2818, %v2820
  %v2828 = vsel %vm177, %v2824, %v2818
  %2829 = vst [vmem:[#allocation2 + $0x100] sm:$0xff] %v2828
  %2830 = vst [vmem:[#allocation2 + $0x108] sm:$0xff] %v2827
  %2831 = vst [vmem:[#allocation2 + $0x110] sm:$0xff] %v2826
  %2832 = vst [vmem:[#allocation2 + $0x118] sm:$0xff] %v2825
  %2833 = vrot.lane.b32.xlu0 %v2680, 18
  %v2834 = vpop.permute.xlu0 %2833
  %2835 = vrot.lane.b32.xlu0 %v2681, 18
  %v2836 = vpop.permute.xlu0 %2835
  %2837 = vrot.lane.b32.xlu0 %v2682, 18
  %v2838 = vpop.permute.xlu0 %2837
  %2839 = vrot.lane.b32.xlu0 %v2683, 18
  %v2840 = vpop.permute.xlu0 %2839
  %v2841 = vsel %vm194, %v2838, %v2840
  %v2842 = vsel %vm194, %v2836, %v2838
  %v2843 = vsel %vm194, %v2834, %v2836
  %v2844 = vsel %vm194, %v2840, %v2834
  %2845 = vst [vmem:[#allocation2 + $0x120] sm:$0xff] %v2844
  %2846 = vst [vmem:[#allocation2 + $0x128] sm:$0xff] %v2843
  %2847 = vst [vmem:[#allocation2 + $0x130] sm:$0xff] %v2842
  %2848 = vst [vmem:[#allocation2 + $0x138] sm:$0xff] %v2841
  %2849 = vrot.lane.b32.xlu0 %v2680, 2
  %v2850 = vpop.permute.xlu0 %2849
  %2851 = vrot.lane.b32.xlu0 %v2681, 2
  %v2852 = vpop.permute.xlu0 %2851
  %2853 = vrot.lane.b32.xlu0 %v2682, 2
  %v2854 = vpop.permute.xlu0 %2853
  %2855 = vrot.lane.b32.xlu0 %v2683, 2
  %v2856 = vpop.permute.xlu0 %2855
  %v2857 = vsel %vm211, %v2854, %v2856
  %v2858 = vsel %vm211, %v2852, %v2854
  %v2859 = vsel %vm211, %v2850, %v2852
  %v2860 = vsel %vm211, %v2856, %v2850
  %2861 = vst [vmem:[#allocation2 + $0x140] sm:$0xff] %v2860
  %2862 = vst [vmem:[#allocation2 + $0x148] sm:$0xff] %v2859
  %2863 = vst [vmem:[#allocation2 + $0x150] sm:$0xff] %v2858
  %2864 = vst [vmem:[#allocation2 + $0x158] sm:$0xff] %v2857
  %2865 = vrot.lane.b32.xlu0 %v2680, 1
  %v2866 = vpop.permute.xlu0 %2865
  %2867 = vrot.lane.b32.xlu0 %v2681, 1
  %v2868 = vpop.permute.xlu0 %2867
  %2869 = vrot.lane.b32.xlu0 %v2682, 1
  %v2870 = vpop.permute.xlu0 %2869
  %2871 = vrot.lane.b32.xlu0 %v2683, 1
  %v2872 = vpop.permute.xlu0 %2871
  %v2873 = vsel %vm228, %v2870, %v2872
  %v2874 = vsel %vm228, %v2868, %v2870
  %v2875 = vsel %vm228, %v2866, %v2868
  %v2876 = vsel %vm228, %v2872, %v2866
  %2877 = vst [vmem:[#allocation2 + $0x160] sm:$0xff] %v2876
  %2878 = vst [vmem:[#allocation2 + $0x168] sm:$0xff] %v2875
  %2879 = vst [vmem:[#allocation2 + $0x170] sm:$0xff] %v2874
  %2880 = vst [vmem:[#allocation2 + $0x178] sm:$0xff] %v2873
  %2881 = vst [vmem:[#allocation2 + $0x180] sm:$0xff] %v2680
  %2882 = vst [vmem:[#allocation2 + $0x188] sm:$0xff] %v2681
  %2883 = vst [vmem:[#allocation2 + $0x190] sm:$0xff] %v2682
  %2884 = vst [vmem:[#allocation2 + $0x198] sm:$0xff] %v2683
  %2885 = vrot.lane.b32.xlu0 %v2680, 127
  %v2886 = vpop.permute.xlu0 %2885
  %2887 = vrot.lane.b32.xlu0 %v2681, 127
  %v2888 = vpop.permute.xlu0 %2887
  %2889 = vrot.lane.b32.xlu0 %v2682, 127
  %v2890 = vpop.permute.xlu0 %2889
  %2891 = vrot.lane.b32.xlu0 %v2683, 127
  %v2892 = vpop.permute.xlu0 %2891
  %v2893 = vsel %vm249, %v2890, %v2892
  %v2894 = vsel %vm249, %v2888, %v2890
  %v2895 = vsel %vm249, %v2886, %v2888
  %v2896 = vsel %vm249, %v2892, %v2886
  %2897 = vst [vmem:[#allocation2 + $0x1a0] sm:$0xff] %v2895
  %2898 = vst [vmem:[#allocation2 + $0x1a8] sm:$0xff] %v2894
  %2899 = vst [vmem:[#allocation2 + $0x1b0] sm:$0xff] %v2893
  %2900 = vst [vmem:[#allocation2 + $0x1b8] sm:$0xff] %v2896
  %2901 = vrot.lane.b32.xlu0 %v2680, 126
  %v2902 = vpop.permute.xlu0 %2901
  %2903 = vrot.lane.b32.xlu0 %v2681, 126
  %v2904 = vpop.permute.xlu0 %2903
  %2905 = vrot.lane.b32.xlu0 %v2682, 126
  %v2906 = vpop.permute.xlu0 %2905
  %2907 = vrot.lane.b32.xlu0 %v2683, 126
  %v2908 = vpop.permute.xlu0 %2907
  %v2909 = vsel %vm266, %v2906, %v2908
  %v2910 = vsel %vm266, %v2904, %v2906
  %v2911 = vsel %vm266, %v2902, %v2904
  %v2912 = vsel %vm266, %v2908, %v2902
  %2913 = vst [vmem:[#allocation2 + $0x1c0] sm:$0xff] %v2911
  %2914 = vst [vmem:[#allocation2 + $0x1c8] sm:$0xff] %v2910
  %2915 = vst [vmem:[#allocation2 + $0x1d0] sm:$0xff] %v2909
  %2916 = vst [vmem:[#allocation2 + $0x1d8] sm:$0xff] %v2912
  %2917 = vrot.lane.b32.xlu0 %v2680, 110
  %v2918 = vpop.permute.xlu0 %2917
  %2919 = vrot.lane.b32.xlu0 %v2681, 110
  %v2920 = vpop.permute.xlu0 %2919
  %2921 = vrot.lane.b32.xlu0 %v2682, 110
  %v2922 = vpop.permute.xlu0 %2921
  %2923 = vrot.lane.b32.xlu0 %v2683, 110
  %v2924 = vpop.permute.xlu0 %2923
  %v2925 = vsel %vm283, %v2922, %v2924
  %v2926 = vsel %vm283, %v2920, %v2922
  %v2927 = vsel %vm283, %v2918, %v2920
  %v2928 = vsel %vm283, %v2924, %v2918
  %2929 = vst [vmem:[#allocation2 + $0x1e0] sm:$0xff] %v2927
  %2930 = vst [vmem:[#allocation2 + $0x1e8] sm:$0xff] %v2926
  %2931 = vst [vmem:[#allocation2 + $0x1f0] sm:$0xff] %v2925
  %2932 = vst [vmem:[#allocation2 + $0x1f8] sm:$0xff] %v2928
  %2933 = vrot.lane.b32.xlu0 %v2680, 109
  %v2934 = vpop.permute.xlu0 %2933
  %2935 = vrot.lane.b32.xlu0 %v2681, 109
  %v2936 = vpop.permute.xlu0 %2935
  %2937 = vrot.lane.b32.xlu0 %v2682, 109
  %v2938 = vpop.permute.xlu0 %2937
  %2939 = vrot.lane.b32.xlu0 %v2683, 109
  %v2940 = vpop.permute.xlu0 %2939
  %v2941 = vsel %vm300, %v2938, %v2940
  %v2942 = vsel %vm300, %v2936, %v2938
  %v2943 = vsel %vm300, %v2934, %v2936
  %v2944 = vsel %vm300, %v2940, %v2934
  %2945 = vst [vmem:[#allocation2 + $0x200] sm:$0xff] %v2943
  %2946 = vst [vmem:[#allocation2 + $0x208] sm:$0xff] %v2942
  %2947 = vst [vmem:[#allocation2 + $0x210] sm:$0xff] %v2941
  %2948 = vst [vmem:[#allocation2 + $0x218] sm:$0xff] %v2944
  %2949 = vrot.lane.b32.xlu0 %v2680, 108
  %v2950 = vpop.permute.xlu0 %2949
  %2951 = vrot.lane.b32.xlu0 %v2681, 108
  %v2952 = vpop.permute.xlu0 %2951
  %2953 = vrot.lane.b32.xlu0 %v2682, 108
  %v2954 = vpop.permute.xlu0 %2953
  %2955 = vrot.lane.b32.xlu0 %v2683, 108
  %v2956 = vpop.permute.xlu0 %2955
  %v2957 = vsel %vm317, %v2954, %v2956
  %v2958 = vsel %vm317, %v2952, %v2954
  %v2959 = vsel %vm317, %v2950, %v2952
  %v2960 = vsel %vm317, %v2956, %v2950
  %2961 = vst [vmem:[#allocation2 + $0x220] sm:$0xff] %v2959
  %2962 = vst [vmem:[#allocation2 + $0x228] sm:$0xff] %v2958
  %2963 = vst [vmem:[#allocation2 + $0x230] sm:$0xff] %v2957
  %2964 = vst [vmem:[#allocation2 + $0x238] sm:$0xff] %v2960
  %2965 = vrot.lane.b32.xlu0 %v2680, 107
  %v2966 = vpop.permute.xlu0 %2965
  %2967 = vrot.lane.b32.xlu0 %v2681, 107
  %v2968 = vpop.permute.xlu0 %2967
  %2969 = vrot.lane.b32.xlu0 %v2682, 107
  %v2970 = vpop.permute.xlu0 %2969
  %2971 = vrot.lane.b32.xlu0 %v2683, 107
  %v2972 = vpop.permute.xlu0 %2971
  %v2973 = vsel %vm334, %v2970, %v2972
  %v2974 = vsel %vm334, %v2968, %v2970
  %v2975 = vsel %vm334, %v2966, %v2968
  %v2976 = vsel %vm334, %v2972, %v2966
  %2977 = vst [vmem:[#allocation2 + $0x240] sm:$0xff] %v2975
  %2978 = vst [vmem:[#allocation2 + $0x248] sm:$0xff] %v2974
  %2979 = vst [vmem:[#allocation2 + $0x250] sm:$0xff] %v2973
  %2980 = vst [vmem:[#allocation2 + $0x258] sm:$0xff] %v2976
  %2981 = vrot.lane.b32.xlu0 %v2680, 106
  %v2982 = vpop.permute.xlu0 %2981
  %2983 = vrot.lane.b32.xlu0 %v2681, 106
  %v2984 = vpop.permute.xlu0 %2983
  %2985 = vrot.lane.b32.xlu0 %v2682, 106
  %v2986 = vpop.permute.xlu0 %2985
  %2987 = vrot.lane.b32.xlu0 %v2683, 106
  %v2988 = vpop.permute.xlu0 %2987
  %v2989 = vsel %vm351, %v2986, %v2988
  %v2990 = vsel %vm351, %v2984, %v2986
  %v2991 = vsel %vm351, %v2982, %v2984
  %v2992 = vsel %vm351, %v2988, %v2982
  %2993 = vst [vmem:[#allocation2 + $0x260] sm:$0xff] %v2991
  %2994 = vst [vmem:[#allocation2 + $0x268] sm:$0xff] %v2990
  %2995 = vst [vmem:[#allocation2 + $0x270] sm:$0xff] %v2989
  %2996 = vst [vmem:[#allocation2 + $0x278] sm:$0xff] %v2992
  %2997 = vrot.lane.b32.xlu0 %v2680, 90
  %v2998 = vpop.permute.xlu0 %2997
  %2999 = vrot.lane.b32.xlu0 %v2681, 90
  %v3000 = vpop.permute.xlu0 %2999
  %3001 = vrot.lane.b32.xlu0 %v2682, 90
  %v3002 = vpop.permute.xlu0 %3001
  %3003 = vrot.lane.b32.xlu0 %v2683, 90
  %v3004 = vpop.permute.xlu0 %3003
  %v3005 = vsel %vm368, %v3002, %v3004
  %v3006 = vsel %vm368, %v3000, %v3002
  %v3007 = vsel %vm368, %v2998, %v3000
  %v3008 = vsel %vm368, %v3004, %v2998
  %3009 = vst [vmem:[#allocation2 + $0x280] sm:$0xff] %v3007
  %3010 = vst [vmem:[#allocation2 + $0x288] sm:$0xff] %v3006
  %3011 = vst [vmem:[#allocation2 + $0x290] sm:$0xff] %v3005
  %3012 = vst [vmem:[#allocation2 + $0x298] sm:$0xff] %v3008
  %3013 = vrot.lane.b32.xlu0 %v2680, 89
  %v3014 = vpop.permute.xlu0 %3013
  %3015 = vrot.lane.b32.xlu0 %v2681, 89
  %v3016 = vpop.permute.xlu0 %3015
  %3017 = vrot.lane.b32.xlu0 %v2682, 89
  %v3018 = vpop.permute.xlu0 %3017
  %3019 = vrot.lane.b32.xlu0 %v2683, 89
  %v3020 = vpop.permute.xlu0 %3019
  %v3021 = vsel %vm385, %v3018, %v3020
  %v3022 = vsel %vm385, %v3016, %v3018
  %v3023 = vsel %vm385, %v3014, %v3016
  %v3024 = vsel %vm385, %v3020, %v3014
  %3025 = vst [vmem:[#allocation2 + $0x2a0] sm:$0xff] %v3023
  %3026 = vst [vmem:[#allocation2 + $0x2a8] sm:$0xff] %v3022
  %3027 = vst [vmem:[#allocation2 + $0x2b0] sm:$0xff] %v3021
  %3028 = vst [vmem:[#allocation2 + $0x2b8] sm:$0xff] %v3024
  %3029 = vrot.lane.b32.xlu0 %v2680, 88
  %v3030 = vpop.permute.xlu0 %3029
  %3031 = vrot.lane.b32.xlu0 %v2681, 88
  %v3032 = vpop.permute.xlu0 %3031
  %3033 = vrot.lane.b32.xlu0 %v2682, 88
  %v3034 = vpop.permute.xlu0 %3033
  %3035 = vrot.lane.b32.xlu0 %v2683, 88
  %v3036 = vpop.permute.xlu0 %3035
  %v3037 = vsel %vm402, %v3034, %v3036
  %v3038 = vsel %vm402, %v3032, %v3034
  %v3039 = vsel %vm402, %v3030, %v3032
  %v3040 = vsel %vm402, %v3036, %v3030
  %3041 = vst [vmem:[#allocation2 + $0x2c0] sm:$0xff] %v3039
  %3042 = vst [vmem:[#allocation2 + $0x2c8] sm:$0xff] %v3038
  %3043 = vst [vmem:[#allocation2 + $0x2d0] sm:$0xff] %v3037
  %3044 = vst [vmem:[#allocation2 + $0x2d8] sm:$0xff] %v3040
  %3045 = vrot.lane.b32.xlu0 %v2680, 87
  %v3046 = vpop.permute.xlu0 %3045
  %3047 = vrot.lane.b32.xlu0 %v2681, 87
  %v3048 = vpop.permute.xlu0 %3047
  %3049 = vrot.lane.b32.xlu0 %v2682, 87
  %v3050 = vpop.permute.xlu0 %3049
  %3051 = vrot.lane.b32.xlu0 %v2683, 87
  %v3052 = vpop.permute.xlu0 %3051
  %v3053 = vsel %vm419, %v3050, %v3052
  %v3054 = vsel %vm419, %v3048, %v3050
  %v3055 = vsel %vm419, %v3046, %v3048
  %v3056 = vsel %vm419, %v3052, %v3046
  %3057 = vst [vmem:[#allocation2 + $0x2e0] sm:$0xff] %v3055
  %3058 = vst [vmem:[#allocation2 + $0x2e8] sm:$0xff] %v3054
  %3059 = vst [vmem:[#allocation2 + $0x2f0] sm:$0xff] %v3053
  %3060 = vst [vmem:[#allocation2 + $0x2f8] sm:$0xff] %v3056
  %3061 = vrot.lane.b32.xlu0 %v2680, 86
  %v3062 = vpop.permute.xlu0 %3061
  %3063 = vrot.lane.b32.xlu0 %v2681, 86
  %v3064 = vpop.permute.xlu0 %3063
  %3065 = vrot.lane.b32.xlu0 %v2682, 86
  %v3066 = vpop.permute.xlu0 %3065
  %3067 = vrot.lane.b32.xlu0 %v2683, 86
  %v3068 = vpop.permute.xlu0 %3067
  %v3069 = vsel %vm436, %v3066, %v3068
  %v3070 = vsel %vm436, %v3064, %v3066
  %v3071 = vsel %vm436, %v3062, %v3064
  %v3072 = vsel %vm436, %v3068, %v3062
  %3073 = vst [vmem:[#allocation2 + $0x300] sm:$0xff] %v3071
  %3074 = vst [vmem:[#allocation2 + $0x308] sm:$0xff] %v3070
  %3075 = vst [vmem:[#allocation2 + $0x310] sm:$0xff] %v3069
  %3076 = vst [vmem:[#allocation2 + $0x318] sm:$0xff] %v3072
  %v3077 = vld [vmem:[#allocation2] sm:$0xff]
  %v3078 = vld [vmem:[#allocation2 + $0x8] sm:$0xff]
  %v3079 = vld [vmem:[#allocation2 + $0x10] sm:$0xff]
  %v3080 = vld [vmem:[#allocation2 + $0x18] sm:$0xff]
  %v3081 = vld [vmem:[#allocation2 + $0x20] sm:$0xff]
  %v3082 = vld [vmem:[#allocation2 + $0x28] sm:$0xff]
  %v3083 = vld [vmem:[#allocation2 + $0x30] sm:$0xff]
  %v3084 = vld [vmem:[#allocation2 + $0x38] sm:$0xff]
  %v3085 = vld [vmem:[#allocation2 + $0x40] sm:$0xff]
  %v3086 = vld [vmem:[#allocation2 + $0x48] sm:$0xff]
  %v3087 = vld [vmem:[#allocation2 + $0x50] sm:$0xff]
  %v3088 = vld [vmem:[#allocation2 + $0x58] sm:$0xff]
  %v3089 = vld [vmem:[#allocation2 + $0x60] sm:$0xff]
  %v3090 = vld [vmem:[#allocation2 + $0x68] sm:$0xff]
  %v3091 = vld [vmem:[#allocation2 + $0x70] sm:$0xff]
  %v3092 = vld [vmem:[#allocation2 + $0x78] sm:$0xff]
  %v3093 = vld [vmem:[#allocation2 + $0x80] sm:$0xff]
  %v3094 = vld [vmem:[#allocation2 + $0x88] sm:$0xff]
  %v3095 = vld [vmem:[#allocation2 + $0x90] sm:$0xff]
  %v3096 = vld [vmem:[#allocation2 + $0x98] sm:$0xff]
  %v3097 = vld [vmem:[#allocation2 + $0xa0] sm:$0xff]
  %v3098 = vld [vmem:[#allocation2 + $0xa8] sm:$0xff]
  %v3099 = vld [vmem:[#allocation2 + $0xb0] sm:$0xff]
  %v3100 = vld [vmem:[#allocation2 + $0xb8] sm:$0xff]
  %v3101 = vld [vmem:[#allocation2 + $0xc0] sm:$0xff]
  %v3102 = vld [vmem:[#allocation2 + $0xc8] sm:$0xff]
  %v3103 = vld [vmem:[#allocation2 + $0xd0] sm:$0xff]
  %v3104 = vld [vmem:[#allocation2 + $0xd8] sm:$0xff]
  %v3105 = vld [vmem:[#allocation2 + $0xe0] sm:$0xff]
  %v3106 = vld [vmem:[#allocation2 + $0xe8] sm:$0xff]
  %v3107 = vld [vmem:[#allocation2 + $0xf0] sm:$0xff]
  %v3108 = vld [vmem:[#allocation2 + $0xf8] sm:$0xff]
  %v3109 = vld [vmem:[#allocation2 + $0x100] sm:$0xff]
  %v3110 = vld [vmem:[#allocation2 + $0x108] sm:$0xff]
  %v3111 = vld [vmem:[#allocation2 + $0x110] sm:$0xff]
  %v3112 = vld [vmem:[#allocation2 + $0x118] sm:$0xff]
  %v3113 = vld [vmem:[#allocation2 + $0x120] sm:$0xff]
  %v3114 = vld [vmem:[#allocation2 + $0x128] sm:$0xff]
  %v3115 = vld [vmem:[#allocation2 + $0x130] sm:$0xff]
  %v3116 = vld [vmem:[#allocation2 + $0x138] sm:$0xff]
  %v3117 = vld [vmem:[#allocation2 + $0x140] sm:$0xff]
  %v3118 = vld [vmem:[#allocation2 + $0x148] sm:$0xff]
  %v3119 = vld [vmem:[#allocation2 + $0x150] sm:$0xff]
  %v3120 = vld [vmem:[#allocation2 + $0x158] sm:$0xff]
  %v3121 = vld [vmem:[#allocation2 + $0x160] sm:$0xff]
  %v3122 = vld [vmem:[#allocation2 + $0x168] sm:$0xff]
  %v3123 = vld [vmem:[#allocation2 + $0x170] sm:$0xff]
  %v3124 = vld [vmem:[#allocation2 + $0x178] sm:$0xff]
  %v3125 = vld [vmem:[#allocation2 + $0x180] sm:$0xff]
  %v3126 = vld [vmem:[#allocation2 + $0x188] sm:$0xff]
  %v3127 = vld [vmem:[#allocation2 + $0x190] sm:$0xff]
  %v3128 = vld [vmem:[#allocation2 + $0x198] sm:$0xff]
  %v3129 = vld [vmem:[#allocation2 + $0x1a0] sm:$0xff]
  %v3130 = vld [vmem:[#allocation2 + $0x1a8] sm:$0xff]
  %v3131 = vld [vmem:[#allocation2 + $0x1b0] sm:$0xff]
  %v3132 = vld [vmem:[#allocation2 + $0x1b8] sm:$0xff]
  %v3133 = vld [vmem:[#allocation2 + $0x1c0] sm:$0xff]
  %v3134 = vld [vmem:[#allocation2 + $0x1c8] sm:$0xff]
  %v3135 = vld [vmem:[#allocation2 + $0x1d0] sm:$0xff]
  %v3136 = vld [vmem:[#allocation2 + $0x1d8] sm:$0xff]
  %v3137 = vld [vmem:[#allocation2 + $0x1e0] sm:$0xff]
  %v3138 = vld [vmem:[#allocation2 + $0x1e8] sm:$0xff]
  %v3139 = vld [vmem:[#allocation2 + $0x1f0] sm:$0xff]
  %v3140 = vld [vmem:[#allocation2 + $0x1f8] sm:$0xff]
  %v3141 = vld [vmem:[#allocation2 + $0x200] sm:$0xff]
  %v3142 = vld [vmem:[#allocation2 + $0x208] sm:$0xff]
  %v3143 = vld [vmem:[#allocation2 + $0x210] sm:$0xff]
  %v3144 = vld [vmem:[#allocation2 + $0x218] sm:$0xff]
  %v3145 = vld [vmem:[#allocation2 + $0x220] sm:$0xff]
  %v3146 = vld [vmem:[#allocation2 + $0x228] sm:$0xff]
  %v3147 = vld [vmem:[#allocation2 + $0x230] sm:$0xff]
  %v3148 = vld [vmem:[#allocation2 + $0x238] sm:$0xff]
  %v3149 = vld [vmem:[#allocation2 + $0x240] sm:$0xff]
  %v3150 = vld [vmem:[#allocation2 + $0x248] sm:$0xff]
  %v3151 = vld [vmem:[#allocation2 + $0x250] sm:$0xff]
  %v3152 = vld [vmem:[#allocation2 + $0x258] sm:$0xff]
  %v3153 = vld [vmem:[#allocation2 + $0x260] sm:$0xff]
  %v3154 = vld [vmem:[#allocation2 + $0x268] sm:$0xff]
  %v3155 = vld [vmem:[#allocation2 + $0x270] sm:$0xff]
  %v3156 = vld [vmem:[#allocation2 + $0x278] sm:$0xff]
  %v3157 = vld [vmem:[#allocation2 + $0x280] sm:$0xff]
  %v3158 = vld [vmem:[#allocation2 + $0x288] sm:$0xff]
  %v3159 = vld [vmem:[#allocation2 + $0x290] sm:$0xff]
  %v3160 = vld [vmem:[#allocation2 + $0x298] sm:$0xff]
  %v3161 = vld [vmem:[#allocation2 + $0x2a0] sm:$0xff]
  %v3162 = vld [vmem:[#allocation2 + $0x2a8] sm:$0xff]
  %v3163 = vld [vmem:[#allocation2 + $0x2b0] sm:$0xff]
  %v3164 = vld [vmem:[#allocation2 + $0x2b8] sm:$0xff]
  %v3165 = vld [vmem:[#allocation2 + $0x2c0] sm:$0xff]
  %v3166 = vld [vmem:[#allocation2 + $0x2c8] sm:$0xff]
  %v3167 = vld [vmem:[#allocation2 + $0x2d0] sm:$0xff]
  %v3168 = vld [vmem:[#allocation2 + $0x2d8] sm:$0xff]
  %v3169 = vld [vmem:[#allocation2 + $0x2e0] sm:$0xff]
  %v3170 = vld [vmem:[#allocation2 + $0x2e8] sm:$0xff]
  %v3171 = vld [vmem:[#allocation2 + $0x2f0] sm:$0xff]
  %v3172 = vld [vmem:[#allocation2 + $0x2f8] sm:$0xff]
  %v3173 = vld [vmem:[#allocation2 + $0x300] sm:$0xff]
  %v3174 = vld [vmem:[#allocation2 + $0x308] sm:$0xff]
  %v3175 = vld [vmem:[#allocation2 + $0x310] sm:$0xff]
  %v3176 = vld [vmem:[#allocation2 + $0x318] sm:$0xff]
  %3178 = vset.pattern.permute.xlu0 0
  %3179 = vperm.xlu0 %3178, %v2688
  %v3180 = vpop.permute.xlu0 %3179
  %v3183 = vsel %vm550, %v2686, 0
  %3185 = vmatprep.subr.mxu0 %v3078
  %3186 = vmatpush1.msra.mxu0 %v3077
  %3187 = vmatprep.subr.mxu0 %v3082
  %3188 = vmatpush1.msra.mxu0 %v3081
  %3189 = vmatprep.subr.mxu0 %v3086
  %3190 = vmatpush1.msra.mxu0 %v3085
  %3191 = vmatprep.subr.mxu0 %v3090
  %3192 = vmatpush1.msra.mxu0 %v3089
  %3193 = vmatprep.subr.mxu0 %v3094
  %3194 = vmatpush1.msra.mxu0 %v3093
  %3195 = vmatprep.subr.mxu0 %v3098
  %3196 = vmatpush1.msra.mxu0 %v3097
  %3197 = vmatprep.subr.mxu0 %v3102
  %3198 = vmatpush1.msra.mxu0 %v3101
  %3199 = vmatprep.subr.mxu0 %v3106
  %3200 = vmatpush1.msra.mxu0 %v3105
  %3201 = vmatprep.subr.mxu0 %v3110
  %3202 = vmatpush1.msra.mxu0 %v3109
  %3203 = vmatprep.subr.mxu0 %v3114
  %3204 = vmatpush1.msra.mxu0 %v3113
  %3205 = vmatprep.subr.mxu0 %v3118
  %3206 = vmatpush1.msra.mxu0 %v3117
  %3207 = vmatprep.subr.mxu0 %v3122
  %3208 = vmatpush1.msra.mxu0 %v3121
  %3209 = vmatprep.subr.mxu0 %v3126
  %3210 = vmatpush1.msra.mxu0 %v3125
  %3211 = vmatprep.subr.mxu0 %v3130
  %3212 = vmatpush1.msra.mxu0 %v3129
  %3213 = vmatprep.subr.mxu0 %v3134
  %3214 = vmatpush1.msra.mxu0 %v3133
  %3215 = vmatprep.subr.mxu0 %v3138
  %3216 = vmatpush1.msra.mxu0 %v3137
  %3217 = vmatprep.subr.mxu0 %v3142
  %3218 = vmatpush1.msra.mxu0 %v3141
  %3219 = vmatprep.subr.mxu0 %v3146
  %3220 = vmatpush1.msra.mxu0 %v3145
  %3221 = vmatprep.subr.mxu0 %v3150
  %3222 = vmatpush1.msra.mxu0 %v3149
  %3223 = vmatprep.subr.mxu0 %v3154
  %3224 = vmatpush1.msra.mxu0 %v3153
  %3225 = vmatprep.subr.mxu0 %v3158
  %3226 = vmatpush1.msra.mxu0 %v3157
  %3227 = vmatprep.subr.mxu0 %v3162
  %3228 = vmatpush1.msra.mxu0 %v3161
  %3229 = vmatprep.subr.mxu0 %v3166
  %3230 = vmatpush1.msra.mxu0 %v3165
  %3231 = vmatprep.subr.mxu0 %v3170
  %3232 = vmatpush1.msra.mxu0 %v3169
  %3233 = vmatprep.subr.mxu0 %v3174
  %3234 = vmatpush1.msra.mxu0 %v3173
  %3235 = vmatprep.subr.mxu0 0.0
  %3236 = vmatpush1.msra.mxu0 0.0
  %3237 = vmatprep.subr.mxu0 0.0
  %3238 = vmatpush1.msra.mxu0 0.0
  %3239 = vmatprep.subr.mxu0 0.0
  %3240 = vmatpush1.msra.mxu0 0.0
  %3241 = vmatprep.subr.mxu0 0.0
  %3242 = vmatpush1.msra.mxu0 0.0
  %3243 = vmatprep.subr.mxu0 0.0
  %3244 = vmatpush1.msra.mxu0 0.0
  %3245 = vmatprep.subr.mxu0 0.0
  %3246 = vmatpush1.msra.mxu0 0.0
  %3247 = vmatprep.subr.mxu0 0.0
  %3248 = vmatpush1.msra.mxu0 0.0
  %3249 = vmatprep.mubr.f32.mxu0 %v3183
  %3250 = vmatmul.mubr.f32.gmra.mrb[0].mxu0 %v2685
  %v3251 = vpop.f32.mrb[0].mxu0
  %v3252 = vadd.f32 %v3180, %v3251
  %v3253 = vpop.f32.mrb[0].mxu0
  %v3254 = vadd.f32 %v3180, %v3253
  %3255 = vdwg.mxu0
  %3256 = vmatprep.subr.mxu0 %v3080
  %3257 = vmatpush1.msra.mxu0 %v3079
  %3258 = vmatprep.subr.mxu0 %v3084
  %3259 = vmatpush1.msra.mxu0 %v3083
  %3260 = vmatprep.subr.mxu0 %v3088
  %3261 = vmatpush1.msra.mxu0 %v3087
  %3262 = vmatprep.subr.mxu0 %v3092
  %3263 = vmatpush1.msra.mxu0 %v3091
  %3264 = vmatprep.subr.mxu0 %v3096
  %3265 = vmatpush1.msra.mxu0 %v3095
  %3266 = vmatprep.subr.mxu0 %v3100
  %3267 = vmatpush1.msra.mxu0 %v3099
  %3268 = vmatprep.subr.mxu0 %v3104
  %3269 = vmatpush1.msra.mxu0 %v3103
  %3270 = vmatprep.subr.mxu0 %v3108
  %3271 = vmatpush1.msra.mxu0 %v3107
  %3272 = vmatprep.subr.mxu0 %v3112
  %3273 = vmatpush1.msra.mxu0 %v3111
  %3274 = vmatprep.subr.mxu0 %v3116
  %3275 = vmatpush1.msra.mxu0 %v3115
  %3276 = vmatprep.subr.mxu0 %v3120
  %3277 = vmatpush1.msra.mxu0 %v3119
  %3278 = vmatprep.subr.mxu0 %v3124
  %3279 = vmatpush1.msra.mxu0 %v3123
  %3280 = vmatprep.subr.mxu0 %v3128
  %3281 = vmatpush1.msra.mxu0 %v3127
  %3282 = vmatprep.subr.mxu0 %v3132
  %3283 = vmatpush1.msra.mxu0 %v3131
  %3284 = vmatprep.subr.mxu0 %v3136
  %3285 = vmatpush1.msra.mxu0 %v3135
  %3286 = vmatprep.subr.mxu0 %v3140
  %3287 = vmatpush1.msra.mxu0 %v3139
  %3288 = vmatprep.subr.mxu0 %v3144
  %3289 = vmatpush1.msra.mxu0 %v3143
  %3290 = vmatprep.subr.mxu0 %v3148
  %3291 = vmatpush1.msra.mxu0 %v3147
  %3292 = vmatprep.subr.mxu0 %v3152
  %3293 = vmatpush1.msra.mxu0 %v3151
  %3294 = vmatprep.subr.mxu0 %v3156
  %3295 = vmatpush1.msra.mxu0 %v3155
  %3296 = vmatprep.subr.mxu0 %v3160
  %3297 = vmatpush1.msra.mxu0 %v3159
  %3298 = vmatprep.subr.mxu0 %v3164
  %3299 = vmatpush1.msra.mxu0 %v3163
  %3300 = vmatprep.subr.mxu0 %v3168
  %3301 = vmatpush1.msra.mxu0 %v3167
  %3302 = vmatprep.subr.mxu0 %v3172
  %3303 = vmatpush1.msra.mxu0 %v3171
  %3304 = vmatprep.subr.mxu0 %v3176
  %3305 = vmatpush1.msra.mxu0 %v3175
  %3306 = vmatprep.subr.mxu0 0.0
  %3307 = vmatpush1.msra.mxu0 0.0
  %3308 = vmatprep.subr.mxu0 0.0
  %3309 = vmatpush1.msra.mxu0 0.0
  %3310 = vmatprep.subr.mxu0 0.0
  %3311 = vmatpush1.msra.mxu0 0.0
  %3312 = vmatprep.subr.mxu0 0.0
  %3313 = vmatpush1.msra.mxu0 0.0
  %3314 = vmatprep.subr.mxu0 0.0
  %3315 = vmatpush1.msra.mxu0 0.0
  %3316 = vmatprep.subr.mxu0 0.0
  %3317 = vmatpush1.msra.mxu0 0.0
  %3318 = vmatprep.subr.mxu0 0.0
  %3319 = vmatpush1.msra.mxu0 0.0
  %3320 = vmatprep.mubr.f32.mxu0 %v3183
  %3321 = vmatmul.mubr.f32.gmra.mrb[0].mxu0 %v2685
  %v3322 = vpop.f32.mrb[0].mxu0
  %v3323 = vadd.f32 %v3180, %v3322
  %v3324 = vpop.f32.mrb[0].mxu0
  %v3325 = vadd.f32 %v3180, %v3324
  %3326 = vdwg.mxu0
  %v3327 = vmax.f32 %v3252, 0.0
  %v3328 = vmax.f32 %v3254, 0.0
  %v3329 = vmax.f32 %v3323, 0.0
  %v3330 = vmax.f32 %v3325, 0.0
  %v3331 = vmul.f32 %v3327, %v704
  %v3332 = vmul.f32 %v3328, %v708
  %v3333 = vmul.f32 %v3329, %v712
  %v3334 = vmul.f32 %v3330, %v716
  %s3335 = scalar_lea.vmem %s4, 32
  %v3336 = vld [vmem:[%s3335] sm:$0xff]
  %v3337 = vld [vmem:[%s3335 + $0x8] sm:$0xff]
  %s3338 = scalar_lea.vmem %s5, 16
  %v3339 = vld [vmem:[%s3338] sm:$0xff]
  %3340 = vrot.lane.b32.xlu0 %v3331, 42
  %v3341 = vpop.permute.xlu0 %3340
  %3342 = vrot.lane.b32.xlu0 %v3332, 42
  %v3343 = vpop.permute.xlu0 %3342
  %3344 = vrot.lane.b32.xlu0 %v3333, 42
  %v3345 = vpop.permute.xlu0 %3344
  %3346 = vrot.lane.b32.xlu0 %v3334, 42
  %v3347 = vpop.permute.xlu0 %3346
  %v3348 = vsel %vm41, %v3345, %v3347
  %v3349 = vsel %vm41, %v3343, %v3345
  %v3350 = vsel %vm41, %v3341, %v3343
  %v3351 = vsel %vm41, %v3347, %v3341
  %3352 = vst [vmem:[#allocation2] sm:$0xff] %v3351
  %3353 = vst [vmem:[#allocation2 + $0x8] sm:$0xff] %v3350
  %3354 = vst [vmem:[#allocation2 + $0x10] sm:$0xff] %v3349
  %3355 = vst [vmem:[#allocation2 + $0x18] sm:$0xff] %v3348
  %3356 = vrot.lane.b32.xlu0 %v3331, 41
  %v3357 = vpop.permute.xlu0 %3356
  %3358 = vrot.lane.b32.xlu0 %v3332, 41
  %v3359 = vpop.permute.xlu0 %3358
  %3360 = vrot.lane.b32.xlu0 %v3333, 41
  %v3361 = vpop.permute.xlu0 %3360
  %3362 = vrot.lane.b32.xlu0 %v3334, 41
  %v3363 = vpop.permute.xlu0 %3362
  %v3364 = vsel %vm58, %v3361, %v3363
  %v3365 = vsel %vm58, %v3359, %v3361
  %v3366 = vsel %vm58, %v3357, %v3359
  %v3367 = vsel %vm58, %v3363, %v3357
  %3368 = vst [vmem:[#allocation2 + $0x20] sm:$0xff] %v3367
  %3369 = vst [vmem:[#allocation2 + $0x28] sm:$0xff] %v3366
  %3370 = vst [vmem:[#allocation2 + $0x30] sm:$0xff] %v3365
  %3371 = vst [vmem:[#allocation2 + $0x38] sm:$0xff] %v3364
  %3372 = vrot.lane.b32.xlu0 %v3331, 40
  %v3373 = vpop.permute.xlu0 %3372
  %3374 = vrot.lane.b32.xlu0 %v3332, 40
  %v3375 = vpop.permute.xlu0 %3374
  %3376 = vrot.lane.b32.xlu0 %v3333, 40
  %v3377 = vpop.permute.xlu0 %3376
  %3378 = vrot.lane.b32.xlu0 %v3334, 40
  %v3379 = vpop.permute.xlu0 %3378
  %v3380 = vsel %vm75, %v3377, %v3379
  %v3381 = vsel %vm75, %v3375, %v3377
  %v3382 = vsel %vm75, %v3373, %v3375
  %v3383 = vsel %vm75, %v3379, %v3373
  %3384 = vst [vmem:[#allocation2 + $0x40] sm:$0xff] %v3383
  %3385 = vst [vmem:[#allocation2 + $0x48] sm:$0xff] %v3382
  %3386 = vst [vmem:[#allocation2 + $0x50] sm:$0xff] %v3381
  %3387 = vst [vmem:[#allocation2 + $0x58] sm:$0xff] %v3380
  %3388 = vrot.lane.b32.xlu0 %v3331, 39
  %v3389 = vpop.permute.xlu0 %3388
  %3390 = vrot.lane.b32.xlu0 %v3332, 39
  %v3391 = vpop.permute.xlu0 %3390
  %3392 = vrot.lane.b32.xlu0 %v3333, 39
  %v3393 = vpop.permute.xlu0 %3392
  %3394 = vrot.lane.b32.xlu0 %v3334, 39
  %v3395 = vpop.permute.xlu0 %3394
  %v3396 = vsel %vm92, %v3393, %v3395
  %v3397 = vsel %vm92, %v3391, %v3393
  %v3398 = vsel %vm92, %v3389, %v3391
  %v3399 = vsel %vm92, %v3395, %v3389
  %3400 = vst [vmem:[#allocation2 + $0x60] sm:$0xff] %v3399
  %3401 = vst [vmem:[#allocation2 + $0x68] sm:$0xff] %v3398
  %3402 = vst [vmem:[#allocation2 + $0x70] sm:$0xff] %v3397
  %3403 = vst [vmem:[#allocation2 + $0x78] sm:$0xff] %v3396
  %3404 = vrot.lane.b32.xlu0 %v3331, 38
  %v3405 = vpop.permute.xlu0 %3404
  %3406 = vrot.lane.b32.xlu0 %v3332, 38
  %v3407 = vpop.permute.xlu0 %3406
  %3408 = vrot.lane.b32.xlu0 %v3333, 38
  %v3409 = vpop.permute.xlu0 %3408
  %3410 = vrot.lane.b32.xlu0 %v3334, 38
  %v3411 = vpop.permute.xlu0 %3410
  %v3412 = vsel %vm109, %v3409, %v3411
  %v3413 = vsel %vm109, %v3407, %v3409
  %v3414 = vsel %vm109, %v3405, %v3407
  %v3415 = vsel %vm109, %v3411, %v3405
  %3416 = vst [vmem:[#allocation2 + $0x80] sm:$0xff] %v3415
  %3417 = vst [vmem:[#allocation2 + $0x88] sm:$0xff] %v3414
  %3418 = vst [vmem:[#allocation2 + $0x90] sm:$0xff] %v3413
  %3419 = vst [vmem:[#allocation2 + $0x98] sm:$0xff] %v3412
  %3420 = vrot.lane.b32.xlu0 %v3331, 22
  %v3421 = vpop.permute.xlu0 %3420
  %3422 = vrot.lane.b32.xlu0 %v3332, 22
  %v3423 = vpop.permute.xlu0 %3422
  %3424 = vrot.lane.b32.xlu0 %v3333, 22
  %v3425 = vpop.permute.xlu0 %3424
  %3426 = vrot.lane.b32.xlu0 %v3334, 22
  %v3427 = vpop.permute.xlu0 %3426
  %v3428 = vsel %vm126, %v3425, %v3427
  %v3429 = vsel %vm126, %v3423, %v3425
  %v3430 = vsel %vm126, %v3421, %v3423
  %v3431 = vsel %vm126, %v3427, %v3421
  %3432 = vst [vmem:[#allocation2 + $0xa0] sm:$0xff] %v3431
  %3433 = vst [vmem:[#allocation2 + $0xa8] sm:$0xff] %v3430
  %3434 = vst [vmem:[#allocation2 + $0xb0] sm:$0xff] %v3429
  %3435 = vst [vmem:[#allocation2 + $0xb8] sm:$0xff] %v3428
  %3436 = vrot.lane.b32.xlu0 %v3331, 21
  %v3437 = vpop.permute.xlu0 %3436
  %3438 = vrot.lane.b32.xlu0 %v3332, 21
  %v3439 = vpop.permute.xlu0 %3438
  %3440 = vrot.lane.b32.xlu0 %v3333, 21
  %v3441 = vpop.permute.xlu0 %3440
  %3442 = vrot.lane.b32.xlu0 %v3334, 21
  %v3443 = vpop.permute.xlu0 %3442
  %v3444 = vsel %vm143, %v3441, %v3443
  %v3445 = vsel %vm143, %v3439, %v3441
  %v3446 = vsel %vm143, %v3437, %v3439
  %v3447 = vsel %vm143, %v3443, %v3437
  %3448 = vst [vmem:[#allocation2 + $0xc0] sm:$0xff] %v3447
  %3449 = vst [vmem:[#allocation2 + $0xc8] sm:$0xff] %v3446
  %3450 = vst [vmem:[#allocation2 + $0xd0] sm:$0xff] %v3445
  %3451 = vst [vmem:[#allocation2 + $0xd8] sm:$0xff] %v3444
  %3452 = vrot.lane.b32.xlu0 %v3331, 20
  %v3453 = vpop.permute.xlu0 %3452
  %3454 = vrot.lane.b32.xlu0 %v3332, 20
  %v3455 = vpop.permute.xlu0 %3454
  %3456 = vrot.lane.b32.xlu0 %v3333, 20
  %v3457 = vpop.permute.xlu0 %3456
  %3458 = vrot.lane.b32.xlu0 %v3334, 20
  %v3459 = vpop.permute.xlu0 %3458
  %v3460 = vsel %vm160, %v3457, %v3459
  %v3461 = vsel %vm160, %v3455, %v3457
  %v3462 = vsel %vm160, %v3453, %v3455
  %v3463 = vsel %vm160, %v3459, %v3453
  %3464 = vst [vmem:[#allocation2 + $0xe0] sm:$0xff] %v3463
  %3465 = vst [vmem:[#allocation2 + $0xe8] sm:$0xff] %v3462
  %3466 = vst [vmem:[#allocation2 + $0xf0] sm:$0xff] %v3461
  %3467 = vst [vmem:[#allocation2 + $0xf8] sm:$0xff] %v3460
  %3468 = vrot.lane.b32.xlu0 %v3331, 19
  %v3469 = vpop.permute.xlu0 %3468
  %3470 = vrot.lane.b32.xlu0 %v3332, 19
  %v3471 = vpop.permute.xlu0 %3470
  %3472 = vrot.lane.b32.xlu0 %v3333, 19
  %v3473 = vpop.permute.xlu0 %3472
  %3474 = vrot.lane.b32.xlu0 %v3334, 19
  %v3475 = vpop.permute.xlu0 %3474
  %v3476 = vsel %vm177, %v3473, %v3475
  %v3477 = vsel %vm177, %v3471, %v3473
  %v3478 = vsel %vm177, %v3469, %v3471
  %v3479 = vsel %vm177, %v3475, %v3469
  %3480 = vst [vmem:[#allocation2 + $0x100] sm:$0xff] %v3479
  %3481 = vst [vmem:[#allocation2 + $0x108] sm:$0xff] %v3478
  %3482 = vst [vmem:[#allocation2 + $0x110] sm:$0xff] %v3477
  %3483 = vst [vmem:[#allocation2 + $0x118] sm:$0xff] %v3476
  %3484 = vrot.lane.b32.xlu0 %v3331, 18
  %v3485 = vpop.permute.xlu0 %3484
  %3486 = vrot.lane.b32.xlu0 %v3332, 18
  %v3487 = vpop.permute.xlu0 %3486
  %3488 = vrot.lane.b32.xlu0 %v3333, 18
  %v3489 = vpop.permute.xlu0 %3488
  %3490 = vrot.lane.b32.xlu0 %v3334, 18
  %v3491 = vpop.permute.xlu0 %3490
  %v3492 = vsel %vm194, %v3489, %v3491
  %v3493 = vsel %vm194, %v3487, %v3489
  %v3494 = vsel %vm194, %v3485, %v3487
  %v3495 = vsel %vm194, %v3491, %v3485
  %3496 = vst [vmem:[#allocation2 + $0x120] sm:$0xff] %v3495
  %3497 = vst [vmem:[#allocation2 + $0x128] sm:$0xff] %v3494
  %3498 = vst [vmem:[#allocation2 + $0x130] sm:$0xff] %v3493
  %3499 = vst [vmem:[#allocation2 + $0x138] sm:$0xff] %v3492
  %3500 = vrot.lane.b32.xlu0 %v3331, 2
  %v3501 = vpop.permute.xlu0 %3500
  %3502 = vrot.lane.b32.xlu0 %v3332, 2
  %v3503 = vpop.permute.xlu0 %3502
  %3504 = vrot.lane.b32.xlu0 %v3333, 2
  %v3505 = vpop.permute.xlu0 %3504
  %3506 = vrot.lane.b32.xlu0 %v3334, 2
  %v3507 = vpop.permute.xlu0 %3506
  %v3508 = vsel %vm211, %v3505, %v3507
  %v3509 = vsel %vm211, %v3503, %v3505
  %v3510 = vsel %vm211, %v3501, %v3503
  %v3511 = vsel %vm211, %v3507, %v3501
  %3512 = vst [vmem:[#allocation2 + $0x140] sm:$0xff] %v3511
  %3513 = vst [vmem:[#allocation2 + $0x148] sm:$0xff] %v3510
  %3514 = vst [vmem:[#allocation2 + $0x150] sm:$0xff] %v3509
  %3515 = vst [vmem:[#allocation2 + $0x158] sm:$0xff] %v3508
  %3516 = vrot.lane.b32.xlu0 %v3331, 1
  %v3517 = vpop.permute.xlu0 %3516
  %3518 = vrot.lane.b32.xlu0 %v3332, 1
  %v3519 = vpop.permute.xlu0 %3518
  %3520 = vrot.lane.b32.xlu0 %v3333, 1
  %v3521 = vpop.permute.xlu0 %3520
  %3522 = vrot.lane.b32.xlu0 %v3334, 1
  %v3523 = vpop.permute.xlu0 %3522
  %v3524 = vsel %vm228, %v3521, %v3523
  %v3525 = vsel %vm228, %v3519, %v3521
  %v3526 = vsel %vm228, %v3517, %v3519
  %v3527 = vsel %vm228, %v3523, %v3517
  %3528 = vst [vmem:[#allocation2 + $0x160] sm:$0xff] %v3527
  %3529 = vst [vmem:[#allocation2 + $0x168] sm:$0xff] %v3526
  %3530 = vst [vmem:[#allocation2 + $0x170] sm:$0xff] %v3525
  %3531 = vst [vmem:[#allocation2 + $0x178] sm:$0xff] %v3524
  %3532 = vst [vmem:[#allocation2 + $0x180] sm:$0xff] %v3331
  %3533 = vst [vmem:[#allocation2 + $0x188] sm:$0xff] %v3332
  %3534 = vst [vmem:[#allocation2 + $0x190] sm:$0xff] %v3333
  %3535 = vst [vmem:[#allocation2 + $0x198] sm:$0xff] %v3334
  %3536 = vrot.lane.b32.xlu0 %v3331, 127
  %v3537 = vpop.permute.xlu0 %3536
  %3538 = vrot.lane.b32.xlu0 %v3332, 127
  %v3539 = vpop.permute.xlu0 %3538
  %3540 = vrot.lane.b32.xlu0 %v3333, 127
  %v3541 = vpop.permute.xlu0 %3540
  %3542 = vrot.lane.b32.xlu0 %v3334, 127
  %v3543 = vpop.permute.xlu0 %3542
  %v3544 = vsel %vm249, %v3541, %v3543
  %v3545 = vsel %vm249, %v3539, %v3541
  %v3546 = vsel %vm249, %v3537, %v3539
  %v3547 = vsel %vm249, %v3543, %v3537
  %3548 = vst [vmem:[#allocation2 + $0x1a0] sm:$0xff] %v3546
  %3549 = vst [vmem:[#allocation2 + $0x1a8] sm:$0xff] %v3545
  %3550 = vst [vmem:[#allocation2 + $0x1b0] sm:$0xff] %v3544
  %3551 = vst [vmem:[#allocation2 + $0x1b8] sm:$0xff] %v3547
  %3552 = vrot.lane.b32.xlu0 %v3331, 126
  %v3553 = vpop.permute.xlu0 %3552
  %3554 = vrot.lane.b32.xlu0 %v3332, 126
  %v3555 = vpop.permute.xlu0 %3554
  %3556 = vrot.lane.b32.xlu0 %v3333, 126
  %v3557 = vpop.permute.xlu0 %3556
  %3558 = vrot.lane.b32.xlu0 %v3334, 126
  %v3559 = vpop.permute.xlu0 %3558
  %v3560 = vsel %vm266, %v3557, %v3559
  %v3561 = vsel %vm266, %v3555, %v3557
  %v3562 = vsel %vm266, %v3553, %v3555
  %v3563 = vsel %vm266, %v3559, %v3553
  %3564 = vst [vmem:[#allocation2 + $0x1c0] sm:$0xff] %v3562
  %3565 = vst [vmem:[#allocation2 + $0x1c8] sm:$0xff] %v3561
  %3566 = vst [vmem:[#allocation2 + $0x1d0] sm:$0xff] %v3560
  %3567 = vst [vmem:[#allocation2 + $0x1d8] sm:$0xff] %v3563
  %3568 = vrot.lane.b32.xlu0 %v3331, 110
  %v3569 = vpop.permute.xlu0 %3568
  %3570 = vrot.lane.b32.xlu0 %v3332, 110
  %v3571 = vpop.permute.xlu0 %3570
  %3572 = vrot.lane.b32.xlu0 %v3333, 110
  %v3573 = vpop.permute.xlu0 %3572
  %3574 = vrot.lane.b32.xlu0 %v3334, 110
  %v3575 = vpop.permute.xlu0 %3574
  %v3576 = vsel %vm283, %v3573, %v3575
  %v3577 = vsel %vm283, %v3571, %v3573
  %v3578 = vsel %vm283, %v3569, %v3571
  %v3579 = vsel %vm283, %v3575, %v3569
  %3580 = vst [vmem:[#allocation2 + $0x1e0] sm:$0xff] %v3578
  %3581 = vst [vmem:[#allocation2 + $0x1e8] sm:$0xff] %v3577
  %3582 = vst [vmem:[#allocation2 + $0x1f0] sm:$0xff] %v3576
  %3583 = vst [vmem:[#allocation2 + $0x1f8] sm:$0xff] %v3579
  %3584 = vrot.lane.b32.xlu0 %v3331, 109
  %v3585 = vpop.permute.xlu0 %3584
  %3586 = vrot.lane.b32.xlu0 %v3332, 109
  %v3587 = vpop.permute.xlu0 %3586
  %3588 = vrot.lane.b32.xlu0 %v3333, 109
  %v3589 = vpop.permute.xlu0 %3588
  %3590 = vrot.lane.b32.xlu0 %v3334, 109
  %v3591 = vpop.permute.xlu0 %3590
  %v3592 = vsel %vm300, %v3589, %v3591
  %v3593 = vsel %vm300, %v3587, %v3589
  %v3594 = vsel %vm300, %v3585, %v3587
  %v3595 = vsel %vm300, %v3591, %v3585
  %3596 = vst [vmem:[#allocation2 + $0x200] sm:$0xff] %v3594
  %3597 = vst [vmem:[#allocation2 + $0x208] sm:$0xff] %v3593
  %3598 = vst [vmem:[#allocation2 + $0x210] sm:$0xff] %v3592
  %3599 = vst [vmem:[#allocation2 + $0x218] sm:$0xff] %v3595
  %3600 = vrot.lane.b32.xlu0 %v3331, 108
  %v3601 = vpop.permute.xlu0 %3600
  %3602 = vrot.lane.b32.xlu0 %v3332, 108
  %v3603 = vpop.permute.xlu0 %3602
  %3604 = vrot.lane.b32.xlu0 %v3333, 108
  %v3605 = vpop.permute.xlu0 %3604
  %3606 = vrot.lane.b32.xlu0 %v3334, 108
  %v3607 = vpop.permute.xlu0 %3606
  %v3608 = vsel %vm317, %v3605, %v3607
  %v3609 = vsel %vm317, %v3603, %v3605
  %v3610 = vsel %vm317, %v3601, %v3603
  %v3611 = vsel %vm317, %v3607, %v3601
  %3612 = vst [vmem:[#allocation2 + $0x220] sm:$0xff] %v3610
  %3613 = vst [vmem:[#allocation2 + $0x228] sm:$0xff] %v3609
  %3614 = vst [vmem:[#allocation2 + $0x230] sm:$0xff] %v3608
  %3615 = vst [vmem:[#allocation2 + $0x238] sm:$0xff] %v3611
  %3616 = vrot.lane.b32.xlu0 %v3331, 107
  %v3617 = vpop.permute.xlu0 %3616
  %3618 = vrot.lane.b32.xlu0 %v3332, 107
  %v3619 = vpop.permute.xlu0 %3618
  %3620 = vrot.lane.b32.xlu0 %v3333, 107
  %v3621 = vpop.permute.xlu0 %3620
  %3622 = vrot.lane.b32.xlu0 %v3334, 107
  %v3623 = vpop.permute.xlu0 %3622
  %v3624 = vsel %vm334, %v3621, %v3623
  %v3625 = vsel %vm334, %v3619, %v3621
  %v3626 = vsel %vm334, %v3617, %v3619
  %v3627 = vsel %vm334, %v3623, %v3617
  %3628 = vst [vmem:[#allocation2 + $0x240] sm:$0xff] %v3626
  %3629 = vst [vmem:[#allocation2 + $0x248] sm:$0xff] %v3625
  %3630 = vst [vmem:[#allocation2 + $0x250] sm:$0xff] %v3624
  %3631 = vst [vmem:[#allocation2 + $0x258] sm:$0xff] %v3627
  %3632 = vrot.lane.b32.xlu0 %v3331, 106
  %v3633 = vpop.permute.xlu0 %3632
  %3634 = vrot.lane.b32.xlu0 %v3332, 106
  %v3635 = vpop.permute.xlu0 %3634
  %3636 = vrot.lane.b32.xlu0 %v3333, 106
  %v3637 = vpop.permute.xlu0 %3636
  %3638 = vrot.lane.b32.xlu0 %v3334, 106
  %v3639 = vpop.permute.xlu0 %3638
  %v3640 = vsel %vm351, %v3637, %v3639
  %v3641 = vsel %vm351, %v3635, %v3637
  %v3642 = vsel %vm351, %v3633, %v3635
  %v3643 = vsel %vm351, %v3639, %v3633
  %3644 = vst [vmem:[#allocation2 + $0x260] sm:$0xff] %v3642
  %3645 = vst [vmem:[#allocation2 + $0x268] sm:$0xff] %v3641
  %3646 = vst [vmem:[#allocation2 + $0x270] sm:$0xff] %v3640
  %3647 = vst [vmem:[#allocation2 + $0x278] sm:$0xff] %v3643
  %3648 = vrot.lane.b32.xlu0 %v3331, 90
  %v3649 = vpop.permute.xlu0 %3648
  %3650 = vrot.lane.b32.xlu0 %v3332, 90
  %v3651 = vpop.permute.xlu0 %3650
  %3652 = vrot.lane.b32.xlu0 %v3333, 90
  %v3653 = vpop.permute.xlu0 %3652
  %3654 = vrot.lane.b32.xlu0 %v3334, 90
  %v3655 = vpop.permute.xlu0 %3654
  %v3656 = vsel %vm368, %v3653, %v3655
  %v3657 = vsel %vm368, %v3651, %v3653
  %v3658 = vsel %vm368, %v3649, %v3651
  %v3659 = vsel %vm368, %v3655, %v3649
  %3660 = vst [vmem:[#allocation2 + $0x280] sm:$0xff] %v3658
  %3661 = vst [vmem:[#allocation2 + $0x288] sm:$0xff] %v3657
  %3662 = vst [vmem:[#allocation2 + $0x290] sm:$0xff] %v3656
  %3663 = vst [vmem:[#allocation2 + $0x298] sm:$0xff] %v3659
  %3664 = vrot.lane.b32.xlu0 %v3331, 89
  %v3665 = vpop.permute.xlu0 %3664
  %3666 = vrot.lane.b32.xlu0 %v3332, 89
  %v3667 = vpop.permute.xlu0 %3666
  %3668 = vrot.lane.b32.xlu0 %v3333, 89
  %v3669 = vpop.permute.xlu0 %3668
  %3670 = vrot.lane.b32.xlu0 %v3334, 89
  %v3671 = vpop.permute.xlu0 %3670
  %v3672 = vsel %vm385, %v3669, %v3671
  %v3673 = vsel %vm385, %v3667, %v3669
  %v3674 = vsel %vm385, %v3665, %v3667
  %v3675 = vsel %vm385, %v3671, %v3665
  %3676 = vst [vmem:[#allocation2 + $0x2a0] sm:$0xff] %v3674
  %3677 = vst [vmem:[#allocation2 + $0x2a8] sm:$0xff] %v3673
  %3678 = vst [vmem:[#allocation2 + $0x2b0] sm:$0xff] %v3672
  %3679 = vst [vmem:[#allocation2 + $0x2b8] sm:$0xff] %v3675
  %3680 = vrot.lane.b32.xlu0 %v3331, 88
  %v3681 = vpop.permute.xlu0 %3680
  %3682 = vrot.lane.b32.xlu0 %v3332, 88
  %v3683 = vpop.permute.xlu0 %3682
  %3684 = vrot.lane.b32.xlu0 %v3333, 88
  %v3685 = vpop.permute.xlu0 %3684
  %3686 = vrot.lane.b32.xlu0 %v3334, 88
  %v3687 = vpop.permute.xlu0 %3686
  %v3688 = vsel %vm402, %v3685, %v3687
  %v3689 = vsel %vm402, %v3683, %v3685
  %v3690 = vsel %vm402, %v3681, %v3683
  %v3691 = vsel %vm402, %v3687, %v3681
  %3692 = vst [vmem:[#allocation2 + $0x2c0] sm:$0xff] %v3690
  %3693 = vst [vmem:[#allocation2 + $0x2c8] sm:$0xff] %v3689
  %3694 = vst [vmem:[#allocation2 + $0x2d0] sm:$0xff] %v3688
  %3695 = vst [vmem:[#allocation2 + $0x2d8] sm:$0xff] %v3691
  %3696 = vrot.lane.b32.xlu0 %v3331, 87
  %v3697 = vpop.permute.xlu0 %3696
  %3698 = vrot.lane.b32.xlu0 %v3332, 87
  %v3699 = vpop.permute.xlu0 %3698
  %3700 = vrot.lane.b32.xlu0 %v3333, 87
  %v3701 = vpop.permute.xlu0 %3700
  %3702 = vrot.lane.b32.xlu0 %v3334, 87
  %v3703 = vpop.permute.xlu0 %3702
  %v3704 = vsel %vm419, %v3701, %v3703
  %v3705 = vsel %vm419, %v3699, %v3701
  %v3706 = vsel %vm419, %v3697, %v3699
  %v3707 = vsel %vm419, %v3703, %v3697
  %3708 = vst [vmem:[#allocation2 + $0x2e0] sm:$0xff] %v3706
  %3709 = vst [vmem:[#allocation2 + $0x2e8] sm:$0xff] %v3705
  %3710 = vst [vmem:[#allocation2 + $0x2f0] sm:$0xff] %v3704
  %3711 = vst [vmem:[#allocation2 + $0x2f8] sm:$0xff] %v3707
  %3712 = vrot.lane.b32.xlu0 %v3331, 86
  %v3713 = vpop.permute.xlu0 %3712
  %3714 = vrot.lane.b32.xlu0 %v3332, 86
  %v3715 = vpop.permute.xlu0 %3714
  %3716 = vrot.lane.b32.xlu0 %v3333, 86
  %v3717 = vpop.permute.xlu0 %3716
  %3718 = vrot.lane.b32.xlu0 %v3334, 86
  %v3719 = vpop.permute.xlu0 %3718
  %v3720 = vsel %vm436, %v3717, %v3719
  %v3721 = vsel %vm436, %v3715, %v3717
  %v3722 = vsel %vm436, %v3713, %v3715
  %v3723 = vsel %vm436, %v3719, %v3713
  %3724 = vst [vmem:[#allocation2 + $0x300] sm:$0xff] %v3722
  %3725 = vst [vmem:[#allocation2 + $0x308] sm:$0xff] %v3721
  %3726 = vst [vmem:[#allocation2 + $0x310] sm:$0xff] %v3720
  %3727 = vst [vmem:[#allocation2 + $0x318] sm:$0xff] %v3723
  %v3728 = vld [vmem:[#allocation2] sm:$0xff]
  %v3729 = vld [vmem:[#allocation2 + $0x8] sm:$0xff]
  %v3730 = vld [vmem:[#allocation2 + $0x10] sm:$0xff]
  %v3731 = vld [vmem:[#allocation2 + $0x18] sm:$0xff]
  %v3732 = vld [vmem:[#allocation2 + $0x20] sm:$0xff]
  %v3733 = vld [vmem:[#allocation2 + $0x28] sm:$0xff]
  %v3734 = vld [vmem:[#allocation2 + $0x30] sm:$0xff]
  %v3735 = vld [vmem:[#allocation2 + $0x38] sm:$0xff]
  %v3736 = vld [vmem:[#allocation2 + $0x40] sm:$0xff]
  %v3737 = vld [vmem:[#allocation2 + $0x48] sm:$0xff]
  %v3738 = vld [vmem:[#allocation2 + $0x50] sm:$0xff]
  %v3739 = vld [vmem:[#allocation2 + $0x58] sm:$0xff]
  %v3740 = vld [vmem:[#allocation2 + $0x60] sm:$0xff]
  %v3741 = vld [vmem:[#allocation2 + $0x68] sm:$0xff]
  %v3742 = vld [vmem:[#allocation2 + $0x70] sm:$0xff]
  %v3743 = vld [vmem:[#allocation2 + $0x78] sm:$0xff]
  %v3744 = vld [vmem:[#allocation2 + $0x80] sm:$0xff]
  %v3745 = vld [vmem:[#allocation2 + $0x88] sm:$0xff]
  %v3746 = vld [vmem:[#allocation2 + $0x90] sm:$0xff]
  %v3747 = vld [vmem:[#allocation2 + $0x98] sm:$0xff]
  %v3748 = vld [vmem:[#allocation2 + $0xa0] sm:$0xff]
  %v3749 = vld [vmem:[#allocation2 + $0xa8] sm:$0xff]
  %v3750 = vld [vmem:[#allocation2 + $0xb0] sm:$0xff]
  %v3751 = vld [vmem:[#allocation2 + $0xb8] sm:$0xff]
  %v3752 = vld [vmem:[#allocation2 + $0xc0] sm:$0xff]
  %v3753 = vld [vmem:[#allocation2 + $0xc8] sm:$0xff]
  %v3754 = vld [vmem:[#allocation2 + $0xd0] sm:$0xff]
  %v3755 = vld [vmem:[#allocation2 + $0xd8] sm:$0xff]
  %v3756 = vld [vmem:[#allocation2 + $0xe0] sm:$0xff]
  %v3757 = vld [vmem:[#allocation2 + $0xe8] sm:$0xff]
  %v3758 = vld [vmem:[#allocation2 + $0xf0] sm:$0xff]
  %v3759 = vld [vmem:[#allocation2 + $0xf8] sm:$0xff]
  %v3760 = vld [vmem:[#allocation2 + $0x100] sm:$0xff]
  %v3761 = vld [vmem:[#allocation2 + $0x108] sm:$0xff]
  %v3762 = vld [vmem:[#allocation2 + $0x110] sm:$0xff]
  %v3763 = vld [vmem:[#allocation2 + $0x118] sm:$0xff]
  %v3764 = vld [vmem:[#allocation2 + $0x120] sm:$0xff]
  %v3765 = vld [vmem:[#allocation2 + $0x128] sm:$0xff]
  %v3766 = vld [vmem:[#allocation2 + $0x130] sm:$0xff]
  %v3767 = vld [vmem:[#allocation2 + $0x138] sm:$0xff]
  %v3768 = vld [vmem:[#allocation2 + $0x140] sm:$0xff]
  %v3769 = vld [vmem:[#allocation2 + $0x148] sm:$0xff]
  %v3770 = vld [vmem:[#allocation2 + $0x150] sm:$0xff]
  %v3771 = vld [vmem:[#allocation2 + $0x158] sm:$0xff]
  %v3772 = vld [vmem:[#allocation2 + $0x160] sm:$0xff]
  %v3773 = vld [vmem:[#allocation2 + $0x168] sm:$0xff]
  %v3774 = vld [vmem:[#allocation2 + $0x170] sm:$0xff]
  %v3775 = vld [vmem:[#allocation2 + $0x178] sm:$0xff]
  %v3776 = vld [vmem:[#allocation2 + $0x180] sm:$0xff]
  %v3777 = vld [vmem:[#allocation2 + $0x188] sm:$0xff]
  %v3778 = vld [vmem:[#allocation2 + $0x190] sm:$0xff]
  %v3779 = vld [vmem:[#allocation2 + $0x198] sm:$0xff]
  %v3780 = vld [vmem:[#allocation2 + $0x1a0] sm:$0xff]
  %v3781 = vld [vmem:[#allocation2 + $0x1a8] sm:$0xff]
  %v3782 = vld [vmem:[#allocation2 + $0x1b0] sm:$0xff]
  %v3783 = vld [vmem:[#allocation2 + $0x1b8] sm:$0xff]
  %v3784 = vld [vmem:[#allocation2 + $0x1c0] sm:$0xff]
  %v3785 = vld [vmem:[#allocation2 + $0x1c8] sm:$0xff]
  %v3786 = vld [vmem:[#allocation2 + $0x1d0] sm:$0xff]
  %v3787 = vld [vmem:[#allocation2 + $0x1d8] sm:$0xff]
  %v3788 = vld [vmem:[#allocation2 + $0x1e0] sm:$0xff]
  %v3789 = vld [vmem:[#allocation2 + $0x1e8] sm:$0xff]
  %v3790 = vld [vmem:[#allocation2 + $0x1f0] sm:$0xff]
  %v3791 = vld [vmem:[#allocation2 + $0x1f8] sm:$0xff]
  %v3792 = vld [vmem:[#allocation2 + $0x200] sm:$0xff]
  %v3793 = vld [vmem:[#allocation2 + $0x208] sm:$0xff]
  %v3794 = vld [vmem:[#allocation2 + $0x210] sm:$0xff]
  %v3795 = vld [vmem:[#allocation2 + $0x218] sm:$0xff]
  %v3796 = vld [vmem:[#allocation2 + $0x220] sm:$0xff]
  %v3797 = vld [vmem:[#allocation2 + $0x228] sm:$0xff]
  %v3798 = vld [vmem:[#allocation2 + $0x230] sm:$0xff]
  %v3799 = vld [vmem:[#allocation2 + $0x238] sm:$0xff]
  %v3800 = vld [vmem:[#allocation2 + $0x240] sm:$0xff]
  %v3801 = vld [vmem:[#allocation2 + $0x248] sm:$0xff]
  %v3802 = vld [vmem:[#allocation2 + $0x250] sm:$0xff]
  %v3803 = vld [vmem:[#allocation2 + $0x258] sm:$0xff]
  %v3804 = vld [vmem:[#allocation2 + $0x260] sm:$0xff]
  %v3805 = vld [vmem:[#allocation2 + $0x268] sm:$0xff]
  %v3806 = vld [vmem:[#allocation2 + $0x270] sm:$0xff]
  %v3807 = vld [vmem:[#allocation2 + $0x278] sm:$0xff]
  %v3808 = vld [vmem:[#allocation2 + $0x280] sm:$0xff]
  %v3809 = vld [vmem:[#allocation2 + $0x288] sm:$0xff]
  %v3810 = vld [vmem:[#allocation2 + $0x290] sm:$0xff]
  %v3811 = vld [vmem:[#allocation2 + $0x298] sm:$0xff]
  %v3812 = vld [vmem:[#allocation2 + $0x2a0] sm:$0xff]
  %v3813 = vld [vmem:[#allocation2 + $0x2a8] sm:$0xff]
  %v3814 = vld [vmem:[#allocation2 + $0x2b0] sm:$0xff]
  %v3815 = vld [vmem:[#allocation2 + $0x2b8] sm:$0xff]
  %v3816 = vld [vmem:[#allocation2 + $0x2c0] sm:$0xff]
  %v3817 = vld [vmem:[#allocation2 + $0x2c8] sm:$0xff]
  %v3818 = vld [vmem:[#allocation2 + $0x2d0] sm:$0xff]
  %v3819 = vld [vmem:[#allocation2 + $0x2d8] sm:$0xff]
  %v3820 = vld [vmem:[#allocation2 + $0x2e0] sm:$0xff]
  %v3821 = vld [vmem:[#allocation2 + $0x2e8] sm:$0xff]
  %v3822 = vld [vmem:[#allocation2 + $0x2f0] sm:$0xff]
  %v3823 = vld [vmem:[#allocation2 + $0x2f8] sm:$0xff]
  %v3824 = vld [vmem:[#allocation2 + $0x300] sm:$0xff]
  %v3825 = vld [vmem:[#allocation2 + $0x308] sm:$0xff]
  %v3826 = vld [vmem:[#allocation2 + $0x310] sm:$0xff]
  %v3827 = vld [vmem:[#allocation2 + $0x318] sm:$0xff]
  %3829 = vset.pattern.permute.xlu0 0
  %3830 = vperm.xlu0 %3829, %v3339
  %v3831 = vpop.permute.xlu0 %3830
  %v3834 = vsel %vm550, %v3337, 0
  %3836 = vmatprep.subr.mxu0 %v3729
  %3837 = vmatpush1.msra.mxu0 %v3728
  %3838 = vmatprep.subr.mxu0 %v3733
  %3839 = vmatpush1.msra.mxu0 %v3732
  %3840 = vmatprep.subr.mxu0 %v3737
  %3841 = vmatpush1.msra.mxu0 %v3736
  %3842 = vmatprep.subr.mxu0 %v3741
  %3843 = vmatpush1.msra.mxu0 %v3740
  %3844 = vmatprep.subr.mxu0 %v3745
  %3845 = vmatpush1.msra.mxu0 %v3744
  %3846 = vmatprep.subr.mxu0 %v3749
  %3847 = vmatpush1.msra.mxu0 %v3748
  %3848 = vmatprep.subr.mxu0 %v3753
  %3849 = vmatpush1.msra.mxu0 %v3752
  %3850 = vmatprep.subr.mxu0 %v3757
  %3851 = vmatpush1.msra.mxu0 %v3756
  %3852 = vmatprep.subr.mxu0 %v3761
  %3853 = vmatpush1.msra.mxu0 %v3760
  %3854 = vmatprep.subr.mxu0 %v3765
  %3855 = vmatpush1.msra.mxu0 %v3764
  %3856 = vmatprep.subr.mxu0 %v3769
  %3857 = vmatpush1.msra.mxu0 %v3768
  %3858 = vmatprep.subr.mxu0 %v3773
  %3859 = vmatpush1.msra.mxu0 %v3772
  %3860 = vmatprep.subr.mxu0 %v3777
  %3861 = vmatpush1.msra.mxu0 %v3776
  %3862 = vmatprep.subr.mxu0 %v3781
  %3863 = vmatpush1.msra.mxu0 %v3780
  %3864 = vmatprep.subr.mxu0 %v3785
  %3865 = vmatpush1.msra.mxu0 %v3784
  %3866 = vmatprep.subr.mxu0 %v3789
  %3867 = vmatpush1.msra.mxu0 %v3788
  %3868 = vmatprep.subr.mxu0 %v3793
  %3869 = vmatpush1.msra.mxu0 %v3792
  %3870 = vmatprep.subr.mxu0 %v3797
  %3871 = vmatpush1.msra.mxu0 %v3796
  %3872 = vmatprep.subr.mxu0 %v3801
  %3873 = vmatpush1.msra.mxu0 %v3800
  %3874 = vmatprep.subr.mxu0 %v3805
  %3875 = vmatpush1.msra.mxu0 %v3804
  %3876 = vmatprep.subr.mxu0 %v3809
  %3877 = vmatpush1.msra.mxu0 %v3808
  %3878 = vmatprep.subr.mxu0 %v3813
  %3879 = vmatpush1.msra.mxu0 %v3812
  %3880 = vmatprep.subr.mxu0 %v3817
  %3881 = vmatpush1.msra.mxu0 %v3816
  %3882 = vmatprep.subr.mxu0 %v3821
  %3883 = vmatpush1.msra.mxu0 %v3820
  %3884 = vmatprep.subr.mxu0 %v3825
  %3885 = vmatpush1.msra.mxu0 %v3824
  %3886 = vmatprep.subr.mxu0 0.0
  %3887 = vmatpush1.msra.mxu0 0.0
  %3888 = vmatprep.subr.mxu0 0.0
  %3889 = vmatpush1.msra.mxu0 0.0
  %3890 = vmatprep.subr.mxu0 0.0
  %3891 = vmatpush1.msra.mxu0 0.0
  %3892 = vmatprep.subr.mxu0 0.0
  %3893 = vmatpush1.msra.mxu0 0.0
  %3894 = vmatprep.subr.mxu0 0.0
  %3895 = vmatpush1.msra.mxu0 0.0
  %3896 = vmatprep.subr.mxu0 0.0
  %3897 = vmatpush1.msra.mxu0 0.0
  %3898 = vmatprep.subr.mxu0 0.0
  %3899 = vmatpush1.msra.mxu0 0.0
  %3900 = vmatprep.mubr.f32.mxu0 %v3834
  %3901 = vmatmul.mubr.f32.gmra.mrb[0].mxu0 %v3336
  %v3902 = vpop.f32.mrb[0].mxu0
  %v3903 = vadd.f32 %v3831, %v3902
  %v3904 = vpop.f32.mrb[0].mxu0
  %v3905 = vadd.f32 %v3831, %v3904
  %3906 = vdwg.mxu0
  %3907 = vmatprep.subr.mxu0 %v3731
  %3908 = vmatpush1.msra.mxu0 %v3730
  %3909 = vmatprep.subr.mxu0 %v3735
  %3910 = vmatpush1.msra.mxu0 %v3734
  %3911 = vmatprep.subr.mxu0 %v3739
  %3912 = vmatpush1.msra.mxu0 %v3738
  %3913 = vmatprep.subr.mxu0 %v3743
  %3914 = vmatpush1.msra.mxu0 %v3742
  %3915 = vmatprep.subr.mxu0 %v3747
  %3916 = vmatpush1.msra.mxu0 %v3746
  %3917 = vmatprep.subr.mxu0 %v3751
  %3918 = vmatpush1.msra.mxu0 %v3750
  %3919 = vmatprep.subr.mxu0 %v3755
  %3920 = vmatpush1.msra.mxu0 %v3754
  %3921 = vmatprep.subr.mxu0 %v3759
  %3922 = vmatpush1.msra.mxu0 %v3758
  %3923 = vmatprep.subr.mxu0 %v3763
  %3924 = vmatpush1.msra.mxu0 %v3762
  %3925 = vmatprep.subr.mxu0 %v3767
  %3926 = vmatpush1.msra.mxu0 %v3766
  %3927 = vmatprep.subr.mxu0 %v3771
  %3928 = vmatpush1.msra.mxu0 %v3770
  %3929 = vmatprep.subr.mxu0 %v3775
  %3930 = vmatpush1.msra.mxu0 %v3774
  %3931 = vmatprep.subr.mxu0 %v3779
  %3932 = vmatpush1.msra.mxu0 %v3778
  %3933 = vmatprep.subr.mxu0 %v3783
  %3934 = vmatpush1.msra.mxu0 %v3782
  %3935 = vmatprep.subr.mxu0 %v3787
  %3936 = vmatpush1.msra.mxu0 %v3786
  %3937 = vmatprep.subr.mxu0 %v3791
  %3938 = vmatpush1.msra.mxu0 %v3790
  %3939 = vmatprep.subr.mxu0 %v3795
  %3940 = vmatpush1.msra.mxu0 %v3794
  %3941 = vmatprep.subr.mxu0 %v3799
  %3942 = vmatpush1.msra.mxu0 %v3798
  %3943 = vmatprep.subr.mxu0 %v3803
  %3944 = vmatpush1.msra.mxu0 %v3802
  %3945 = vmatprep.subr.mxu0 %v3807
  %3946 = vmatpush1.msra.mxu0 %v3806
  %3947 = vmatprep.subr.mxu0 %v3811
  %3948 = vmatpush1.msra.mxu0 %v3810
  %3949 = vmatprep.subr.mxu0 %v3815
  %3950 = vmatpush1.msra.mxu0 %v3814
  %3951 = vmatprep.subr.mxu0 %v3819
  %3952 = vmatpush1.msra.mxu0 %v3818
  %3953 = vmatprep.subr.mxu0 %v3823
  %3954 = vmatpush1.msra.mxu0 %v3822
  %3955 = vmatprep.subr.mxu0 %v3827
  %3956 = vmatpush1.msra.mxu0 %v3826
  %3957 = vmatprep.subr.mxu0 0.0
  %3958 = vmatpush1.msra.mxu0 0.0
  %3959 = vmatprep.subr.mxu0 0.0
  %3960 = vmatpush1.msra.mxu0 0.0
  %3961 = vmatprep.subr.mxu0 0.0
  %3962 = vmatpush1.msra.mxu0 0.0
  %3963 = vmatprep.subr.mxu0 0.0
  %3964 = vmatpush1.msra.mxu0 0.0
  %3965 = vmatprep.subr.mxu0 0.0
  %3966 = vmatpush1.msra.mxu0 0.0
  %3967 = vmatprep.subr.mxu0 0.0
  %3968 = vmatpush1.msra.mxu0 0.0
  %3969 = vmatprep.subr.mxu0 0.0
  %3970 = vmatpush1.msra.mxu0 0.0
  %3971 = vmatprep.mubr.f32.mxu0 %v3834
  %3972 = vmatmul.mubr.f32.gmra.mrb[0].mxu0 %v3336
  %v3973 = vpop.f32.mrb[0].mxu0
  %v3974 = vadd.f32 %v3831, %v3973
  %v3975 = vpop.f32.mrb[0].mxu0
  %v3976 = vadd.f32 %v3831, %v3975
  %3977 = vdwg.mxu0
  %v3978 = vmax.f32 %v3903, 0.0
  %v3979 = vmax.f32 %v3905, 0.0
  %v3980 = vmax.f32 %v3974, 0.0
  %v3981 = vmax.f32 %v3976, 0.0
  %v3982 = vmul.f32 %v3978, %v704
  %v3983 = vmul.f32 %v3979, %v708
  %v3984 = vmul.f32 %v3980, %v712
  %v3985 = vmul.f32 %v3981, %v716
  %v3986 = vadd.f32 %v3982, %v2680
  %v3987 = vadd.f32 %v3983, %v2681
  %v3988 = vadd.f32 %v3984, %v2682
  %v3989 = vadd.f32 %v3985, %v2683
  %s3990 = scalar_lea.vmem %s2, 48
  %v3991 = vld [vmem:[%s3990] sm:$0xff]
  %v3992 = vld [vmem:[%s3990 + $0x8] sm:$0xff]
  %s3993 = scalar_lea.vmem %s3, 24
  %v3994 = vld [vmem:[%s3993] sm:$0xff]
  %3995 = vrot.lane.b32.xlu0 %v3986, 42
  %v3996 = vpop.permute.xlu0 %3995
  %3997 = vrot.lane.b32.xlu0 %v3987, 42
  %v3998 = vpop.permute.xlu0 %3997
  %3999 = vrot.lane.b32.xlu0 %v3988, 42
  %v4000 = vpop.permute.xlu0 %3999
  %4001 = vrot.lane.b32.xlu0 %v3989, 42
  %v4002 = vpop.permute.xlu0 %4001
  %v4003 = vsel %vm41, %v4000, %v4002
  %v4004 = vsel %vm41, %v3998, %v4000
  %v4005 = vsel %vm41, %v3996, %v3998
  %v4006 = vsel %vm41, %v4002, %v3996
  %4007 = vst [vmem:[#allocation2] sm:$0xff] %v4006
  %4008 = vst [vmem:[#allocation2 + $0x8] sm:$0xff] %v4005
  %4009 = vst [vmem:[#allocation2 + $0x10] sm:$0xff] %v4004
  %4010 = vst [vmem:[#allocation2 + $0x18] sm:$0xff] %v4003
  %4011 = vrot.lane.b32.xlu0 %v3986, 41
  %v4012 = vpop.permute.xlu0 %4011
  %4013 = vrot.lane.b32.xlu0 %v3987, 41
  %v4014 = vpop.permute.xlu0 %4013
  %4015 = vrot.lane.b32.xlu0 %v3988, 41
  %v4016 = vpop.permute.xlu0 %4015
  %4017 = vrot.lane.b32.xlu0 %v3989, 41
  %v4018 = vpop.permute.xlu0 %4017
  %v4019 = vsel %vm58, %v4016, %v4018
  %v4020 = vsel %vm58, %v4014, %v4016
  %v4021 = vsel %vm58, %v4012, %v4014
  %v4022 = vsel %vm58, %v4018, %v4012
  %4023 = vst [vmem:[#allocation2 + $0x20] sm:$0xff] %v4022
  %4024 = vst [vmem:[#allocation2 + $0x28] sm:$0xff] %v4021
  %4025 = vst [vmem:[#allocation2 + $0x30] sm:$0xff] %v4020
  %4026 = vst [vmem:[#allocation2 + $0x38] sm:$0xff] %v4019
  %4027 = vrot.lane.b32.xlu0 %v3986, 40
  %v4028 = vpop.permute.xlu0 %4027
  %4029 = vrot.lane.b32.xlu0 %v3987, 40
  %v4030 = vpop.permute.xlu0 %4029
  %4031 = vrot.lane.b32.xlu0 %v3988, 40
  %v4032 = vpop.permute.xlu0 %4031
  %4033 = vrot.lane.b32.xlu0 %v3989, 40
  %v4034 = vpop.permute.xlu0 %4033
  %v4035 = vsel %vm75, %v4032, %v4034
  %v4036 = vsel %vm75, %v4030, %v4032
  %v4037 = vsel %vm75, %v4028, %v4030
  %v4038 = vsel %vm75, %v4034, %v4028
  %4039 = vst [vmem:[#allocation2 + $0x40] sm:$0xff] %v4038
  %4040 = vst [vmem:[#allocation2 + $0x48] sm:$0xff] %v4037
  %4041 = vst [vmem:[#allocation2 + $0x50] sm:$0xff] %v4036
  %4042 = vst [vmem:[#allocation2 + $0x58] sm:$0xff] %v4035
  %4043 = vrot.lane.b32.xlu0 %v3986, 39
  %v4044 = vpop.permute.xlu0 %4043
  %4045 = vrot.lane.b32.xlu0 %v3987, 39
  %v4046 = vpop.permute.xlu0 %4045
  %4047 = vrot.lane.b32.xlu0 %v3988, 39
  %v4048 = vpop.permute.xlu0 %4047
  %4049 = vrot.lane.b32.xlu0 %v3989, 39
  %v4050 = vpop.permute.xlu0 %4049
  %v4051 = vsel %vm92, %v4048, %v4050
  %v4052 = vsel %vm92, %v4046, %v4048
  %v4053 = vsel %vm92, %v4044, %v4046
  %v4054 = vsel %vm92, %v4050, %v4044
  %4055 = vst [vmem:[#allocation2 + $0x60] sm:$0xff] %v4054
  %4056 = vst [vmem:[#allocation2 + $0x68] sm:$0xff] %v4053
  %4057 = vst [vmem:[#allocation2 + $0x70] sm:$0xff] %v4052
  %4058 = vst [vmem:[#allocation2 + $0x78] sm:$0xff] %v4051
  %4059 = vrot.lane.b32.xlu0 %v3986, 38
  %v4060 = vpop.permute.xlu0 %4059
  %4061 = vrot.lane.b32.xlu0 %v3987, 38
  %v4062 = vpop.permute.xlu0 %4061
  %4063 = vrot.lane.b32.xlu0 %v3988, 38
  %v4064 = vpop.permute.xlu0 %4063
  %4065 = vrot.lane.b32.xlu0 %v3989, 38
  %v4066 = vpop.permute.xlu0 %4065
  %v4067 = vsel %vm109, %v4064, %v4066
  %v4068 = vsel %vm109, %v4062, %v4064
  %v4069 = vsel %vm109, %v4060, %v4062
  %v4070 = vsel %vm109, %v4066, %v4060
  %4071 = vst [vmem:[#allocation2 + $0x80] sm:$0xff] %v4070
  %4072 = vst [vmem:[#allocation2 + $0x88] sm:$0xff] %v4069
  %4073 = vst [vmem:[#allocation2 + $0x90] sm:$0xff] %v4068
  %4074 = vst [vmem:[#allocation2 + $0x98] sm:$0xff] %v4067
  %4075 = vrot.lane.b32.xlu0 %v3986, 22
  %v4076 = vpop.permute.xlu0 %4075
  %4077 = vrot.lane.b32.xlu0 %v3987, 22
  %v4078 = vpop.permute.xlu0 %4077
  %4079 = vrot.lane.b32.xlu0 %v3988, 22
  %v4080 = vpop.permute.xlu0 %4079
  %4081 = vrot.lane.b32.xlu0 %v3989, 22
  %v4082 = vpop.permute.xlu0 %4081
  %v4083 = vsel %vm126, %v4080, %v4082
  %v4084 = vsel %vm126, %v4078, %v4080
  %v4085 = vsel %vm126, %v4076, %v4078
  %v4086 = vsel %vm126, %v4082, %v4076
  %4087 = vst [vmem:[#allocation2 + $0xa0] sm:$0xff] %v4086
  %4088 = vst [vmem:[#allocation2 + $0xa8] sm:$0xff] %v4085
  %4089 = vst [vmem:[#allocation2 + $0xb0] sm:$0xff] %v4084
  %4090 = vst [vmem:[#allocation2 + $0xb8] sm:$0xff] %v4083
  %4091 = vrot.lane.b32.xlu0 %v3986, 21
  %v4092 = vpop.permute.xlu0 %4091
  %4093 = vrot.lane.b32.xlu0 %v3987, 21
  %v4094 = vpop.permute.xlu0 %4093
  %4095 = vrot.lane.b32.xlu0 %v3988, 21
  %v4096 = vpop.permute.xlu0 %4095
  %4097 = vrot.lane.b32.xlu0 %v3989, 21
  %v4098 = vpop.permute.xlu0 %4097
  %v4099 = vsel %vm143, %v4096, %v4098
  %v4100 = vsel %vm143, %v4094, %v4096
  %v4101 = vsel %vm143, %v4092, %v4094
  %v4102 = vsel %vm143, %v4098, %v4092
  %4103 = vst [vmem:[#allocation2 + $0xc0] sm:$0xff] %v4102
  %4104 = vst [vmem:[#allocation2 + $0xc8] sm:$0xff] %v4101
  %4105 = vst [vmem:[#allocation2 + $0xd0] sm:$0xff] %v4100
  %4106 = vst [vmem:[#allocation2 + $0xd8] sm:$0xff] %v4099
  %4107 = vrot.lane.b32.xlu0 %v3986, 20
  %v4108 = vpop.permute.xlu0 %4107
  %4109 = vrot.lane.b32.xlu0 %v3987, 20
  %v4110 = vpop.permute.xlu0 %4109
  %4111 = vrot.lane.b32.xlu0 %v3988, 20
  %v4112 = vpop.permute.xlu0 %4111
  %4113 = vrot.lane.b32.xlu0 %v3989, 20
  %v4114 = vpop.permute.xlu0 %4113
  %v4115 = vsel %vm160, %v4112, %v4114
  %v4116 = vsel %vm160, %v4110, %v4112
  %v4117 = vsel %vm160, %v4108, %v4110
  %v4118 = vsel %vm160, %v4114, %v4108
  %4119 = vst [vmem:[#allocation2 + $0xe0] sm:$0xff] %v4118
  %4120 = vst [vmem:[#allocation2 + $0xe8] sm:$0xff] %v4117
  %4121 = vst [vmem:[#allocation2 + $0xf0] sm:$0xff] %v4116
  %4122 = vst [vmem:[#allocation2 + $0xf8] sm:$0xff] %v4115
  %4123 = vrot.lane.b32.xlu0 %v3986, 19
  %v4124 = vpop.permute.xlu0 %4123
  %4125 = vrot.lane.b32.xlu0 %v3987, 19
  %v4126 = vpop.permute.xlu0 %4125
  %4127 = vrot.lane.b32.xlu0 %v3988, 19
  %v4128 = vpop.permute.xlu0 %4127
  %4129 = vrot.lane.b32.xlu0 %v3989, 19
  %v4130 = vpop.permute.xlu0 %4129
  %v4131 = vsel %vm177, %v4128, %v4130
  %v4132 = vsel %vm177, %v4126, %v4128
  %v4133 = vsel %vm177, %v4124, %v4126
  %v4134 = vsel %vm177, %v4130, %v4124
  %4135 = vst [vmem:[#allocation2 + $0x100] sm:$0xff] %v4134
  %4136 = vst [vmem:[#allocation2 + $0x108] sm:$0xff] %v4133
  %4137 = vst [vmem:[#allocation2 + $0x110] sm:$0xff] %v4132
  %4138 = vst [vmem:[#allocation2 + $0x118] sm:$0xff] %v4131
  %4139 = vrot.lane.b32.xlu0 %v3986, 18
  %v4140 = vpop.permute.xlu0 %4139
  %4141 = vrot.lane.b32.xlu0 %v3987, 18
  %v4142 = vpop.permute.xlu0 %4141
  %4143 = vrot.lane.b32.xlu0 %v3988, 18
  %v4144 = vpop.permute.xlu0 %4143
  %4145 = vrot.lane.b32.xlu0 %v3989, 18
  %v4146 = vpop.permute.xlu0 %4145
  %v4147 = vsel %vm194, %v4144, %v4146
  %v4148 = vsel %vm194, %v4142, %v4144
  %v4149 = vsel %vm194, %v4140, %v4142
  %v4150 = vsel %vm194, %v4146, %v4140
  %4151 = vst [vmem:[#allocation2 + $0x120] sm:$0xff] %v4150
  %4152 = vst [vmem:[#allocation2 + $0x128] sm:$0xff] %v4149
  %4153 = vst [vmem:[#allocation2 + $0x130] sm:$0xff] %v4148
  %4154 = vst [vmem:[#allocation2 + $0x138] sm:$0xff] %v4147
  %4155 = vrot.lane.b32.xlu0 %v3986, 2
  %v4156 = vpop.permute.xlu0 %4155
  %4157 = vrot.lane.b32.xlu0 %v3987, 2
  %v4158 = vpop.permute.xlu0 %4157
  %4159 = vrot.lane.b32.xlu0 %v3988, 2
  %v4160 = vpop.permute.xlu0 %4159
  %4161 = vrot.lane.b32.xlu0 %v3989, 2
  %v4162 = vpop.permute.xlu0 %4161
  %v4163 = vsel %vm211, %v4160, %v4162
  %v4164 = vsel %vm211, %v4158, %v4160
  %v4165 = vsel %vm211, %v4156, %v4158
  %v4166 = vsel %vm211, %v4162, %v4156
  %4167 = vst [vmem:[#allocation2 + $0x140] sm:$0xff] %v4166
  %4168 = vst [vmem:[#allocation2 + $0x148] sm:$0xff] %v4165
  %4169 = vst [vmem:[#allocation2 + $0x150] sm:$0xff] %v4164
  %4170 = vst [vmem:[#allocation2 + $0x158] sm:$0xff] %v4163
  %4171 = vrot.lane.b32.xlu0 %v3986, 1
  %v4172 = vpop.permute.xlu0 %4171
  %4173 = vrot.lane.b32.xlu0 %v3987, 1
  %v4174 = vpop.permute.xlu0 %4173
  %4175 = vrot.lane.b32.xlu0 %v3988, 1
  %v4176 = vpop.permute.xlu0 %4175
  %4177 = vrot.lane.b32.xlu0 %v3989, 1
  %v4178 = vpop.permute.xlu0 %4177
  %v4179 = vsel %vm228, %v4176, %v4178
  %v4180 = vsel %vm228, %v4174, %v4176
  %v4181 = vsel %vm228, %v4172, %v4174
  %v4182 = vsel %vm228, %v4178, %v4172
  %4183 = vst [vmem:[#allocation2 + $0x160] sm:$0xff] %v4182
  %4184 = vst [vmem:[#allocation2 + $0x168] sm:$0xff] %v4181
  %4185 = vst [vmem:[#allocation2 + $0x170] sm:$0xff] %v4180
  %4186 = vst [vmem:[#allocation2 + $0x178] sm:$0xff] %v4179
  %4187 = vst [vmem:[#allocation2 + $0x180] sm:$0xff] %v3986
  %4188 = vst [vmem:[#allocation2 + $0x188] sm:$0xff] %v3987
  %4189 = vst [vmem:[#allocation2 + $0x190] sm:$0xff] %v3988
  %4190 = vst [vmem:[#allocation2 + $0x198] sm:$0xff] %v3989
  %4191 = vrot.lane.b32.xlu0 %v3986, 127
  %v4192 = vpop.permute.xlu0 %4191
  %4193 = vrot.lane.b32.xlu0 %v3987, 127
  %v4194 = vpop.permute.xlu0 %4193
  %4195 = vrot.lane.b32.xlu0 %v3988, 127
  %v4196 = vpop.permute.xlu0 %4195
  %4197 = vrot.lane.b32.xlu0 %v3989, 127
  %v4198 = vpop.permute.xlu0 %4197
  %v4199 = vsel %vm249, %v4196, %v4198
  %v4200 = vsel %vm249, %v4194, %v4196
  %v4201 = vsel %vm249, %v4192, %v4194
  %v4202 = vsel %vm249, %v4198, %v4192
  %4203 = vst [vmem:[#allocation2 + $0x1a0] sm:$0xff] %v4201
  %4204 = vst [vmem:[#allocation2 + $0x1a8] sm:$0xff] %v4200
  %4205 = vst [vmem:[#allocation2 + $0x1b0] sm:$0xff] %v4199
  %4206 = vst [vmem:[#allocation2 + $0x1b8] sm:$0xff] %v4202
  %4207 = vrot.lane.b32.xlu0 %v3986, 126
  %v4208 = vpop.permute.xlu0 %4207
  %4209 = vrot.lane.b32.xlu0 %v3987, 126
  %v4210 = vpop.permute.xlu0 %4209
  %4211 = vrot.lane.b32.xlu0 %v3988, 126
  %v4212 = vpop.permute.xlu0 %4211
  %4213 = vrot.lane.b32.xlu0 %v3989, 126
  %v4214 = vpop.permute.xlu0 %4213
  %v4215 = vsel %vm266, %v4212, %v4214
  %v4216 = vsel %vm266, %v4210, %v4212
  %v4217 = vsel %vm266, %v4208, %v4210
  %v4218 = vsel %vm266, %v4214, %v4208
  %4219 = vst [vmem:[#allocation2 + $0x1c0] sm:$0xff] %v4217
  %4220 = vst [vmem:[#allocation2 + $0x1c8] sm:$0xff] %v4216
  %4221 = vst [vmem:[#allocation2 + $0x1d0] sm:$0xff] %v4215
  %4222 = vst [vmem:[#allocation2 + $0x1d8] sm:$0xff] %v4218
  %4223 = vrot.lane.b32.xlu0 %v3986, 110
  %v4224 = vpop.permute.xlu0 %4223
  %4225 = vrot.lane.b32.xlu0 %v3987, 110
  %v4226 = vpop.permute.xlu0 %4225
  %4227 = vrot.lane.b32.xlu0 %v3988, 110
  %v4228 = vpop.permute.xlu0 %4227
  %4229 = vrot.lane.b32.xlu0 %v3989, 110
  %v4230 = vpop.permute.xlu0 %4229
  %v4231 = vsel %vm283, %v4228, %v4230
  %v4232 = vsel %vm283, %v4226, %v4228
  %v4233 = vsel %vm283, %v4224, %v4226
  %v4234 = vsel %vm283, %v4230, %v4224
  %4235 = vst [vmem:[#allocation2 + $0x1e0] sm:$0xff] %v4233
  %4236 = vst [vmem:[#allocation2 + $0x1e8] sm:$0xff] %v4232
  %4237 = vst [vmem:[#allocation2 + $0x1f0] sm:$0xff] %v4231
  %4238 = vst [vmem:[#allocation2 + $0x1f8] sm:$0xff] %v4234
  %4239 = vrot.lane.b32.xlu0 %v3986, 109
  %v4240 = vpop.permute.xlu0 %4239
  %4241 = vrot.lane.b32.xlu0 %v3987, 109
  %v4242 = vpop.permute.xlu0 %4241
  %4243 = vrot.lane.b32.xlu0 %v3988, 109
  %v4244 = vpop.permute.xlu0 %4243
  %4245 = vrot.lane.b32.xlu0 %v3989, 109
  %v4246 = vpop.permute.xlu0 %4245
  %v4247 = vsel %vm300, %v4244, %v4246
  %v4248 = vsel %vm300, %v4242, %v4244
  %v4249 = vsel %vm300, %v4240, %v4242
  %v4250 = vsel %vm300, %v4246, %v4240
  %4251 = vst [vmem:[#allocation2 + $0x200] sm:$0xff] %v4249
  %4252 = vst [vmem:[#allocation2 + $0x208] sm:$0xff] %v4248
  %4253 = vst [vmem:[#allocation2 + $0x210] sm:$0xff] %v4247
  %4254 = vst [vmem:[#allocation2 + $0x218] sm:$0xff] %v4250
  %4255 = vrot.lane.b32.xlu0 %v3986, 108
  %v4256 = vpop.permute.xlu0 %4255
  %4257 = vrot.lane.b32.xlu0 %v3987, 108
  %v4258 = vpop.permute.xlu0 %4257
  %4259 = vrot.lane.b32.xlu0 %v3988, 108
  %v4260 = vpop.permute.xlu0 %4259
  %4261 = vrot.lane.b32.xlu0 %v3989, 108
  %v4262 = vpop.permute.xlu0 %4261
  %v4263 = vsel %vm317, %v4260, %v4262
  %v4264 = vsel %vm317, %v4258, %v4260
  %v4265 = vsel %vm317, %v4256, %v4258
  %v4266 = vsel %vm317, %v4262, %v4256
  %4267 = vst [vmem:[#allocation2 + $0x220] sm:$0xff] %v4265
  %4268 = vst [vmem:[#allocation2 + $0x228] sm:$0xff] %v4264
  %4269 = vst [vmem:[#allocation2 + $0x230] sm:$0xff] %v4263
  %4270 = vst [vmem:[#allocation2 + $0x238] sm:$0xff] %v4266
  %4271 = vrot.lane.b32.xlu0 %v3986, 107
  %v4272 = vpop.permute.xlu0 %4271
  %4273 = vrot.lane.b32.xlu0 %v3987, 107
  %v4274 = vpop.permute.xlu0 %4273
  %4275 = vrot.lane.b32.xlu0 %v3988, 107
  %v4276 = vpop.permute.xlu0 %4275
  %4277 = vrot.lane.b32.xlu0 %v3989, 107
  %v4278 = vpop.permute.xlu0 %4277
  %v4279 = vsel %vm334, %v4276, %v4278
  %v4280 = vsel %vm334, %v4274, %v4276
  %v4281 = vsel %vm334, %v4272, %v4274
  %v4282 = vsel %vm334, %v4278, %v4272
  %4283 = vst [vmem:[#allocation2 + $0x240] sm:$0xff] %v4281
  %4284 = vst [vmem:[#allocation2 + $0x248] sm:$0xff] %v4280
  %4285 = vst [vmem:[#allocation2 + $0x250] sm:$0xff] %v4279
  %4286 = vst [vmem:[#allocation2 + $0x258] sm:$0xff] %v4282
  %4287 = vrot.lane.b32.xlu0 %v3986, 106
  %v4288 = vpop.permute.xlu0 %4287
  %4289 = vrot.lane.b32.xlu0 %v3987, 106
  %v4290 = vpop.permute.xlu0 %4289
  %4291 = vrot.lane.b32.xlu0 %v3988, 106
  %v4292 = vpop.permute.xlu0 %4291
  %4293 = vrot.lane.b32.xlu0 %v3989, 106
  %v4294 = vpop.permute.xlu0 %4293
  %v4295 = vsel %vm351, %v4292, %v4294
  %v4296 = vsel %vm351, %v4290, %v4292
  %v4297 = vsel %vm351, %v4288, %v4290
  %v4298 = vsel %vm351, %v4294, %v4288
  %4299 = vst [vmem:[#allocation2 + $0x260] sm:$0xff] %v4297
  %4300 = vst [vmem:[#allocation2 + $0x268] sm:$0xff] %v4296
  %4301 = vst [vmem:[#allocation2 + $0x270] sm:$0xff] %v4295
  %4302 = vst [vmem:[#allocation2 + $0x278] sm:$0xff] %v4298
  %4303 = vrot.lane.b32.xlu0 %v3986, 90
  %v4304 = vpop.permute.xlu0 %4303
  %4305 = vrot.lane.b32.xlu0 %v3987, 90
  %v4306 = vpop.permute.xlu0 %4305
  %4307 = vrot.lane.b32.xlu0 %v3988, 90
  %v4308 = vpop.permute.xlu0 %4307
  %4309 = vrot.lane.b32.xlu0 %v3989, 90
  %v4310 = vpop.permute.xlu0 %4309
  %v4311 = vsel %vm368, %v4308, %v4310
  %v4312 = vsel %vm368, %v4306, %v4308
  %v4313 = vsel %vm368, %v4304, %v4306
  %v4314 = vsel %vm368, %v4310, %v4304
  %4315 = vst [vmem:[#allocation2 + $0x280] sm:$0xff] %v4313
  %4316 = vst [vmem:[#allocation2 + $0x288] sm:$0xff] %v4312
  %4317 = vst [vmem:[#allocation2 + $0x290] sm:$0xff] %v4311
  %4318 = vst [vmem:[#allocation2 + $0x298] sm:$0xff] %v4314
  %4319 = vrot.lane.b32.xlu0 %v3986, 89
  %v4320 = vpop.permute.xlu0 %4319
  %4321 = vrot.lane.b32.xlu0 %v3987, 89
  %v4322 = vpop.permute.xlu0 %4321
  %4323 = vrot.lane.b32.xlu0 %v3988, 89
  %v4324 = vpop.permute.xlu0 %4323
  %4325 = vrot.lane.b32.xlu0 %v3989, 89
  %v4326 = vpop.permute.xlu0 %4325
  %v4327 = vsel %vm385, %v4324, %v4326
  %v4328 = vsel %vm385, %v4322, %v4324
  %v4329 = vsel %vm385, %v4320, %v4322
  %v4330 = vsel %vm385, %v4326, %v4320
  %4331 = vst [vmem:[#allocation2 + $0x2a0] sm:$0xff] %v4329
  %4332 = vst [vmem:[#allocation2 + $0x2a8] sm:$0xff] %v4328
  %4333 = vst [vmem:[#allocation2 + $0x2b0] sm:$0xff] %v4327
  %4334 = vst [vmem:[#allocation2 + $0x2b8] sm:$0xff] %v4330
  %4335 = vrot.lane.b32.xlu0 %v3986, 88
  %v4336 = vpop.permute.xlu0 %4335
  %4337 = vrot.lane.b32.xlu0 %v3987, 88
  %v4338 = vpop.permute.xlu0 %4337
  %4339 = vrot.lane.b32.xlu0 %v3988, 88
  %v4340 = vpop.permute.xlu0 %4339
  %4341 = vrot.lane.b32.xlu0 %v3989, 88
  %v4342 = vpop.permute.xlu0 %4341
  %v4343 = vsel %vm402, %v4340, %v4342
  %v4344 = vsel %vm402, %v4338, %v4340
  %v4345 = vsel %vm402, %v4336, %v4338
  %v4346 = vsel %vm402, %v4342, %v4336
  %4347 = vst [vmem:[#allocation2 + $0x2c0] sm:$0xff] %v4345
  %4348 = vst [vmem:[#allocation2 + $0x2c8] sm:$0xff] %v4344
  %4349 = vst [vmem:[#allocation2 + $0x2d0] sm:$0xff] %v4343
  %4350 = vst [vmem:[#allocation2 + $0x2d8] sm:$0xff] %v4346
  %4351 = vrot.lane.b32.xlu0 %v3986, 87
  %v4352 = vpop.permute.xlu0 %4351
  %4353 = vrot.lane.b32.xlu0 %v3987, 87
  %v4354 = vpop.permute.xlu0 %4353
  %4355 = vrot.lane.b32.xlu0 %v3988, 87
  %v4356 = vpop.permute.xlu0 %4355
  %4357 = vrot.lane.b32.xlu0 %v3989, 87
  %v4358 = vpop.permute.xlu0 %4357
  %v4359 = vsel %vm419, %v4356, %v4358
  %v4360 = vsel %vm419, %v4354, %v4356
  %v4361 = vsel %vm419, %v4352, %v4354
  %v4362 = vsel %vm419, %v4358, %v4352
  %4363 = vst [vmem:[#allocation2 + $0x2e0] sm:$0xff] %v4361
  %4364 = vst [vmem:[#allocation2 + $0x2e8] sm:$0xff] %v4360
  %4365 = vst [vmem:[#allocation2 + $0x2f0] sm:$0xff] %v4359
  %4366 = vst [vmem:[#allocation2 + $0x2f8] sm:$0xff] %v4362
  %4367 = vrot.lane.b32.xlu0 %v3986, 86
  %v4368 = vpop.permute.xlu0 %4367
  %4369 = vrot.lane.b32.xlu0 %v3987, 86
  %v4370 = vpop.permute.xlu0 %4369
  %4371 = vrot.lane.b32.xlu0 %v3988, 86
  %v4372 = vpop.permute.xlu0 %4371
  %4373 = vrot.lane.b32.xlu0 %v3989, 86
  %v4374 = vpop.permute.xlu0 %4373
  %v4375 = vsel %vm436, %v4372, %v4374
  %v4376 = vsel %vm436, %v4370, %v4372
  %v4377 = vsel %vm436, %v4368, %v4370
  %v4378 = vsel %vm436, %v4374, %v4368
  %4379 = vst [vmem:[#allocation2 + $0x300] sm:$0xff] %v4377
  %4380 = vst [vmem:[#allocation2 + $0x308] sm:$0xff] %v4376
  %4381 = vst [vmem:[#allocation2 + $0x310] sm:$0xff] %v4375
  %4382 = vst [vmem:[#allocation2 + $0x318] sm:$0xff] %v4378
  %v4383 = vld [vmem:[#allocation2] sm:$0xff]
  %v4384 = vld [vmem:[#allocation2 + $0x8] sm:$0xff]
  %v4385 = vld [vmem:[#allocation2 + $0x10] sm:$0xff]
  %v4386 = vld [vmem:[#allocation2 + $0x18] sm:$0xff]
  %v4387 = vld [vmem:[#allocation2 + $0x20] sm:$0xff]
  %v4388 = vld [vmem:[#allocation2 + $0x28] sm:$0xff]
  %v4389 = vld [vmem:[#allocation2 + $0x30] sm:$0xff]
  %v4390 = vld [vmem:[#allocation2 + $0x38] sm:$0xff]
  %v4391 = vld [vmem:[#allocation2 + $0x40] sm:$0xff]
  %v4392 = vld [vmem:[#allocation2 + $0x48] sm:$0xff]
  %v4393 = vld [vmem:[#allocation2 + $0x50] sm:$0xff]
  %v4394 = vld [vmem:[#allocation2 + $0x58] sm:$0xff]
  %v4395 = vld [vmem:[#allocation2 + $0x60] sm:$0xff]
  %v4396 = vld [vmem:[#allocation2 + $0x68] sm:$0xff]
  %v4397 = vld [vmem:[#allocation2 + $0x70] sm:$0xff]
  %v4398 = vld [vmem:[#allocation2 + $0x78] sm:$0xff]
  %v4399 = vld [vmem:[#allocation2 + $0x80] sm:$0xff]
  %v4400 = vld [vmem:[#allocation2 + $0x88] sm:$0xff]
  %v4401 = vld [vmem:[#allocation2 + $0x90] sm:$0xff]
  %v4402 = vld [vmem:[#allocation2 + $0x98] sm:$0xff]
  %v4403 = vld [vmem:[#allocation2 + $0xa0] sm:$0xff]
  %v4404 = vld [vmem:[#allocation2 + $0xa8] sm:$0xff]
  %v4405 = vld [vmem:[#allocation2 + $0xb0] sm:$0xff]
  %v4406 = vld [vmem:[#allocation2 + $0xb8] sm:$0xff]
  %v4407 = vld [vmem:[#allocation2 + $0xc0] sm:$0xff]
  %v4408 = vld [vmem:[#allocation2 + $0xc8] sm:$0xff]
  %v4409 = vld [vmem:[#allocation2 + $0xd0] sm:$0xff]
  %v4410 = vld [vmem:[#allocation2 + $0xd8] sm:$0xff]
  %v4411 = vld [vmem:[#allocation2 + $0xe0] sm:$0xff]
  %v4412 = vld [vmem:[#allocation2 + $0xe8] sm:$0xff]
  %v4413 = vld [vmem:[#allocation2 + $0xf0] sm:$0xff]
  %v4414 = vld [vmem:[#allocation2 + $0xf8] sm:$0xff]
  %v4415 = vld [vmem:[#allocation2 + $0x100] sm:$0xff]
  %v4416 = vld [vmem:[#allocation2 + $0x108] sm:$0xff]
  %v4417 = vld [vmem:[#allocation2 + $0x110] sm:$0xff]
  %v4418 = vld [vmem:[#allocation2 + $0x118] sm:$0xff]
  %v4419 = vld [vmem:[#allocation2 + $0x120] sm:$0xff]
  %v4420 = vld [vmem:[#allocation2 + $0x128] sm:$0xff]
  %v4421 = vld [vmem:[#allocation2 + $0x130] sm:$0xff]
  %v4422 = vld [vmem:[#allocation2 + $0x138] sm:$0xff]
  %v4423 = vld [vmem:[#allocation2 + $0x140] sm:$0xff]
  %v4424 = vld [vmem:[#allocation2 + $0x148] sm:$0xff]
  %v4425 = vld [vmem:[#allocation2 + $0x150] sm:$0xff]
  %v4426 = vld [vmem:[#allocation2 + $0x158] sm:$0xff]
  %v4427 = vld [vmem:[#allocation2 + $0x160] sm:$0xff]
  %v4428 = vld [vmem:[#allocation2 + $0x168] sm:$0xff]
  %v4429 = vld [vmem:[#allocation2 + $0x170] sm:$0xff]
  %v4430 = vld [vmem:[#allocation2 + $0x178] sm:$0xff]
  %v4431 = vld [vmem:[#allocation2 + $0x180] sm:$0xff]
  %v4432 = vld [vmem:[#allocation2 + $0x188] sm:$0xff]
  %v4433 = vld [vmem:[#allocation2 + $0x190] sm:$0xff]
  %v4434 = vld [vmem:[#allocation2 + $0x198] sm:$0xff]
  %v4435 = vld [vmem:[#allocation2 + $0x1a0] sm:$0xff]
  %v4436 = vld [vmem:[#allocation2 + $0x1a8] sm:$0xff]
  %v4437 = vld [vmem:[#allocation2 + $0x1b0] sm:$0xff]
  %v4438 = vld [vmem:[#allocation2 + $0x1b8] sm:$0xff]
  %v4439 = vld [vmem:[#allocation2 + $0x1c0] sm:$0xff]
  %v4440 = vld [vmem:[#allocation2 + $0x1c8] sm:$0xff]
  %v4441 = vld [vmem:[#allocation2 + $0x1d0] sm:$0xff]
  %v4442 = vld [vmem:[#allocation2 + $0x1d8] sm:$0xff]
  %v4443 = vld [vmem:[#allocation2 + $0x1e0] sm:$0xff]
  %v4444 = vld [vmem:[#allocation2 + $0x1e8] sm:$0xff]
  %v4445 = vld [vmem:[#allocation2 + $0x1f0] sm:$0xff]
  %v4446 = vld [vmem:[#allocation2 + $0x1f8] sm:$0xff]
  %v4447 = vld [vmem:[#allocation2 + $0x200] sm:$0xff]
  %v4448 = vld [vmem:[#allocation2 + $0x208] sm:$0xff]
  %v4449 = vld [vmem:[#allocation2 + $0x210] sm:$0xff]
  %v4450 = vld [vmem:[#allocation2 + $0x218] sm:$0xff]
  %v4451 = vld [vmem:[#allocation2 + $0x220] sm:$0xff]
  %v4452 = vld [vmem:[#allocation2 + $0x228] sm:$0xff]
  %v4453 = vld [vmem:[#allocation2 + $0x230] sm:$0xff]
  %v4454 = vld [vmem:[#allocation2 + $0x238] sm:$0xff]
  %v4455 = vld [vmem:[#allocation2 + $0x240] sm:$0xff]
  %v4456 = vld [vmem:[#allocation2 + $0x248] sm:$0xff]
  %v4457 = vld [vmem:[#allocation2 + $0x250] sm:$0xff]
  %v4458 = vld [vmem:[#allocation2 + $0x258] sm:$0xff]
  %v4459 = vld [vmem:[#allocation2 + $0x260] sm:$0xff]
  %v4460 = vld [vmem:[#allocation2 + $0x268] sm:$0xff]
  %v4461 = vld [vmem:[#allocation2 + $0x270] sm:$0xff]
  %v4462 = vld [vmem:[#allocation2 + $0x278] sm:$0xff]
  %v4463 = vld [vmem:[#allocation2 + $0x280] sm:$0xff]
  %v4464 = vld [vmem:[#allocation2 + $0x288] sm:$0xff]
  %v4465 = vld [vmem:[#allocation2 + $0x290] sm:$0xff]
  %v4466 = vld [vmem:[#allocation2 + $0x298] sm:$0xff]
  %v4467 = vld [vmem:[#allocation2 + $0x2a0] sm:$0xff]
  %v4468 = vld [vmem:[#allocation2 + $0x2a8] sm:$0xff]
  %v4469 = vld [vmem:[#allocation2 + $0x2b0] sm:$0xff]
  %v4470 = vld [vmem:[#allocation2 + $0x2b8] sm:$0xff]
  %v4471 = vld [vmem:[#allocation2 + $0x2c0] sm:$0xff]
  %v4472 = vld [vmem:[#allocation2 + $0x2c8] sm:$0xff]
  %v4473 = vld [vmem:[#allocation2 + $0x2d0] sm:$0xff]
  %v4474 = vld [vmem:[#allocation2 + $0x2d8] sm:$0xff]
  %v4475 = vld [vmem:[#allocation2 + $0x2e0] sm:$0xff]
  %v4476 = vld [vmem:[#allocation2 + $0x2e8] sm:$0xff]
  %v4477 = vld [vmem:[#allocation2 + $0x2f0] sm:$0xff]
  %v4478 = vld [vmem:[#allocation2 + $0x2f8] sm:$0xff]
  %v4479 = vld [vmem:[#allocation2 + $0x300] sm:$0xff]
  %v4480 = vld [vmem:[#allocation2 + $0x308] sm:$0xff]
  %v4481 = vld [vmem:[#allocation2 + $0x310] sm:$0xff]
  %v4482 = vld [vmem:[#allocation2 + $0x318] sm:$0xff]
  %4484 = vset.pattern.permute.xlu0 0
  %4485 = vperm.xlu0 %4484, %v3994
  %v4486 = vpop.permute.xlu0 %4485
  %v4489 = vsel %vm550, %v3992, 0
  %4491 = vmatprep.subr.mxu0 %v4384
  %4492 = vmatpush1.msra.mxu0 %v4383
  %4493 = vmatprep.subr.mxu0 %v4388
  %4494 = vmatpush1.msra.mxu0 %v4387
  %4495 = vmatprep.subr.mxu0 %v4392
  %4496 = vmatpush1.msra.mxu0 %v4391
  %4497 = vmatprep.subr.mxu0 %v4396
  %4498 = vmatpush1.msra.mxu0 %v4395
  %4499 = vmatprep.subr.mxu0 %v4400
  %4500 = vmatpush1.msra.mxu0 %v4399
  %4501 = vmatprep.subr.mxu0 %v4404
  %4502 = vmatpush1.msra.mxu0 %v4403
  %4503 = vmatprep.subr.mxu0 %v4408
  %4504 = vmatpush1.msra.mxu0 %v4407
  %4505 = vmatprep.subr.mxu0 %v4412
  %4506 = vmatpush1.msra.mxu0 %v4411
  %4507 = vmatprep.subr.mxu0 %v4416
  %4508 = vmatpush1.msra.mxu0 %v4415
  %4509 = vmatprep.subr.mxu0 %v4420
  %4510 = vmatpush1.msra.mxu0 %v4419
  %4511 = vmatprep.subr.mxu0 %v4424
  %4512 = vmatpush1.msra.mxu0 %v4423
  %4513 = vmatprep.subr.mxu0 %v4428
  %4514 = vmatpush1.msra.mxu0 %v4427
  %4515 = vmatprep.subr.mxu0 %v4432
  %4516 = vmatpush1.msra.mxu0 %v4431
  %4517 = vmatprep.subr.mxu0 %v4436
  %4518 = vmatpush1.msra.mxu0 %v4435
  %4519 = vmatprep.subr.mxu0 %v4440
  %4520 = vmatpush1.msra.mxu0 %v4439
  %4521 = vmatprep.subr.mxu0 %v4444
  %4522 = vmatpush1.msra.mxu0 %v4443
  %4523 = vmatprep.subr.mxu0 %v4448
  %4524 = vmatpush1.msra.mxu0 %v4447
  %4525 = vmatprep.subr.mxu0 %v4452
  %4526 = vmatpush1.msra.mxu0 %v4451
  %4527 = vmatprep.subr.mxu0 %v4456
  %4528 = vmatpush1.msra.mxu0 %v4455
  %4529 = vmatprep.subr.mxu0 %v4460
  %4530 = vmatpush1.msra.mxu0 %v4459
  %4531 = vmatprep.subr.mxu0 %v4464
  %4532 = vmatpush1.msra.mxu0 %v4463
  %4533 = vmatprep.subr.mxu0 %v4468
  %4534 = vmatpush1.msra.mxu0 %v4467
  %4535 = vmatprep.subr.mxu0 %v4472
  %4536 = vmatpush1.msra.mxu0 %v4471
  %4537 = vmatprep.subr.mxu0 %v4476
  %4538 = vmatpush1.msra.mxu0 %v4475
  %4539 = vmatprep.subr.mxu0 %v4480
  %4540 = vmatpush1.msra.mxu0 %v4479
  %4541 = vmatprep.subr.mxu0 0.0
  %4542 = vmatpush1.msra.mxu0 0.0
  %4543 = vmatprep.subr.mxu0 0.0
  %4544 = vmatpush1.msra.mxu0 0.0
  %4545 = vmatprep.subr.mxu0 0.0
  %4546 = vmatpush1.msra.mxu0 0.0
  %4547 = vmatprep.subr.mxu0 0.0
  %4548 = vmatpush1.msra.mxu0 0.0
  %4549 = vmatprep.subr.mxu0 0.0
  %4550 = vmatpush1.msra.mxu0 0.0
  %4551 = vmatprep.subr.mxu0 0.0
  %4552 = vmatpush1.msra.mxu0 0.0
  %4553 = vmatprep.subr.mxu0 0.0
  %4554 = vmatpush1.msra.mxu0 0.0
  %4555 = vmatprep.mubr.f32.mxu0 %v4489
  %4556 = vmatmul.mubr.f32.gmra.mrb[0].mxu0 %v3991
  %v4557 = vpop.f32.mrb[0].mxu0
  %v4558 = vadd.f32 %v4486, %v4557
  %v4559 = vpop.f32.mrb[0].mxu0
  %v4560 = vadd.f32 %v4486, %v4559
  %4561 = vdwg.mxu0
  %4562 = vmatprep.subr.mxu0 %v4386
  %4563 = vmatpush1.msra.mxu0 %v4385
  %4564 = vmatprep.subr.mxu0 %v4390
  %4565 = vmatpush1.msra.mxu0 %v4389
  %4566 = vmatprep.subr.mxu0 %v4394
  %4567 = vmatpush1.msra.mxu0 %v4393
  %4568 = vmatprep.subr.mxu0 %v4398
  %4569 = vmatpush1.msra.mxu0 %v4397
  %4570 = vmatprep.subr.mxu0 %v4402
  %4571 = vmatpush1.msra.mxu0 %v4401
  %4572 = vmatprep.subr.mxu0 %v4406
  %4573 = vmatpush1.msra.mxu0 %v4405
  %4574 = vmatprep.subr.mxu0 %v4410
  %4575 = vmatpush1.msra.mxu0 %v4409
  %4576 = vmatprep.subr.mxu0 %v4414
  %4577 = vmatpush1.msra.mxu0 %v4413
  %4578 = vmatprep.subr.mxu0 %v4418
  %4579 = vmatpush1.msra.mxu0 %v4417
  %4580 = vmatprep.subr.mxu0 %v4422
  %4581 = vmatpush1.msra.mxu0 %v4421
  %4582 = vmatprep.subr.mxu0 %v4426
  %4583 = vmatpush1.msra.mxu0 %v4425
  %4584 = vmatprep.subr.mxu0 %v4430
  %4585 = vmatpush1.msra.mxu0 %v4429
  %4586 = vmatprep.subr.mxu0 %v4434
  %4587 = vmatpush1.msra.mxu0 %v4433
  %4588 = vmatprep.subr.mxu0 %v4438
  %4589 = vmatpush1.msra.mxu0 %v4437
  %4590 = vmatprep.subr.mxu0 %v4442
  %4591 = vmatpush1.msra.mxu0 %v4441
  %4592 = vmatprep.subr.mxu0 %v4446
  %4593 = vmatpush1.msra.mxu0 %v4445
  %4594 = vmatprep.subr.mxu0 %v4450
  %4595 = vmatpush1.msra.mxu0 %v4449
  %4596 = vmatprep.subr.mxu0 %v4454
  %4597 = vmatpush1.msra.mxu0 %v4453
  %4598 = vmatprep.subr.mxu0 %v4458
  %4599 = vmatpush1.msra.mxu0 %v4457
  %4600 = vmatprep.subr.mxu0 %v4462
  %4601 = vmatpush1.msra.mxu0 %v4461
  %4602 = vmatprep.subr.mxu0 %v4466
  %4603 = vmatpush1.msra.mxu0 %v4465
  %4604 = vmatprep.subr.mxu0 %v4470
  %4605 = vmatpush1.msra.mxu0 %v4469
  %4606 = vmatprep.subr.mxu0 %v4474
  %4607 = vmatpush1.msra.mxu0 %v4473
  %4608 = vmatprep.subr.mxu0 %v4478
  %4609 = vmatpush1.msra.mxu0 %v4477
  %4610 = vmatprep.subr.mxu0 %v4482
  %4611 = vmatpush1.msra.mxu0 %v4481
  %4612 = vmatprep.subr.mxu0 0.0
  %4613 = vmatpush1.msra.mxu0 0.0
  %4614 = vmatprep.subr.mxu0 0.0
  %4615 = vmatpush1.msra.mxu0 0.0
  %4616 = vmatprep.subr.mxu0 0.0
  %4617 = vmatpush1.msra.mxu0 0.0
  %4618 = vmatprep.subr.mxu0 0.0
  %4619 = vmatpush1.msra.mxu0 0.0
  %4620 = vmatprep.subr.mxu0 0.0
  %4621 = vmatpush1.msra.mxu0 0.0
  %4622 = vmatprep.subr.mxu0 0.0
  %4623 = vmatpush1.msra.mxu0 0.0
  %4624 = vmatprep.subr.mxu0 0.0
  %4625 = vmatpush1.msra.mxu0 0.0
  %4626 = vmatprep.mubr.f32.mxu0 %v4489
  %4627 = vmatmul.mubr.f32.gmra.mrb[0].mxu0 %v3991
  %v4628 = vpop.f32.mrb[0].mxu0
  %v4629 = vadd.f32 %v4486, %v4628
  %v4630 = vpop.f32.mrb[0].mxu0
  %v4631 = vadd.f32 %v4486, %v4630
  %4632 = vdwg.mxu0
  %v4633 = vmax.f32 %v4558, 0.0
  %v4634 = vmax.f32 %v4560, 0.0
  %v4635 = vmax.f32 %v4629, 0.0
  %v4636 = vmax.f32 %v4631, 0.0
  %v4637 = vmul.f32 %v4633, %v704
  %v4638 = vmul.f32 %v4634, %v708
  %v4639 = vmul.f32 %v4635, %v712
  %v4640 = vmul.f32 %v4636, %v716
  %s4641 = scalar_lea.vmem %s4, 48
  %v4642 = vld [vmem:[%s4641] sm:$0xff]
  %v4643 = vld [vmem:[%s4641 + $0x8] sm:$0xff]
  %s4644 = scalar_lea.vmem %s5, 24
  %v4645 = vld [vmem:[%s4644] sm:$0xff]
  %4646 = vrot.lane.b32.xlu0 %v4637, 42
  %v4647 = vpop.permute.xlu0 %4646
  %4648 = vrot.lane.b32.xlu0 %v4638, 42
  %v4649 = vpop.permute.xlu0 %4648
  %4650 = vrot.lane.b32.xlu0 %v4639, 42
  %v4651 = vpop.permute.xlu0 %4650
  %4652 = vrot.lane.b32.xlu0 %v4640, 42
  %v4653 = vpop.permute.xlu0 %4652
  %v4654 = vsel %vm41, %v4651, %v4653
  %v4655 = vsel %vm41, %v4649, %v4651
  %v4656 = vsel %vm41, %v4647, %v4649
  %v4657 = vsel %vm41, %v4653, %v4647
  %4658 = vst [vmem:[#allocation2] sm:$0xff] %v4657
  %4659 = vst [vmem:[#allocation2 + $0x8] sm:$0xff] %v4656
  %4660 = vst [vmem:[#allocation2 + $0x10] sm:$0xff] %v4655
  %4661 = vst [vmem:[#allocation2 + $0x18] sm:$0xff] %v4654
  %4662 = vrot.lane.b32.xlu0 %v4637, 41
  %v4663 = vpop.permute.xlu0 %4662
  %4664 = vrot.lane.b32.xlu0 %v4638, 41
  %v4665 = vpop.permute.xlu0 %4664
  %4666 = vrot.lane.b32.xlu0 %v4639, 41
  %v4667 = vpop.permute.xlu0 %4666
  %4668 = vrot.lane.b32.xlu0 %v4640, 41
  %v4669 = vpop.permute.xlu0 %4668
  %v4670 = vsel %vm58, %v4667, %v4669
  %v4671 = vsel %vm58, %v4665, %v4667
  %v4672 = vsel %vm58, %v4663, %v4665
  %v4673 = vsel %vm58, %v4669, %v4663
  %4674 = vst [vmem:[#allocation2 + $0x20] sm:$0xff] %v4673
  %4675 = vst [vmem:[#allocation2 + $0x28] sm:$0xff] %v4672
  %4676 = vst [vmem:[#allocation2 + $0x30] sm:$0xff] %v4671
  %4677 = vst [vmem:[#allocation2 + $0x38] sm:$0xff] %v4670
  %4678 = vrot.lane.b32.xlu0 %v4637, 40
  %v4679 = vpop.permute.xlu0 %4678
  %4680 = vrot.lane.b32.xlu0 %v4638, 40
  %v4681 = vpop.permute.xlu0 %4680
  %4682 = vrot.lane.b32.xlu0 %v4639, 40
  %v4683 = vpop.permute.xlu0 %4682
  %4684 = vrot.lane.b32.xlu0 %v4640, 40
  %v4685 = vpop.permute.xlu0 %4684
  %v4686 = vsel %vm75, %v4683, %v4685
  %v4687 = vsel %vm75, %v4681, %v4683
  %v4688 = vsel %vm75, %v4679, %v4681
  %v4689 = vsel %vm75, %v4685, %v4679
  %4690 = vst [vmem:[#allocation2 + $0x40] sm:$0xff] %v4689
  %4691 = vst [vmem:[#allocation2 + $0x48] sm:$0xff] %v4688
  %4692 = vst [vmem:[#allocation2 + $0x50] sm:$0xff] %v4687
  %4693 = vst [vmem:[#allocation2 + $0x58] sm:$0xff] %v4686
  %4694 = vrot.lane.b32.xlu0 %v4637, 39
  %v4695 = vpop.permute.xlu0 %4694
  %4696 = vrot.lane.b32.xlu0 %v4638, 39
  %v4697 = vpop.permute.xlu0 %4696
  %4698 = vrot.lane.b32.xlu0 %v4639, 39
  %v4699 = vpop.permute.xlu0 %4698
  %4700 = vrot.lane.b32.xlu0 %v4640, 39
  %v4701 = vpop.permute.xlu0 %4700
  %v4702 = vsel %vm92, %v4699, %v4701
  %v4703 = vsel %vm92, %v4697, %v4699
  %v4704 = vsel %vm92, %v4695, %v4697
  %v4705 = vsel %vm92, %v4701, %v4695
  %4706 = vst [vmem:[#allocation2 + $0x60] sm:$0xff] %v4705
  %4707 = vst [vmem:[#allocation2 + $0x68] sm:$0xff] %v4704
  %4708 = vst [vmem:[#allocation2 + $0x70] sm:$0xff] %v4703
  %4709 = vst [vmem:[#allocation2 + $0x78] sm:$0xff] %v4702
  %4710 = vrot.lane.b32.xlu0 %v4637, 38
  %v4711 = vpop.permute.xlu0 %4710
  %4712 = vrot.lane.b32.xlu0 %v4638, 38
  %v4713 = vpop.permute.xlu0 %4712
  %4714 = vrot.lane.b32.xlu0 %v4639, 38
  %v4715 = vpop.permute.xlu0 %4714
  %4716 = vrot.lane.b32.xlu0 %v4640, 38
  %v4717 = vpop.permute.xlu0 %4716
  %v4718 = vsel %vm109, %v4715, %v4717
  %v4719 = vsel %vm109, %v4713, %v4715
  %v4720 = vsel %vm109, %v4711, %v4713
  %v4721 = vsel %vm109, %v4717, %v4711
  %4722 = vst [vmem:[#allocation2 + $0x80] sm:$0xff] %v4721
  %4723 = vst [vmem:[#allocation2 + $0x88] sm:$0xff] %v4720
  %4724 = vst [vmem:[#allocation2 + $0x90] sm:$0xff] %v4719
  %4725 = vst [vmem:[#allocation2 + $0x98] sm:$0xff] %v4718
  %4726 = vrot.lane.b32.xlu0 %v4637, 22
  %v4727 = vpop.permute.xlu0 %4726
  %4728 = vrot.lane.b32.xlu0 %v4638, 22
  %v4729 = vpop.permute.xlu0 %4728
  %4730 = vrot.lane.b32.xlu0 %v4639, 22
  %v4731 = vpop.permute.xlu0 %4730
  %4732 = vrot.lane.b32.xlu0 %v4640, 22
  %v4733 = vpop.permute.xlu0 %4732
  %v4734 = vsel %vm126, %v4731, %v4733
  %v4735 = vsel %vm126, %v4729, %v4731
  %v4736 = vsel %vm126, %v4727, %v4729
  %v4737 = vsel %vm126, %v4733, %v4727
  %4738 = vst [vmem:[#allocation2 + $0xa0] sm:$0xff] %v4737
  %4739 = vst [vmem:[#allocation2 + $0xa8] sm:$0xff] %v4736
  %4740 = vst [vmem:[#allocation2 + $0xb0] sm:$0xff] %v4735
  %4741 = vst [vmem:[#allocation2 + $0xb8] sm:$0xff] %v4734
  %4742 = vrot.lane.b32.xlu0 %v4637, 21
  %v4743 = vpop.permute.xlu0 %4742
  %4744 = vrot.lane.b32.xlu0 %v4638, 21
  %v4745 = vpop.permute.xlu0 %4744
  %4746 = vrot.lane.b32.xlu0 %v4639, 21
  %v4747 = vpop.permute.xlu0 %4746
  %4748 = vrot.lane.b32.xlu0 %v4640, 21
  %v4749 = vpop.permute.xlu0 %4748
  %v4750 = vsel %vm143, %v4747, %v4749
  %v4751 = vsel %vm143, %v4745, %v4747
  %v4752 = vsel %vm143, %v4743, %v4745
  %v4753 = vsel %vm143, %v4749, %v4743
  %4754 = vst [vmem:[#allocation2 + $0xc0] sm:$0xff] %v4753
  %4755 = vst [vmem:[#allocation2 + $0xc8] sm:$0xff] %v4752
  %4756 = vst [vmem:[#allocation2 + $0xd0] sm:$0xff] %v4751
  %4757 = vst [vmem:[#allocation2 + $0xd8] sm:$0xff] %v4750
  %4758 = vrot.lane.b32.xlu0 %v4637, 20
  %v4759 = vpop.permute.xlu0 %4758
  %4760 = vrot.lane.b32.xlu0 %v4638, 20
  %v4761 = vpop.permute.xlu0 %4760
  %4762 = vrot.lane.b32.xlu0 %v4639, 20
  %v4763 = vpop.permute.xlu0 %4762
  %4764 = vrot.lane.b32.xlu0 %v4640, 20
  %v4765 = vpop.permute.xlu0 %4764
  %v4766 = vsel %vm160, %v4763, %v4765
  %v4767 = vsel %vm160, %v4761, %v4763
  %v4768 = vsel %vm160, %v4759, %v4761
  %v4769 = vsel %vm160, %v4765, %v4759
  %4770 = vst [vmem:[#allocation2 + $0xe0] sm:$0xff] %v4769
  %4771 = vst [vmem:[#allocation2 + $0xe8] sm:$0xff] %v4768
  %4772 = vst [vmem:[#allocation2 + $0xf0] sm:$0xff] %v4767
  %4773 = vst [vmem:[#allocation2 + $0xf8] sm:$0xff] %v4766
  %4774 = vrot.lane.b32.xlu0 %v4637, 19
  %v4775 = vpop.permute.xlu0 %4774
  %4776 = vrot.lane.b32.xlu0 %v4638, 19
  %v4777 = vpop.permute.xlu0 %4776
  %4778 = vrot.lane.b32.xlu0 %v4639, 19
  %v4779 = vpop.permute.xlu0 %4778
  %4780 = vrot.lane.b32.xlu0 %v4640, 19
  %v4781 = vpop.permute.xlu0 %4780
  %v4782 = vsel %vm177, %v4779, %v4781
  %v4783 = vsel %vm177, %v4777, %v4779
  %v4784 = vsel %vm177, %v4775, %v4777
  %v4785 = vsel %vm177, %v4781, %v4775
  %4786 = vst [vmem:[#allocation2 + $0x100] sm:$0xff] %v4785
  %4787 = vst [vmem:[#allocation2 + $0x108] sm:$0xff] %v4784
  %4788 = vst [vmem:[#allocation2 + $0x110] sm:$0xff] %v4783
  %4789 = vst [vmem:[#allocation2 + $0x118] sm:$0xff] %v4782
  %4790 = vrot.lane.b32.xlu0 %v4637, 18
  %v4791 = vpop.permute.xlu0 %4790
  %4792 = vrot.lane.b32.xlu0 %v4638, 18
  %v4793 = vpop.permute.xlu0 %4792
  %4794 = vrot.lane.b32.xlu0 %v4639, 18
  %v4795 = vpop.permute.xlu0 %4794
  %4796 = vrot.lane.b32.xlu0 %v4640, 18
  %v4797 = vpop.permute.xlu0 %4796
  %v4798 = vsel %vm194, %v4795, %v4797
  %v4799 = vsel %vm194, %v4793, %v4795
  %v4800 = vsel %vm194, %v4791, %v4793
  %v4801 = vsel %vm194, %v4797, %v4791
  %4802 = vst [vmem:[#allocation2 + $0x120] sm:$0xff] %v4801
  %4803 = vst [vmem:[#allocation2 + $0x128] sm:$0xff] %v4800
  %4804 = vst [vmem:[#allocation2 + $0x130] sm:$0xff] %v4799
  %4805 = vst [vmem:[#allocation2 + $0x138] sm:$0xff] %v4798
  %4806 = vrot.lane.b32.xlu0 %v4637, 2
  %v4807 = vpop.permute.xlu0 %4806
  %4808 = vrot.lane.b32.xlu0 %v4638, 2
  %v4809 = vpop.permute.xlu0 %4808
  %4810 = vrot.lane.b32.xlu0 %v4639, 2
  %v4811 = vpop.permute.xlu0 %4810
  %4812 = vrot.lane.b32.xlu0 %v4640, 2
  %v4813 = vpop.permute.xlu0 %4812
  %v4814 = vsel %vm211, %v4811, %v4813
  %v4815 = vsel %vm211, %v4809, %v4811
  %v4816 = vsel %vm211, %v4807, %v4809
  %v4817 = vsel %vm211, %v4813, %v4807
  %4818 = vst [vmem:[#allocation2 + $0x140] sm:$0xff] %v4817
  %4819 = vst [vmem:[#allocation2 + $0x148] sm:$0xff] %v4816
  %4820 = vst [vmem:[#allocation2 + $0x150] sm:$0xff] %v4815
  %4821 = vst [vmem:[#allocation2 + $0x158] sm:$0xff] %v4814
  %4822 = vrot.lane.b32.xlu0 %v4637, 1
  %v4823 = vpop.permute.xlu0 %4822
  %4824 = vrot.lane.b32.xlu0 %v4638, 1
  %v4825 = vpop.permute.xlu0 %4824
  %4826 = vrot.lane.b32.xlu0 %v4639, 1
  %v4827 = vpop.permute.xlu0 %4826
  %4828 = vrot.lane.b32.xlu0 %v4640, 1
  %v4829 = vpop.permute.xlu0 %4828
  %v4830 = vsel %vm228, %v4827, %v4829
  %v4831 = vsel %vm228, %v4825, %v4827
  %v4832 = vsel %vm228, %v4823, %v4825
  %v4833 = vsel %vm228, %v4829, %v4823
  %4834 = vst [vmem:[#allocation2 + $0x160] sm:$0xff] %v4833
  %4835 = vst [vmem:[#allocation2 + $0x168] sm:$0xff] %v4832
  %4836 = vst [vmem:[#allocation2 + $0x170] sm:$0xff] %v4831
  %4837 = vst [vmem:[#allocation2 + $0x178] sm:$0xff] %v4830
  %4838 = vst [vmem:[#allocation2 + $0x180] sm:$0xff] %v4637
  %4839 = vst [vmem:[#allocation2 + $0x188] sm:$0xff] %v4638
  %4840 = vst [vmem:[#allocation2 + $0x190] sm:$0xff] %v4639
  %4841 = vst [vmem:[#allocation2 + $0x198] sm:$0xff] %v4640
  %4842 = vrot.lane.b32.xlu0 %v4637, 127
  %v4843 = vpop.permute.xlu0 %4842
  %4844 = vrot.lane.b32.xlu0 %v4638, 127
  %v4845 = vpop.permute.xlu0 %4844
  %4846 = vrot.lane.b32.xlu0 %v4639, 127
  %v4847 = vpop.permute.xlu0 %4846
  %4848 = vrot.lane.b32.xlu0 %v4640, 127
  %v4849 = vpop.permute.xlu0 %4848
  %v4850 = vsel %vm249, %v4847, %v4849
  %v4851 = vsel %vm249, %v4845, %v4847
  %v4852 = vsel %vm249, %v4843, %v4845
  %v4853 = vsel %vm249, %v4849, %v4843
  %4854 = vst [vmem:[#allocation2 + $0x1a0] sm:$0xff] %v4852
  %4855 = vst [vmem:[#allocation2 + $0x1a8] sm:$0xff] %v4851
  %4856 = vst [vmem:[#allocation2 + $0x1b0] sm:$0xff] %v4850
  %4857 = vst [vmem:[#allocation2 + $0x1b8] sm:$0xff] %v4853
  %4858 = vrot.lane.b32.xlu0 %v4637, 126
  %v4859 = vpop.permute.xlu0 %4858
  %4860 = vrot.lane.b32.xlu0 %v4638, 126
  %v4861 = vpop.permute.xlu0 %4860
  %4862 = vrot.lane.b32.xlu0 %v4639, 126
  %v4863 = vpop.permute.xlu0 %4862
  %4864 = vrot.lane.b32.xlu0 %v4640, 126
  %v4865 = vpop.permute.xlu0 %4864
  %v4866 = vsel %vm266, %v4863, %v4865
  %v4867 = vsel %vm266, %v4861, %v4863
  %v4868 = vsel %vm266, %v4859, %v4861
  %v4869 = vsel %vm266, %v4865, %v4859
  %4870 = vst [vmem:[#allocation2 + $0x1c0] sm:$0xff] %v4868
  %4871 = vst [vmem:[#allocation2 + $0x1c8] sm:$0xff] %v4867
  %4872 = vst [vmem:[#allocation2 + $0x1d0] sm:$0xff] %v4866
  %4873 = vst [vmem:[#allocation2 + $0x1d8] sm:$0xff] %v4869
  %4874 = vrot.lane.b32.xlu0 %v4637, 110
  %v4875 = vpop.permute.xlu0 %4874
  %4876 = vrot.lane.b32.xlu0 %v4638, 110
  %v4877 = vpop.permute.xlu0 %4876
  %4878 = vrot.lane.b32.xlu0 %v4639, 110
  %v4879 = vpop.permute.xlu0 %4878
  %4880 = vrot.lane.b32.xlu0 %v4640, 110
  %v4881 = vpop.permute.xlu0 %4880
  %v4882 = vsel %vm283, %v4879, %v4881
  %v4883 = vsel %vm283, %v4877, %v4879
  %v4884 = vsel %vm283, %v4875, %v4877
  %v4885 = vsel %vm283, %v4881, %v4875
  %4886 = vst [vmem:[#allocation2 + $0x1e0] sm:$0xff] %v4884
  %4887 = vst [vmem:[#allocation2 + $0x1e8] sm:$0xff] %v4883
  %4888 = vst [vmem:[#allocation2 + $0x1f0] sm:$0xff] %v4882
  %4889 = vst [vmem:[#allocation2 + $0x1f8] sm:$0xff] %v4885
  %4890 = vrot.lane.b32.xlu0 %v4637, 109
  %v4891 = vpop.permute.xlu0 %4890
  %4892 = vrot.lane.b32.xlu0 %v4638, 109
  %v4893 = vpop.permute.xlu0 %4892
  %4894 = vrot.lane.b32.xlu0 %v4639, 109
  %v4895 = vpop.permute.xlu0 %4894
  %4896 = vrot.lane.b32.xlu0 %v4640, 109
  %v4897 = vpop.permute.xlu0 %4896
  %v4898 = vsel %vm300, %v4895, %v4897
  %v4899 = vsel %vm300, %v4893, %v4895
  %v4900 = vsel %vm300, %v4891, %v4893
  %v4901 = vsel %vm300, %v4897, %v4891
  %4902 = vst [vmem:[#allocation2 + $0x200] sm:$0xff] %v4900
  %4903 = vst [vmem:[#allocation2 + $0x208] sm:$0xff] %v4899
  %4904 = vst [vmem:[#allocation2 + $0x210] sm:$0xff] %v4898
  %4905 = vst [vmem:[#allocation2 + $0x218] sm:$0xff] %v4901
  %4906 = vrot.lane.b32.xlu0 %v4637, 108
  %v4907 = vpop.permute.xlu0 %4906
  %4908 = vrot.lane.b32.xlu0 %v4638, 108
  %v4909 = vpop.permute.xlu0 %4908
  %4910 = vrot.lane.b32.xlu0 %v4639, 108
  %v4911 = vpop.permute.xlu0 %4910
  %4912 = vrot.lane.b32.xlu0 %v4640, 108
  %v4913 = vpop.permute.xlu0 %4912
  %v4914 = vsel %vm317, %v4911, %v4913
  %v4915 = vsel %vm317, %v4909, %v4911
  %v4916 = vsel %vm317, %v4907, %v4909
  %v4917 = vsel %vm317, %v4913, %v4907
  %4918 = vst [vmem:[#allocation2 + $0x220] sm:$0xff] %v4916
  %4919 = vst [vmem:[#allocation2 + $0x228] sm:$0xff] %v4915
  %4920 = vst [vmem:[#allocation2 + $0x230] sm:$0xff] %v4914
  %4921 = vst [vmem:[#allocation2 + $0x238] sm:$0xff] %v4917
  %4922 = vrot.lane.b32.xlu0 %v4637, 107
  %v4923 = vpop.permute.xlu0 %4922
  %4924 = vrot.lane.b32.xlu0 %v4638, 107
  %v4925 = vpop.permute.xlu0 %4924
  %4926 = vrot.lane.b32.xlu0 %v4639, 107
  %v4927 = vpop.permute.xlu0 %4926
  %4928 = vrot.lane.b32.xlu0 %v4640, 107
  %v4929 = vpop.permute.xlu0 %4928
  %v4930 = vsel %vm334, %v4927, %v4929
  %v4931 = vsel %vm334, %v4925, %v4927
  %v4932 = vsel %vm334, %v4923, %v4925
  %v4933 = vsel %vm334, %v4929, %v4923
  %4934 = vst [vmem:[#allocation2 + $0x240] sm:$0xff] %v4932
  %4935 = vst [vmem:[#allocation2 + $0x248] sm:$0xff] %v4931
  %4936 = vst [vmem:[#allocation2 + $0x250] sm:$0xff] %v4930
  %4937 = vst [vmem:[#allocation2 + $0x258] sm:$0xff] %v4933
  %4938 = vrot.lane.b32.xlu0 %v4637, 106
  %v4939 = vpop.permute.xlu0 %4938
  %4940 = vrot.lane.b32.xlu0 %v4638, 106
  %v4941 = vpop.permute.xlu0 %4940
  %4942 = vrot.lane.b32.xlu0 %v4639, 106
  %v4943 = vpop.permute.xlu0 %4942
  %4944 = vrot.lane.b32.xlu0 %v4640, 106
  %v4945 = vpop.permute.xlu0 %4944
  %v4946 = vsel %vm351, %v4943, %v4945
  %v4947 = vsel %vm351, %v4941, %v4943
  %v4948 = vsel %vm351, %v4939, %v4941
  %v4949 = vsel %vm351, %v4945, %v4939
  %4950 = vst [vmem:[#allocation2 + $0x260] sm:$0xff] %v4948
  %4951 = vst [vmem:[#allocation2 + $0x268] sm:$0xff] %v4947
  %4952 = vst [vmem:[#allocation2 + $0x270] sm:$0xff] %v4946
  %4953 = vst [vmem:[#allocation2 + $0x278] sm:$0xff] %v4949
  %4954 = vrot.lane.b32.xlu0 %v4637, 90
  %v4955 = vpop.permute.xlu0 %4954
  %4956 = vrot.lane.b32.xlu0 %v4638, 90
  %v4957 = vpop.permute.xlu0 %4956
  %4958 = vrot.lane.b32.xlu0 %v4639, 90
  %v4959 = vpop.permute.xlu0 %4958
  %4960 = vrot.lane.b32.xlu0 %v4640, 90
  %v4961 = vpop.permute.xlu0 %4960
  %v4962 = vsel %vm368, %v4959, %v4961
  %v4963 = vsel %vm368, %v4957, %v4959
  %v4964 = vsel %vm368, %v4955, %v4957
  %v4965 = vsel %vm368, %v4961, %v4955
  %4966 = vst [vmem:[#allocation2 + $0x280] sm:$0xff] %v4964
  %4967 = vst [vmem:[#allocation2 + $0x288] sm:$0xff] %v4963
  %4968 = vst [vmem:[#allocation2 + $0x290] sm:$0xff] %v4962
  %4969 = vst [vmem:[#allocation2 + $0x298] sm:$0xff] %v4965
  %4970 = vrot.lane.b32.xlu0 %v4637, 89
  %v4971 = vpop.permute.xlu0 %4970
  %4972 = vrot.lane.b32.xlu0 %v4638, 89
  %v4973 = vpop.permute.xlu0 %4972
  %4974 = vrot.lane.b32.xlu0 %v4639, 89
  %v4975 = vpop.permute.xlu0 %4974
  %4976 = vrot.lane.b32.xlu0 %v4640, 89
  %v4977 = vpop.permute.xlu0 %4976
  %v4978 = vsel %vm385, %v4975, %v4977
  %v4979 = vsel %vm385, %v4973, %v4975
  %v4980 = vsel %vm385, %v4971, %v4973
  %v4981 = vsel %vm385, %v4977, %v4971
  %4982 = vst [vmem:[#allocation2 + $0x2a0] sm:$0xff] %v4980
  %4983 = vst [vmem:[#allocation2 + $0x2a8] sm:$0xff] %v4979
  %4984 = vst [vmem:[#allocation2 + $0x2b0] sm:$0xff] %v4978
  %4985 = vst [vmem:[#allocation2 + $0x2b8] sm:$0xff] %v4981
  %4986 = vrot.lane.b32.xlu0 %v4637, 88
  %v4987 = vpop.permute.xlu0 %4986
  %4988 = vrot.lane.b32.xlu0 %v4638, 88
  %v4989 = vpop.permute.xlu0 %4988
  %4990 = vrot.lane.b32.xlu0 %v4639, 88
  %v4991 = vpop.permute.xlu0 %4990
  %4992 = vrot.lane.b32.xlu0 %v4640, 88
  %v4993 = vpop.permute.xlu0 %4992
  %v4994 = vsel %vm402, %v4991, %v4993
  %v4995 = vsel %vm402, %v4989, %v4991
  %v4996 = vsel %vm402, %v4987, %v4989
  %v4997 = vsel %vm402, %v4993, %v4987
  %4998 = vst [vmem:[#allocation2 + $0x2c0] sm:$0xff] %v4996
  %4999 = vst [vmem:[#allocation2 + $0x2c8] sm:$0xff] %v4995
  %5000 = vst [vmem:[#allocation2 + $0x2d0] sm:$0xff] %v4994
  %5001 = vst [vmem:[#allocation2 + $0x2d8] sm:$0xff] %v4997
  %5002 = vrot.lane.b32.xlu0 %v4637, 87
  %v5003 = vpop.permute.xlu0 %5002
  %5004 = vrot.lane.b32.xlu0 %v4638, 87
  %v5005 = vpop.permute.xlu0 %5004
  %5006 = vrot.lane.b32.xlu0 %v4639, 87
  %v5007 = vpop.permute.xlu0 %5006
  %5008 = vrot.lane.b32.xlu0 %v4640, 87
  %v5009 = vpop.permute.xlu0 %5008
  %v5010 = vsel %vm419, %v5007, %v5009
  %v5011 = vsel %vm419, %v5005, %v5007
  %v5012 = vsel %vm419, %v5003, %v5005
  %v5013 = vsel %vm419, %v5009, %v5003
  %5014 = vst [vmem:[#allocation2 + $0x2e0] sm:$0xff] %v5012
  %5015 = vst [vmem:[#allocation2 + $0x2e8] sm:$0xff] %v5011
  %5016 = vst [vmem:[#allocation2 + $0x2f0] sm:$0xff] %v5010
  %5017 = vst [vmem:[#allocation2 + $0x2f8] sm:$0xff] %v5013
  %5018 = vrot.lane.b32.xlu0 %v4637, 86
  %v5019 = vpop.permute.xlu0 %5018
  %5020 = vrot.lane.b32.xlu0 %v4638, 86
  %v5021 = vpop.permute.xlu0 %5020
  %5022 = vrot.lane.b32.xlu0 %v4639, 86
  %v5023 = vpop.permute.xlu0 %5022
  %5024 = vrot.lane.b32.xlu0 %v4640, 86
  %v5025 = vpop.permute.xlu0 %5024
  %v5026 = vsel %vm436, %v5023, %v5025
  %v5027 = vsel %vm436, %v5021, %v5023
  %v5028 = vsel %vm436, %v5019, %v5021
  %v5029 = vsel %vm436, %v5025, %v5019
  %5030 = vst [vmem:[#allocation2 + $0x300] sm:$0xff] %v5028
  %5031 = vst [vmem:[#allocation2 + $0x308] sm:$0xff] %v5027
  %5032 = vst [vmem:[#allocation2 + $0x310] sm:$0xff] %v5026
  %5033 = vst [vmem:[#allocation2 + $0x318] sm:$0xff] %v5029
  %v5034 = vld [vmem:[#allocation2] sm:$0xff]
  %v5035 = vld [vmem:[#allocation2 + $0x8] sm:$0xff]
  %v5036 = vld [vmem:[#allocation2 + $0x10] sm:$0xff]
  %v5037 = vld [vmem:[#allocation2 + $0x18] sm:$0xff]
  %v5038 = vld [vmem:[#allocation2 + $0x20] sm:$0xff]
  %v5039 = vld [vmem:[#allocation2 + $0x28] sm:$0xff]
  %v5040 = vld [vmem:[#allocation2 + $0x30] sm:$0xff]
  %v5041 = vld [vmem:[#allocation2 + $0x38] sm:$0xff]
  %v5042 = vld [vmem:[#allocation2 + $0x40] sm:$0xff]
  %v5043 = vld [vmem:[#allocation2 + $0x48] sm:$0xff]
  %v5044 = vld [vmem:[#allocation2 + $0x50] sm:$0xff]
  %v5045 = vld [vmem:[#allocation2 + $0x58] sm:$0xff]
  %v5046 = vld [vmem:[#allocation2 + $0x60] sm:$0xff]
  %v5047 = vld [vmem:[#allocation2 + $0x68] sm:$0xff]
  %v5048 = vld [vmem:[#allocation2 + $0x70] sm:$0xff]
  %v5049 = vld [vmem:[#allocation2 + $0x78] sm:$0xff]
  %v5050 = vld [vmem:[#allocation2 + $0x80] sm:$0xff]
  %v5051 = vld [vmem:[#allocation2 + $0x88] sm:$0xff]
  %v5052 = vld [vmem:[#allocation2 + $0x90] sm:$0xff]
  %v5053 = vld [vmem:[#allocation2 + $0x98] sm:$0xff]
  %v5054 = vld [vmem:[#allocation2 + $0xa0] sm:$0xff]
  %v5055 = vld [vmem:[#allocation2 + $0xa8] sm:$0xff]
  %v5056 = vld [vmem:[#allocation2 + $0xb0] sm:$0xff]
  %v5057 = vld [vmem:[#allocation2 + $0xb8] sm:$0xff]
  %v5058 = vld [vmem:[#allocation2 + $0xc0] sm:$0xff]
  %v5059 = vld [vmem:[#allocation2 + $0xc8] sm:$0xff]
  %v5060 = vld [vmem:[#allocation2 + $0xd0] sm:$0xff]
  %v5061 = vld [vmem:[#allocation2 + $0xd8] sm:$0xff]
  %v5062 = vld [vmem:[#allocation2 + $0xe0] sm:$0xff]
  %v5063 = vld [vmem:[#allocation2 + $0xe8] sm:$0xff]
  %v5064 = vld [vmem:[#allocation2 + $0xf0] sm:$0xff]
  %v5065 = vld [vmem:[#allocation2 + $0xf8] sm:$0xff]
  %v5066 = vld [vmem:[#allocation2 + $0x100] sm:$0xff]
  %v5067 = vld [vmem:[#allocation2 + $0x108] sm:$0xff]
  %v5068 = vld [vmem:[#allocation2 + $0x110] sm:$0xff]
  %v5069 = vld [vmem:[#allocation2 + $0x118] sm:$0xff]
  %v5070 = vld [vmem:[#allocation2 + $0x120] sm:$0xff]
  %v5071 = vld [vmem:[#allocation2 + $0x128] sm:$0xff]
  %v5072 = vld [vmem:[#allocation2 + $0x130] sm:$0xff]
  %v5073 = vld [vmem:[#allocation2 + $0x138] sm:$0xff]
  %v5074 = vld [vmem:[#allocation2 + $0x140] sm:$0xff]
  %v5075 = vld [vmem:[#allocation2 + $0x148] sm:$0xff]
  %v5076 = vld [vmem:[#allocation2 + $0x150] sm:$0xff]
  %v5077 = vld [vmem:[#allocation2 + $0x158] sm:$0xff]
  %v5078 = vld [vmem:[#allocation2 + $0x160] sm:$0xff]
  %v5079 = vld [vmem:[#allocation2 + $0x168] sm:$0xff]
  %v5080 = vld [vmem:[#allocation2 + $0x170] sm:$0xff]
  %v5081 = vld [vmem:[#allocation2 + $0x178] sm:$0xff]
  %v5082 = vld [vmem:[#allocation2 + $0x180] sm:$0xff]
  %v5083 = vld [vmem:[#allocation2 + $0x188] sm:$0xff]
  %v5084 = vld [vmem:[#allocation2 + $0x190] sm:$0xff]
  %v5085 = vld [vmem:[#allocation2 + $0x198] sm:$0xff]
  %v5086 = vld [vmem:[#allocation2 + $0x1a0] sm:$0xff]
  %v5087 = vld [vmem:[#allocation2 + $0x1a8] sm:$0xff]
  %v5088 = vld [vmem:[#allocation2 + $0x1b0] sm:$0xff]
  %v5089 = vld [vmem:[#allocation2 + $0x1b8] sm:$0xff]
  %v5090 = vld [vmem:[#allocation2 + $0x1c0] sm:$0xff]
  %v5091 = vld [vmem:[#allocation2 + $0x1c8] sm:$0xff]
  %v5092 = vld [vmem:[#allocation2 + $0x1d0] sm:$0xff]
  %v5093 = vld [vmem:[#allocation2 + $0x1d8] sm:$0xff]
  %v5094 = vld [vmem:[#allocation2 + $0x1e0] sm:$0xff]
  %v5095 = vld [vmem:[#allocation2 + $0x1e8] sm:$0xff]
  %v5096 = vld [vmem:[#allocation2 + $0x1f0] sm:$0xff]
  %v5097 = vld [vmem:[#allocation2 + $0x1f8] sm:$0xff]
  %v5098 = vld [vmem:[#allocation2 + $0x200] sm:$0xff]
  %v5099 = vld [vmem:[#allocation2 + $0x208] sm:$0xff]
  %v5100 = vld [vmem:[#allocation2 + $0x210] sm:$0xff]
  %v5101 = vld [vmem:[#allocation2 + $0x218] sm:$0xff]
  %v5102 = vld [vmem:[#allocation2 + $0x220] sm:$0xff]
  %v5103 = vld [vmem:[#allocation2 + $0x228] sm:$0xff]
  %v5104 = vld [vmem:[#allocation2 + $0x230] sm:$0xff]
  %v5105 = vld [vmem:[#allocation2 + $0x238] sm:$0xff]
  %v5106 = vld [vmem:[#allocation2 + $0x240] sm:$0xff]
  %v5107 = vld [vmem:[#allocation2 + $0x248] sm:$0xff]
  %v5108 = vld [vmem:[#allocation2 + $0x250] sm:$0xff]
  %v5109 = vld [vmem:[#allocation2 + $0x258] sm:$0xff]
  %v5110 = vld [vmem:[#allocation2 + $0x260] sm:$0xff]
  %v5111 = vld [vmem:[#allocation2 + $0x268] sm:$0xff]
  %v5112 = vld [vmem:[#allocation2 + $0x270] sm:$0xff]
  %v5113 = vld [vmem:[#allocation2 + $0x278] sm:$0xff]
  %v5114 = vld [vmem:[#allocation2 + $0x280] sm:$0xff]
  %v5115 = vld [vmem:[#allocation2 + $0x288] sm:$0xff]
  %v5116 = vld [vmem:[#allocation2 + $0x290] sm:$0xff]
  %v5117 = vld [vmem:[#allocation2 + $0x298] sm:$0xff]
  %v5118 = vld [vmem:[#allocation2 + $0x2a0] sm:$0xff]
  %v5119 = vld [vmem:[#allocation2 + $0x2a8] sm:$0xff]
  %v5120 = vld [vmem:[#allocation2 + $0x2b0] sm:$0xff]
  %v5121 = vld [vmem:[#allocation2 + $0x2b8] sm:$0xff]
  %v5122 = vld [vmem:[#allocation2 + $0x2c0] sm:$0xff]
  %v5123 = vld [vmem:[#allocation2 + $0x2c8] sm:$0xff]
  %v5124 = vld [vmem:[#allocation2 + $0x2d0] sm:$0xff]
  %v5125 = vld [vmem:[#allocation2 + $0x2d8] sm:$0xff]
  %v5126 = vld [vmem:[#allocation2 + $0x2e0] sm:$0xff]
  %v5127 = vld [vmem:[#allocation2 + $0x2e8] sm:$0xff]
  %v5128 = vld [vmem:[#allocation2 + $0x2f0] sm:$0xff]
  %v5129 = vld [vmem:[#allocation2 + $0x2f8] sm:$0xff]
  %v5130 = vld [vmem:[#allocation2 + $0x300] sm:$0xff]
  %v5131 = vld [vmem:[#allocation2 + $0x308] sm:$0xff]
  %v5132 = vld [vmem:[#allocation2 + $0x310] sm:$0xff]
  %v5133 = vld [vmem:[#allocation2 + $0x318] sm:$0xff]
  %5135 = vset.pattern.permute.xlu0 0
  %5136 = vperm.xlu0 %5135, %v4645
  %v5137 = vpop.permute.xlu0 %5136
  %v5140 = vsel %vm550, %v4643, 0
  %5142 = vmatprep.subr.mxu0 %v5035
  %5143 = vmatpush1.msra.mxu0 %v5034
  %5144 = vmatprep.subr.mxu0 %v5039
  %5145 = vmatpush1.msra.mxu0 %v5038
  %5146 = vmatprep.subr.mxu0 %v5043
  %5147 = vmatpush1.msra.mxu0 %v5042
  %5148 = vmatprep.subr.mxu0 %v5047
  %5149 = vmatpush1.msra.mxu0 %v5046
  %5150 = vmatprep.subr.mxu0 %v5051
  %5151 = vmatpush1.msra.mxu0 %v5050
  %5152 = vmatprep.subr.mxu0 %v5055
  %5153 = vmatpush1.msra.mxu0 %v5054
  %5154 = vmatprep.subr.mxu0 %v5059
  %5155 = vmatpush1.msra.mxu0 %v5058
  %5156 = vmatprep.subr.mxu0 %v5063
  %5157 = vmatpush1.msra.mxu0 %v5062
  %5158 = vmatprep.subr.mxu0 %v5067
  %5159 = vmatpush1.msra.mxu0 %v5066
  %5160 = vmatprep.subr.mxu0 %v5071
  %5161 = vmatpush1.msra.mxu0 %v5070
  %5162 = vmatprep.subr.mxu0 %v5075
  %5163 = vmatpush1.msra.mxu0 %v5074
  %5164 = vmatprep.subr.mxu0 %v5079
  %5165 = vmatpush1.msra.mxu0 %v5078
  %5166 = vmatprep.subr.mxu0 %v5083
  %5167 = vmatpush1.msra.mxu0 %v5082
  %5168 = vmatprep.subr.mxu0 %v5087
  %5169 = vmatpush1.msra.mxu0 %v5086
  %5170 = vmatprep.subr.mxu0 %v5091
  %5171 = vmatpush1.msra.mxu0 %v5090
  %5172 = vmatprep.subr.mxu0 %v5095
  %5173 = vmatpush1.msra.mxu0 %v5094
  %5174 = vmatprep.subr.mxu0 %v5099
  %5175 = vmatpush1.msra.mxu0 %v5098
  %5176 = vmatprep.subr.mxu0 %v5103
  %5177 = vmatpush1.msra.mxu0 %v5102
  %5178 = vmatprep.subr.mxu0 %v5107
  %5179 = vmatpush1.msra.mxu0 %v5106
  %5180 = vmatprep.subr.mxu0 %v5111
  %5181 = vmatpush1.msra.mxu0 %v5110
  %5182 = vmatprep.subr.mxu0 %v5115
  %5183 = vmatpush1.msra.mxu0 %v5114
  %5184 = vmatprep.subr.mxu0 %v5119
  %5185 = vmatpush1.msra.mxu0 %v5118
  %5186 = vmatprep.subr.mxu0 %v5123
  %5187 = vmatpush1.msra.mxu0 %v5122
  %5188 = vmatprep.subr.mxu0 %v5127
  %5189 = vmatpush1.msra.mxu0 %v5126
  %5190 = vmatprep.subr.mxu0 %v5131
  %5191 = vmatpush1.msra.mxu0 %v5130
  %5192 = vmatprep.subr.mxu0 0.0
  %5193 = vmatpush1.msra.mxu0 0.0
  %5194 = vmatprep.subr.mxu0 0.0
  %5195 = vmatpush1.msra.mxu0 0.0
  %5196 = vmatprep.subr.mxu0 0.0
  %5197 = vmatpush1.msra.mxu0 0.0
  %5198 = vmatprep.subr.mxu0 0.0
  %5199 = vmatpush1.msra.mxu0 0.0
  %5200 = vmatprep.subr.mxu0 0.0
  %5201 = vmatpush1.msra.mxu0 0.0
  %5202 = vmatprep.subr.mxu0 0.0
  %5203 = vmatpush1.msra.mxu0 0.0
  %5204 = vmatprep.subr.mxu0 0.0
  %5205 = vmatpush1.msra.mxu0 0.0
  %5206 = vmatprep.mubr.f32.mxu0 %v5140
  %5207 = vmatmul.mubr.f32.gmra.mrb[0].mxu0 %v4642
  %v5208 = vpop.f32.mrb[0].mxu0
  %v5209 = vadd.f32 %v5137, %v5208
  %v5210 = vpop.f32.mrb[0].mxu0
  %v5211 = vadd.f32 %v5137, %v5210
  %5212 = vdwg.mxu0
  %5213 = vmatprep.subr.mxu0 %v5037
  %5214 = vmatpush1.msra.mxu0 %v5036
  %5215 = vmatprep.subr.mxu0 %v5041
  %5216 = vmatpush1.msra.mxu0 %v5040
  %5217 = vmatprep.subr.mxu0 %v5045
  %5218 = vmatpush1.msra.mxu0 %v5044
  %5219 = vmatprep.subr.mxu0 %v5049
  %5220 = vmatpush1.msra.mxu0 %v5048
  %5221 = vmatprep.subr.mxu0 %v5053
  %5222 = vmatpush1.msra.mxu0 %v5052
  %5223 = vmatprep.subr.mxu0 %v5057
  %5224 = vmatpush1.msra.mxu0 %v5056
  %5225 = vmatprep.subr.mxu0 %v5061
  %5226 = vmatpush1.msra.mxu0 %v5060
  %5227 = vmatprep.subr.mxu0 %v5065
  %5228 = vmatpush1.msra.mxu0 %v5064
  %5229 = vmatprep.subr.mxu0 %v5069
  %5230 = vmatpush1.msra.mxu0 %v5068
  %5231 = vmatprep.subr.mxu0 %v5073
  %5232 = vmatpush1.msra.mxu0 %v5072
  %5233 = vmatprep.subr.mxu0 %v5077
  %5234 = vmatpush1.msra.mxu0 %v5076
  %5235 = vmatprep.subr.mxu0 %v5081
  %5236 = vmatpush1.msra.mxu0 %v5080
  %5237 = vmatprep.subr.mxu0 %v5085
  %5238 = vmatpush1.msra.mxu0 %v5084
  %5239 = vmatprep.subr.mxu0 %v5089
  %5240 = vmatpush1.msra.mxu0 %v5088
  %5241 = vmatprep.subr.mxu0 %v5093
  %5242 = vmatpush1.msra.mxu0 %v5092
  %5243 = vmatprep.subr.mxu0 %v5097
  %5244 = vmatpush1.msra.mxu0 %v5096
  %5245 = vmatprep.subr.mxu0 %v5101
  %5246 = vmatpush1.msra.mxu0 %v5100
  %5247 = vmatprep.subr.mxu0 %v5105
  %5248 = vmatpush1.msra.mxu0 %v5104
  %5249 = vmatprep.subr.mxu0 %v5109
  %5250 = vmatpush1.msra.mxu0 %v5108
  %5251 = vmatprep.subr.mxu0 %v5113
  %5252 = vmatpush1.msra.mxu0 %v5112
  %5253 = vmatprep.subr.mxu0 %v5117
  %5254 = vmatpush1.msra.mxu0 %v5116
  %5255 = vmatprep.subr.mxu0 %v5121
  %5256 = vmatpush1.msra.mxu0 %v5120
  %5257 = vmatprep.subr.mxu0 %v5125
  %5258 = vmatpush1.msra.mxu0 %v5124
  %5259 = vmatprep.subr.mxu0 %v5129
  %5260 = vmatpush1.msra.mxu0 %v5128
  %5261 = vmatprep.subr.mxu0 %v5133
  %5262 = vmatpush1.msra.mxu0 %v5132
  %5263 = vmatprep.subr.mxu0 0.0
  %5264 = vmatpush1.msra.mxu0 0.0
  %5265 = vmatprep.subr.mxu0 0.0
  %5266 = vmatpush1.msra.mxu0 0.0
  %5267 = vmatprep.subr.mxu0 0.0
  %5268 = vmatpush1.msra.mxu0 0.0
  %5269 = vmatprep.subr.mxu0 0.0
  %5270 = vmatpush1.msra.mxu0 0.0
  %5271 = vmatprep.subr.mxu0 0.0
  %5272 = vmatpush1.msra.mxu0 0.0
  %5273 = vmatprep.subr.mxu0 0.0
  %5274 = vmatpush1.msra.mxu0 0.0
  %5275 = vmatprep.subr.mxu0 0.0
  %5276 = vmatpush1.msra.mxu0 0.0
  %5277 = vmatprep.mubr.f32.mxu0 %v5140
  %5278 = vmatmul.mubr.f32.gmra.mrb[0].mxu0 %v4642
  %v5279 = vpop.f32.mrb[0].mxu0
  %v5280 = vadd.f32 %v5137, %v5279
  %v5281 = vpop.f32.mrb[0].mxu0
  %v5282 = vadd.f32 %v5137, %v5281
  %5283 = vdwg.mxu0
  %v5284 = vmax.f32 %v5209, 0.0
  %v5285 = vmax.f32 %v5211, 0.0
  %v5286 = vmax.f32 %v5280, 0.0
  %v5287 = vmax.f32 %v5282, 0.0
  %v5288 = vmul.f32 %v5284, %v704
  %v5289 = vmul.f32 %v5285, %v708
  %v5290 = vmul.f32 %v5286, %v712
  %v5291 = vmul.f32 %v5287, %v716
  %v5292 = vadd.f32 %v5288, %v3986
  %v5293 = vadd.f32 %v5289, %v3987
  %v5294 = vadd.f32 %v5290, %v3988
  %v5295 = vadd.f32 %v5291, %v3989
  %5296 = vst [vmem:[%s6] sm:$0xff] %v5292
  %5297 = vst [vmem:[%s6 + $0x8] sm:$0xff] %v5293
  %5298 = vst [vmem:[%s6 + $0x10] sm:$0xff] %v5294
  %5299 = vst [vmem:[%s6 + $0x18] sm:$0xff] %v5295
  // Predicated region
  $region26: #{convnet_forward.1} parent=0 // pred_check
    _
  $region27: #{convnet_forward.1} parent=0 // pred_check_branch
    %5301 = sbr.rel (0) target = $region29
  $region28: #{convnet_forward.1} parent=0 // pred_region
    _
  $region29: #{convnet_forward.1} parent=0 // pred_fallthru
    _
  // Predicated region
  $region30: #{convnet_forward.1} parent=0 // pred_check
    _
  $region31: #{convnet_forward.1} parent=0 // pred_check_branch
    %5303 = sbr.rel (0) target = $region33
  $region32: #{convnet_forward.1} parent=0 // pred_region
    _
  $region33: #{convnet_forward.1} parent=0 // pred_fallthru
    _

</llo_original>
